<compile_context>
chip_gen: v6e
topology: v6e:2x2x1
jax: 0.10.0
libtpu: 0.0.40
codegen_flags: <defaults>
</compile_context>

<pallas_src>
import math
from functools import partial

import numpy as np
import jax
import jax.numpy as jnp
from jax import lax
from jax.experimental import pallas as pl
from jax.experimental.pallas import tpu as pltpu

_INV_SQRT2 = 0.7071067811865476


def _erf(x):
    # Abramowitz & Stegun 7.1.26 (max abs error 1.5e-7); uses only abs/exp/mul/div/where,
    # all of which lower cleanly in Mosaic and behave identically in interpret mode.
    p = 0.3275911
    a1, a2, a3, a4, a5 = 0.254829592, -0.284496736, 1.421413741, -1.453152027, 1.061405429
    ax = jnp.abs(x)
    t = 1.0 / (1.0 + p * ax)
    poly = ((((a5 * t + a4) * t + a3) * t + a2) * t + a1) * t
    y = 1.0 - poly * jnp.exp(-ax * ax)
    return jnp.where(x < 0.0, -y, y)


def _gelu(x):
    # exact (erf) GELU, matching torch.nn.GELU() default
    return 0.5 * x * (1.0 + _erf(x * _INV_SQRT2))


# ----------------------------------------------------------------------------
# Fused kernel: depthwise 3x3 conv (+folded BN) + GELU + residual
#               -> LayerNorm -> MHA -> residual -> LayerNorm -> FFN -> residual
# One grid step == one batch element.
# ----------------------------------------------------------------------------
def mixing_block_kernel(x_ref, smat_ref, tap_ref, shift_ref,
                        ln1g_ref, ln1b_ref,
                        wqkv_ref, bqkv_ref, wo_ref, bo_ref,
                        ln2g_ref, ln2b_ref,
                        w1_ref, b1_ref, w2_ref, b2_ref,
                        o_ref, *, num_heads):
    _, T, C = x_ref.shape
    Dh = C // num_heads

    x = x_ref[0]                                      # (T, C) f32, channels on lanes

    # ---- local branch: depthwise 3x3 conv + (folded) BN + GELU + residual --
    # conv[t, c] = sum_k (S_k @ x)[t, c] * tap_k[c]; boundary zeros are inside S_k.
    conv = jnp.zeros((T, C), jnp.float32)
    for k in range(9):                                # static unroll, 9 tiny MXU matmuls
        conv = conv + jnp.dot(smat_ref[k], x,
                              preferred_element_type=jnp.float32) * tap_ref[k]
    x1 = x + _gelu(conv + shift_ref[...])             # shift = folded conv bias + BN shift

    # ---- helpers -----------------------------------------------------------
    def layer_norm(v, g, b):
        mu = jnp.mean(v, axis=-1, keepdims=True)
        d = v - mu
        var = jnp.mean(d * d, axis=-1, keepdims=True)
        return d * lax.rsqrt(var + 1e-5) * g + b

    # ---- attention_norm + MHA (residual adds onto the *normalized* act) ----
    xn = layer_norm(x1, ln1g_ref[...], ln1b_ref[...])

    scale = 1.0 / math.sqrt(Dh)
    attn = jnp.zeros((T, C), jnp.float32)
    for h in range(num_heads):                        # static loop over heads
        qh = jnp.dot(xn, wqkv_ref[h], preferred_element_type=jnp.float32) + bqkv_ref[h]
        kh = jnp.dot(xn, wqkv_ref[num_heads + h],
                     preferred_element_type=jnp.float32) + bqkv_ref[num_heads + h]
        vh = jnp.dot(xn, wqkv_ref[2 * num_heads + h],
                     preferred_element_type=jnp.float32) + bqkv_ref[2 * num_heads + h]
        # scores = q @ k^T  (contract last dims; same pattern as flash-attention kernels)
        s = lax.dot_general(qh, kh, (((1,), (1,)), ((), ())),
                            preferred_element_type=jnp.float32) * scale      # (T, T)
        s = s - jnp.max(s, axis=-1, keepdims=True)
        p = jnp.exp(s)
        p = p / jnp.sum(p, axis=-1, keepdims=True)
        oh = jnp.dot(p, vh, preferred_element_type=jnp.float32)              # (T, Dh)
        # accumulate this head straight into the output projection (no concat)
        attn = attn + jnp.dot(oh, wo_ref[h], preferred_element_type=jnp.float32)
    attn = attn + bo_ref[...]

    x2 = xn + attn                                    # residual (post attention_norm)

    # ---- ffn_norm + FFN ----------------------------------------------------
    yn = layer_norm(x2, ln2g_ref[...], ln2b_ref[...])
    h1 = _gelu(jnp.dot(yn, w1_ref[...], preferred_element_type=jnp.float32) + b1_ref[...])
    # TODO(synk): nn.Dropout(0.1) is identity here (inference semantics).
    ffn = jnp.dot(h1, w2_ref[...], preferred_element_type=jnp.float32) + b2_ref[...]
    o_ref[0] = (yn + ffn).astype(o_ref.dtype)         # residual (post ffn_norm)


# ----------------------------------------------------------------------------
# Host-side helpers
# ----------------------------------------------------------------------------
def _make_shift_mats(H, W):
    """9 (T, T) 0/1 matrices: S_k @ x shifts the flattened image by tap k with zero padding."""
    T = H * W
    t = np.arange(T)
    hh, ww = t // W, t % W
    mats = np.zeros((9, T, T), np.float32)
    k = 0
    for dy in (-1, 0, 1):                 # same (dy-major, dx-minor) order as conv_w.reshape(9, C)
        for dx in (-1, 0, 1):
            h2, w2 = hh + dy, ww + dx
            valid = (h2 >= 0) & (h2 < H) & (w2 >= 0) & (w2 < W)
            src = h2 * W + w2
            mats[k, t[valid], src[valid]] = 1.0
            k += 1
    return mats


def _full_spec(shape):
    zeros = (0,) * len(shape)
    return pl.BlockSpec(shape, lambda b, _z=zeros: _z)


def mixing_block_forward(x, H, W, p, num_heads):
    B, T, C = x.shape
    assert T == H * W
    assert C % num_heads == 0
    Dh = C // num_heads
    E = p["w1"].shape[1]
    f32 = jnp.float32

    # fold BatchNorm (eval mode, running stats) into the conv taps + per-channel shift
    bn_scale = p["bn_gamma"] / jnp.sqrt(p["bn_var"] + 1e-5)
    taps = (p["conv_w"] * bn_scale).reshape(9, 1, C)                          # (9, 1, C)
    shift = ((p["conv_b"] - p["bn_mean"]) * bn_scale + p["bn_beta"]).reshape(1, C)
    smats = jnp.asarray(_make_shift_mats(H, W))                               # (9, T, T)

    # pre-split q/k/v and output-projection weights per head (no in-kernel lane slicing)
    def per_head_in(w):                                                       # (C,C) -> (nh,C,Dh)
        return jnp.transpose(w.reshape(C, num_heads, Dh), (1, 0, 2))
    wqkv_h = jnp.concatenate([per_head_in(p["wq"]), per_head_in(p["wk"]),
                              per_head_in(p["wv"])], axis=0)                  # (3*nh, C, Dh)
    bqkv_h = jnp.concatenate([p["bq"].reshape(num_heads, 1, Dh),
                              p["bk"].reshape(num_heads, 1, Dh),
                              p["bv"].reshape(num_heads, 1, Dh)], axis=0)     # (3*nh, 1, Dh)
    wo_h = p["wo"].reshape(num_heads, Dh, C)                                  # (nh, Dh, C)

    weights = [smats, taps, shift,
               p["ln1_g"].reshape(1, C), p["ln1_b"].reshape(1, C),
               wqkv_h, bqkv_h, wo_h, p["bo"].reshape(1, C),
               p["ln2_g"].reshape(1, C), p["ln2_b"].reshape(1, C),
               p["w1"], p["b1"].reshape(1, E), p["w2"], p["b2"].reshape(1, C)]
    weights = [jnp.asarray(w, f32) for w in weights]

    return pl.pallas_call(
        partial(mixing_block_kernel, num_heads=num_heads),
        out_shape=jax.ShapeDtypeStruct((B, T, C), x.dtype),
        grid=(B,),
        in_specs=[pl.BlockSpec((1, T, C), lambda b: (b, 0, 0))]
                 + [_full_spec(tuple(w.shape)) for w in weights],
        out_specs=pl.BlockSpec((1, T, C), lambda b: (b, 0, 0)),
        compiler_params=pltpu.CompilerParams(dimension_semantics=("parallel",)),
    )(jnp.asarray(x, f32), *weights)


# ----------------------------------------------------------------------------
# Pure-JAX reference (for correctness check)
# ----------------------------------------------------------------------------
def reference_forward(x, H, W, p, num_heads):
    B, T, C = x.shape
    Dh = C // num_heads

    def layer_norm(v, g, b):
        mu = jnp.mean(v, axis=-1, keepdims=True)
        var = jnp.mean((v - mu) ** 2, axis=-1, keepdims=True)
        return (v - mu) / jnp.sqrt(var + 1e-5) * g + b

    x2d = x.reshape(B, H, W, C)
    rhs = p["conv_w"][:, :, None, :]  # (3,3,1,C) HWIO, depthwise
    conv = lax.conv_general_dilated(
        x2d, rhs, (1, 1), "SAME",
        dimension_numbers=("NHWC", "HWIO", "NHWC"), feature_group_count=C)
    conv = conv + p["conv_b"]
    bn = (conv - p["bn_mean"]) / jnp.sqrt(p["bn_var"] + 1e-5) * p["bn_gamma"] + p["bn_beta"]
    xl = jax.nn.gelu(bn, approximate=False).reshape(B, T, C)

    x1 = x + xl
    xn = layer_norm(x1, p["ln1_g"], p["ln1_b"])

    q = (xn @ p["wq"] + p["bq"]).reshape(B, T, num_heads, Dh).transpose(0, 2, 1, 3)
    k = (xn @ p["wk"] + p["bk"]).reshape(B, T, num_heads, Dh).transpose(0, 2, 1, 3)
    v = (xn @ p["wv"] + p["bv"]).reshape(B, T, num_heads, Dh).transpose(0, 2, 1, 3)
    s = jnp.einsum("bhtd,bhsd->bhts", q, k) / math.sqrt(Dh)
    a = jax.nn.softmax(s, axis=-1)
    o = jnp.einsum("bhts,bhsd->bhtd", a, v).transpose(0, 2, 1, 3).reshape(B, T, C)
    attn = o @ p["wo"] + p["bo"]

    x2 = xn + attn
    yn = layer_norm(x2, p["ln2_g"], p["ln2_b"])
    h1 = jax.nn.gelu(yn @ p["w1"] + p["b1"], approximate=False)
    return yn + (h1 @ p["w2"] + p["b2"])


# ----------------------------------------------------------------------------
if __name__ == "__main__":
    B, C, NUM_HEADS, H, W = 2, 32, 4, 8, 8
    EXPANSION = 4
    T = H * W
    E = C * EXPANSION

    key = jax.random.PRNGKey(0)
    ks = jax.random.split(key, 20)

    # Deterministic synthetic parameters (shapes mirror the PyTorch module's __init__).
    conv_w_torch = 0.2 * jax.random.normal(ks[0], (C, 1, 3, 3), jnp.float32)   # Conv2d weight
    in_proj_w = 0.2 * jax.random.normal(ks[1], (3 * C, C), jnp.float32)        # MHA in_proj_weight
    in_proj_b = 0.1 * jax.random.normal(ks[2], (3 * C,), jnp.float32)
    out_proj_w = 0.2 * jax.random.normal(ks[3], (C, C), jnp.float32)
    ffn_w1 = 0.2 * jax.random.normal(ks[4], (E, C), jnp.float32)               # Linear(C, 4C).weight
    ffn_w2 = 0.2 * jax.random.normal(ks[5], (C, E), jnp.float32)               # Linear(4C, C).weight

    params = dict(
        conv_w=jnp.transpose(conv_w_torch[:, 0], (1, 2, 0)),                   # (3, 3, C)
        conv_b=0.1 * jax.random.normal(ks[6], (C,), jnp.float32),
        bn_gamma=1.0 + 0.1 * jax.random.normal(ks[7], (C,), jnp.float32),
        bn_beta=0.1 * jax.random.normal(ks[8], (C,), jnp.float32),
        bn_mean=0.05 * jax.random.normal(ks[9], (C,), jnp.float32),
        bn_var=1.0 + 0.1 * jnp.abs(jax.random.normal(ks[10], (C,), jnp.float32)),
        ln1_g=1.0 + 0.1 * jax.random.normal(ks[11], (C,), jnp.float32),
        ln1_b=0.1 * jax.random.normal(ks[12], (C,), jnp.float32),
        wq=in_proj_w[:C].T, bq=in_proj_b[:C],
        wk=in_proj_w[C:2 * C].T, bk=in_proj_b[C:2 * C],
        wv=in_proj_w[2 * C:].T, bv=in_proj_b[2 * C:],
        wo=out_proj_w.T, bo=0.1 * jax.random.normal(ks[13], (C,), jnp.float32),
        ln2_g=1.0 + 0.1 * jax.random.normal(ks[14], (C,), jnp.float32),
        ln2_b=0.1 * jax.random.normal(ks[15], (C,), jnp.float32),
        w1=ffn_w1.T, b1=0.1 * jax.random.normal(ks[16], (E,), jnp.float32),
        w2=ffn_w2.T, b2=0.1 * jax.random.normal(ks[17], (C,), jnp.float32),
    )

    x = jax.random.normal(ks[18], (B, T, C), jnp.float32)

    ref = reference_forward(x, H, W, params, NUM_HEADS)
    out = jax.block_until_ready(mixing_block_forward(x, H, W, params, NUM_HEADS))

    assert out.shape == (B, T, C)
    assert bool(jnp.all(jnp.isfinite(out)))
    max_err = jnp.max(jnp.abs(out - ref))
    assert bool(jnp.allclose(out, ref, atol=2e-2, rtol=2e-2)), \
        f"kernel mismatch vs reference (max abs err {max_err})"
    print("KERNEL_OK")
</pallas_src>

<mosaic_0001>
module attributes {stable_mosaic.version = 11 : i64} {
  func.func @mixing_block_kernel(%arg0: i32, %arg1: memref<1x64x32xf32, #tpu.memory_space<vmem>>, %arg2: memref<9x64x64xf32, #tpu.memory_space<vmem>>, %arg3: memref<9x1x32xf32, #tpu.memory_space<vmem>>, %arg4: memref<1x32xf32, #tpu.memory_space<vmem>>, %arg5: memref<1x32xf32, #tpu.memory_space<vmem>>, %arg6: memref<1x32xf32, #tpu.memory_space<vmem>>, %arg7: memref<12x32x8xf32, #tpu.memory_space<vmem>>, %arg8: memref<12x1x8xf32, #tpu.memory_space<vmem>>, %arg9: memref<4x8x32xf32, #tpu.memory_space<vmem>>, %arg10: memref<1x32xf32, #tpu.memory_space<vmem>>, %arg11: memref<1x32xf32, #tpu.memory_space<vmem>>, %arg12: memref<1x32xf32, #tpu.memory_space<vmem>>, %arg13: memref<32x128xf32, #tpu.memory_space<vmem>>, %arg14: memref<1x128xf32, #tpu.memory_space<vmem>>, %arg15: memref<128x32xf32, #tpu.memory_space<vmem>>, %arg16: memref<1x32xf32, #tpu.memory_space<vmem>>, %arg17: memref<1x64x32xf32, #tpu.memory_space<vmem>>) attributes {dimension_semantics = [#tpu.dimension_semantics<parallel>], iteration_bounds = array<i64: 2>, scalar_prefetch = 0 : i64, scratch_operands = 0 : i64, tpu.core_type = #tpu.core_type<tc>, window_params = [{transform_indices = @transform_0, window_bounds = array<i64: 1, 64, 32>}, {pipeline_mode = #tpu.pipeline_mode<synchronous>, transform_indices = @transform_1, window_bounds = array<i64: 9, 64, 64>}, {pipeline_mode = #tpu.pipeline_mode<synchronous>, transform_indices = @transform_2, window_bounds = array<i64: 9, 1, 32>}, {pipeline_mode = #tpu.pipeline_mode<synchronous>, transform_indices = @transform_3, window_bounds = array<i64: 1, 32>}, {pipeline_mode = #tpu.pipeline_mode<synchronous>, transform_indices = @transform_4, window_bounds = array<i64: 1, 32>}, {pipeline_mode = #tpu.pipeline_mode<synchronous>, transform_indices = @transform_5, window_bounds = array<i64: 1, 32>}, {pipeline_mode = #tpu.pipeline_mode<synchronous>, transform_indices = @transform_6, window_bounds = array<i64: 12, 32, 8>}, {pipeline_mode = #tpu.pipeline_mode<synchronous>, transform_indices = @transform_7, window_bounds = array<i64: 12, 1, 8>}, {pipeline_mode = #tpu.pipeline_mode<synchronous>, transform_indices = @transform_8, window_bounds = array<i64: 4, 8, 32>}, {pipeline_mode = #tpu.pipeline_mode<synchronous>, transform_indices = @transform_9, window_bounds = array<i64: 1, 32>}, {pipeline_mode = #tpu.pipeline_mode<synchronous>, transform_indices = @transform_10, window_bounds = array<i64: 1, 32>}, {pipeline_mode = #tpu.pipeline_mode<synchronous>, transform_indices = @transform_11, window_bounds = array<i64: 1, 32>}, {pipeline_mode = #tpu.pipeline_mode<synchronous>, transform_indices = @transform_12, window_bounds = array<i64: 32, 128>}, {pipeline_mode = #tpu.pipeline_mode<synchronous>, transform_indices = @transform_13, window_bounds = array<i64: 1, 128>}, {pipeline_mode = #tpu.pipeline_mode<synchronous>, transform_indices = @transform_14, window_bounds = array<i64: 128, 32>}, {pipeline_mode = #tpu.pipeline_mode<synchronous>, transform_indices = @transform_15, window_bounds = array<i64: 1, 32>}, {transform_indices = @transform_16, window_bounds = array<i64: 1, 64, 32>}]} {
    %c0 = arith.constant 0 : index
    %c0_0 = arith.constant 0 : index
    %c0_1 = arith.constant 0 : index
    %0 = vector.load %arg1[%c0, %c0_0, %c0_1] : memref<1x64x32xf32, #tpu.memory_space<vmem>>, vector<1x64x32xf32>
    %1 = vector.shape_cast %0 : vector<1x64x32xf32> to vector<64x32xf32>
    %cst = arith.constant 0.000000e+00 : f32
    %2 = vector.broadcast %cst : f32 to vector<64x32xf32>
    %c0_2 = arith.constant 0 : index
    %c0_3 = arith.constant 0 : index
    %c0_4 = arith.constant 0 : index
    %3 = vector.load %arg2[%c0_2, %c0_3, %c0_4] : memref<9x64x64xf32, #tpu.memory_space<vmem>>, vector<1x64x64xf32>
    %4 = vector.shape_cast %3 : vector<1x64x64xf32> to vector<64x64xf32>
    %cst_5 = arith.constant dense<0.000000e+00> : vector<64x32xf32>
    %5 = tpu.matmul %4, %1, %cst_5 {dimension_numbers = #tpu.dot_dimension_numbers<[1], [0], [0], [1], [0, 0, 1, 1], [], []>} : vector<64x64xf32>, vector<64x32xf32>, vector<64x32xf32> -> vector<64x32xf32>
    %c0_6 = arith.constant 0 : index
    %c0_7 = arith.constant 0 : index
    %c0_8 = arith.constant 0 : index
    %6 = vector.load %arg3[%c0_6, %c0_7, %c0_8] : memref<9x1x32xf32, #tpu.memory_space<vmem>>, vector<1x1x32xf32>
    %7 = vector.shape_cast %6 : vector<1x1x32xf32> to vector<1x32xf32>
    %8 = vector.broadcast %7 : vector<1x32xf32> to vector<64x32xf32>
    %9 = arith.mulf %5, %8 : vector<64x32xf32>
    %10 = arith.addf %2, %9 : vector<64x32xf32>
    %c1 = arith.constant 1 : index
    %c0_9 = arith.constant 0 : index
    %c0_10 = arith.constant 0 : index
    %11 = vector.load %arg2[%c1, %c0_9, %c0_10] : memref<9x64x64xf32, #tpu.memory_space<vmem>>, vector<1x64x64xf32>
    %12 = vector.shape_cast %11 : vector<1x64x64xf32> to vector<64x64xf32>
    %cst_11 = arith.constant dense<0.000000e+00> : vector<64x32xf32>
    %13 = tpu.matmul %12, %1, %cst_11 {dimension_numbers = #tpu.dot_dimension_numbers<[1], [0], [0], [1], [0, 0, 1, 1], [], []>} : vector<64x64xf32>, vector<64x32xf32>, vector<64x32xf32> -> vector<64x32xf32>
    %c1_12 = arith.constant 1 : index
    %c0_13 = arith.constant 0 : index
    %c0_14 = arith.constant 0 : index
    %14 = vector.load %arg3[%c1_12, %c0_13, %c0_14] : memref<9x1x32xf32, #tpu.memory_space<vmem>>, vector<1x1x32xf32>
    %15 = vector.shape_cast %14 : vector<1x1x32xf32> to vector<1x32xf32>
    %16 = vector.broadcast %15 : vector<1x32xf32> to vector<64x32xf32>
    %17 = arith.mulf %13, %16 : vector<64x32xf32>
    %18 = arith.addf %10, %17 : vector<64x32xf32>
    %c2 = arith.constant 2 : index
    %c0_15 = arith.constant 0 : index
    %c0_16 = arith.constant 0 : index
    %19 = vector.load %arg2[%c2, %c0_15, %c0_16] : memref<9x64x64xf32, #tpu.memory_space<vmem>>, vector<1x64x64xf32>
    %20 = vector.shape_cast %19 : vector<1x64x64xf32> to vector<64x64xf32>
    %cst_17 = arith.constant dense<0.000000e+00> : vector<64x32xf32>
    %21 = tpu.matmul %20, %1, %cst_17 {dimension_numbers = #tpu.dot_dimension_numbers<[1], [0], [0], [1], [0, 0, 1, 1], [], []>} : vector<64x64xf32>, vector<64x32xf32>, vector<64x32xf32> -> vector<64x32xf32>
    %c2_18 = arith.constant 2 : index
    %c0_19 = arith.constant 0 : index
    %c0_20 = arith.constant 0 : index
    %22 = vector.load %arg3[%c2_18, %c0_19, %c0_20] : memref<9x1x32xf32, #tpu.memory_space<vmem>>, vector<1x1x32xf32>
    %23 = vector.shape_cast %22 : vector<1x1x32xf32> to vector<1x32xf32>
    %24 = vector.broadcast %23 : vector<1x32xf32> to vector<64x32xf32>
    %25 = arith.mulf %21, %24 : vector<64x32xf32>
    %26 = arith.addf %18, %25 : vector<64x32xf32>
    %c3 = arith.constant 3 : index
    %c0_21 = arith.constant 0 : index
    %c0_22 = arith.constant 0 : index
    %27 = vector.load %arg2[%c3, %c0_21, %c0_22] : memref<9x64x64xf32, #tpu.memory_space<vmem>>, vector<1x64x64xf32>
    %28 = vector.shape_cast %27 : vector<1x64x64xf32> to vector<64x64xf32>
    %cst_23 = arith.constant dense<0.000000e+00> : vector<64x32xf32>
    %29 = tpu.matmul %28, %1, %cst_23 {dimension_numbers = #tpu.dot_dimension_numbers<[1], [0], [0], [1], [0, 0, 1, 1], [], []>} : vector<64x64xf32>, vector<64x32xf32>, vector<64x32xf32> -> vector<64x32xf32>
    %c3_24 = arith.constant 3 : index
    %c0_25 = arith.constant 0 : index
    %c0_26 = arith.constant 0 : index
    %30 = vector.load %arg3[%c3_24, %c0_25, %c0_26] : memref<9x1x32xf32, #tpu.memory_space<vmem>>, vector<1x1x32xf32>
    %31 = vector.shape_cast %30 : vector<1x1x32xf32> to vector<1x32xf32>
    %32 = vector.broadcast %31 : vector<1x32xf32> to vector<64x32xf32>
    %33 = arith.mulf %29, %32 : vector<64x32xf32>
    %34 = arith.addf %26, %33 : vector<64x32xf32>
    %c4 = arith.constant 4 : index
    %c0_27 = arith.constant 0 : index
    %c0_28 = arith.constant 0 : index
    %35 = vector.load %arg2[%c4, %c0_27, %c0_28] : memref<9x64x64xf32, #tpu.memory_space<vmem>>, vector<1x64x64xf32>
    %36 = vector.shape_cast %35 : vector<1x64x64xf32> to vector<64x64xf32>
    %cst_29 = arith.constant dense<0.000000e+00> : vector<64x32xf32>
    %37 = tpu.matmul %36, %1, %cst_29 {dimension_numbers = #tpu.dot_dimension_numbers<[1], [0], [0], [1], [0, 0, 1, 1], [], []>} : vector<64x64xf32>, vector<64x32xf32>, vector<64x32xf32> -> vector<64x32xf32>
    %c4_30 = arith.constant 4 : index
    %c0_31 = arith.constant 0 : index
    %c0_32 = arith.constant 0 : index
    %38 = vector.load %arg3[%c4_30, %c0_31, %c0_32] : memref<9x1x32xf32, #tpu.memory_space<vmem>>, vector<1x1x32xf32>
    %39 = vector.shape_cast %38 : vector<1x1x32xf32> to vector<1x32xf32>
    %40 = vector.broadcast %39 : vector<1x32xf32> to vector<64x32xf32>
    %41 = arith.mulf %37, %40 : vector<64x32xf32>
    %42 = arith.addf %34, %41 : vector<64x32xf32>
    %c5 = arith.constant 5 : index
    %c0_33 = arith.constant 0 : index
    %c0_34 = arith.constant 0 : index
    %43 = vector.load %arg2[%c5, %c0_33, %c0_34] : memref<9x64x64xf32, #tpu.memory_space<vmem>>, vector<1x64x64xf32>
    %44 = vector.shape_cast %43 : vector<1x64x64xf32> to vector<64x64xf32>
    %cst_35 = arith.constant dense<0.000000e+00> : vector<64x32xf32>
    %45 = tpu.matmul %44, %1, %cst_35 {dimension_numbers = #tpu.dot_dimension_numbers<[1], [0], [0], [1], [0, 0, 1, 1], [], []>} : vector<64x64xf32>, vector<64x32xf32>, vector<64x32xf32> -> vector<64x32xf32>
    %c5_36 = arith.constant 5 : index
    %c0_37 = arith.constant 0 : index
    %c0_38 = arith.constant 0 : index
    %46 = vector.load %arg3[%c5_36, %c0_37, %c0_38] : memref<9x1x32xf32, #tpu.memory_space<vmem>>, vector<1x1x32xf32>
    %47 = vector.shape_cast %46 : vector<1x1x32xf32> to vector<1x32xf32>
    %48 = vector.broadcast %47 : vector<1x32xf32> to vector<64x32xf32>
    %49 = arith.mulf %45, %48 : vector<64x32xf32>
    %50 = arith.addf %42, %49 : vector<64x32xf32>
    %c6 = arith.constant 6 : index
    %c0_39 = arith.constant 0 : index
    %c0_40 = arith.constant 0 : index
    %51 = vector.load %arg2[%c6, %c0_39, %c0_40] : memref<9x64x64xf32, #tpu.memory_space<vmem>>, vector<1x64x64xf32>
    %52 = vector.shape_cast %51 : vector<1x64x64xf32> to vector<64x64xf32>
    %cst_41 = arith.constant dense<0.000000e+00> : vector<64x32xf32>
    %53 = tpu.matmul %52, %1, %cst_41 {dimension_numbers = #tpu.dot_dimension_numbers<[1], [0], [0], [1], [0, 0, 1, 1], [], []>} : vector<64x64xf32>, vector<64x32xf32>, vector<64x32xf32> -> vector<64x32xf32>
    %c6_42 = arith.constant 6 : index
    %c0_43 = arith.constant 0 : index
    %c0_44 = arith.constant 0 : index
    %54 = vector.load %arg3[%c6_42, %c0_43, %c0_44] : memref<9x1x32xf32, #tpu.memory_space<vmem>>, vector<1x1x32xf32>
    %55 = vector.shape_cast %54 : vector<1x1x32xf32> to vector<1x32xf32>
    %56 = vector.broadcast %55 : vector<1x32xf32> to vector<64x32xf32>
    %57 = arith.mulf %53, %56 : vector<64x32xf32>
    %58 = arith.addf %50, %57 : vector<64x32xf32>
    %c7 = arith.constant 7 : index
    %c0_45 = arith.constant 0 : index
    %c0_46 = arith.constant 0 : index
    %59 = vector.load %arg2[%c7, %c0_45, %c0_46] : memref<9x64x64xf32, #tpu.memory_space<vmem>>, vector<1x64x64xf32>
    %60 = vector.shape_cast %59 : vector<1x64x64xf32> to vector<64x64xf32>
    %cst_47 = arith.constant dense<0.000000e+00> : vector<64x32xf32>
    %61 = tpu.matmul %60, %1, %cst_47 {dimension_numbers = #tpu.dot_dimension_numbers<[1], [0], [0], [1], [0, 0, 1, 1], [], []>} : vector<64x64xf32>, vector<64x32xf32>, vector<64x32xf32> -> vector<64x32xf32>
    %c7_48 = arith.constant 7 : index
    %c0_49 = arith.constant 0 : index
    %c0_50 = arith.constant 0 : index
    %62 = vector.load %arg3[%c7_48, %c0_49, %c0_50] : memref<9x1x32xf32, #tpu.memory_space<vmem>>, vector<1x1x32xf32>
    %63 = vector.shape_cast %62 : vector<1x1x32xf32> to vector<1x32xf32>
    %64 = vector.broadcast %63 : vector<1x32xf32> to vector<64x32xf32>
    %65 = arith.mulf %61, %64 : vector<64x32xf32>
    %66 = arith.addf %58, %65 : vector<64x32xf32>
    %c8 = arith.constant 8 : index
    %c0_51 = arith.constant 0 : index
    %c0_52 = arith.constant 0 : index
    %67 = vector.load %arg2[%c8, %c0_51, %c0_52] : memref<9x64x64xf32, #tpu.memory_space<vmem>>, vector<1x64x64xf32>
    %68 = vector.shape_cast %67 : vector<1x64x64xf32> to vector<64x64xf32>
    %cst_53 = arith.constant dense<0.000000e+00> : vector<64x32xf32>
    %69 = tpu.matmul %68, %1, %cst_53 {dimension_numbers = #tpu.dot_dimension_numbers<[1], [0], [0], [1], [0, 0, 1, 1], [], []>} : vector<64x64xf32>, vector<64x32xf32>, vector<64x32xf32> -> vector<64x32xf32>
    %c8_54 = arith.constant 8 : index
    %c0_55 = arith.constant 0 : index
    %c0_56 = arith.constant 0 : index
    %70 = vector.load %arg3[%c8_54, %c0_55, %c0_56] : memref<9x1x32xf32, #tpu.memory_space<vmem>>, vector<1x1x32xf32>
    %71 = vector.shape_cast %70 : vector<1x1x32xf32> to vector<1x32xf32>
    %72 = vector.broadcast %71 : vector<1x32xf32> to vector<64x32xf32>
    %73 = arith.mulf %69, %72 : vector<64x32xf32>
    %74 = arith.addf %66, %73 : vector<64x32xf32>
    %c0_57 = arith.constant 0 : index
    %c0_58 = arith.constant 0 : index
    %75 = vector.load %arg4[%c0_57, %c0_58] : memref<1x32xf32, #tpu.memory_space<vmem>>, vector<1x32xf32>
    %76 = vector.broadcast %75 : vector<1x32xf32> to vector<64x32xf32>
    %77 = arith.addf %74, %76 : vector<64x32xf32>
    %cst_59 = arith.constant 5.000000e-01 : f32
    %78 = vector.broadcast %cst_59 : f32 to vector<64x32xf32>
    %79 = arith.mulf %78, %77 : vector<64x32xf32>
    %cst_60 = arith.constant 0.707106769 : f32
    %80 = vector.broadcast %cst_60 : f32 to vector<64x32xf32>
    %81 = arith.mulf %77, %80 : vector<64x32xf32>
    %82 = math.absf %81 : vector<64x32xf32>
    %cst_61 = arith.constant 0.327591091 : f32
    %83 = vector.broadcast %cst_61 : f32 to vector<64x32xf32>
    %84 = arith.mulf %83, %82 : vector<64x32xf32>
    %cst_62 = arith.constant 1.000000e+00 : f32
    %85 = vector.broadcast %cst_62 : f32 to vector<64x32xf32>
    %86 = arith.addf %85, %84 : vector<64x32xf32>
    %cst_63 = arith.constant 1.000000e+00 : f32
    %87 = vector.broadcast %cst_63 : f32 to vector<64x32xf32>
    %88 = arith.divf %87, %86 : vector<64x32xf32>
    %cst_64 = arith.constant 1.06140542 : f32
    %89 = vector.broadcast %cst_64 : f32 to vector<64x32xf32>
    %90 = arith.mulf %89, %88 : vector<64x32xf32>
    %cst_65 = arith.constant -1.45315206 : f32
    %91 = vector.broadcast %cst_65 : f32 to vector<64x32xf32>
    %92 = arith.addf %90, %91 : vector<64x32xf32>
    %93 = arith.mulf %92, %88 : vector<64x32xf32>
    %cst_66 = arith.constant 1.42141378 : f32
    %94 = vector.broadcast %cst_66 : f32 to vector<64x32xf32>
    %95 = arith.addf %93, %94 : vector<64x32xf32>
    %96 = arith.mulf %95, %88 : vector<64x32xf32>
    %cst_67 = arith.constant -0.284496725 : f32
    %97 = vector.broadcast %cst_67 : f32 to vector<64x32xf32>
    %98 = arith.addf %96, %97 : vector<64x32xf32>
    %99 = arith.mulf %98, %88 : vector<64x32xf32>
    %cst_68 = arith.constant 0.254829586 : f32
    %100 = vector.broadcast %cst_68 : f32 to vector<64x32xf32>
    %101 = arith.addf %99, %100 : vector<64x32xf32>
    %102 = arith.mulf %101, %88 : vector<64x32xf32>
    %cst_69 = arith.constant 0.000000e+00 : f32
    %103 = vector.broadcast %cst_69 : f32 to vector<64x32xf32>
    %104 = arith.subf %103, %82 : vector<64x32xf32>
    %105 = arith.mulf %104, %82 : vector<64x32xf32>
    %106 = math.exp %105 : vector<64x32xf32>
    %107 = arith.mulf %102, %106 : vector<64x32xf32>
    %cst_70 = arith.constant 1.000000e+00 : f32
    %108 = vector.broadcast %cst_70 : f32 to vector<64x32xf32>
    %109 = arith.subf %108, %107 : vector<64x32xf32>
    %cst_71 = arith.constant 0.000000e+00 : f32
    %110 = vector.broadcast %cst_71 : f32 to vector<64x32xf32>
    %111 = arith.cmpf olt, %81, %110 : vector<64x32xf32>
    %cst_72 = arith.constant 0.000000e+00 : f32
    %112 = vector.broadcast %cst_72 : f32 to vector<64x32xf32>
    %113 = arith.subf %112, %109 : vector<64x32xf32>
    %114 = arith.select %111, %113, %109 : vector<64x32xi1>, vector<64x32xf32>
    %cst_73 = arith.constant 1.000000e+00 : f32
    %115 = vector.broadcast %cst_73 : f32 to vector<64x32xf32>
    %116 = arith.addf %115, %114 : vector<64x32xf32>
    %117 = arith.mulf %79, %116 : vector<64x32xf32>
    %118 = arith.addf %1, %117 : vector<64x32xf32>
    %c0_74 = arith.constant 0 : index
    %c0_75 = arith.constant 0 : index
    %119 = vector.load %arg5[%c0_74, %c0_75] : memref<1x32xf32, #tpu.memory_space<vmem>>, vector<1x32xf32>
    %c0_76 = arith.constant 0 : index
    %c0_77 = arith.constant 0 : index
    %120 = vector.load %arg6[%c0_76, %c0_77] : memref<1x32xf32, #tpu.memory_space<vmem>>, vector<1x32xf32>
    %cst_78 = arith.constant dense<0.000000e+00> : vector<64xf32>
    %121 = vector.multi_reduction <add>, %118, %cst_78 [1] : vector<64x32xf32> to vector<64xf32>
    %122 = vector.shape_cast %121 : vector<64xf32> to vector<64x1xf32>
    %cst_79 = arith.constant 3.200000e+01 : f32
    %123 = vector.broadcast %cst_79 : f32 to vector<64x1xf32>
    %124 = arith.divf %122, %123 : vector<64x1xf32>
    %125 = vector.broadcast %124 : vector<64x1xf32> to vector<64x32xf32>
    %126 = arith.subf %118, %125 : vector<64x32xf32>
    %127 = arith.mulf %126, %126 : vector<64x32xf32>
    %cst_80 = arith.constant dense<0.000000e+00> : vector<64xf32>
    %128 = vector.multi_reduction <add>, %127, %cst_80 [1] : vector<64x32xf32> to vector<64xf32>
    %129 = vector.shape_cast %128 : vector<64xf32> to vector<64x1xf32>
    %cst_81 = arith.constant 3.200000e+01 : f32
    %130 = vector.broadcast %cst_81 : f32 to vector<64x1xf32>
    %131 = arith.divf %129, %130 : vector<64x1xf32>
    %cst_82 = arith.constant 9.99999974E-6 : f32
    %132 = vector.broadcast %cst_82 : f32 to vector<64x1xf32>
    %133 = arith.addf %131, %132 : vector<64x1xf32>
    %134 = math.rsqrt %133 : vector<64x1xf32>
    %135 = vector.broadcast %134 : vector<64x1xf32> to vector<64x32xf32>
    %136 = arith.mulf %126, %135 : vector<64x32xf32>
    %137 = vector.broadcast %119 : vector<1x32xf32> to vector<64x32xf32>
    %138 = arith.mulf %136, %137 : vector<64x32xf32>
    %139 = vector.broadcast %120 : vector<1x32xf32> to vector<64x32xf32>
    %140 = arith.addf %138, %139 : vector<64x32xf32>
    %cst_83 = arith.constant 0.000000e+00 : f32
    %141 = vector.broadcast %cst_83 : f32 to vector<64x32xf32>
    %c0_84 = arith.constant 0 : index
    %c0_85 = arith.constant 0 : index
    %c0_86 = arith.constant 0 : index
    %142 = vector.load %arg7[%c0_84, %c0_85, %c0_86] : memref<12x32x8xf32, #tpu.memory_space<vmem>>, vector<1x32x8xf32>
    %143 = vector.shape_cast %142 : vector<1x32x8xf32> to vector<32x8xf32>
    %cst_87 = arith.constant dense<0.000000e+00> : vector<64x8xf32>
    %144 = tpu.matmul %140, %143, %cst_87 {dimension_numbers = #tpu.dot_dimension_numbers<[1], [0], [0], [1], [0, 0, 1, 1], [], []>} : vector<64x32xf32>, vector<32x8xf32>, vector<64x8xf32> -> vector<64x8xf32>
    %c0_88 = arith.constant 0 : index
    %c0_89 = arith.constant 0 : index
    %c0_90 = arith.constant 0 : index
    %145 = vector.load %arg8[%c0_88, %c0_89, %c0_90] : memref<12x1x8xf32, #tpu.memory_space<vmem>>, vector<1x1x8xf32>
    %146 = vector.shape_cast %145 : vector<1x1x8xf32> to vector<1x8xf32>
    %147 = vector.broadcast %146 : vector<1x8xf32> to vector<64x8xf32>
    %148 = arith.addf %144, %147 : vector<64x8xf32>
    %c4_91 = arith.constant 4 : index
    %c0_92 = arith.constant 0 : index
    %c0_93 = arith.constant 0 : index
    %149 = vector.load %arg7[%c4_91, %c0_92, %c0_93] : memref<12x32x8xf32, #tpu.memory_space<vmem>>, vector<1x32x8xf32>
    %150 = vector.shape_cast %149 : vector<1x32x8xf32> to vector<32x8xf32>
    %cst_94 = arith.constant dense<0.000000e+00> : vector<64x8xf32>
    %151 = tpu.matmul %140, %150, %cst_94 {dimension_numbers = #tpu.dot_dimension_numbers<[1], [0], [0], [1], [0, 0, 1, 1], [], []>} : vector<64x32xf32>, vector<32x8xf32>, vector<64x8xf32> -> vector<64x8xf32>
    %c4_95 = arith.constant 4 : index
    %c0_96 = arith.constant 0 : index
    %c0_97 = arith.constant 0 : index
    %152 = vector.load %arg8[%c4_95, %c0_96, %c0_97] : memref<12x1x8xf32, #tpu.memory_space<vmem>>, vector<1x1x8xf32>
    %153 = vector.shape_cast %152 : vector<1x1x8xf32> to vector<1x8xf32>
    %154 = vector.broadcast %153 : vector<1x8xf32> to vector<64x8xf32>
    %155 = arith.addf %151, %154 : vector<64x8xf32>
    %c8_98 = arith.constant 8 : index
    %c0_99 = arith.constant 0 : index
    %c0_100 = arith.constant 0 : index
    %156 = vector.load %arg7[%c8_98, %c0_99, %c0_100] : memref<12x32x8xf32, #tpu.memory_space<vmem>>, vector<1x32x8xf32>
    %157 = vector.shape_cast %156 : vector<1x32x8xf32> to vector<32x8xf32>
    %cst_101 = arith.constant dense<0.000000e+00> : vector<64x8xf32>
    %158 = tpu.matmul %140, %157, %cst_101 {dimension_numbers = #tpu.dot_dimension_numbers<[1], [0], [0], [1], [0, 0, 1, 1], [], []>} : vector<64x32xf32>, vector<32x8xf32>, vector<64x8xf32> -> vector<64x8xf32>
    %c8_102 = arith.constant 8 : index
    %c0_103 = arith.constant 0 : index
    %c0_104 = arith.constant 0 : index
    %159 = vector.load %arg8[%c8_102, %c0_103, %c0_104] : memref<12x1x8xf32, #tpu.memory_space<vmem>>, vector<1x1x8xf32>
    %160 = vector.shape_cast %159 : vector<1x1x8xf32> to vector<1x8xf32>
    %161 = vector.broadcast %160 : vector<1x8xf32> to vector<64x8xf32>
    %162 = arith.addf %158, %161 : vector<64x8xf32>
    %cst_105 = arith.constant dense<0.000000e+00> : vector<64x64xf32>
    %163 = tpu.matmul %148, %155, %cst_105 {dimension_numbers = #tpu.dot_dimension_numbers<[1], [1], [0], [0], [0, 0, 1, 0], [], []>} : vector<64x8xf32>, vector<64x8xf32>, vector<64x64xf32> -> vector<64x64xf32>
    %cst_106 = arith.constant 0.353553385 : f32
    %164 = vector.broadcast %cst_106 : f32 to vector<64x64xf32>
    %165 = arith.mulf %163, %164 : vector<64x64xf32>
    %cst_107 = arith.constant dense<0xFF800000> : vector<64xf32>
    %166 = vector.multi_reduction <maximumf>, %165, %cst_107 [1] : vector<64x64xf32> to vector<64xf32>
    %167 = vector.shape_cast %166 : vector<64xf32> to vector<64x1xf32>
    %168 = vector.broadcast %167 : vector<64x1xf32> to vector<64x64xf32>
    %169 = arith.subf %165, %168 : vector<64x64xf32>
    %170 = math.exp %169 : vector<64x64xf32>
    %cst_108 = arith.constant dense<0.000000e+00> : vector<64xf32>
    %171 = vector.multi_reduction <add>, %170, %cst_108 [1] : vector<64x64xf32> to vector<64xf32>
    %172 = vector.shape_cast %171 : vector<64xf32> to vector<64x1xf32>
    %173 = vector.broadcast %172 : vector<64x1xf32> to vector<64x64xf32>
    %174 = arith.divf %170, %173 : vector<64x64xf32>
    %cst_109 = arith.constant dense<0.000000e+00> : vector<64x8xf32>
    %175 = tpu.matmul %174, %162, %cst_109 {dimension_numbers = #tpu.dot_dimension_numbers<[1], [0], [0], [1], [0, 0, 1, 1], [], []>} : vector<64x64xf32>, vector<64x8xf32>, vector<64x8xf32> -> vector<64x8xf32>
    %c0_110 = arith.constant 0 : index
    %c0_111 = arith.constant 0 : index
    %c0_112 = arith.constant 0 : index
    %176 = vector.load %arg9[%c0_110, %c0_111, %c0_112] : memref<4x8x32xf32, #tpu.memory_space<vmem>>, vector<1x8x32xf32>
    %177 = vector.shape_cast %176 : vector<1x8x32xf32> to vector<8x32xf32>
    %cst_113 = arith.constant dense<0.000000e+00> : vector<64x32xf32>
    %178 = tpu.matmul %175, %177, %cst_113 {dimension_numbers = #tpu.dot_dimension_numbers<[1], [0], [0], [1], [0, 0, 1, 1], [], []>} : vector<64x8xf32>, vector<8x32xf32>, vector<64x32xf32> -> vector<64x32xf32>
    %179 = arith.addf %141, %178 : vector<64x32xf32>
    %c1_114 = arith.constant 1 : index
    %c0_115 = arith.constant 0 : index
    %c0_116 = arith.constant 0 : index
    %180 = vector.load %arg7[%c1_114, %c0_115, %c0_116] : memref<12x32x8xf32, #tpu.memory_space<vmem>>, vector<1x32x8xf32>
    %181 = vector.shape_cast %180 : vector<1x32x8xf32> to vector<32x8xf32>
    %cst_117 = arith.constant dense<0.000000e+00> : vector<64x8xf32>
    %182 = tpu.matmul %140, %181, %cst_117 {dimension_numbers = #tpu.dot_dimension_numbers<[1], [0], [0], [1], [0, 0, 1, 1], [], []>} : vector<64x32xf32>, vector<32x8xf32>, vector<64x8xf32> -> vector<64x8xf32>
    %c1_118 = arith.constant 1 : index
    %c0_119 = arith.constant 0 : index
    %c0_120 = arith.constant 0 : index
    %183 = vector.load %arg8[%c1_118, %c0_119, %c0_120] : memref<12x1x8xf32, #tpu.memory_space<vmem>>, vector<1x1x8xf32>
    %184 = vector.shape_cast %183 : vector<1x1x8xf32> to vector<1x8xf32>
    %185 = vector.broadcast %184 : vector<1x8xf32> to vector<64x8xf32>
    %186 = arith.addf %182, %185 : vector<64x8xf32>
    %c5_121 = arith.constant 5 : index
    %c0_122 = arith.constant 0 : index
    %c0_123 = arith.constant 0 : index
    %187 = vector.load %arg7[%c5_121, %c0_122, %c0_123] : memref<12x32x8xf32, #tpu.memory_space<vmem>>, vector<1x32x8xf32>
    %188 = vector.shape_cast %187 : vector<1x32x8xf32> to vector<32x8xf32>
    %cst_124 = arith.constant dense<0.000000e+00> : vector<64x8xf32>
    %189 = tpu.matmul %140, %188, %cst_124 {dimension_numbers = #tpu.dot_dimension_numbers<[1], [0], [0], [1], [0, 0, 1, 1], [], []>} : vector<64x32xf32>, vector<32x8xf32>, vector<64x8xf32> -> vector<64x8xf32>
    %c5_125 = arith.constant 5 : index
    %c0_126 = arith.constant 0 : index
    %c0_127 = arith.constant 0 : index
    %190 = vector.load %arg8[%c5_125, %c0_126, %c0_127] : memref<12x1x8xf32, #tpu.memory_space<vmem>>, vector<1x1x8xf32>
    %191 = vector.shape_cast %190 : vector<1x1x8xf32> to vector<1x8xf32>
    %192 = vector.broadcast %191 : vector<1x8xf32> to vector<64x8xf32>
    %193 = arith.addf %189, %192 : vector<64x8xf32>
    %c9 = arith.constant 9 : index
    %c0_128 = arith.constant 0 : index
    %c0_129 = arith.constant 0 : index
    %194 = vector.load %arg7[%c9, %c0_128, %c0_129] : memref<12x32x8xf32, #tpu.memory_space<vmem>>, vector<1x32x8xf32>
    %195 = vector.shape_cast %194 : vector<1x32x8xf32> to vector<32x8xf32>
    %cst_130 = arith.constant dense<0.000000e+00> : vector<64x8xf32>
    %196 = tpu.matmul %140, %195, %cst_130 {dimension_numbers = #tpu.dot_dimension_numbers<[1], [0], [0], [1], [0, 0, 1, 1], [], []>} : vector<64x32xf32>, vector<32x8xf32>, vector<64x8xf32> -> vector<64x8xf32>
    %c9_131 = arith.constant 9 : index
    %c0_132 = arith.constant 0 : index
    %c0_133 = arith.constant 0 : index
    %197 = vector.load %arg8[%c9_131, %c0_132, %c0_133] : memref<12x1x8xf32, #tpu.memory_space<vmem>>, vector<1x1x8xf32>
    %198 = vector.shape_cast %197 : vector<1x1x8xf32> to vector<1x8xf32>
    %199 = vector.broadcast %198 : vector<1x8xf32> to vector<64x8xf32>
    %200 = arith.addf %196, %199 : vector<64x8xf32>
    %cst_134 = arith.constant dense<0.000000e+00> : vector<64x64xf32>
    %201 = tpu.matmul %186, %193, %cst_134 {dimension_numbers = #tpu.dot_dimension_numbers<[1], [1], [0], [0], [0, 0, 1, 0], [], []>} : vector<64x8xf32>, vector<64x8xf32>, vector<64x64xf32> -> vector<64x64xf32>
    %cst_135 = arith.constant 0.353553385 : f32
    %202 = vector.broadcast %cst_135 : f32 to vector<64x64xf32>
    %203 = arith.mulf %201, %202 : vector<64x64xf32>
    %cst_136 = arith.constant dense<0xFF800000> : vector<64xf32>
    %204 = vector.multi_reduction <maximumf>, %203, %cst_136 [1] : vector<64x64xf32> to vector<64xf32>
    %205 = vector.shape_cast %204 : vector<64xf32> to vector<64x1xf32>
    %206 = vector.broadcast %205 : vector<64x1xf32> to vector<64x64xf32>
    %207 = arith.subf %203, %206 : vector<64x64xf32>
    %208 = math.exp %207 : vector<64x64xf32>
    %cst_137 = arith.constant dense<0.000000e+00> : vector<64xf32>
    %209 = vector.multi_reduction <add>, %208, %cst_137 [1] : vector<64x64xf32> to vector<64xf32>
    %210 = vector.shape_cast %209 : vector<64xf32> to vector<64x1xf32>
    %211 = vector.broadcast %210 : vector<64x1xf32> to vector<64x64xf32>
    %212 = arith.divf %208, %211 : vector<64x64xf32>
    %cst_138 = arith.constant dense<0.000000e+00> : vector<64x8xf32>
    %213 = tpu.matmul %212, %200, %cst_138 {dimension_numbers = #tpu.dot_dimension_numbers<[1], [0], [0], [1], [0, 0, 1, 1], [], []>} : vector<64x64xf32>, vector<64x8xf32>, vector<64x8xf32> -> vector<64x8xf32>
    %c1_139 = arith.constant 1 : index
    %c0_140 = arith.constant 0 : index
    %c0_141 = arith.constant 0 : index
    %214 = vector.load %arg9[%c1_139, %c0_140, %c0_141] : memref<4x8x32xf32, #tpu.memory_space<vmem>>, vector<1x8x32xf32>
    %215 = vector.shape_cast %214 : vector<1x8x32xf32> to vector<8x32xf32>
    %cst_142 = arith.constant dense<0.000000e+00> : vector<64x32xf32>
    %216 = tpu.matmul %213, %215, %cst_142 {dimension_numbers = #tpu.dot_dimension_numbers<[1], [0], [0], [1], [0, 0, 1, 1], [], []>} : vector<64x8xf32>, vector<8x32xf32>, vector<64x32xf32> -> vector<64x32xf32>
    %217 = arith.addf %179, %216 : vector<64x32xf32>
    %c2_143 = arith.constant 2 : index
    %c0_144 = arith.constant 0 : index
    %c0_145 = arith.constant 0 : index
    %218 = vector.load %arg7[%c2_143, %c0_144, %c0_145] : memref<12x32x8xf32, #tpu.memory_space<vmem>>, vector<1x32x8xf32>
    %219 = vector.shape_cast %218 : vector<1x32x8xf32> to vector<32x8xf32>
    %cst_146 = arith.constant dense<0.000000e+00> : vector<64x8xf32>
    %220 = tpu.matmul %140, %219, %cst_146 {dimension_numbers = #tpu.dot_dimension_numbers<[1], [0], [0], [1], [0, 0, 1, 1], [], []>} : vector<64x32xf32>, vector<32x8xf32>, vector<64x8xf32> -> vector<64x8xf32>
    %c2_147 = arith.constant 2 : index
    %c0_148 = arith.constant 0 : index
    %c0_149 = arith.constant 0 : index
    %221 = vector.load %arg8[%c2_147, %c0_148, %c0_149] : memref<12x1x8xf32, #tpu.memory_space<vmem>>, vector<1x1x8xf32>
    %222 = vector.shape_cast %221 : vector<1x1x8xf32> to vector<1x8xf32>
    %223 = vector.broadcast %222 : vector<1x8xf32> to vector<64x8xf32>
    %224 = arith.addf %220, %223 : vector<64x8xf32>
    %c6_150 = arith.constant 6 : index
    %c0_151 = arith.constant 0 : index
    %c0_152 = arith.constant 0 : index
    %225 = vector.load %arg7[%c6_150, %c0_151, %c0_152] : memref<12x32x8xf32, #tpu.memory_space<vmem>>, vector<1x32x8xf32>
    %226 = vector.shape_cast %225 : vector<1x32x8xf32> to vector<32x8xf32>
    %cst_153 = arith.constant dense<0.000000e+00> : vector<64x8xf32>
    %227 = tpu.matmul %140, %226, %cst_153 {dimension_numbers = #tpu.dot_dimension_numbers<[1], [0], [0], [1], [0, 0, 1, 1], [], []>} : vector<64x32xf32>, vector<32x8xf32>, vector<64x8xf32> -> vector<64x8xf32>
    %c6_154 = arith.constant 6 : index
    %c0_155 = arith.constant 0 : index
    %c0_156 = arith.constant 0 : index
    %228 = vector.load %arg8[%c6_154, %c0_155, %c0_156] : memref<12x1x8xf32, #tpu.memory_space<vmem>>, vector<1x1x8xf32>
    %229 = vector.shape_cast %228 : vector<1x1x8xf32> to vector<1x8xf32>
    %230 = vector.broadcast %229 : vector<1x8xf32> to vector<64x8xf32>
    %231 = arith.addf %227, %230 : vector<64x8xf32>
    %c10 = arith.constant 10 : index
    %c0_157 = arith.constant 0 : index
    %c0_158 = arith.constant 0 : index
    %232 = vector.load %arg7[%c10, %c0_157, %c0_158] : memref<12x32x8xf32, #tpu.memory_space<vmem>>, vector<1x32x8xf32>
    %233 = vector.shape_cast %232 : vector<1x32x8xf32> to vector<32x8xf32>
    %cst_159 = arith.constant dense<0.000000e+00> : vector<64x8xf32>
    %234 = tpu.matmul %140, %233, %cst_159 {dimension_numbers = #tpu.dot_dimension_numbers<[1], [0], [0], [1], [0, 0, 1, 1], [], []>} : vector<64x32xf32>, vector<32x8xf32>, vector<64x8xf32> -> vector<64x8xf32>
    %c10_160 = arith.constant 10 : index
    %c0_161 = arith.constant 0 : index
    %c0_162 = arith.constant 0 : index
    %235 = vector.load %arg8[%c10_160, %c0_161, %c0_162] : memref<12x1x8xf32, #tpu.memory_space<vmem>>, vector<1x1x8xf32>
    %236 = vector.shape_cast %235 : vector<1x1x8xf32> to vector<1x8xf32>
    %237 = vector.broadcast %236 : vector<1x8xf32> to vector<64x8xf32>
    %238 = arith.addf %234, %237 : vector<64x8xf32>
    %cst_163 = arith.constant dense<0.000000e+00> : vector<64x64xf32>
    %239 = tpu.matmul %224, %231, %cst_163 {dimension_numbers = #tpu.dot_dimension_numbers<[1], [1], [0], [0], [0, 0, 1, 0], [], []>} : vector<64x8xf32>, vector<64x8xf32>, vector<64x64xf32> -> vector<64x64xf32>
    %cst_164 = arith.constant 0.353553385 : f32
    %240 = vector.broadcast %cst_164 : f32 to vector<64x64xf32>
    %241 = arith.mulf %239, %240 : vector<64x64xf32>
    %cst_165 = arith.constant dense<0xFF800000> : vector<64xf32>
    %242 = vector.multi_reduction <maximumf>, %241, %cst_165 [1] : vector<64x64xf32> to vector<64xf32>
    %243 = vector.shape_cast %242 : vector<64xf32> to vector<64x1xf32>
    %244 = vector.broadcast %243 : vector<64x1xf32> to vector<64x64xf32>
    %245 = arith.subf %241, %244 : vector<64x64xf32>
    %246 = math.exp %245 : vector<64x64xf32>
    %cst_166 = arith.constant dense<0.000000e+00> : vector<64xf32>
    %247 = vector.multi_reduction <add>, %246, %cst_166 [1] : vector<64x64xf32> to vector<64xf32>
    %248 = vector.shape_cast %247 : vector<64xf32> to vector<64x1xf32>
    %249 = vector.broadcast %248 : vector<64x1xf32> to vector<64x64xf32>
    %250 = arith.divf %246, %249 : vector<64x64xf32>
    %cst_167 = arith.constant dense<0.000000e+00> : vector<64x8xf32>
    %251 = tpu.matmul %250, %238, %cst_167 {dimension_numbers = #tpu.dot_dimension_numbers<[1], [0], [0], [1], [0, 0, 1, 1], [], []>} : vector<64x64xf32>, vector<64x8xf32>, vector<64x8xf32> -> vector<64x8xf32>
    %c2_168 = arith.constant 2 : index
    %c0_169 = arith.constant 0 : index
    %c0_170 = arith.constant 0 : index
    %252 = vector.load %arg9[%c2_168, %c0_169, %c0_170] : memref<4x8x32xf32, #tpu.memory_space<vmem>>, vector<1x8x32xf32>
    %253 = vector.shape_cast %252 : vector<1x8x32xf32> to vector<8x32xf32>
    %cst_171 = arith.constant dense<0.000000e+00> : vector<64x32xf32>
    %254 = tpu.matmul %251, %253, %cst_171 {dimension_numbers = #tpu.dot_dimension_numbers<[1], [0], [0], [1], [0, 0, 1, 1], [], []>} : vector<64x8xf32>, vector<8x32xf32>, vector<64x32xf32> -> vector<64x32xf32>
    %255 = arith.addf %217, %254 : vector<64x32xf32>
    %c3_172 = arith.constant 3 : index
    %c0_173 = arith.constant 0 : index
    %c0_174 = arith.constant 0 : index
    %256 = vector.load %arg7[%c3_172, %c0_173, %c0_174] : memref<12x32x8xf32, #tpu.memory_space<vmem>>, vector<1x32x8xf32>
    %257 = vector.shape_cast %256 : vector<1x32x8xf32> to vector<32x8xf32>
    %cst_175 = arith.constant dense<0.000000e+00> : vector<64x8xf32>
    %258 = tpu.matmul %140, %257, %cst_175 {dimension_numbers = #tpu.dot_dimension_numbers<[1], [0], [0], [1], [0, 0, 1, 1], [], []>} : vector<64x32xf32>, vector<32x8xf32>, vector<64x8xf32> -> vector<64x8xf32>
    %c3_176 = arith.constant 3 : index
    %c0_177 = arith.constant 0 : index
    %c0_178 = arith.constant 0 : index
    %259 = vector.load %arg8[%c3_176, %c0_177, %c0_178] : memref<12x1x8xf32, #tpu.memory_space<vmem>>, vector<1x1x8xf32>
    %260 = vector.shape_cast %259 : vector<1x1x8xf32> to vector<1x8xf32>
    %261 = vector.broadcast %260 : vector<1x8xf32> to vector<64x8xf32>
    %262 = arith.addf %258, %261 : vector<64x8xf32>
    %c7_179 = arith.constant 7 : index
    %c0_180 = arith.constant 0 : index
    %c0_181 = arith.constant 0 : index
    %263 = vector.load %arg7[%c7_179, %c0_180, %c0_181] : memref<12x32x8xf32, #tpu.memory_space<vmem>>, vector<1x32x8xf32>
    %264 = vector.shape_cast %263 : vector<1x32x8xf32> to vector<32x8xf32>
    %cst_182 = arith.constant dense<0.000000e+00> : vector<64x8xf32>
    %265 = tpu.matmul %140, %264, %cst_182 {dimension_numbers = #tpu.dot_dimension_numbers<[1], [0], [0], [1], [0, 0, 1, 1], [], []>} : vector<64x32xf32>, vector<32x8xf32>, vector<64x8xf32> -> vector<64x8xf32>
    %c7_183 = arith.constant 7 : index
    %c0_184 = arith.constant 0 : index
    %c0_185 = arith.constant 0 : index
    %266 = vector.load %arg8[%c7_183, %c0_184, %c0_185] : memref<12x1x8xf32, #tpu.memory_space<vmem>>, vector<1x1x8xf32>
    %267 = vector.shape_cast %266 : vector<1x1x8xf32> to vector<1x8xf32>
    %268 = vector.broadcast %267 : vector<1x8xf32> to vector<64x8xf32>
    %269 = arith.addf %265, %268 : vector<64x8xf32>
    %c11 = arith.constant 11 : index
    %c0_186 = arith.constant 0 : index
    %c0_187 = arith.constant 0 : index
    %270 = vector.load %arg7[%c11, %c0_186, %c0_187] : memref<12x32x8xf32, #tpu.memory_space<vmem>>, vector<1x32x8xf32>
    %271 = vector.shape_cast %270 : vector<1x32x8xf32> to vector<32x8xf32>
    %cst_188 = arith.constant dense<0.000000e+00> : vector<64x8xf32>
    %272 = tpu.matmul %140, %271, %cst_188 {dimension_numbers = #tpu.dot_dimension_numbers<[1], [0], [0], [1], [0, 0, 1, 1], [], []>} : vector<64x32xf32>, vector<32x8xf32>, vector<64x8xf32> -> vector<64x8xf32>
    %c11_189 = arith.constant 11 : index
    %c0_190 = arith.constant 0 : index
    %c0_191 = arith.constant 0 : index
    %273 = vector.load %arg8[%c11_189, %c0_190, %c0_191] : memref<12x1x8xf32, #tpu.memory_space<vmem>>, vector<1x1x8xf32>
    %274 = vector.shape_cast %273 : vector<1x1x8xf32> to vector<1x8xf32>
    %275 = vector.broadcast %274 : vector<1x8xf32> to vector<64x8xf32>
    %276 = arith.addf %272, %275 : vector<64x8xf32>
    %cst_192 = arith.constant dense<0.000000e+00> : vector<64x64xf32>
    %277 = tpu.matmul %262, %269, %cst_192 {dimension_numbers = #tpu.dot_dimension_numbers<[1], [1], [0], [0], [0, 0, 1, 0], [], []>} : vector<64x8xf32>, vector<64x8xf32>, vector<64x64xf32> -> vector<64x64xf32>
    %cst_193 = arith.constant 0.353553385 : f32
    %278 = vector.broadcast %cst_193 : f32 to vector<64x64xf32>
    %279 = arith.mulf %277, %278 : vector<64x64xf32>
    %cst_194 = arith.constant dense<0xFF800000> : vector<64xf32>
    %280 = vector.multi_reduction <maximumf>, %279, %cst_194 [1] : vector<64x64xf32> to vector<64xf32>
    %281 = vector.shape_cast %280 : vector<64xf32> to vector<64x1xf32>
    %282 = vector.broadcast %281 : vector<64x1xf32> to vector<64x64xf32>
    %283 = arith.subf %279, %282 : vector<64x64xf32>
    %284 = math.exp %283 : vector<64x64xf32>
    %cst_195 = arith.constant dense<0.000000e+00> : vector<64xf32>
    %285 = vector.multi_reduction <add>, %284, %cst_195 [1] : vector<64x64xf32> to vector<64xf32>
    %286 = vector.shape_cast %285 : vector<64xf32> to vector<64x1xf32>
    %287 = vector.broadcast %286 : vector<64x1xf32> to vector<64x64xf32>
    %288 = arith.divf %284, %287 : vector<64x64xf32>
    %cst_196 = arith.constant dense<0.000000e+00> : vector<64x8xf32>
    %289 = tpu.matmul %288, %276, %cst_196 {dimension_numbers = #tpu.dot_dimension_numbers<[1], [0], [0], [1], [0, 0, 1, 1], [], []>} : vector<64x64xf32>, vector<64x8xf32>, vector<64x8xf32> -> vector<64x8xf32>
    %c3_197 = arith.constant 3 : index
    %c0_198 = arith.constant 0 : index
    %c0_199 = arith.constant 0 : index
    %290 = vector.load %arg9[%c3_197, %c0_198, %c0_199] : memref<4x8x32xf32, #tpu.memory_space<vmem>>, vector<1x8x32xf32>
    %291 = vector.shape_cast %290 : vector<1x8x32xf32> to vector<8x32xf32>
    %cst_200 = arith.constant dense<0.000000e+00> : vector<64x32xf32>
    %292 = tpu.matmul %289, %291, %cst_200 {dimension_numbers = #tpu.dot_dimension_numbers<[1], [0], [0], [1], [0, 0, 1, 1], [], []>} : vector<64x8xf32>, vector<8x32xf32>, vector<64x32xf32> -> vector<64x32xf32>
    %293 = arith.addf %255, %292 : vector<64x32xf32>
    %c0_201 = arith.constant 0 : index
    %c0_202 = arith.constant 0 : index
    %294 = vector.load %arg10[%c0_201, %c0_202] : memref<1x32xf32, #tpu.memory_space<vmem>>, vector<1x32xf32>
    %295 = vector.broadcast %294 : vector<1x32xf32> to vector<64x32xf32>
    %296 = arith.addf %293, %295 : vector<64x32xf32>
    %297 = arith.addf %140, %296 : vector<64x32xf32>
    %c0_203 = arith.constant 0 : index
    %c0_204 = arith.constant 0 : index
    %298 = vector.load %arg11[%c0_203, %c0_204] : memref<1x32xf32, #tpu.memory_space<vmem>>, vector<1x32xf32>
    %c0_205 = arith.constant 0 : index
    %c0_206 = arith.constant 0 : index
    %299 = vector.load %arg12[%c0_205, %c0_206] : memref<1x32xf32, #tpu.memory_space<vmem>>, vector<1x32xf32>
    %cst_207 = arith.constant dense<0.000000e+00> : vector<64xf32>
    %300 = vector.multi_reduction <add>, %297, %cst_207 [1] : vector<64x32xf32> to vector<64xf32>
    %301 = vector.shape_cast %300 : vector<64xf32> to vector<64x1xf32>
    %cst_208 = arith.constant 3.200000e+01 : f32
    %302 = vector.broadcast %cst_208 : f32 to vector<64x1xf32>
    %303 = arith.divf %301, %302 : vector<64x1xf32>
    %304 = vector.broadcast %303 : vector<64x1xf32> to vector<64x32xf32>
    %305 = arith.subf %297, %304 : vector<64x32xf32>
    %306 = arith.mulf %305, %305 : vector<64x32xf32>
    %cst_209 = arith.constant dense<0.000000e+00> : vector<64xf32>
    %307 = vector.multi_reduction <add>, %306, %cst_209 [1] : vector<64x32xf32> to vector<64xf32>
    %308 = vector.shape_cast %307 : vector<64xf32> to vector<64x1xf32>
    %cst_210 = arith.constant 3.200000e+01 : f32
    %309 = vector.broadcast %cst_210 : f32 to vector<64x1xf32>
    %310 = arith.divf %308, %309 : vector<64x1xf32>
    %cst_211 = arith.constant 9.99999974E-6 : f32
    %311 = vector.broadcast %cst_211 : f32 to vector<64x1xf32>
    %312 = arith.addf %310, %311 : vector<64x1xf32>
    %313 = math.rsqrt %312 : vector<64x1xf32>
    %314 = vector.broadcast %313 : vector<64x1xf32> to vector<64x32xf32>
    %315 = arith.mulf %305, %314 : vector<64x32xf32>
    %316 = vector.broadcast %298 : vector<1x32xf32> to vector<64x32xf32>
    %317 = arith.mulf %315, %316 : vector<64x32xf32>
    %318 = vector.broadcast %299 : vector<1x32xf32> to vector<64x32xf32>
    %319 = arith.addf %317, %318 : vector<64x32xf32>
    %c0_212 = arith.constant 0 : index
    %c0_213 = arith.constant 0 : index
    %320 = vector.load %arg13[%c0_212, %c0_213] : memref<32x128xf32, #tpu.memory_space<vmem>>, vector<32x128xf32>
    %cst_214 = arith.constant dense<0.000000e+00> : vector<64x128xf32>
    %321 = tpu.matmul %319, %320, %cst_214 {dimension_numbers = #tpu.dot_dimension_numbers<[1], [0], [0], [1], [0, 0, 1, 1], [], []>} : vector<64x32xf32>, vector<32x128xf32>, vector<64x128xf32> -> vector<64x128xf32>
    %c0_215 = arith.constant 0 : index
    %c0_216 = arith.constant 0 : index
    %322 = vector.load %arg14[%c0_215, %c0_216] : memref<1x128xf32, #tpu.memory_space<vmem>>, vector<1x128xf32>
    %323 = vector.broadcast %322 : vector<1x128xf32> to vector<64x128xf32>
    %324 = arith.addf %321, %323 : vector<64x128xf32>
    %cst_217 = arith.constant 5.000000e-01 : f32
    %325 = vector.broadcast %cst_217 : f32 to vector<64x128xf32>
    %326 = arith.mulf %325, %324 : vector<64x128xf32>
    %cst_218 = arith.constant 0.707106769 : f32
    %327 = vector.broadcast %cst_218 : f32 to vector<64x128xf32>
    %328 = arith.mulf %324, %327 : vector<64x128xf32>
    %329 = math.absf %328 : vector<64x128xf32>
    %cst_219 = arith.constant 0.327591091 : f32
    %330 = vector.broadcast %cst_219 : f32 to vector<64x128xf32>
    %331 = arith.mulf %330, %329 : vector<64x128xf32>
    %cst_220 = arith.constant 1.000000e+00 : f32
    %332 = vector.broadcast %cst_220 : f32 to vector<64x128xf32>
    %333 = arith.addf %332, %331 : vector<64x128xf32>
    %cst_221 = arith.constant 1.000000e+00 : f32
    %334 = vector.broadcast %cst_221 : f32 to vector<64x128xf32>
    %335 = arith.divf %334, %333 : vector<64x128xf32>
    %cst_222 = arith.constant 1.06140542 : f32
    %336 = vector.broadcast %cst_222 : f32 to vector<64x128xf32>
    %337 = arith.mulf %336, %335 : vector<64x128xf32>
    %cst_223 = arith.constant -1.45315206 : f32
    %338 = vector.broadcast %cst_223 : f32 to vector<64x128xf32>
    %339 = arith.addf %337, %338 : vector<64x128xf32>
    %340 = arith.mulf %339, %335 : vector<64x128xf32>
    %cst_224 = arith.constant 1.42141378 : f32
    %341 = vector.broadcast %cst_224 : f32 to vector<64x128xf32>
    %342 = arith.addf %340, %341 : vector<64x128xf32>
    %343 = arith.mulf %342, %335 : vector<64x128xf32>
    %cst_225 = arith.constant -0.284496725 : f32
    %344 = vector.broadcast %cst_225 : f32 to vector<64x128xf32>
    %345 = arith.addf %343, %344 : vector<64x128xf32>
    %346 = arith.mulf %345, %335 : vector<64x128xf32>
    %cst_226 = arith.constant 0.254829586 : f32
    %347 = vector.broadcast %cst_226 : f32 to vector<64x128xf32>
    %348 = arith.addf %346, %347 : vector<64x128xf32>
    %349 = arith.mulf %348, %335 : vector<64x128xf32>
    %cst_227 = arith.constant 0.000000e+00 : f32
    %350 = vector.broadcast %cst_227 : f32 to vector<64x128xf32>
    %351 = arith.subf %350, %329 : vector<64x128xf32>
    %352 = arith.mulf %351, %329 : vector<64x128xf32>
    %353 = math.exp %352 : vector<64x128xf32>
    %354 = arith.mulf %349, %353 : vector<64x128xf32>
    %cst_228 = arith.constant 1.000000e+00 : f32
    %355 = vector.broadcast %cst_228 : f32 to vector<64x128xf32>
    %356 = arith.subf %355, %354 : vector<64x128xf32>
    %cst_229 = arith.constant 0.000000e+00 : f32
    %357 = vector.broadcast %cst_229 : f32 to vector<64x128xf32>
    %358 = arith.cmpf olt, %328, %357 : vector<64x128xf32>
    %cst_230 = arith.constant 0.000000e+00 : f32
    %359 = vector.broadcast %cst_230 : f32 to vector<64x128xf32>
    %360 = arith.subf %359, %356 : vector<64x128xf32>
    %361 = arith.select %358, %360, %356 : vector<64x128xi1>, vector<64x128xf32>
    %cst_231 = arith.constant 1.000000e+00 : f32
    %362 = vector.broadcast %cst_231 : f32 to vector<64x128xf32>
    %363 = arith.addf %362, %361 : vector<64x128xf32>
    %364 = arith.mulf %326, %363 : vector<64x128xf32>
    %c0_232 = arith.constant 0 : index
    %c0_233 = arith.constant 0 : index
    %365 = vector.load %arg15[%c0_232, %c0_233] : memref<128x32xf32, #tpu.memory_space<vmem>>, vector<128x32xf32>
    %cst_234 = arith.constant dense<0.000000e+00> : vector<64x32xf32>
    %366 = tpu.matmul %364, %365, %cst_234 {dimension_numbers = #tpu.dot_dimension_numbers<[1], [0], [0], [1], [0, 0, 1, 1], [], []>} : vector<64x128xf32>, vector<128x32xf32>, vector<64x32xf32> -> vector<64x32xf32>
    %c0_235 = arith.constant 0 : index
    %c0_236 = arith.constant 0 : index
    %367 = vector.load %arg16[%c0_235, %c0_236] : memref<1x32xf32, #tpu.memory_space<vmem>>, vector<1x32xf32>
    %368 = vector.broadcast %367 : vector<1x32xf32> to vector<64x32xf32>
    %369 = arith.addf %366, %368 : vector<64x32xf32>
    %370 = arith.addf %319, %369 : vector<64x32xf32>
    %c0_237 = arith.constant 0 : index
    %c0_238 = arith.constant 0 : index
    %c0_239 = arith.constant 0 : index
    %371 = vector.load %arg17[%c0_237, %c0_238, %c0_239] : memref<1x64x32xf32, #tpu.memory_space<vmem>>, vector<1x64x32xf32>
    %372 = vector.shape_cast %371 : vector<1x64x32xf32> to vector<64x32xf32>
    %373 = vector.shape_cast %370 : vector<64x32xf32> to vector<1x64x32xf32>
    tpu.vector_store %arg17[%c0_237, %c0_238, %c0_239], %373 {strides = array<i32>} : memref<1x64x32xf32, #tpu.memory_space<vmem>>, vector<1x64x32xf32>,
    return
  }
  func.func @transform_0(%arg0: i32) -> (i32, i32, i32) {
    %c0_i32 = arith.constant 0 : i32
    %c0_i32_0 = arith.constant 0 : i32
    %c0_i32_1 = arith.constant 0 : i32
    return %arg0, %c0_i32, %c0_i32_0 : i32, i32, i32
  }
  func.func @transform_1(%arg0: i32) -> (i32, i32, i32) {
    %c0_i32 = arith.constant 0 : i32
    %c0_i32_0 = arith.constant 0 : i32
    %c0_i32_1 = arith.constant 0 : i32
    %c0_i32_2 = arith.constant 0 : i32
    return %c0_i32, %c0_i32_0, %c0_i32_1 : i32, i32, i32
  }
  func.func @transform_2(%arg0: i32) -> (i32, i32, i32) {
    %c0_i32 = arith.constant 0 : i32
    %c0_i32_0 = arith.constant 0 : i32
    %c0_i32_1 = arith.constant 0 : i32
    %c0_i32_2 = arith.constant 0 : i32
    return %c0_i32, %c0_i32_0, %c0_i32_1 : i32, i32, i32
  }
  func.func @transform_3(%arg0: i32) -> (i32, i32) {
    %c0_i32 = arith.constant 0 : i32
    %c0_i32_0 = arith.constant 0 : i32
    %c0_i32_1 = arith.constant 0 : i32
    return %c0_i32, %c0_i32_0 : i32, i32
  }
  func.func @transform_4(%arg0: i32) -> (i32, i32) {
    %c0_i32 = arith.constant 0 : i32
    %c0_i32_0 = arith.constant 0 : i32
    %c0_i32_1 = arith.constant 0 : i32
    return %c0_i32, %c0_i32_0 : i32, i32
  }
  func.func @transform_5(%arg0: i32) -> (i32, i32) {
    %c0_i32 = arith.constant 0 : i32
    %c0_i32_0 = arith.constant 0 : i32
    %c0_i32_1 = arith.constant 0 : i32
    return %c0_i32, %c0_i32_0 : i32, i32
  }
  func.func @transform_6(%arg0: i32) -> (i32, i32, i32) {
    %c0_i32 = arith.constant 0 : i32
    %c0_i32_0 = arith.constant 0 : i32
    %c0_i32_1 = arith.constant 0 : i32
    %c0_i32_2 = arith.constant 0 : i32
    return %c0_i32, %c0_i32_0, %c0_i32_1 : i32, i32, i32
  }
  func.func @transform_7(%arg0: i32) -> (i32, i32, i32) {
    %c0_i32 = arith.constant 0 : i32
    %c0_i32_0 = arith.constant 0 : i32
    %c0_i32_1 = arith.constant 0 : i32
    %c0_i32_2 = arith.constant 0 : i32
    return %c0_i32, %c0_i32_0, %c0_i32_1 : i32, i32, i32
  }
  func.func @transform_8(%arg0: i32) -> (i32, i32, i32) {
    %c0_i32 = arith.constant 0 : i32
    %c0_i32_0 = arith.constant 0 : i32
    %c0_i32_1 = arith.constant 0 : i32
    %c0_i32_2 = arith.constant 0 : i32
    return %c0_i32, %c0_i32_0, %c0_i32_1 : i32, i32, i32
  }
  func.func @transform_9(%arg0: i32) -> (i32, i32) {
    %c0_i32 = arith.constant 0 : i32
    %c0_i32_0 = arith.constant 0 : i32
    %c0_i32_1 = arith.constant 0 : i32
    return %c0_i32, %c0_i32_0 : i32, i32
  }
  func.func @transform_10(%arg0: i32) -> (i32, i32) {
    %c0_i32 = arith.constant 0 : i32
    %c0_i32_0 = arith.constant 0 : i32
    %c0_i32_1 = arith.constant 0 : i32
    return %c0_i32, %c0_i32_0 : i32, i32
  }
  func.func @transform_11(%arg0: i32) -> (i32, i32) {
    %c0_i32 = arith.constant 0 : i32
    %c0_i32_0 = arith.constant 0 : i32
    %c0_i32_1 = arith.constant 0 : i32
    return %c0_i32, %c0_i32_0 : i32, i32
  }
  func.func @transform_12(%arg0: i32) -> (i32, i32) {
    %c0_i32 = arith.constant 0 : i32
    %c0_i32_0 = arith.constant 0 : i32
    %c0_i32_1 = arith.constant 0 : i32
    return %c0_i32, %c0_i32_0 : i32, i32
  }
  func.func @transform_13(%arg0: i32) -> (i32, i32) {
    %c0_i32 = arith.constant 0 : i32
    %c0_i32_0 = arith.constant 0 : i32
    %c0_i32_1 = arith.constant 0 : i32
    return %c0_i32, %c0_i32_0 : i32, i32
  }
  func.func @transform_14(%arg0: i32) -> (i32, i32) {
    %c0_i32 = arith.constant 0 : i32
    %c0_i32_0 = arith.constant 0 : i32
    %c0_i32_1 = arith.constant 0 : i32
    return %c0_i32, %c0_i32_0 : i32, i32
  }
  func.func @transform_15(%arg0: i32) -> (i32, i32) {
    %c0_i32 = arith.constant 0 : i32
    %c0_i32_0 = arith.constant 0 : i32
    %c0_i32_1 = arith.constant 0 : i32
    return %c0_i32, %c0_i32_0 : i32, i32
  }
  func.func @transform_16(%arg0: i32) -> (i32, i32, i32) {
    %c0_i32 = arith.constant 0 : i32
    %c0_i32_0 = arith.constant 0 : i32
    %c0_i32_1 = arith.constant 0 : i32
    return %arg0, %c0_i32, %c0_i32_0 : i32, i32, i32
  }
}

</mosaic_0001>

<llo_original>
// kernel: tpu_custom_call.1
$region0: #{tpu_custom_call.1}
  #allocation0 [shape = 'u32[]', space=smem, size = 0x4, offset = 0x4, fixed_abs, tag = 'smem constant byte address 0x4 - core index']
  #allocation1 [shape = 'u32[144,128]{1,0:T(1,128)}', space=vmem, size = 0x12000, scoped, tag = 'internal scratch']
  %s0 = inlined_call_operand.vmem [shape: f32[2,64,32], index: 0, kind: input, shape index: {}]
  %s1 = inlined_call_operand.vmem [shape: f32[9,64,64], index: 1, kind: input, shape index: {}]
  %s2 = inlined_call_operand.vmem [shape: f32[9,1,32], index: 2, kind: input, shape index: {}]
  %s3 = inlined_call_operand.vmem [shape: f32[1,32], index: 3, kind: input, shape index: {}]
  %s4 = inlined_call_operand.vmem [shape: f32[1,32], index: 4, kind: input, shape index: {}]
  %s5 = inlined_call_operand.vmem [shape: f32[1,32], index: 5, kind: input, shape index: {}]
  %s6 = inlined_call_operand.vmem [shape: f32[12,32,8], index: 6, kind: input, shape index: {}]
  %s7 = inlined_call_operand.vmem [shape: f32[12,1,8], index: 7, kind: input, shape index: {}]
  %s8 = inlined_call_operand.vmem [shape: f32[4,8,32], index: 8, kind: input, shape index: {}]
  %s9 = inlined_call_operand.vmem [shape: f32[1,32], index: 9, kind: input, shape index: {}]
  %s10 = inlined_call_operand.vmem [shape: f32[1,32], index: 10, kind: input, shape index: {}]
  %s11 = inlined_call_operand.vmem [shape: f32[1,32], index: 11, kind: input, shape index: {}]
  %s12 = inlined_call_operand.vmem [shape: f32[32,128], index: 12, kind: input, shape index: {}]
  %s13 = inlined_call_operand.vmem [shape: f32[1,128], index: 13, kind: input, shape index: {}]
  %s14 = inlined_call_operand.vmem [shape: f32[128,32], index: 14, kind: input, shape index: {}]
  %s15 = inlined_call_operand.vmem [shape: f32[1,32], index: 15, kind: input, shape index: {}]
  %s16 = inlined_call_operand.vmem [shape: f32[2,64,32], index: 16, kind: output, shape index: {}]
  %s17 = sld [smem:[#allocation0]]
  $region97: #{tpu_custom_call.1} parent=0
    _
  %s19 = ssub.s32 1, %s17
  %s20 = scalar_select 0, %s19, %s17
  loop: start=0, step=1, limit=4
  $region2: #{tpu_custom_call.1} parent=0 // loop_pre_header
    _
  $region3: #{tpu_custom_call.1} parent=0 // loop_header
    %s22 = sphi 0, %s26
    %p23 = scmp.ge.s32.totalorder %s22, 4
    %s32 = sphi 0, %s34
    %s35 = sphi 0, %s32
    %s36 = sphi 0, %s35
    %s52 = sphi 0, %s36
    %s56 = sphi 0, %s56
    %s58 = sphi 0, %s56
    %s59 = sphi 0, %s58
    %s73 = sphi 0, %s59
    %s77 = sphi 0, %s77
    %s79 = sphi 0, %s77
    %s80 = sphi 0, %s79
    %s94 = sphi 0, %s80
    %s98 = sphi 0, %s98
    %s100 = sphi 0, %s98
    %s101 = sphi 0, %s100
    %s115 = sphi 0, %s101
    %s119 = sphi 0, %s119
    %s121 = sphi 0, %s119
    %s122 = sphi 0, %s121
    %s136 = sphi 0, %s122
    %s140 = sphi 0, %s140
    %s142 = sphi 0, %s140
    %s143 = sphi 0, %s142
    %s157 = sphi 0, %s143
    %s161 = sphi 0, %s161
    %s163 = sphi 0, %s161
    %s164 = sphi 0, %s163
    %s178 = sphi 0, %s164
    %s182 = sphi 0, %s182
    %s184 = sphi 0, %s182
    %s185 = sphi 0, %s184
    %s199 = sphi 0, %s185
    %s203 = sphi 0, %s203
    %s205 = sphi 0, %s203
    %s206 = sphi 0, %s205
    %s220 = sphi 0, %s206
    %s224 = sphi 0, %s224
    %s226 = sphi 0, %s224
    %s227 = sphi 0, %s226
    %s241 = sphi 0, %s227
    %s245 = sphi 0, %s245
    %s247 = sphi 0, %s245
    %s248 = sphi 0, %s247
    %s262 = sphi 0, %s248
    %s266 = sphi 0, %s266
    %s268 = sphi 0, %s266
    %s269 = sphi 0, %s268
    %s283 = sphi 0, %s269
    %s287 = sphi 0, %s287
    %s289 = sphi 0, %s287
    %s290 = sphi 0, %s289
    %s304 = sphi 0, %s290
    %s308 = sphi 0, %s308
    %s310 = sphi 0, %s308
    %s311 = sphi 0, %s310
    %s325 = sphi 0, %s311
    %s329 = sphi 0, %s329
    %s331 = sphi 0, %s329
    %s332 = sphi 0, %s331
    %s346 = sphi 0, %s332
    %s350 = sphi 0, %s350
    %s352 = sphi 0, %s350
    %s353 = sphi 0, %s352
    %s367 = sphi 0, %s353
    %s373 = sphi 0, %s375
    %s376 = sphi 0, %s373
    %s377 = sphi 0, %s376
    %s393 = sphi 0, %s377
  $region4: #{tpu_custom_call.1} parent=0 // loop_header_branch
    %25 = sbr.rel (%p23) target = $region8
  $region5: #{tpu_custom_call.1} parent=0 // loop_body
    %s27 = ssub.s32 %s22, 1
    %s28 = ssub.s32 %s22, 2
    %s29 = sadd.s32 %s22, 1
    %s30 = ssub.s32 %s22, %s29
    %p31 = scmp.eq.s32.totalorder %s30, 0
    %s33 = sadd.s32 %s32, 1
    %s34 = scalar_select %p31, %s32, %s33
    %p37 = pneg %p31
    %p38 = scmp.eq.s32.totalorder %s22, 1
    %p39 = por %p37, %p38
    %p40 = scmp.ne.s32.totalorder %s32, %s35
    %p41 = scmp.eq.s32.totalorder %s22, 0
    %p42 = por %p40, %p41
    %p43 = scmp.ne.s32.totalorder %s32, %s35
    %p44 = scmp.eq.s32.totalorder %s27, 1
    %p45 = por %p43, %p44
    %p46 = scmp.ne.s32.totalorder %s35, %s36
    %p47 = scmp.eq.s32.totalorder %s27, 0
    %p48 = por %p46, %p47
    %p49 = scmp.ne.s32.totalorder %s35, %s36
    %p50 = scmp.eq.s32.totalorder %s28, 1
    %p51 = por %p49, %p50
    %p53 = scmp.ne.s32.totalorder %s36, %s52
    %p54 = scmp.eq.s32.totalorder %s28, 0
    %p55 = por %p53, %p54
    %s57 = sadd.s32 %s56, 1
    %p60 = scmp.eq.s32.totalorder %s22, 1
    %p61 = scmp.ne.s32.totalorder %s56, %s58
    %p62 = scmp.eq.s32.totalorder %s22, 0
    %p63 = por %p61, %p62
    %p64 = scmp.ne.s32.totalorder %s56, %s58
    %p65 = scmp.eq.s32.totalorder %s27, 1
    %p66 = por %p64, %p65
    %p67 = scmp.ne.s32.totalorder %s58, %s59
    %p68 = scmp.eq.s32.totalorder %s27, 0
    %p69 = por %p67, %p68
    %p70 = scmp.ne.s32.totalorder %s58, %s59
    %p71 = scmp.eq.s32.totalorder %s28, 1
    %p72 = por %p70, %p71
    %p74 = scmp.ne.s32.totalorder %s59, %s73
    %p75 = scmp.eq.s32.totalorder %s28, 0
    %p76 = por %p74, %p75
    %s78 = sadd.s32 %s77, 1
    %p81 = scmp.eq.s32.totalorder %s22, 1
    %p82 = scmp.ne.s32.totalorder %s77, %s79
    %p83 = scmp.eq.s32.totalorder %s22, 0
    %p84 = por %p82, %p83
    %p85 = scmp.ne.s32.totalorder %s77, %s79
    %p86 = scmp.eq.s32.totalorder %s27, 1
    %p87 = por %p85, %p86
    %p88 = scmp.ne.s32.totalorder %s79, %s80
    %p89 = scmp.eq.s32.totalorder %s27, 0
    %p90 = por %p88, %p89
    %p91 = scmp.ne.s32.totalorder %s79, %s80
    %p92 = scmp.eq.s32.totalorder %s28, 1
    %p93 = por %p91, %p92
    %p95 = scmp.ne.s32.totalorder %s80, %s94
    %p96 = scmp.eq.s32.totalorder %s28, 0
    %p97 = por %p95, %p96
    %s99 = sadd.s32 %s98, 1
    %p102 = scmp.eq.s32.totalorder %s22, 1
    %p103 = scmp.ne.s32.totalorder %s98, %s100
    %p104 = scmp.eq.s32.totalorder %s22, 0
    %p105 = por %p103, %p104
    %p106 = scmp.ne.s32.totalorder %s98, %s100
    %p107 = scmp.eq.s32.totalorder %s27, 1
    %p108 = por %p106, %p107
    %p109 = scmp.ne.s32.totalorder %s100, %s101
    %p110 = scmp.eq.s32.totalorder %s27, 0
    %p111 = por %p109, %p110
    %p112 = scmp.ne.s32.totalorder %s100, %s101
    %p113 = scmp.eq.s32.totalorder %s28, 1
    %p114 = por %p112, %p113
    %p116 = scmp.ne.s32.totalorder %s101, %s115
    %p117 = scmp.eq.s32.totalorder %s28, 0
    %p118 = por %p116, %p117
    %s120 = sadd.s32 %s119, 1
    %p123 = scmp.eq.s32.totalorder %s22, 1
    %p124 = scmp.ne.s32.totalorder %s119, %s121
    %p125 = scmp.eq.s32.totalorder %s22, 0
    %p126 = por %p124, %p125
    %p127 = scmp.ne.s32.totalorder %s119, %s121
    %p128 = scmp.eq.s32.totalorder %s27, 1
    %p129 = por %p127, %p128
    %p130 = scmp.ne.s32.totalorder %s121, %s122
    %p131 = scmp.eq.s32.totalorder %s27, 0
    %p132 = por %p130, %p131
    %p133 = scmp.ne.s32.totalorder %s121, %s122
    %p134 = scmp.eq.s32.totalorder %s28, 1
    %p135 = por %p133, %p134
    %p137 = scmp.ne.s32.totalorder %s122, %s136
    %p138 = scmp.eq.s32.totalorder %s28, 0
    %p139 = por %p137, %p138
    %s141 = sadd.s32 %s140, 1
    %p144 = scmp.eq.s32.totalorder %s22, 1
    %p145 = scmp.ne.s32.totalorder %s140, %s142
    %p146 = scmp.eq.s32.totalorder %s22, 0
    %p147 = por %p145, %p146
    %p148 = scmp.ne.s32.totalorder %s140, %s142
    %p149 = scmp.eq.s32.totalorder %s27, 1
    %p150 = por %p148, %p149
    %p151 = scmp.ne.s32.totalorder %s142, %s143
    %p152 = scmp.eq.s32.totalorder %s27, 0
    %p153 = por %p151, %p152
    %p154 = scmp.ne.s32.totalorder %s142, %s143
    %p155 = scmp.eq.s32.totalorder %s28, 1
    %p156 = por %p154, %p155
    %p158 = scmp.ne.s32.totalorder %s143, %s157
    %p159 = scmp.eq.s32.totalorder %s28, 0
    %p160 = por %p158, %p159
    %s162 = sadd.s32 %s161, 1
    %p165 = scmp.eq.s32.totalorder %s22, 1
    %p166 = scmp.ne.s32.totalorder %s161, %s163
    %p167 = scmp.eq.s32.totalorder %s22, 0
    %p168 = por %p166, %p167
    %p169 = scmp.ne.s32.totalorder %s161, %s163
    %p170 = scmp.eq.s32.totalorder %s27, 1
    %p171 = por %p169, %p170
    %p172 = scmp.ne.s32.totalorder %s163, %s164
    %p173 = scmp.eq.s32.totalorder %s27, 0
    %p174 = por %p172, %p173
    %p175 = scmp.ne.s32.totalorder %s163, %s164
    %p176 = scmp.eq.s32.totalorder %s28, 1
    %p177 = por %p175, %p176
    %p179 = scmp.ne.s32.totalorder %s164, %s178
    %p180 = scmp.eq.s32.totalorder %s28, 0
    %p181 = por %p179, %p180
    %s183 = sadd.s32 %s182, 1
    %p186 = scmp.eq.s32.totalorder %s22, 1
    %p187 = scmp.ne.s32.totalorder %s182, %s184
    %p188 = scmp.eq.s32.totalorder %s22, 0
    %p189 = por %p187, %p188
    %p190 = scmp.ne.s32.totalorder %s182, %s184
    %p191 = scmp.eq.s32.totalorder %s27, 1
    %p192 = por %p190, %p191
    %p193 = scmp.ne.s32.totalorder %s184, %s185
    %p194 = scmp.eq.s32.totalorder %s27, 0
    %p195 = por %p193, %p194
    %p196 = scmp.ne.s32.totalorder %s184, %s185
    %p197 = scmp.eq.s32.totalorder %s28, 1
    %p198 = por %p196, %p197
    %p200 = scmp.ne.s32.totalorder %s185, %s199
    %p201 = scmp.eq.s32.totalorder %s28, 0
    %p202 = por %p200, %p201
    %s204 = sadd.s32 %s203, 1
    %p207 = scmp.eq.s32.totalorder %s22, 1
    %p208 = scmp.ne.s32.totalorder %s203, %s205
    %p209 = scmp.eq.s32.totalorder %s22, 0
    %p210 = por %p208, %p209
    %p211 = scmp.ne.s32.totalorder %s203, %s205
    %p212 = scmp.eq.s32.totalorder %s27, 1
    %p213 = por %p211, %p212
    %p214 = scmp.ne.s32.totalorder %s205, %s206
    %p215 = scmp.eq.s32.totalorder %s27, 0
    %p216 = por %p214, %p215
    %p217 = scmp.ne.s32.totalorder %s205, %s206
    %p218 = scmp.eq.s32.totalorder %s28, 1
    %p219 = por %p217, %p218
    %p221 = scmp.ne.s32.totalorder %s206, %s220
    %p222 = scmp.eq.s32.totalorder %s28, 0
    %p223 = por %p221, %p222
    %s225 = sadd.s32 %s224, 1
    %p228 = scmp.eq.s32.totalorder %s22, 1
    %p229 = scmp.ne.s32.totalorder %s224, %s226
    %p230 = scmp.eq.s32.totalorder %s22, 0
    %p231 = por %p229, %p230
    %p232 = scmp.ne.s32.totalorder %s224, %s226
    %p233 = scmp.eq.s32.totalorder %s27, 1
    %p234 = por %p232, %p233
    %p235 = scmp.ne.s32.totalorder %s226, %s227
    %p236 = scmp.eq.s32.totalorder %s27, 0
    %p237 = por %p235, %p236
    %p238 = scmp.ne.s32.totalorder %s226, %s227
    %p239 = scmp.eq.s32.totalorder %s28, 1
    %p240 = por %p238, %p239
    %p242 = scmp.ne.s32.totalorder %s227, %s241
    %p243 = scmp.eq.s32.totalorder %s28, 0
    %p244 = por %p242, %p243
    %s246 = sadd.s32 %s245, 1
    %p249 = scmp.eq.s32.totalorder %s22, 1
    %p250 = scmp.ne.s32.totalorder %s245, %s247
    %p251 = scmp.eq.s32.totalorder %s22, 0
    %p252 = por %p250, %p251
    %p253 = scmp.ne.s32.totalorder %s245, %s247
    %p254 = scmp.eq.s32.totalorder %s27, 1
    %p255 = por %p253, %p254
    %p256 = scmp.ne.s32.totalorder %s247, %s248
    %p257 = scmp.eq.s32.totalorder %s27, 0
    %p258 = por %p256, %p257
    %p259 = scmp.ne.s32.totalorder %s247, %s248
    %p260 = scmp.eq.s32.totalorder %s28, 1
    %p261 = por %p259, %p260
    %p263 = scmp.ne.s32.totalorder %s248, %s262
    %p264 = scmp.eq.s32.totalorder %s28, 0
    %p265 = por %p263, %p264
    %s267 = sadd.s32 %s266, 1
    %p270 = scmp.eq.s32.totalorder %s22, 1
    %p271 = scmp.ne.s32.totalorder %s266, %s268
    %p272 = scmp.eq.s32.totalorder %s22, 0
    %p273 = por %p271, %p272
    %p274 = scmp.ne.s32.totalorder %s266, %s268
    %p275 = scmp.eq.s32.totalorder %s27, 1
    %p276 = por %p274, %p275
    %p277 = scmp.ne.s32.totalorder %s268, %s269
    %p278 = scmp.eq.s32.totalorder %s27, 0
    %p279 = por %p277, %p278
    %p280 = scmp.ne.s32.totalorder %s268, %s269
    %p281 = scmp.eq.s32.totalorder %s28, 1
    %p282 = por %p280, %p281
    %p284 = scmp.ne.s32.totalorder %s269, %s283
    %p285 = scmp.eq.s32.totalorder %s28, 0
    %p286 = por %p284, %p285
    %s288 = sadd.s32 %s287, 1
    %p291 = scmp.eq.s32.totalorder %s22, 1
    %p292 = scmp.ne.s32.totalorder %s287, %s289
    %p293 = scmp.eq.s32.totalorder %s22, 0
    %p294 = por %p292, %p293
    %p295 = scmp.ne.s32.totalorder %s287, %s289
    %p296 = scmp.eq.s32.totalorder %s27, 1
    %p297 = por %p295, %p296
    %p298 = scmp.ne.s32.totalorder %s289, %s290
    %p299 = scmp.eq.s32.totalorder %s27, 0
    %p300 = por %p298, %p299
    %p301 = scmp.ne.s32.totalorder %s289, %s290
    %p302 = scmp.eq.s32.totalorder %s28, 1
    %p303 = por %p301, %p302
    %p305 = scmp.ne.s32.totalorder %s290, %s304
    %p306 = scmp.eq.s32.totalorder %s28, 0
    %p307 = por %p305, %p306
    %s309 = sadd.s32 %s308, 1
    %p312 = scmp.eq.s32.totalorder %s22, 1
    %p313 = scmp.ne.s32.totalorder %s308, %s310
    %p314 = scmp.eq.s32.totalorder %s22, 0
    %p315 = por %p313, %p314
    %p316 = scmp.ne.s32.totalorder %s308, %s310
    %p317 = scmp.eq.s32.totalorder %s27, 1
    %p318 = por %p316, %p317
    %p319 = scmp.ne.s32.totalorder %s310, %s311
    %p320 = scmp.eq.s32.totalorder %s27, 0
    %p321 = por %p319, %p320
    %p322 = scmp.ne.s32.totalorder %s310, %s311
    %p323 = scmp.eq.s32.totalorder %s28, 1
    %p324 = por %p322, %p323
    %p326 = scmp.ne.s32.totalorder %s311, %s325
    %p327 = scmp.eq.s32.totalorder %s28, 0
    %p328 = por %p326, %p327
    %s330 = sadd.s32 %s329, 1
    %p333 = scmp.eq.s32.totalorder %s22, 1
    %p334 = scmp.ne.s32.totalorder %s329, %s331
    %p335 = scmp.eq.s32.totalorder %s22, 0
    %p336 = por %p334, %p335
    %p337 = scmp.ne.s32.totalorder %s329, %s331
    %p338 = scmp.eq.s32.totalorder %s27, 1
    %p339 = por %p337, %p338
    %p340 = scmp.ne.s32.totalorder %s331, %s332
    %p341 = scmp.eq.s32.totalorder %s27, 0
    %p342 = por %p340, %p341
    %p343 = scmp.ne.s32.totalorder %s331, %s332
    %p344 = scmp.eq.s32.totalorder %s28, 1
    %p345 = por %p343, %p344
    %p347 = scmp.ne.s32.totalorder %s332, %s346
    %p348 = scmp.eq.s32.totalorder %s28, 0
    %p349 = por %p347, %p348
    %s351 = sadd.s32 %s350, 1
    %p354 = scmp.eq.s32.totalorder %s22, 1
    %p355 = scmp.ne.s32.totalorder %s350, %s352
    %p356 = scmp.eq.s32.totalorder %s22, 0
    %p357 = por %p355, %p356
    %p358 = scmp.ne.s32.totalorder %s350, %s352
    %p359 = scmp.eq.s32.totalorder %s27, 1
    %p360 = por %p358, %p359
    %p361 = scmp.ne.s32.totalorder %s352, %s353
    %p362 = scmp.eq.s32.totalorder %s27, 0
    %p363 = por %p361, %p362
    %p364 = scmp.ne.s32.totalorder %s352, %s353
    %p365 = scmp.eq.s32.totalorder %s28, 1
    %p366 = por %p364, %p365
    %p368 = scmp.ne.s32.totalorder %s353, %s367
    %p369 = scmp.eq.s32.totalorder %s28, 0
    %p370 = por %p368, %p369
    %s371 = ssub.s32 %s22, %s29
    %p372 = scmp.eq.s32.totalorder %s371, 0
    %s374 = sadd.s32 %s373, 1
    %s375 = scalar_select %p372, %s373, %s374
    %p378 = pneg %p372
    %p379 = scmp.eq.s32.totalorder %s22, 1
    %p380 = por %p378, %p379
    %p381 = scmp.ne.s32.totalorder %s373, %s376
    %p382 = scmp.eq.s32.totalorder %s22, 0
    %p383 = por %p381, %p382
    %p384 = scmp.ne.s32.totalorder %s373, %s376
    %p385 = scmp.eq.s32.totalorder %s27, 1
    %p386 = por %p384, %p385
    %p387 = scmp.ne.s32.totalorder %s376, %s377
    %p388 = scmp.eq.s32.totalorder %s27, 0
    %p389 = por %p387, %p388
    %p390 = scmp.ne.s32.totalorder %s376, %s377
    %p391 = scmp.eq.s32.totalorder %s28, 1
    %p392 = por %p390, %p391
    %p394 = scmp.ne.s32.totalorder %s377, %s393
    %p395 = scmp.eq.s32.totalorder %s28, 0
    %p396 = por %p394, %p395
    %p397 = scmp.le.s32.totalorder 1, %s22
    %p398 = scmp.lt.s32.totalorder %s22, 3
    %p399 = pnand %p397, %p398
    %p400 = pneg %p399
    // Predicated region
    $region9: #{tpu_custom_call.1} parent=5 // pred_check
      _
    $region10: #{tpu_custom_call.1} parent=5 // pred_check_branch
      %402 = sbr.rel (%p399) target = $region12
    $region11: #{tpu_custom_call.1} parent=5 // pred_region
      %s403 = ssub.s32 %s22, 1
      // Predicated region
      $region13: #{tpu_custom_call.1} parent=11 // pred_check
        %p404 = pneg %p69
      $region14: #{tpu_custom_call.1} parent=11 // pred_check_branch
        %406 = sbr.rel (%p404) target = $region16
      $region15: #{tpu_custom_call.1} parent=11 // pred_region
        _
      $region16: #{tpu_custom_call.1} parent=11 // pred_fallthru
        _
      // Predicated region
      $region17: #{tpu_custom_call.1} parent=11 // pred_check
        %p407 = pneg %p90
      $region18: #{tpu_custom_call.1} parent=11 // pred_check_branch
        %409 = sbr.rel (%p407) target = $region20
      $region19: #{tpu_custom_call.1} parent=11 // pred_region
        _
      $region20: #{tpu_custom_call.1} parent=11 // pred_fallthru
        _
      // Predicated region
      $region21: #{tpu_custom_call.1} parent=11 // pred_check
        %p410 = pneg %p111
      $region22: #{tpu_custom_call.1} parent=11 // pred_check_branch
        %412 = sbr.rel (%p410) target = $region24
      $region23: #{tpu_custom_call.1} parent=11 // pred_region
        _
      $region24: #{tpu_custom_call.1} parent=11 // pred_fallthru
        _
      // Predicated region
      $region25: #{tpu_custom_call.1} parent=11 // pred_check
        %p413 = pneg %p132
      $region26: #{tpu_custom_call.1} parent=11 // pred_check_branch
        %415 = sbr.rel (%p413) target = $region28
      $region27: #{tpu_custom_call.1} parent=11 // pred_region
        _
      $region28: #{tpu_custom_call.1} parent=11 // pred_fallthru
        _
      // Predicated region
      $region29: #{tpu_custom_call.1} parent=11 // pred_check
        %p416 = pneg %p153
      $region30: #{tpu_custom_call.1} parent=11 // pred_check_branch
        %418 = sbr.rel (%p416) target = $region32
      $region31: #{tpu_custom_call.1} parent=11 // pred_region
        _
      $region32: #{tpu_custom_call.1} parent=11 // pred_fallthru
        _
      // Predicated region
      $region33: #{tpu_custom_call.1} parent=11 // pred_check
        %p419 = pneg %p174
      $region34: #{tpu_custom_call.1} parent=11 // pred_check_branch
        %421 = sbr.rel (%p419) target = $region36
      $region35: #{tpu_custom_call.1} parent=11 // pred_region
        _
      $region36: #{tpu_custom_call.1} parent=11 // pred_fallthru
        _
      // Predicated region
      $region37: #{tpu_custom_call.1} parent=11 // pred_check
        %p422 = pneg %p195
      $region38: #{tpu_custom_call.1} parent=11 // pred_check_branch
        %424 = sbr.rel (%p422) target = $region40
      $region39: #{tpu_custom_call.1} parent=11 // pred_region
        _
      $region40: #{tpu_custom_call.1} parent=11 // pred_fallthru
        _
      // Predicated region
      $region41: #{tpu_custom_call.1} parent=11 // pred_check
        %p425 = pneg %p216
      $region42: #{tpu_custom_call.1} parent=11 // pred_check_branch
        %427 = sbr.rel (%p425) target = $region44
      $region43: #{tpu_custom_call.1} parent=11 // pred_region
        _
      $region44: #{tpu_custom_call.1} parent=11 // pred_fallthru
        _
      // Predicated region
      $region45: #{tpu_custom_call.1} parent=11 // pred_check
        %p428 = pneg %p237
      $region46: #{tpu_custom_call.1} parent=11 // pred_check_branch
        %430 = sbr.rel (%p428) target = $region48
      $region47: #{tpu_custom_call.1} parent=11 // pred_region
        _
      $region48: #{tpu_custom_call.1} parent=11 // pred_fallthru
        _
      // Predicated region
      $region49: #{tpu_custom_call.1} parent=11 // pred_check
        %p431 = pneg %p258
      $region50: #{tpu_custom_call.1} parent=11 // pred_check_branch
        %433 = sbr.rel (%p431) target = $region52
      $region51: #{tpu_custom_call.1} parent=11 // pred_region
        _
      $region52: #{tpu_custom_call.1} parent=11 // pred_fallthru
        _
      // Predicated region
      $region53: #{tpu_custom_call.1} parent=11 // pred_check
        %p434 = pneg %p279
      $region54: #{tpu_custom_call.1} parent=11 // pred_check_branch
        %436 = sbr.rel (%p434) target = $region56
      $region55: #{tpu_custom_call.1} parent=11 // pred_region
        _
      $region56: #{tpu_custom_call.1} parent=11 // pred_fallthru
        _
      // Predicated region
      $region57: #{tpu_custom_call.1} parent=11 // pred_check
        %p437 = pneg %p300
      $region58: #{tpu_custom_call.1} parent=11 // pred_check_branch
        %439 = sbr.rel (%p437) target = $region60
      $region59: #{tpu_custom_call.1} parent=11 // pred_region
        _
      $region60: #{tpu_custom_call.1} parent=11 // pred_fallthru
        _
      // Predicated region
      $region61: #{tpu_custom_call.1} parent=11 // pred_check
        %p440 = pneg %p321
      $region62: #{tpu_custom_call.1} parent=11 // pred_check_branch
        %442 = sbr.rel (%p440) target = $region64
      $region63: #{tpu_custom_call.1} parent=11 // pred_region
        _
      $region64: #{tpu_custom_call.1} parent=11 // pred_fallthru
        _
      // Predicated region
      $region65: #{tpu_custom_call.1} parent=11 // pred_check
        %p443 = pneg %p342
      $region66: #{tpu_custom_call.1} parent=11 // pred_check_branch
        %445 = sbr.rel (%p443) target = $region68
      $region67: #{tpu_custom_call.1} parent=11 // pred_region
        _
      $region68: #{tpu_custom_call.1} parent=11 // pred_fallthru
        _
      // Predicated region
      $region69: #{tpu_custom_call.1} parent=11 // pred_check
        %p446 = pneg %p363
      $region70: #{tpu_custom_call.1} parent=11 // pred_check_branch
        %448 = sbr.rel (%p446) target = $region72
      $region71: #{tpu_custom_call.1} parent=11 // pred_region
        _
      $region72: #{tpu_custom_call.1} parent=11 // pred_fallthru
        _
    $region12: #{tpu_custom_call.1} parent=5 // pred_fallthru
      _
    %p449 = scmp.lt.s32.totalorder %s22, 2
    // Predicated region
    $region73: #{tpu_custom_call.1} parent=5 // pred_check
      %p450 = pneg %p449
    $region74: #{tpu_custom_call.1} parent=5 // pred_check_branch
      %452 = sbr.rel (%p450) target = $region76
    $region75: #{tpu_custom_call.1} parent=5 // pred_region
      // Predicated region
      $region77: #{tpu_custom_call.1} parent=75 // pred_check
        %p453 = pneg %p42
      $region78: #{tpu_custom_call.1} parent=75 // pred_check_branch
        %455 = sbr.rel (%p453) target = $region80
      $region79: #{tpu_custom_call.1} parent=75 // pred_region
        %p456 = scmp.lt.s32.totalorder %s22, 1
        %s457 = scalar_select %p456, %s22, 1
        %s458 = smul.addr %s457, 8
        %s459 = smul.addr %s458, 8
        %s460 = scalar_lea.vmem %s0, %s459
      $region80: #{tpu_custom_call.1} parent=75 // pred_fallthru
        _
    $region76: #{tpu_custom_call.1} parent=5 // pred_fallthru
      _
    %p461 = scmp.le.s32.totalorder 1, %s22
    %p462 = scmp.lt.s32.totalorder %s22, 3
    %p463 = pnand %p461, %p462
    %p464 = pneg %p463
    // Predicated region
    $region81: #{tpu_custom_call.1} parent=5 // pred_check
      _
    $region82: #{tpu_custom_call.1} parent=5 // pred_check_branch
      %466 = sbr.rel (%p463) target = $region84
    $region83: #{tpu_custom_call.1} parent=5 // pred_region
      %s467 = ssub.s32 %s22, 1
      %p468 = scmp.lt.s32.totalorder %s27, 1
      %s469 = scalar_select %p468, %s27, 1
      %s470 = smul.addr %s469, 8
      %s471 = smul.addr %s470, 8
      %s472 = scalar_lea.vmem %s0, %s471
      %p473 = pneg %p48
      %p474 = pneg %p45
      %p475 = pneg %p69
      %p476 = pneg %p66
      %p477 = pneg %p90
      %p478 = pneg %p87
      %p479 = pneg %p111
      %p480 = pneg %p108
      %p481 = pneg %p132
      %p482 = pneg %p129
      %p483 = pneg %p153
      %p484 = pneg %p150
      %p485 = pneg %p174
      %p486 = pneg %p171
      %p487 = pneg %p195
      %p488 = pneg %p192
      %p489 = pneg %p216
      %p490 = pneg %p213
      %p491 = pneg %p237
      %p492 = pneg %p234
      %p493 = pneg %p258
      %p494 = pneg %p255
      %p495 = pneg %p279
      %p496 = pneg %p276
      %p497 = pneg %p300
      %p498 = pneg %p297
      %p499 = pneg %p321
      %p500 = pneg %p318
      %p501 = pneg %p342
      %p502 = pneg %p339
      %p503 = pneg %p363
      %p504 = pneg %p360
      %p505 = pneg %p389
      %p506 = pneg %p386
      %p507 = scmp.lt.s32.totalorder %s27, 1
      %s508 = scalar_select %p507, %s27, 1
      %s509 = smul.addr %s508, 8
      %s510 = smul.addr %s509, 8
      %s511 = scalar_lea.vmem %s16, %s510
      %p512 = scmp.lt.s32.totalorder %s27, 1
      %s513 = scalar_select %p512, %s27, 1
      %s514 = smul.addr %s513, 8
      %s515 = smul.addr %s514, 8
      %s516 = scalar_lea.vmem %s0, %s515
      %p517 = scmp.lt.s32.totalorder %s27, 1
      %s518 = scalar_select %p517, %s27, 1
      %s519 = smul.addr %s518, 8
      %s520 = smul.addr %s519, 8
      %s521 = scalar_lea.vmem %s16, %s520
      %v522 = vld [vmem:[%s516] sm:$0xff]
      %v523 = vld [vmem:[%s516 + $0x8] sm:$0xff]
      %v524 = vld [vmem:[%s516 + $0x10] sm:$0xff]
      %v525 = vld [vmem:[%s516 + $0x18] sm:$0xff]
      %v526 = vld [vmem:[%s516 + $0x20] sm:$0xff]
      %v527 = vld [vmem:[%s516 + $0x28] sm:$0xff]
      %v528 = vld [vmem:[%s516 + $0x30] sm:$0xff]
      %v529 = vld [vmem:[%s516 + $0x38] sm:$0xff]
      %v530 = vld [vmem:[%s1] sm:$0xff]
      %v531 = vld [vmem:[%s1 + $0x8] sm:$0xff]
      %v532 = vld [vmem:[%s1 + $0x10] sm:$0xff]
      %v533 = vld [vmem:[%s1 + $0x18] sm:$0xff]
      %v534 = vld [vmem:[%s1 + $0x20] sm:$0xff]
      %v535 = vld [vmem:[%s1 + $0x28] sm:$0xff]
      %v536 = vld [vmem:[%s1 + $0x30] sm:$0xff]
      %v537 = vld [vmem:[%s1 + $0x38] sm:$0xff]
      %vm538 = vcmask 523264
      %v540 = vsel %vm538, %v530, 0
      %v543 = vsel %vm538, %v531, 0
      %v546 = vsel %vm538, %v532, 0
      %v549 = vsel %vm538, %v533, 0
      %v552 = vsel %vm538, %v534, 0
      %v555 = vsel %vm538, %v535, 0
      %v558 = vsel %vm538, %v536, 0
      %v561 = vsel %vm538, %v537, 0
      %563 = vmatprep.subr.mxu0 0.0
      %564 = vmatpush1.msra.mxu0 0.0
      %565 = vmatprep.subr.mxu0 0.0
      %566 = vmatpush1.msra.mxu0 0.0
      %567 = vmatprep.subr.mxu0 0.0
      %568 = vmatpush1.msra.mxu0 0.0
      %569 = vmatprep.subr.mxu0 0.0
      %570 = vmatpush1.msra.mxu0 0.0
      %571 = vmatprep.subr.mxu0 0.0
      %572 = vmatpush1.msra.mxu0 0.0
      %573 = vmatprep.subr.mxu0 0.0
      %574 = vmatpush1.msra.mxu0 0.0
      %575 = vmatprep.subr.mxu0 0.0
      %576 = vmatpush1.msra.mxu0 0.0
      %577 = vmatprep.subr.mxu0 0.0
      %578 = vmatpush1.msra.mxu0 0.0
      %579 = vmatprep.subr.mxu0 0.0
      %580 = vmatpush1.msra.mxu0 %v529
      %581 = vmatprep.subr.mxu0 0.0
      %582 = vmatpush1.msra.mxu0 %v528
      %583 = vmatprep.subr.mxu0 0.0
      %584 = vmatpush1.msra.mxu0 %v527
      %585 = vmatprep.subr.mxu0 0.0
      %586 = vmatpush1.msra.mxu0 %v526
      %587 = vmatprep.subr.mxu0 0.0
      %588 = vmatpush1.msra.mxu0 %v525
      %589 = vmatprep.subr.mxu0 0.0
      %590 = vmatpush1.msra.mxu0 %v524
      %591 = vmatprep.subr.mxu0 0.0
      %592 = vmatpush1.msra.mxu0 %v523
      %593 = vmatprep.subr.mxu0 0.0
      %594 = vmatpush1.msra.mxu0 %v522
      %595 = vmatprep.subr.mxu0 0.0
      %596 = vmatpush2.msra.mxu0 0.0
      %597 = vmatprep.subr.mxu0 0.0
      %598 = vmatpush2.msra.mxu0 0.0
      %599 = vmatprep.subr.mxu0 0.0
      %600 = vmatpush2.msra.mxu0 0.0
      %601 = vmatprep.subr.mxu0 0.0
      %602 = vmatpush2.msra.mxu0 0.0
      %603 = vmatprep.subr.mxu0 0.0
      %604 = vmatpush2.msra.mxu0 0.0
      %605 = vmatprep.subr.mxu0 0.0
      %606 = vmatpush2.msra.mxu0 0.0
      %607 = vmatprep.subr.mxu0 0.0
      %608 = vmatpush2.msra.mxu0 0.0
      %609 = vmatprep.subr.mxu0 0.0
      %610 = vmatpush2.msra.mxu0 0.0
      %611 = vmatprep.subr.mxu0 0.0
      %612 = vmatpush2.msra.mxu0 0.0
      %613 = vmatprep.subr.mxu0 0.0
      %614 = vmatpush2.msra.mxu0 0.0
      %615 = vmatprep.subr.mxu0 0.0
      %616 = vmatpush2.msra.mxu0 0.0
      %617 = vmatprep.subr.mxu0 0.0
      %618 = vmatpush2.msra.mxu0 0.0
      %619 = vmatprep.subr.mxu0 0.0
      %620 = vmatpush2.msra.mxu0 0.0
      %621 = vmatprep.subr.mxu0 0.0
      %622 = vmatpush2.msra.mxu0 0.0
      %623 = vmatprep.subr.mxu0 0.0
      %624 = vmatpush2.msra.mxu0 0.0
      %625 = vmatprep.subr.mxu0 0.0
      %626 = vmatpush2.msra.mxu0 0.0
      %627 = vmatprep.mubr.f32.mxu0 0.0
      %628 = vmatmul.mubr.f32.gmra.mxu0 %v540
      %v629 = vpop.f32.mrf.mxu0
      %v630 = vadd.f32 0.0, %v629
      %v631 = vpop.f32.mrf.mxu0
      %632 = vmatprep.mubr.f32.mxu0 0.0
      %633 = vmatmul.mubr.f32.gmra.mxu0 %v543
      %v634 = vpop.f32.mrf.mxu0
      %v635 = vadd.f32 0.0, %v634
      %v636 = vpop.f32.mrf.mxu0
      %637 = vmatprep.mubr.f32.mxu0 0.0
      %638 = vmatmul.mubr.f32.gmra.mxu0 %v546
      %v639 = vpop.f32.mrf.mxu0
      %v640 = vadd.f32 0.0, %v639
      %v641 = vpop.f32.mrf.mxu0
      %642 = vmatprep.mubr.f32.mxu0 0.0
      %643 = vmatmul.mubr.f32.gmra.mxu0 %v549
      %v644 = vpop.f32.mrf.mxu0
      %v645 = vadd.f32 0.0, %v644
      %v646 = vpop.f32.mrf.mxu0
      %647 = vmatprep.mubr.f32.mxu0 0.0
      %648 = vmatmul.mubr.f32.gmra.mxu0 %v552
      %v649 = vpop.f32.mrf.mxu0
      %v650 = vadd.f32 0.0, %v649
      %v651 = vpop.f32.mrf.mxu0
      %652 = vmatprep.mubr.f32.mxu0 0.0
      %653 = vmatmul.mubr.f32.gmra.mxu0 %v555
      %v654 = vpop.f32.mrf.mxu0
      %v655 = vadd.f32 0.0, %v654
      %v656 = vpop.f32.mrf.mxu0
      %657 = vmatprep.mubr.f32.mxu0 0.0
      %658 = vmatmul.mubr.f32.gmra.mxu0 %v558
      %v659 = vpop.f32.mrf.mxu0
      %v660 = vadd.f32 0.0, %v659
      %v661 = vpop.f32.mrf.mxu0
      %662 = vmatprep.mubr.f32.mxu0 0.0
      %663 = vmatmul.mubr.f32.gmra.mxu0 %v561
      %v664 = vpop.f32.mrf.mxu0
      %v665 = vadd.f32 0.0, %v664
      %v666 = vpop.f32.mrf.mxu0
      %667 = vdwg.mxu0
      %v668 = vld [vmem:[%s2] sm:$0x1]
      %v670 = vlaneseq
      %v671 = vshrl.u32 %v670, 7
      %v672 = vsub.s32 0, %v671
      %v673 = vrot.slane %v668, %v672
      %v675 = vmul.f32 %v630, %v673
      %v676 = vmul.f32 %v635, %v673
      %v677 = vmul.f32 %v640, %v673
      %v678 = vmul.f32 %v645, %v673
      %v679 = vmul.f32 %v650, %v673
      %v680 = vmul.f32 %v655, %v673
      %v681 = vmul.f32 %v660, %v673
      %v682 = vmul.f32 %v665, %v673
      %v683 = vadd.f32 %v675, 0.0
      %v684 = vadd.f32 %v676, 0.0
      %v685 = vadd.f32 %v677, 0.0
      %v686 = vadd.f32 %v678, 0.0
      %v687 = vadd.f32 %v679, 0.0
      %v688 = vadd.f32 %v680, 0.0
      %v689 = vadd.f32 %v681, 0.0
      %v690 = vadd.f32 %v682, 0.0
      %s691 = scalar_lea.vmem %s1, 64
      %v692 = vld [vmem:[%s691] sm:$0xff]
      %v693 = vld [vmem:[%s691 + $0x8] sm:$0xff]
      %v694 = vld [vmem:[%s691 + $0x10] sm:$0xff]
      %v695 = vld [vmem:[%s691 + $0x18] sm:$0xff]
      %v696 = vld [vmem:[%s691 + $0x20] sm:$0xff]
      %v697 = vld [vmem:[%s691 + $0x28] sm:$0xff]
      %v698 = vld [vmem:[%s691 + $0x30] sm:$0xff]
      %v699 = vld [vmem:[%s691 + $0x38] sm:$0xff]
      %v701 = vsel %vm538, %v692, 0
      %v704 = vsel %vm538, %v693, 0
      %v707 = vsel %vm538, %v694, 0
      %v710 = vsel %vm538, %v695, 0
      %v713 = vsel %vm538, %v696, 0
      %v716 = vsel %vm538, %v697, 0
      %v719 = vsel %vm538, %v698, 0
      %v722 = vsel %vm538, %v699, 0
      %724 = vmatprep.subr.mxu0 0.0
      %725 = vmatpush1.msra.mxu0 0.0
      %726 = vmatprep.subr.mxu0 0.0
      %727 = vmatpush1.msra.mxu0 0.0
      %728 = vmatprep.subr.mxu0 0.0
      %729 = vmatpush1.msra.mxu0 0.0
      %730 = vmatprep.subr.mxu0 0.0
      %731 = vmatpush1.msra.mxu0 0.0
      %732 = vmatprep.subr.mxu0 0.0
      %733 = vmatpush1.msra.mxu0 0.0
      %734 = vmatprep.subr.mxu0 0.0
      %735 = vmatpush1.msra.mxu0 0.0
      %736 = vmatprep.subr.mxu0 0.0
      %737 = vmatpush1.msra.mxu0 0.0
      %738 = vmatprep.subr.mxu0 0.0
      %739 = vmatpush1.msra.mxu0 0.0
      %740 = vmatprep.subr.mxu0 0.0
      %741 = vmatpush1.msra.mxu0 %v529
      %742 = vmatprep.subr.mxu0 0.0
      %743 = vmatpush1.msra.mxu0 %v528
      %744 = vmatprep.subr.mxu0 0.0
      %745 = vmatpush1.msra.mxu0 %v527
      %746 = vmatprep.subr.mxu0 0.0
      %747 = vmatpush1.msra.mxu0 %v526
      %748 = vmatprep.subr.mxu0 0.0
      %749 = vmatpush1.msra.mxu0 %v525
      %750 = vmatprep.subr.mxu0 0.0
      %751 = vmatpush1.msra.mxu0 %v524
      %752 = vmatprep.subr.mxu0 0.0
      %753 = vmatpush1.msra.mxu0 %v523
      %754 = vmatprep.subr.mxu0 0.0
      %755 = vmatpush1.msra.mxu0 %v522
      %756 = vmatprep.subr.mxu0 0.0
      %757 = vmatpush2.msra.mxu0 0.0
      %758 = vmatprep.subr.mxu0 0.0
      %759 = vmatpush2.msra.mxu0 0.0
      %760 = vmatprep.subr.mxu0 0.0
      %761 = vmatpush2.msra.mxu0 0.0
      %762 = vmatprep.subr.mxu0 0.0
      %763 = vmatpush2.msra.mxu0 0.0
      %764 = vmatprep.subr.mxu0 0.0
      %765 = vmatpush2.msra.mxu0 0.0
      %766 = vmatprep.subr.mxu0 0.0
      %767 = vmatpush2.msra.mxu0 0.0
      %768 = vmatprep.subr.mxu0 0.0
      %769 = vmatpush2.msra.mxu0 0.0
      %770 = vmatprep.subr.mxu0 0.0
      %771 = vmatpush2.msra.mxu0 0.0
      %772 = vmatprep.subr.mxu0 0.0
      %773 = vmatpush2.msra.mxu0 0.0
      %774 = vmatprep.subr.mxu0 0.0
      %775 = vmatpush2.msra.mxu0 0.0
      %776 = vmatprep.subr.mxu0 0.0
      %777 = vmatpush2.msra.mxu0 0.0
      %778 = vmatprep.subr.mxu0 0.0
      %779 = vmatpush2.msra.mxu0 0.0
      %780 = vmatprep.subr.mxu0 0.0
      %781 = vmatpush2.msra.mxu0 0.0
      %782 = vmatprep.subr.mxu0 0.0
      %783 = vmatpush2.msra.mxu0 0.0
      %784 = vmatprep.subr.mxu0 0.0
      %785 = vmatpush2.msra.mxu0 0.0
      %786 = vmatprep.subr.mxu0 0.0
      %787 = vmatpush2.msra.mxu0 0.0
      %788 = vmatprep.mubr.f32.mxu0 0.0
      %789 = vmatmul.mubr.f32.gmra.mxu0 %v701
      %v790 = vpop.f32.mrf.mxu0
      %v791 = vadd.f32 0.0, %v790
      %v792 = vpop.f32.mrf.mxu0
      %793 = vmatprep.mubr.f32.mxu0 0.0
      %794 = vmatmul.mubr.f32.gmra.mxu0 %v704
      %v795 = vpop.f32.mrf.mxu0
      %v796 = vadd.f32 0.0, %v795
      %v797 = vpop.f32.mrf.mxu0
      %798 = vmatprep.mubr.f32.mxu0 0.0
      %799 = vmatmul.mubr.f32.gmra.mxu0 %v707
      %v800 = vpop.f32.mrf.mxu0
      %v801 = vadd.f32 0.0, %v800
      %v802 = vpop.f32.mrf.mxu0
      %803 = vmatprep.mubr.f32.mxu0 0.0
      %804 = vmatmul.mubr.f32.gmra.mxu0 %v710
      %v805 = vpop.f32.mrf.mxu0
      %v806 = vadd.f32 0.0, %v805
      %v807 = vpop.f32.mrf.mxu0
      %808 = vmatprep.mubr.f32.mxu0 0.0
      %809 = vmatmul.mubr.f32.gmra.mxu0 %v713
      %v810 = vpop.f32.mrf.mxu0
      %v811 = vadd.f32 0.0, %v810
      %v812 = vpop.f32.mrf.mxu0
      %813 = vmatprep.mubr.f32.mxu0 0.0
      %814 = vmatmul.mubr.f32.gmra.mxu0 %v716
      %v815 = vpop.f32.mrf.mxu0
      %v816 = vadd.f32 0.0, %v815
      %v817 = vpop.f32.mrf.mxu0
      %818 = vmatprep.mubr.f32.mxu0 0.0
      %819 = vmatmul.mubr.f32.gmra.mxu0 %v719
      %v820 = vpop.f32.mrf.mxu0
      %v821 = vadd.f32 0.0, %v820
      %v822 = vpop.f32.mrf.mxu0
      %823 = vmatprep.mubr.f32.mxu0 0.0
      %824 = vmatmul.mubr.f32.gmra.mxu0 %v722
      %v825 = vpop.f32.mrf.mxu0
      %v826 = vadd.f32 0.0, %v825
      %v827 = vpop.f32.mrf.mxu0
      %828 = vdwg.mxu0
      %s829 = scalar_lea.vmem %s2, 1
      %v830 = vld [vmem:[%s829] sm:$0x1]
      %v832 = vlaneseq
      %v833 = vshrl.u32 %v832, 7
      %v834 = vsub.s32 0, %v833
      %v835 = vrot.slane %v830, %v834
      %v837 = vmul.f32 %v791, %v835
      %v838 = vmul.f32 %v796, %v835
      %v839 = vmul.f32 %v801, %v835
      %v840 = vmul.f32 %v806, %v835
      %v841 = vmul.f32 %v811, %v835
      %v842 = vmul.f32 %v816, %v835
      %v843 = vmul.f32 %v821, %v835
      %v844 = vmul.f32 %v826, %v835
      %v845 = vadd.f32 %v683, %v837
      %v846 = vadd.f32 %v684, %v838
      %v847 = vadd.f32 %v685, %v839
      %v848 = vadd.f32 %v686, %v840
      %v849 = vadd.f32 %v687, %v841
      %v850 = vadd.f32 %v688, %v842
      %v851 = vadd.f32 %v689, %v843
      %v852 = vadd.f32 %v690, %v844
      %s853 = scalar_lea.vmem %s1, 128
      %v854 = vld [vmem:[%s853] sm:$0xff]
      %v855 = vld [vmem:[%s853 + $0x8] sm:$0xff]
      %v856 = vld [vmem:[%s853 + $0x10] sm:$0xff]
      %v857 = vld [vmem:[%s853 + $0x18] sm:$0xff]
      %v858 = vld [vmem:[%s853 + $0x20] sm:$0xff]
      %v859 = vld [vmem:[%s853 + $0x28] sm:$0xff]
      %v860 = vld [vmem:[%s853 + $0x30] sm:$0xff]
      %v861 = vld [vmem:[%s853 + $0x38] sm:$0xff]
      %v863 = vsel %vm538, %v854, 0
      %v866 = vsel %vm538, %v855, 0
      %v869 = vsel %vm538, %v856, 0
      %v872 = vsel %vm538, %v857, 0
      %v875 = vsel %vm538, %v858, 0
      %v878 = vsel %vm538, %v859, 0
      %v881 = vsel %vm538, %v860, 0
      %v884 = vsel %vm538, %v861, 0
      %886 = vmatprep.subr.mxu0 0.0
      %887 = vmatpush1.msra.mxu0 0.0
      %888 = vmatprep.subr.mxu0 0.0
      %889 = vmatpush1.msra.mxu0 0.0
      %890 = vmatprep.subr.mxu0 0.0
      %891 = vmatpush1.msra.mxu0 0.0
      %892 = vmatprep.subr.mxu0 0.0
      %893 = vmatpush1.msra.mxu0 0.0
      %894 = vmatprep.subr.mxu0 0.0
      %895 = vmatpush1.msra.mxu0 0.0
      %896 = vmatprep.subr.mxu0 0.0
      %897 = vmatpush1.msra.mxu0 0.0
      %898 = vmatprep.subr.mxu0 0.0
      %899 = vmatpush1.msra.mxu0 0.0
      %900 = vmatprep.subr.mxu0 0.0
      %901 = vmatpush1.msra.mxu0 0.0
      %902 = vmatprep.subr.mxu0 0.0
      %903 = vmatpush1.msra.mxu0 %v529
      %904 = vmatprep.subr.mxu0 0.0
      %905 = vmatpush1.msra.mxu0 %v528
      %906 = vmatprep.subr.mxu0 0.0
      %907 = vmatpush1.msra.mxu0 %v527
      %908 = vmatprep.subr.mxu0 0.0
      %909 = vmatpush1.msra.mxu0 %v526
      %910 = vmatprep.subr.mxu0 0.0
      %911 = vmatpush1.msra.mxu0 %v525
      %912 = vmatprep.subr.mxu0 0.0
      %913 = vmatpush1.msra.mxu0 %v524
      %914 = vmatprep.subr.mxu0 0.0
      %915 = vmatpush1.msra.mxu0 %v523
      %916 = vmatprep.subr.mxu0 0.0
      %917 = vmatpush1.msra.mxu0 %v522
      %918 = vmatprep.subr.mxu0 0.0
      %919 = vmatpush2.msra.mxu0 0.0
      %920 = vmatprep.subr.mxu0 0.0
      %921 = vmatpush2.msra.mxu0 0.0
      %922 = vmatprep.subr.mxu0 0.0
      %923 = vmatpush2.msra.mxu0 0.0
      %924 = vmatprep.subr.mxu0 0.0
      %925 = vmatpush2.msra.mxu0 0.0
      %926 = vmatprep.subr.mxu0 0.0
      %927 = vmatpush2.msra.mxu0 0.0
      %928 = vmatprep.subr.mxu0 0.0
      %929 = vmatpush2.msra.mxu0 0.0
      %930 = vmatprep.subr.mxu0 0.0
      %931 = vmatpush2.msra.mxu0 0.0
      %932 = vmatprep.subr.mxu0 0.0
      %933 = vmatpush2.msra.mxu0 0.0
      %934 = vmatprep.subr.mxu0 0.0
      %935 = vmatpush2.msra.mxu0 0.0
      %936 = vmatprep.subr.mxu0 0.0
      %937 = vmatpush2.msra.mxu0 0.0
      %938 = vmatprep.subr.mxu0 0.0
      %939 = vmatpush2.msra.mxu0 0.0
      %940 = vmatprep.subr.mxu0 0.0
      %941 = vmatpush2.msra.mxu0 0.0
      %942 = vmatprep.subr.mxu0 0.0
      %943 = vmatpush2.msra.mxu0 0.0
      %944 = vmatprep.subr.mxu0 0.0
      %945 = vmatpush2.msra.mxu0 0.0
      %946 = vmatprep.subr.mxu0 0.0
      %947 = vmatpush2.msra.mxu0 0.0
      %948 = vmatprep.subr.mxu0 0.0
      %949 = vmatpush2.msra.mxu0 0.0
      %950 = vmatprep.mubr.f32.mxu0 0.0
      %951 = vmatmul.mubr.f32.gmra.mxu0 %v863
      %v952 = vpop.f32.mrf.mxu0
      %v953 = vadd.f32 0.0, %v952
      %v954 = vpop.f32.mrf.mxu0
      %955 = vmatprep.mubr.f32.mxu0 0.0
      %956 = vmatmul.mubr.f32.gmra.mxu0 %v866
      %v957 = vpop.f32.mrf.mxu0
      %v958 = vadd.f32 0.0, %v957
      %v959 = vpop.f32.mrf.mxu0
      %960 = vmatprep.mubr.f32.mxu0 0.0
      %961 = vmatmul.mubr.f32.gmra.mxu0 %v869
      %v962 = vpop.f32.mrf.mxu0
      %v963 = vadd.f32 0.0, %v962
      %v964 = vpop.f32.mrf.mxu0
      %965 = vmatprep.mubr.f32.mxu0 0.0
      %966 = vmatmul.mubr.f32.gmra.mxu0 %v872
      %v967 = vpop.f32.mrf.mxu0
      %v968 = vadd.f32 0.0, %v967
      %v969 = vpop.f32.mrf.mxu0
      %970 = vmatprep.mubr.f32.mxu0 0.0
      %971 = vmatmul.mubr.f32.gmra.mxu0 %v875
      %v972 = vpop.f32.mrf.mxu0
      %v973 = vadd.f32 0.0, %v972
      %v974 = vpop.f32.mrf.mxu0
      %975 = vmatprep.mubr.f32.mxu0 0.0
      %976 = vmatmul.mubr.f32.gmra.mxu0 %v878
      %v977 = vpop.f32.mrf.mxu0
      %v978 = vadd.f32 0.0, %v977
      %v979 = vpop.f32.mrf.mxu0
      %980 = vmatprep.mubr.f32.mxu0 0.0
      %981 = vmatmul.mubr.f32.gmra.mxu0 %v881
      %v982 = vpop.f32.mrf.mxu0
      %v983 = vadd.f32 0.0, %v982
      %v984 = vpop.f32.mrf.mxu0
      %985 = vmatprep.mubr.f32.mxu0 0.0
      %986 = vmatmul.mubr.f32.gmra.mxu0 %v884
      %v987 = vpop.f32.mrf.mxu0
      %v988 = vadd.f32 0.0, %v987
      %v989 = vpop.f32.mrf.mxu0
      %990 = vdwg.mxu0
      %s991 = scalar_lea.vmem %s2, 2
      %v992 = vld [vmem:[%s991] sm:$0x1]
      %v994 = vlaneseq
      %v995 = vshrl.u32 %v994, 7
      %v996 = vsub.s32 0, %v995
      %v997 = vrot.slane %v992, %v996
      %v999 = vmul.f32 %v953, %v997
      %v1000 = vmul.f32 %v958, %v997
      %v1001 = vmul.f32 %v963, %v997
      %v1002 = vmul.f32 %v968, %v997
      %v1003 = vmul.f32 %v973, %v997
      %v1004 = vmul.f32 %v978, %v997
      %v1005 = vmul.f32 %v983, %v997
      %v1006 = vmul.f32 %v988, %v997
      %v1007 = vadd.f32 %v845, %v999
      %v1008 = vadd.f32 %v846, %v1000
      %v1009 = vadd.f32 %v847, %v1001
      %v1010 = vadd.f32 %v848, %v1002
      %v1011 = vadd.f32 %v849, %v1003
      %v1012 = vadd.f32 %v850, %v1004
      %v1013 = vadd.f32 %v851, %v1005
      %v1014 = vadd.f32 %v852, %v1006
      %s1015 = scalar_lea.vmem %s1, 192
      %v1016 = vld [vmem:[%s1015] sm:$0xff]
      %v1017 = vld [vmem:[%s1015 + $0x8] sm:$0xff]
      %v1018 = vld [vmem:[%s1015 + $0x10] sm:$0xff]
      %v1019 = vld [vmem:[%s1015 + $0x18] sm:$0xff]
      %v1020 = vld [vmem:[%s1015 + $0x20] sm:$0xff]
      %v1021 = vld [vmem:[%s1015 + $0x28] sm:$0xff]
      %v1022 = vld [vmem:[%s1015 + $0x30] sm:$0xff]
      %v1023 = vld [vmem:[%s1015 + $0x38] sm:$0xff]
      %v1025 = vsel %vm538, %v1016, 0
      %v1028 = vsel %vm538, %v1017, 0
      %v1031 = vsel %vm538, %v1018, 0
      %v1034 = vsel %vm538, %v1019, 0
      %v1037 = vsel %vm538, %v1020, 0
      %v1040 = vsel %vm538, %v1021, 0
      %v1043 = vsel %vm538, %v1022, 0
      %v1046 = vsel %vm538, %v1023, 0
      %1048 = vmatprep.subr.mxu0 0.0
      %1049 = vmatpush1.msra.mxu0 0.0
      %1050 = vmatprep.subr.mxu0 0.0
      %1051 = vmatpush1.msra.mxu0 0.0
      %1052 = vmatprep.subr.mxu0 0.0
      %1053 = vmatpush1.msra.mxu0 0.0
      %1054 = vmatprep.subr.mxu0 0.0
      %1055 = vmatpush1.msra.mxu0 0.0
      %1056 = vmatprep.subr.mxu0 0.0
      %1057 = vmatpush1.msra.mxu0 0.0
      %1058 = vmatprep.subr.mxu0 0.0
      %1059 = vmatpush1.msra.mxu0 0.0
      %1060 = vmatprep.subr.mxu0 0.0
      %1061 = vmatpush1.msra.mxu0 0.0
      %1062 = vmatprep.subr.mxu0 0.0
      %1063 = vmatpush1.msra.mxu0 0.0
      %1064 = vmatprep.subr.mxu0 0.0
      %1065 = vmatpush1.msra.mxu0 %v529
      %1066 = vmatprep.subr.mxu0 0.0
      %1067 = vmatpush1.msra.mxu0 %v528
      %1068 = vmatprep.subr.mxu0 0.0
      %1069 = vmatpush1.msra.mxu0 %v527
      %1070 = vmatprep.subr.mxu0 0.0
      %1071 = vmatpush1.msra.mxu0 %v526
      %1072 = vmatprep.subr.mxu0 0.0
      %1073 = vmatpush1.msra.mxu0 %v525
      %1074 = vmatprep.subr.mxu0 0.0
      %1075 = vmatpush1.msra.mxu0 %v524
      %1076 = vmatprep.subr.mxu0 0.0
      %1077 = vmatpush1.msra.mxu0 %v523
      %1078 = vmatprep.subr.mxu0 0.0
      %1079 = vmatpush1.msra.mxu0 %v522
      %1080 = vmatprep.subr.mxu0 0.0
      %1081 = vmatpush2.msra.mxu0 0.0
      %1082 = vmatprep.subr.mxu0 0.0
      %1083 = vmatpush2.msra.mxu0 0.0
      %1084 = vmatprep.subr.mxu0 0.0
      %1085 = vmatpush2.msra.mxu0 0.0
      %1086 = vmatprep.subr.mxu0 0.0
      %1087 = vmatpush2.msra.mxu0 0.0
      %1088 = vmatprep.subr.mxu0 0.0
      %1089 = vmatpush2.msra.mxu0 0.0
      %1090 = vmatprep.subr.mxu0 0.0
      %1091 = vmatpush2.msra.mxu0 0.0
      %1092 = vmatprep.subr.mxu0 0.0
      %1093 = vmatpush2.msra.mxu0 0.0
      %1094 = vmatprep.subr.mxu0 0.0
      %1095 = vmatpush2.msra.mxu0 0.0
      %1096 = vmatprep.subr.mxu0 0.0
      %1097 = vmatpush2.msra.mxu0 0.0
      %1098 = vmatprep.subr.mxu0 0.0
      %1099 = vmatpush2.msra.mxu0 0.0
      %1100 = vmatprep.subr.mxu0 0.0
      %1101 = vmatpush2.msra.mxu0 0.0
      %1102 = vmatprep.subr.mxu0 0.0
      %1103 = vmatpush2.msra.mxu0 0.0
      %1104 = vmatprep.subr.mxu0 0.0
      %1105 = vmatpush2.msra.mxu0 0.0
      %1106 = vmatprep.subr.mxu0 0.0
      %1107 = vmatpush2.msra.mxu0 0.0
      %1108 = vmatprep.subr.mxu0 0.0
      %1109 = vmatpush2.msra.mxu0 0.0
      %1110 = vmatprep.subr.mxu0 0.0
      %1111 = vmatpush2.msra.mxu0 0.0
      %1112 = vmatprep.mubr.f32.mxu0 0.0
      %1113 = vmatmul.mubr.f32.gmra.mxu0 %v1025
      %v1114 = vpop.f32.mrf.mxu0
      %v1115 = vadd.f32 0.0, %v1114
      %v1116 = vpop.f32.mrf.mxu0
      %1117 = vmatprep.mubr.f32.mxu0 0.0
      %1118 = vmatmul.mubr.f32.gmra.mxu0 %v1028
      %v1119 = vpop.f32.mrf.mxu0
      %v1120 = vadd.f32 0.0, %v1119
      %v1121 = vpop.f32.mrf.mxu0
      %1122 = vmatprep.mubr.f32.mxu0 0.0
      %1123 = vmatmul.mubr.f32.gmra.mxu0 %v1031
      %v1124 = vpop.f32.mrf.mxu0
      %v1125 = vadd.f32 0.0, %v1124
      %v1126 = vpop.f32.mrf.mxu0
      %1127 = vmatprep.mubr.f32.mxu0 0.0
      %1128 = vmatmul.mubr.f32.gmra.mxu0 %v1034
      %v1129 = vpop.f32.mrf.mxu0
      %v1130 = vadd.f32 0.0, %v1129
      %v1131 = vpop.f32.mrf.mxu0
      %1132 = vmatprep.mubr.f32.mxu0 0.0
      %1133 = vmatmul.mubr.f32.gmra.mxu0 %v1037
      %v1134 = vpop.f32.mrf.mxu0
      %v1135 = vadd.f32 0.0, %v1134
      %v1136 = vpop.f32.mrf.mxu0
      %1137 = vmatprep.mubr.f32.mxu0 0.0
      %1138 = vmatmul.mubr.f32.gmra.mxu0 %v1040
      %v1139 = vpop.f32.mrf.mxu0
      %v1140 = vadd.f32 0.0, %v1139
      %v1141 = vpop.f32.mrf.mxu0
      %1142 = vmatprep.mubr.f32.mxu0 0.0
      %1143 = vmatmul.mubr.f32.gmra.mxu0 %v1043
      %v1144 = vpop.f32.mrf.mxu0
      %v1145 = vadd.f32 0.0, %v1144
      %v1146 = vpop.f32.mrf.mxu0
      %1147 = vmatprep.mubr.f32.mxu0 0.0
      %1148 = vmatmul.mubr.f32.gmra.mxu0 %v1046
      %v1149 = vpop.f32.mrf.mxu0
      %v1150 = vadd.f32 0.0, %v1149
      %v1151 = vpop.f32.mrf.mxu0
      %1152 = vdwg.mxu0
      %s1153 = scalar_lea.vmem %s2, 3
      %v1154 = vld [vmem:[%s1153] sm:$0x1]
      %v1156 = vlaneseq
      %v1157 = vshrl.u32 %v1156, 7
      %v1158 = vsub.s32 0, %v1157
      %v1159 = vrot.slane %v1154, %v1158
      %v1161 = vmul.f32 %v1115, %v1159
      %v1162 = vmul.f32 %v1120, %v1159
      %v1163 = vmul.f32 %v1125, %v1159
      %v1164 = vmul.f32 %v1130, %v1159
      %v1165 = vmul.f32 %v1135, %v1159
      %v1166 = vmul.f32 %v1140, %v1159
      %v1167 = vmul.f32 %v1145, %v1159
      %v1168 = vmul.f32 %v1150, %v1159
      %v1169 = vadd.f32 %v1007, %v1161
      %v1170 = vadd.f32 %v1008, %v1162
      %v1171 = vadd.f32 %v1009, %v1163
      %v1172 = vadd.f32 %v1010, %v1164
      %v1173 = vadd.f32 %v1011, %v1165
      %v1174 = vadd.f32 %v1012, %v1166
      %v1175 = vadd.f32 %v1013, %v1167
      %v1176 = vadd.f32 %v1014, %v1168
      %s1177 = scalar_lea.vmem %s1, 256
      %v1178 = vld [vmem:[%s1177] sm:$0xff]
      %v1179 = vld [vmem:[%s1177 + $0x8] sm:$0xff]
      %v1180 = vld [vmem:[%s1177 + $0x10] sm:$0xff]
      %v1181 = vld [vmem:[%s1177 + $0x18] sm:$0xff]
      %v1182 = vld [vmem:[%s1177 + $0x20] sm:$0xff]
      %v1183 = vld [vmem:[%s1177 + $0x28] sm:$0xff]
      %v1184 = vld [vmem:[%s1177 + $0x30] sm:$0xff]
      %v1185 = vld [vmem:[%s1177 + $0x38] sm:$0xff]
      %v1187 = vsel %vm538, %v1178, 0
      %v1190 = vsel %vm538, %v1179, 0
      %v1193 = vsel %vm538, %v1180, 0
      %v1196 = vsel %vm538, %v1181, 0
      %v1199 = vsel %vm538, %v1182, 0
      %v1202 = vsel %vm538, %v1183, 0
      %v1205 = vsel %vm538, %v1184, 0
      %v1208 = vsel %vm538, %v1185, 0
      %1210 = vmatprep.subr.mxu0 0.0
      %1211 = vmatpush1.msra.mxu0 0.0
      %1212 = vmatprep.subr.mxu0 0.0
      %1213 = vmatpush1.msra.mxu0 0.0
      %1214 = vmatprep.subr.mxu0 0.0
      %1215 = vmatpush1.msra.mxu0 0.0
      %1216 = vmatprep.subr.mxu0 0.0
      %1217 = vmatpush1.msra.mxu0 0.0
      %1218 = vmatprep.subr.mxu0 0.0
      %1219 = vmatpush1.msra.mxu0 0.0
      %1220 = vmatprep.subr.mxu0 0.0
      %1221 = vmatpush1.msra.mxu0 0.0
      %1222 = vmatprep.subr.mxu0 0.0
      %1223 = vmatpush1.msra.mxu0 0.0
      %1224 = vmatprep.subr.mxu0 0.0
      %1225 = vmatpush1.msra.mxu0 0.0
      %1226 = vmatprep.subr.mxu0 0.0
      %1227 = vmatpush1.msra.mxu0 %v529
      %1228 = vmatprep.subr.mxu0 0.0
      %1229 = vmatpush1.msra.mxu0 %v528
      %1230 = vmatprep.subr.mxu0 0.0
      %1231 = vmatpush1.msra.mxu0 %v527
      %1232 = vmatprep.subr.mxu0 0.0
      %1233 = vmatpush1.msra.mxu0 %v526
      %1234 = vmatprep.subr.mxu0 0.0
      %1235 = vmatpush1.msra.mxu0 %v525
      %1236 = vmatprep.subr.mxu0 0.0
      %1237 = vmatpush1.msra.mxu0 %v524
      %1238 = vmatprep.subr.mxu0 0.0
      %1239 = vmatpush1.msra.mxu0 %v523
      %1240 = vmatprep.subr.mxu0 0.0
      %1241 = vmatpush1.msra.mxu0 %v522
      %1242 = vmatprep.subr.mxu0 0.0
      %1243 = vmatpush2.msra.mxu0 0.0
      %1244 = vmatprep.subr.mxu0 0.0
      %1245 = vmatpush2.msra.mxu0 0.0
      %1246 = vmatprep.subr.mxu0 0.0
      %1247 = vmatpush2.msra.mxu0 0.0
      %1248 = vmatprep.subr.mxu0 0.0
      %1249 = vmatpush2.msra.mxu0 0.0
      %1250 = vmatprep.subr.mxu0 0.0
      %1251 = vmatpush2.msra.mxu0 0.0
      %1252 = vmatprep.subr.mxu0 0.0
      %1253 = vmatpush2.msra.mxu0 0.0
      %1254 = vmatprep.subr.mxu0 0.0
      %1255 = vmatpush2.msra.mxu0 0.0
      %1256 = vmatprep.subr.mxu0 0.0
      %1257 = vmatpush2.msra.mxu0 0.0
      %1258 = vmatprep.subr.mxu0 0.0
      %1259 = vmatpush2.msra.mxu0 0.0
      %1260 = vmatprep.subr.mxu0 0.0
      %1261 = vmatpush2.msra.mxu0 0.0
      %1262 = vmatprep.subr.mxu0 0.0
      %1263 = vmatpush2.msra.mxu0 0.0
      %1264 = vmatprep.subr.mxu0 0.0
      %1265 = vmatpush2.msra.mxu0 0.0
      %1266 = vmatprep.subr.mxu0 0.0
      %1267 = vmatpush2.msra.mxu0 0.0
      %1268 = vmatprep.subr.mxu0 0.0
      %1269 = vmatpush2.msra.mxu0 0.0
      %1270 = vmatprep.subr.mxu0 0.0
      %1271 = vmatpush2.msra.mxu0 0.0
      %1272 = vmatprep.subr.mxu0 0.0
      %1273 = vmatpush2.msra.mxu0 0.0
      %1274 = vmatprep.mubr.f32.mxu0 0.0
      %1275 = vmatmul.mubr.f32.gmra.mxu0 %v1187
      %v1276 = vpop.f32.mrf.mxu0
      %v1277 = vadd.f32 0.0, %v1276
      %v1278 = vpop.f32.mrf.mxu0
      %1279 = vmatprep.mubr.f32.mxu0 0.0
      %1280 = vmatmul.mubr.f32.gmra.mxu0 %v1190
      %v1281 = vpop.f32.mrf.mxu0
      %v1282 = vadd.f32 0.0, %v1281
      %v1283 = vpop.f32.mrf.mxu0
      %1284 = vmatprep.mubr.f32.mxu0 0.0
      %1285 = vmatmul.mubr.f32.gmra.mxu0 %v1193
      %v1286 = vpop.f32.mrf.mxu0
      %v1287 = vadd.f32 0.0, %v1286
      %v1288 = vpop.f32.mrf.mxu0
      %1289 = vmatprep.mubr.f32.mxu0 0.0
      %1290 = vmatmul.mubr.f32.gmra.mxu0 %v1196
      %v1291 = vpop.f32.mrf.mxu0
      %v1292 = vadd.f32 0.0, %v1291
      %v1293 = vpop.f32.mrf.mxu0
      %1294 = vmatprep.mubr.f32.mxu0 0.0
      %1295 = vmatmul.mubr.f32.gmra.mxu0 %v1199
      %v1296 = vpop.f32.mrf.mxu0
      %v1297 = vadd.f32 0.0, %v1296
      %v1298 = vpop.f32.mrf.mxu0
      %1299 = vmatprep.mubr.f32.mxu0 0.0
      %1300 = vmatmul.mubr.f32.gmra.mxu0 %v1202
      %v1301 = vpop.f32.mrf.mxu0
      %v1302 = vadd.f32 0.0, %v1301
      %v1303 = vpop.f32.mrf.mxu0
      %1304 = vmatprep.mubr.f32.mxu0 0.0
      %1305 = vmatmul.mubr.f32.gmra.mxu0 %v1205
      %v1306 = vpop.f32.mrf.mxu0
      %v1307 = vadd.f32 0.0, %v1306
      %v1308 = vpop.f32.mrf.mxu0
      %1309 = vmatprep.mubr.f32.mxu0 0.0
      %1310 = vmatmul.mubr.f32.gmra.mxu0 %v1208
      %v1311 = vpop.f32.mrf.mxu0
      %v1312 = vadd.f32 0.0, %v1311
      %v1313 = vpop.f32.mrf.mxu0
      %1314 = vdwg.mxu0
      %s1315 = scalar_lea.vmem %s2, 4
      %v1316 = vld [vmem:[%s1315] sm:$0x1]
      %v1318 = vlaneseq
      %v1319 = vshrl.u32 %v1318, 7
      %v1320 = vsub.s32 0, %v1319
      %v1321 = vrot.slane %v1316, %v1320
      %v1323 = vmul.f32 %v1277, %v1321
      %v1324 = vmul.f32 %v1282, %v1321
      %v1325 = vmul.f32 %v1287, %v1321
      %v1326 = vmul.f32 %v1292, %v1321
      %v1327 = vmul.f32 %v1297, %v1321
      %v1328 = vmul.f32 %v1302, %v1321
      %v1329 = vmul.f32 %v1307, %v1321
      %v1330 = vmul.f32 %v1312, %v1321
      %v1331 = vadd.f32 %v1169, %v1323
      %v1332 = vadd.f32 %v1170, %v1324
      %v1333 = vadd.f32 %v1171, %v1325
      %v1334 = vadd.f32 %v1172, %v1326
      %v1335 = vadd.f32 %v1173, %v1327
      %v1336 = vadd.f32 %v1174, %v1328
      %v1337 = vadd.f32 %v1175, %v1329
      %v1338 = vadd.f32 %v1176, %v1330
      %s1339 = scalar_lea.vmem %s1, 320
      %v1340 = vld [vmem:[%s1339] sm:$0xff]
      %v1341 = vld [vmem:[%s1339 + $0x8] sm:$0xff]
      %v1342 = vld [vmem:[%s1339 + $0x10] sm:$0xff]
      %v1343 = vld [vmem:[%s1339 + $0x18] sm:$0xff]
      %v1344 = vld [vmem:[%s1339 + $0x20] sm:$0xff]
      %v1345 = vld [vmem:[%s1339 + $0x28] sm:$0xff]
      %v1346 = vld [vmem:[%s1339 + $0x30] sm:$0xff]
      %v1347 = vld [vmem:[%s1339 + $0x38] sm:$0xff]
      %v1349 = vsel %vm538, %v1340, 0
      %v1352 = vsel %vm538, %v1341, 0
      %v1355 = vsel %vm538, %v1342, 0
      %v1358 = vsel %vm538, %v1343, 0
      %v1361 = vsel %vm538, %v1344, 0
      %v1364 = vsel %vm538, %v1345, 0
      %v1367 = vsel %vm538, %v1346, 0
      %v1370 = vsel %vm538, %v1347, 0
      %1372 = vmatprep.subr.mxu0 0.0
      %1373 = vmatpush1.msra.mxu0 0.0
      %1374 = vmatprep.subr.mxu0 0.0
      %1375 = vmatpush1.msra.mxu0 0.0
      %1376 = vmatprep.subr.mxu0 0.0
      %1377 = vmatpush1.msra.mxu0 0.0
      %1378 = vmatprep.subr.mxu0 0.0
      %1379 = vmatpush1.msra.mxu0 0.0
      %1380 = vmatprep.subr.mxu0 0.0
      %1381 = vmatpush1.msra.mxu0 0.0
      %1382 = vmatprep.subr.mxu0 0.0
      %1383 = vmatpush1.msra.mxu0 0.0
      %1384 = vmatprep.subr.mxu0 0.0
      %1385 = vmatpush1.msra.mxu0 0.0
      %1386 = vmatprep.subr.mxu0 0.0
      %1387 = vmatpush1.msra.mxu0 0.0
      %1388 = vmatprep.subr.mxu0 0.0
      %1389 = vmatpush1.msra.mxu0 %v529
      %1390 = vmatprep.subr.mxu0 0.0
      %1391 = vmatpush1.msra.mxu0 %v528
      %1392 = vmatprep.subr.mxu0 0.0
      %1393 = vmatpush1.msra.mxu0 %v527
      %1394 = vmatprep.subr.mxu0 0.0
      %1395 = vmatpush1.msra.mxu0 %v526
      %1396 = vmatprep.subr.mxu0 0.0
      %1397 = vmatpush1.msra.mxu0 %v525
      %1398 = vmatprep.subr.mxu0 0.0
      %1399 = vmatpush1.msra.mxu0 %v524
      %1400 = vmatprep.subr.mxu0 0.0
      %1401 = vmatpush1.msra.mxu0 %v523
      %1402 = vmatprep.subr.mxu0 0.0
      %1403 = vmatpush1.msra.mxu0 %v522
      %1404 = vmatprep.subr.mxu0 0.0
      %1405 = vmatpush2.msra.mxu0 0.0
      %1406 = vmatprep.subr.mxu0 0.0
      %1407 = vmatpush2.msra.mxu0 0.0
      %1408 = vmatprep.subr.mxu0 0.0
      %1409 = vmatpush2.msra.mxu0 0.0
      %1410 = vmatprep.subr.mxu0 0.0
      %1411 = vmatpush2.msra.mxu0 0.0
      %1412 = vmatprep.subr.mxu0 0.0
      %1413 = vmatpush2.msra.mxu0 0.0
      %1414 = vmatprep.subr.mxu0 0.0
      %1415 = vmatpush2.msra.mxu0 0.0
      %1416 = vmatprep.subr.mxu0 0.0
      %1417 = vmatpush2.msra.mxu0 0.0
      %1418 = vmatprep.subr.mxu0 0.0
      %1419 = vmatpush2.msra.mxu0 0.0
      %1420 = vmatprep.subr.mxu0 0.0
      %1421 = vmatpush2.msra.mxu0 0.0
      %1422 = vmatprep.subr.mxu0 0.0
      %1423 = vmatpush2.msra.mxu0 0.0
      %1424 = vmatprep.subr.mxu0 0.0
      %1425 = vmatpush2.msra.mxu0 0.0
      %1426 = vmatprep.subr.mxu0 0.0
      %1427 = vmatpush2.msra.mxu0 0.0
      %1428 = vmatprep.subr.mxu0 0.0
      %1429 = vmatpush2.msra.mxu0 0.0
      %1430 = vmatprep.subr.mxu0 0.0
      %1431 = vmatpush2.msra.mxu0 0.0
      %1432 = vmatprep.subr.mxu0 0.0
      %1433 = vmatpush2.msra.mxu0 0.0
      %1434 = vmatprep.subr.mxu0 0.0
      %1435 = vmatpush2.msra.mxu0 0.0
      %1436 = vmatprep.mubr.f32.mxu0 0.0
      %1437 = vmatmul.mubr.f32.gmra.mxu0 %v1349
      %v1438 = vpop.f32.mrf.mxu0
      %v1439 = vadd.f32 0.0, %v1438
      %v1440 = vpop.f32.mrf.mxu0
      %1441 = vmatprep.mubr.f32.mxu0 0.0
      %1442 = vmatmul.mubr.f32.gmra.mxu0 %v1352
      %v1443 = vpop.f32.mrf.mxu0
      %v1444 = vadd.f32 0.0, %v1443
      %v1445 = vpop.f32.mrf.mxu0
      %1446 = vmatprep.mubr.f32.mxu0 0.0
      %1447 = vmatmul.mubr.f32.gmra.mxu0 %v1355
      %v1448 = vpop.f32.mrf.mxu0
      %v1449 = vadd.f32 0.0, %v1448
      %v1450 = vpop.f32.mrf.mxu0
      %1451 = vmatprep.mubr.f32.mxu0 0.0
      %1452 = vmatmul.mubr.f32.gmra.mxu0 %v1358
      %v1453 = vpop.f32.mrf.mxu0
      %v1454 = vadd.f32 0.0, %v1453
      %v1455 = vpop.f32.mrf.mxu0
      %1456 = vmatprep.mubr.f32.mxu0 0.0
      %1457 = vmatmul.mubr.f32.gmra.mxu0 %v1361
      %v1458 = vpop.f32.mrf.mxu0
      %v1459 = vadd.f32 0.0, %v1458
      %v1460 = vpop.f32.mrf.mxu0
      %1461 = vmatprep.mubr.f32.mxu0 0.0
      %1462 = vmatmul.mubr.f32.gmra.mxu0 %v1364
      %v1463 = vpop.f32.mrf.mxu0
      %v1464 = vadd.f32 0.0, %v1463
      %v1465 = vpop.f32.mrf.mxu0
      %1466 = vmatprep.mubr.f32.mxu0 0.0
      %1467 = vmatmul.mubr.f32.gmra.mxu0 %v1367
      %v1468 = vpop.f32.mrf.mxu0
      %v1469 = vadd.f32 0.0, %v1468
      %v1470 = vpop.f32.mrf.mxu0
      %1471 = vmatprep.mubr.f32.mxu0 0.0
      %1472 = vmatmul.mubr.f32.gmra.mxu0 %v1370
      %v1473 = vpop.f32.mrf.mxu0
      %v1474 = vadd.f32 0.0, %v1473
      %v1475 = vpop.f32.mrf.mxu0
      %1476 = vdwg.mxu0
      %s1477 = scalar_lea.vmem %s2, 5
      %v1478 = vld [vmem:[%s1477] sm:$0x1]
      %v1480 = vlaneseq
      %v1481 = vshrl.u32 %v1480, 7
      %v1482 = vsub.s32 0, %v1481
      %v1483 = vrot.slane %v1478, %v1482
      %v1485 = vmul.f32 %v1439, %v1483
      %v1486 = vmul.f32 %v1444, %v1483
      %v1487 = vmul.f32 %v1449, %v1483
      %v1488 = vmul.f32 %v1454, %v1483
      %v1489 = vmul.f32 %v1459, %v1483
      %v1490 = vmul.f32 %v1464, %v1483
      %v1491 = vmul.f32 %v1469, %v1483
      %v1492 = vmul.f32 %v1474, %v1483
      %v1493 = vadd.f32 %v1331, %v1485
      %v1494 = vadd.f32 %v1332, %v1486
      %v1495 = vadd.f32 %v1333, %v1487
      %v1496 = vadd.f32 %v1334, %v1488
      %v1497 = vadd.f32 %v1335, %v1489
      %v1498 = vadd.f32 %v1336, %v1490
      %v1499 = vadd.f32 %v1337, %v1491
      %v1500 = vadd.f32 %v1338, %v1492
      %s1501 = scalar_lea.vmem %s1, 384
      %v1502 = vld [vmem:[%s1501] sm:$0xff]
      %v1503 = vld [vmem:[%s1501 + $0x8] sm:$0xff]
      %v1504 = vld [vmem:[%s1501 + $0x10] sm:$0xff]
      %v1505 = vld [vmem:[%s1501 + $0x18] sm:$0xff]
      %v1506 = vld [vmem:[%s1501 + $0x20] sm:$0xff]
      %v1507 = vld [vmem:[%s1501 + $0x28] sm:$0xff]
      %v1508 = vld [vmem:[%s1501 + $0x30] sm:$0xff]
      %v1509 = vld [vmem:[%s1501 + $0x38] sm:$0xff]
      %v1511 = vsel %vm538, %v1502, 0
      %v1514 = vsel %vm538, %v1503, 0
      %v1517 = vsel %vm538, %v1504, 0
      %v1520 = vsel %vm538, %v1505, 0
      %v1523 = vsel %vm538, %v1506, 0
      %v1526 = vsel %vm538, %v1507, 0
      %v1529 = vsel %vm538, %v1508, 0
      %v1532 = vsel %vm538, %v1509, 0
      %1534 = vmatprep.subr.mxu0 0.0
      %1535 = vmatpush1.msra.mxu0 0.0
      %1536 = vmatprep.subr.mxu0 0.0
      %1537 = vmatpush1.msra.mxu0 0.0
      %1538 = vmatprep.subr.mxu0 0.0
      %1539 = vmatpush1.msra.mxu0 0.0
      %1540 = vmatprep.subr.mxu0 0.0
      %1541 = vmatpush1.msra.mxu0 0.0
      %1542 = vmatprep.subr.mxu0 0.0
      %1543 = vmatpush1.msra.mxu0 0.0
      %1544 = vmatprep.subr.mxu0 0.0
      %1545 = vmatpush1.msra.mxu0 0.0
      %1546 = vmatprep.subr.mxu0 0.0
      %1547 = vmatpush1.msra.mxu0 0.0
      %1548 = vmatprep.subr.mxu0 0.0
      %1549 = vmatpush1.msra.mxu0 0.0
      %1550 = vmatprep.subr.mxu0 0.0
      %1551 = vmatpush1.msra.mxu0 %v529
      %1552 = vmatprep.subr.mxu0 0.0
      %1553 = vmatpush1.msra.mxu0 %v528
      %1554 = vmatprep.subr.mxu0 0.0
      %1555 = vmatpush1.msra.mxu0 %v527
      %1556 = vmatprep.subr.mxu0 0.0
      %1557 = vmatpush1.msra.mxu0 %v526
      %1558 = vmatprep.subr.mxu0 0.0
      %1559 = vmatpush1.msra.mxu0 %v525
      %1560 = vmatprep.subr.mxu0 0.0
      %1561 = vmatpush1.msra.mxu0 %v524
      %1562 = vmatprep.subr.mxu0 0.0
      %1563 = vmatpush1.msra.mxu0 %v523
      %1564 = vmatprep.subr.mxu0 0.0
      %1565 = vmatpush1.msra.mxu0 %v522
      %1566 = vmatprep.subr.mxu0 0.0
      %1567 = vmatpush2.msra.mxu0 0.0
      %1568 = vmatprep.subr.mxu0 0.0
      %1569 = vmatpush2.msra.mxu0 0.0
      %1570 = vmatprep.subr.mxu0 0.0
      %1571 = vmatpush2.msra.mxu0 0.0
      %1572 = vmatprep.subr.mxu0 0.0
      %1573 = vmatpush2.msra.mxu0 0.0
      %1574 = vmatprep.subr.mxu0 0.0
      %1575 = vmatpush2.msra.mxu0 0.0
      %1576 = vmatprep.subr.mxu0 0.0
      %1577 = vmatpush2.msra.mxu0 0.0
      %1578 = vmatprep.subr.mxu0 0.0
      %1579 = vmatpush2.msra.mxu0 0.0
      %1580 = vmatprep.subr.mxu0 0.0
      %1581 = vmatpush2.msra.mxu0 0.0
      %1582 = vmatprep.subr.mxu0 0.0
      %1583 = vmatpush2.msra.mxu0 0.0
      %1584 = vmatprep.subr.mxu0 0.0
      %1585 = vmatpush2.msra.mxu0 0.0
      %1586 = vmatprep.subr.mxu0 0.0
      %1587 = vmatpush2.msra.mxu0 0.0
      %1588 = vmatprep.subr.mxu0 0.0
      %1589 = vmatpush2.msra.mxu0 0.0
      %1590 = vmatprep.subr.mxu0 0.0
      %1591 = vmatpush2.msra.mxu0 0.0
      %1592 = vmatprep.subr.mxu0 0.0
      %1593 = vmatpush2.msra.mxu0 0.0
      %1594 = vmatprep.subr.mxu0 0.0
      %1595 = vmatpush2.msra.mxu0 0.0
      %1596 = vmatprep.subr.mxu0 0.0
      %1597 = vmatpush2.msra.mxu0 0.0
      %1598 = vmatprep.mubr.f32.mxu0 0.0
      %1599 = vmatmul.mubr.f32.gmra.mxu0 %v1511
      %v1600 = vpop.f32.mrf.mxu0
      %v1601 = vadd.f32 0.0, %v1600
      %v1602 = vpop.f32.mrf.mxu0
      %1603 = vmatprep.mubr.f32.mxu0 0.0
      %1604 = vmatmul.mubr.f32.gmra.mxu0 %v1514
      %v1605 = vpop.f32.mrf.mxu0
      %v1606 = vadd.f32 0.0, %v1605
      %v1607 = vpop.f32.mrf.mxu0
      %1608 = vmatprep.mubr.f32.mxu0 0.0
      %1609 = vmatmul.mubr.f32.gmra.mxu0 %v1517
      %v1610 = vpop.f32.mrf.mxu0
      %v1611 = vadd.f32 0.0, %v1610
      %v1612 = vpop.f32.mrf.mxu0
      %1613 = vmatprep.mubr.f32.mxu0 0.0
      %1614 = vmatmul.mubr.f32.gmra.mxu0 %v1520
      %v1615 = vpop.f32.mrf.mxu0
      %v1616 = vadd.f32 0.0, %v1615
      %v1617 = vpop.f32.mrf.mxu0
      %1618 = vmatprep.mubr.f32.mxu0 0.0
      %1619 = vmatmul.mubr.f32.gmra.mxu0 %v1523
      %v1620 = vpop.f32.mrf.mxu0
      %v1621 = vadd.f32 0.0, %v1620
      %v1622 = vpop.f32.mrf.mxu0
      %1623 = vmatprep.mubr.f32.mxu0 0.0
      %1624 = vmatmul.mubr.f32.gmra.mxu0 %v1526
      %v1625 = vpop.f32.mrf.mxu0
      %v1626 = vadd.f32 0.0, %v1625
      %v1627 = vpop.f32.mrf.mxu0
      %1628 = vmatprep.mubr.f32.mxu0 0.0
      %1629 = vmatmul.mubr.f32.gmra.mxu0 %v1529
      %v1630 = vpop.f32.mrf.mxu0
      %v1631 = vadd.f32 0.0, %v1630
      %v1632 = vpop.f32.mrf.mxu0
      %1633 = vmatprep.mubr.f32.mxu0 0.0
      %1634 = vmatmul.mubr.f32.gmra.mxu0 %v1532
      %v1635 = vpop.f32.mrf.mxu0
      %v1636 = vadd.f32 0.0, %v1635
      %v1637 = vpop.f32.mrf.mxu0
      %1638 = vdwg.mxu0
      %s1639 = scalar_lea.vmem %s2, 6
      %v1640 = vld [vmem:[%s1639] sm:$0x1]
      %v1642 = vlaneseq
      %v1643 = vshrl.u32 %v1642, 7
      %v1644 = vsub.s32 0, %v1643
      %v1645 = vrot.slane %v1640, %v1644
      %v1647 = vmul.f32 %v1601, %v1645
      %v1648 = vmul.f32 %v1606, %v1645
      %v1649 = vmul.f32 %v1611, %v1645
      %v1650 = vmul.f32 %v1616, %v1645
      %v1651 = vmul.f32 %v1621, %v1645
      %v1652 = vmul.f32 %v1626, %v1645
      %v1653 = vmul.f32 %v1631, %v1645
      %v1654 = vmul.f32 %v1636, %v1645
      %v1655 = vadd.f32 %v1493, %v1647
      %v1656 = vadd.f32 %v1494, %v1648
      %v1657 = vadd.f32 %v1495, %v1649
      %v1658 = vadd.f32 %v1496, %v1650
      %v1659 = vadd.f32 %v1497, %v1651
      %v1660 = vadd.f32 %v1498, %v1652
      %v1661 = vadd.f32 %v1499, %v1653
      %v1662 = vadd.f32 %v1500, %v1654
      %s1663 = scalar_lea.vmem %s1, 448
      %v1664 = vld [vmem:[%s1663] sm:$0xff]
      %v1665 = vld [vmem:[%s1663 + $0x8] sm:$0xff]
      %v1666 = vld [vmem:[%s1663 + $0x10] sm:$0xff]
      %v1667 = vld [vmem:[%s1663 + $0x18] sm:$0xff]
      %v1668 = vld [vmem:[%s1663 + $0x20] sm:$0xff]
      %v1669 = vld [vmem:[%s1663 + $0x28] sm:$0xff]
      %v1670 = vld [vmem:[%s1663 + $0x30] sm:$0xff]
      %v1671 = vld [vmem:[%s1663 + $0x38] sm:$0xff]
      %v1673 = vsel %vm538, %v1664, 0
      %v1676 = vsel %vm538, %v1665, 0
      %v1679 = vsel %vm538, %v1666, 0
      %v1682 = vsel %vm538, %v1667, 0
      %v1685 = vsel %vm538, %v1668, 0
      %v1688 = vsel %vm538, %v1669, 0
      %v1691 = vsel %vm538, %v1670, 0
      %v1694 = vsel %vm538, %v1671, 0
      %1696 = vmatprep.subr.mxu0 0.0
      %1697 = vmatpush1.msra.mxu0 0.0
      %1698 = vmatprep.subr.mxu0 0.0
      %1699 = vmatpush1.msra.mxu0 0.0
      %1700 = vmatprep.subr.mxu0 0.0
      %1701 = vmatpush1.msra.mxu0 0.0
      %1702 = vmatprep.subr.mxu0 0.0
      %1703 = vmatpush1.msra.mxu0 0.0
      %1704 = vmatprep.subr.mxu0 0.0
      %1705 = vmatpush1.msra.mxu0 0.0
      %1706 = vmatprep.subr.mxu0 0.0
      %1707 = vmatpush1.msra.mxu0 0.0
      %1708 = vmatprep.subr.mxu0 0.0
      %1709 = vmatpush1.msra.mxu0 0.0
      %1710 = vmatprep.subr.mxu0 0.0
      %1711 = vmatpush1.msra.mxu0 0.0
      %1712 = vmatprep.subr.mxu0 0.0
      %1713 = vmatpush1.msra.mxu0 %v529
      %1714 = vmatprep.subr.mxu0 0.0
      %1715 = vmatpush1.msra.mxu0 %v528
      %1716 = vmatprep.subr.mxu0 0.0
      %1717 = vmatpush1.msra.mxu0 %v527
      %1718 = vmatprep.subr.mxu0 0.0
      %1719 = vmatpush1.msra.mxu0 %v526
      %1720 = vmatprep.subr.mxu0 0.0
      %1721 = vmatpush1.msra.mxu0 %v525
      %1722 = vmatprep.subr.mxu0 0.0
      %1723 = vmatpush1.msra.mxu0 %v524
      %1724 = vmatprep.subr.mxu0 0.0
      %1725 = vmatpush1.msra.mxu0 %v523
      %1726 = vmatprep.subr.mxu0 0.0
      %1727 = vmatpush1.msra.mxu0 %v522
      %1728 = vmatprep.subr.mxu0 0.0
      %1729 = vmatpush2.msra.mxu0 0.0
      %1730 = vmatprep.subr.mxu0 0.0
      %1731 = vmatpush2.msra.mxu0 0.0
      %1732 = vmatprep.subr.mxu0 0.0
      %1733 = vmatpush2.msra.mxu0 0.0
      %1734 = vmatprep.subr.mxu0 0.0
      %1735 = vmatpush2.msra.mxu0 0.0
      %1736 = vmatprep.subr.mxu0 0.0
      %1737 = vmatpush2.msra.mxu0 0.0
      %1738 = vmatprep.subr.mxu0 0.0
      %1739 = vmatpush2.msra.mxu0 0.0
      %1740 = vmatprep.subr.mxu0 0.0
      %1741 = vmatpush2.msra.mxu0 0.0
      %1742 = vmatprep.subr.mxu0 0.0
      %1743 = vmatpush2.msra.mxu0 0.0
      %1744 = vmatprep.subr.mxu0 0.0
      %1745 = vmatpush2.msra.mxu0 0.0
      %1746 = vmatprep.subr.mxu0 0.0
      %1747 = vmatpush2.msra.mxu0 0.0
      %1748 = vmatprep.subr.mxu0 0.0
      %1749 = vmatpush2.msra.mxu0 0.0
      %1750 = vmatprep.subr.mxu0 0.0
      %1751 = vmatpush2.msra.mxu0 0.0
      %1752 = vmatprep.subr.mxu0 0.0
      %1753 = vmatpush2.msra.mxu0 0.0
      %1754 = vmatprep.subr.mxu0 0.0
      %1755 = vmatpush2.msra.mxu0 0.0
      %1756 = vmatprep.subr.mxu0 0.0
      %1757 = vmatpush2.msra.mxu0 0.0
      %1758 = vmatprep.subr.mxu0 0.0
      %1759 = vmatpush2.msra.mxu0 0.0
      %1760 = vmatprep.mubr.f32.mxu0 0.0
      %1761 = vmatmul.mubr.f32.gmra.mxu0 %v1673
      %v1762 = vpop.f32.mrf.mxu0
      %v1763 = vadd.f32 0.0, %v1762
      %v1764 = vpop.f32.mrf.mxu0
      %1765 = vmatprep.mubr.f32.mxu0 0.0
      %1766 = vmatmul.mubr.f32.gmra.mxu0 %v1676
      %v1767 = vpop.f32.mrf.mxu0
      %v1768 = vadd.f32 0.0, %v1767
      %v1769 = vpop.f32.mrf.mxu0
      %1770 = vmatprep.mubr.f32.mxu0 0.0
      %1771 = vmatmul.mubr.f32.gmra.mxu0 %v1679
      %v1772 = vpop.f32.mrf.mxu0
      %v1773 = vadd.f32 0.0, %v1772
      %v1774 = vpop.f32.mrf.mxu0
      %1775 = vmatprep.mubr.f32.mxu0 0.0
      %1776 = vmatmul.mubr.f32.gmra.mxu0 %v1682
      %v1777 = vpop.f32.mrf.mxu0
      %v1778 = vadd.f32 0.0, %v1777
      %v1779 = vpop.f32.mrf.mxu0
      %1780 = vmatprep.mubr.f32.mxu0 0.0
      %1781 = vmatmul.mubr.f32.gmra.mxu0 %v1685
      %v1782 = vpop.f32.mrf.mxu0
      %v1783 = vadd.f32 0.0, %v1782
      %v1784 = vpop.f32.mrf.mxu0
      %1785 = vmatprep.mubr.f32.mxu0 0.0
      %1786 = vmatmul.mubr.f32.gmra.mxu0 %v1688
      %v1787 = vpop.f32.mrf.mxu0
      %v1788 = vadd.f32 0.0, %v1787
      %v1789 = vpop.f32.mrf.mxu0
      %1790 = vmatprep.mubr.f32.mxu0 0.0
      %1791 = vmatmul.mubr.f32.gmra.mxu0 %v1691
      %v1792 = vpop.f32.mrf.mxu0
      %v1793 = vadd.f32 0.0, %v1792
      %v1794 = vpop.f32.mrf.mxu0
      %1795 = vmatprep.mubr.f32.mxu0 0.0
      %1796 = vmatmul.mubr.f32.gmra.mxu0 %v1694
      %v1797 = vpop.f32.mrf.mxu0
      %v1798 = vadd.f32 0.0, %v1797
      %v1799 = vpop.f32.mrf.mxu0
      %1800 = vdwg.mxu0
      %s1801 = scalar_lea.vmem %s2, 7
      %v1802 = vld [vmem:[%s1801] sm:$0x1]
      %v1804 = vlaneseq
      %v1805 = vshrl.u32 %v1804, 7
      %v1806 = vsub.s32 0, %v1805
      %v1807 = vrot.slane %v1802, %v1806
      %v1809 = vmul.f32 %v1763, %v1807
      %v1810 = vmul.f32 %v1768, %v1807
      %v1811 = vmul.f32 %v1773, %v1807
      %v1812 = vmul.f32 %v1778, %v1807
      %v1813 = vmul.f32 %v1783, %v1807
      %v1814 = vmul.f32 %v1788, %v1807
      %v1815 = vmul.f32 %v1793, %v1807
      %v1816 = vmul.f32 %v1798, %v1807
      %v1817 = vadd.f32 %v1655, %v1809
      %v1818 = vadd.f32 %v1656, %v1810
      %v1819 = vadd.f32 %v1657, %v1811
      %v1820 = vadd.f32 %v1658, %v1812
      %v1821 = vadd.f32 %v1659, %v1813
      %v1822 = vadd.f32 %v1660, %v1814
      %v1823 = vadd.f32 %v1661, %v1815
      %v1824 = vadd.f32 %v1662, %v1816
      %s1825 = scalar_lea.vmem %s1, 512
      %v1826 = vld [vmem:[%s1825] sm:$0xff]
      %v1827 = vld [vmem:[%s1825 + $0x8] sm:$0xff]
      %v1828 = vld [vmem:[%s1825 + $0x10] sm:$0xff]
      %v1829 = vld [vmem:[%s1825 + $0x18] sm:$0xff]
      %v1830 = vld [vmem:[%s1825 + $0x20] sm:$0xff]
      %v1831 = vld [vmem:[%s1825 + $0x28] sm:$0xff]
      %v1832 = vld [vmem:[%s1825 + $0x30] sm:$0xff]
      %v1833 = vld [vmem:[%s1825 + $0x38] sm:$0xff]
      %v1835 = vsel %vm538, %v1826, 0
      %v1838 = vsel %vm538, %v1827, 0
      %v1841 = vsel %vm538, %v1828, 0
      %v1844 = vsel %vm538, %v1829, 0
      %v1847 = vsel %vm538, %v1830, 0
      %v1850 = vsel %vm538, %v1831, 0
      %v1853 = vsel %vm538, %v1832, 0
      %v1856 = vsel %vm538, %v1833, 0
      %1858 = vmatprep.subr.mxu0 0.0
      %1859 = vmatpush1.msra.mxu0 0.0
      %1860 = vmatprep.subr.mxu0 0.0
      %1861 = vmatpush1.msra.mxu0 0.0
      %1862 = vmatprep.subr.mxu0 0.0
      %1863 = vmatpush1.msra.mxu0 0.0
      %1864 = vmatprep.subr.mxu0 0.0
      %1865 = vmatpush1.msra.mxu0 0.0
      %1866 = vmatprep.subr.mxu0 0.0
      %1867 = vmatpush1.msra.mxu0 0.0
      %1868 = vmatprep.subr.mxu0 0.0
      %1869 = vmatpush1.msra.mxu0 0.0
      %1870 = vmatprep.subr.mxu0 0.0
      %1871 = vmatpush1.msra.mxu0 0.0
      %1872 = vmatprep.subr.mxu0 0.0
      %1873 = vmatpush1.msra.mxu0 0.0
      %1874 = vmatprep.subr.mxu0 0.0
      %1875 = vmatpush1.msra.mxu0 %v529
      %1876 = vmatprep.subr.mxu0 0.0
      %1877 = vmatpush1.msra.mxu0 %v528
      %1878 = vmatprep.subr.mxu0 0.0
      %1879 = vmatpush1.msra.mxu0 %v527
      %1880 = vmatprep.subr.mxu0 0.0
      %1881 = vmatpush1.msra.mxu0 %v526
      %1882 = vmatprep.subr.mxu0 0.0
      %1883 = vmatpush1.msra.mxu0 %v525
      %1884 = vmatprep.subr.mxu0 0.0
      %1885 = vmatpush1.msra.mxu0 %v524
      %1886 = vmatprep.subr.mxu0 0.0
      %1887 = vmatpush1.msra.mxu0 %v523
      %1888 = vmatprep.subr.mxu0 0.0
      %1889 = vmatpush1.msra.mxu0 %v522
      %1890 = vmatprep.subr.mxu0 0.0
      %1891 = vmatpush2.msra.mxu0 0.0
      %1892 = vmatprep.subr.mxu0 0.0
      %1893 = vmatpush2.msra.mxu0 0.0
      %1894 = vmatprep.subr.mxu0 0.0
      %1895 = vmatpush2.msra.mxu0 0.0
      %1896 = vmatprep.subr.mxu0 0.0
      %1897 = vmatpush2.msra.mxu0 0.0
      %1898 = vmatprep.subr.mxu0 0.0
      %1899 = vmatpush2.msra.mxu0 0.0
      %1900 = vmatprep.subr.mxu0 0.0
      %1901 = vmatpush2.msra.mxu0 0.0
      %1902 = vmatprep.subr.mxu0 0.0
      %1903 = vmatpush2.msra.mxu0 0.0
      %1904 = vmatprep.subr.mxu0 0.0
      %1905 = vmatpush2.msra.mxu0 0.0
      %1906 = vmatprep.subr.mxu0 0.0
      %1907 = vmatpush2.msra.mxu0 0.0
      %1908 = vmatprep.subr.mxu0 0.0
      %1909 = vmatpush2.msra.mxu0 0.0
      %1910 = vmatprep.subr.mxu0 0.0
      %1911 = vmatpush2.msra.mxu0 0.0
      %1912 = vmatprep.subr.mxu0 0.0
      %1913 = vmatpush2.msra.mxu0 0.0
      %1914 = vmatprep.subr.mxu0 0.0
      %1915 = vmatpush2.msra.mxu0 0.0
      %1916 = vmatprep.subr.mxu0 0.0
      %1917 = vmatpush2.msra.mxu0 0.0
      %1918 = vmatprep.subr.mxu0 0.0
      %1919 = vmatpush2.msra.mxu0 0.0
      %1920 = vmatprep.subr.mxu0 0.0
      %1921 = vmatpush2.msra.mxu0 0.0
      %1922 = vmatprep.mubr.f32.mxu0 0.0
      %1923 = vmatmul.mubr.f32.gmra.mxu0 %v1835
      %v1924 = vpop.f32.mrf.mxu0
      %v1925 = vadd.f32 0.0, %v1924
      %v1926 = vpop.f32.mrf.mxu0
      %1927 = vmatprep.mubr.f32.mxu0 0.0
      %1928 = vmatmul.mubr.f32.gmra.mxu0 %v1838
      %v1929 = vpop.f32.mrf.mxu0
      %v1930 = vadd.f32 0.0, %v1929
      %v1931 = vpop.f32.mrf.mxu0
      %1932 = vmatprep.mubr.f32.mxu0 0.0
      %1933 = vmatmul.mubr.f32.gmra.mxu0 %v1841
      %v1934 = vpop.f32.mrf.mxu0
      %v1935 = vadd.f32 0.0, %v1934
      %v1936 = vpop.f32.mrf.mxu0
      %1937 = vmatprep.mubr.f32.mxu0 0.0
      %1938 = vmatmul.mubr.f32.gmra.mxu0 %v1844
      %v1939 = vpop.f32.mrf.mxu0
      %v1940 = vadd.f32 0.0, %v1939
      %v1941 = vpop.f32.mrf.mxu0
      %1942 = vmatprep.mubr.f32.mxu0 0.0
      %1943 = vmatmul.mubr.f32.gmra.mxu0 %v1847
      %v1944 = vpop.f32.mrf.mxu0
      %v1945 = vadd.f32 0.0, %v1944
      %v1946 = vpop.f32.mrf.mxu0
      %1947 = vmatprep.mubr.f32.mxu0 0.0
      %1948 = vmatmul.mubr.f32.gmra.mxu0 %v1850
      %v1949 = vpop.f32.mrf.mxu0
      %v1950 = vadd.f32 0.0, %v1949
      %v1951 = vpop.f32.mrf.mxu0
      %1952 = vmatprep.mubr.f32.mxu0 0.0
      %1953 = vmatmul.mubr.f32.gmra.mxu0 %v1853
      %v1954 = vpop.f32.mrf.mxu0
      %v1955 = vadd.f32 0.0, %v1954
      %v1956 = vpop.f32.mrf.mxu0
      %1957 = vmatprep.mubr.f32.mxu0 0.0
      %1958 = vmatmul.mubr.f32.gmra.mxu0 %v1856
      %v1959 = vpop.f32.mrf.mxu0
      %v1960 = vadd.f32 0.0, %v1959
      %v1961 = vpop.f32.mrf.mxu0
      %1962 = vdwg.mxu0
      %s1963 = scalar_lea.vmem %s2, 8
      %v1964 = vld [vmem:[%s1963] sm:$0x1]
      %v1966 = vlaneseq
      %v1967 = vshrl.u32 %v1966, 7
      %v1968 = vsub.s32 0, %v1967
      %v1969 = vrot.slane %v1964, %v1968
      %v1971 = vmul.f32 %v1925, %v1969
      %v1972 = vmul.f32 %v1930, %v1969
      %v1973 = vmul.f32 %v1935, %v1969
      %v1974 = vmul.f32 %v1940, %v1969
      %v1975 = vmul.f32 %v1945, %v1969
      %v1976 = vmul.f32 %v1950, %v1969
      %v1977 = vmul.f32 %v1955, %v1969
      %v1978 = vmul.f32 %v1960, %v1969
      %v1979 = vadd.f32 %v1817, %v1971
      %v1980 = vadd.f32 %v1818, %v1972
      %v1981 = vadd.f32 %v1819, %v1973
      %v1982 = vadd.f32 %v1820, %v1974
      %v1983 = vadd.f32 %v1821, %v1975
      %v1984 = vadd.f32 %v1822, %v1976
      %v1985 = vadd.f32 %v1823, %v1977
      %v1986 = vadd.f32 %v1824, %v1978
      %v1987 = vld [vmem:[%s3] sm:$0x1]
      %v1989 = vlaneseq
      %v1990 = vshrl.u32 %v1989, 7
      %v1991 = vsub.s32 0, %v1990
      %v1992 = vrot.slane %v1987, %v1991
      %v1994 = vadd.f32 %v1979, %v1992
      %v1995 = vadd.f32 %v1980, %v1992
      %v1996 = vadd.f32 %v1981, %v1992
      %v1997 = vadd.f32 %v1982, %v1992
      %v1998 = vadd.f32 %v1983, %v1992
      %v1999 = vadd.f32 %v1984, %v1992
      %v2000 = vadd.f32 %v1985, %v1992
      %v2001 = vadd.f32 %v1986, %v1992
      %v2002 = vmul.f32 %v1994, 0.5
      %v2003 = vmul.f32 %v1995, 0.5
      %v2004 = vmul.f32 %v1996, 0.5
      %v2005 = vmul.f32 %v1997, 0.5
      %v2006 = vmul.f32 %v1998, 0.5
      %v2007 = vmul.f32 %v1999, 0.5
      %v2008 = vmul.f32 %v2000, 0.5
      %v2009 = vmul.f32 %v2001, 0.5
      %v2010 = vmul.f32 %v1994, 0.70710677
      %v2011 = vmul.f32 %v1995, 0.70710677
      %v2012 = vmul.f32 %v1996, 0.70710677
      %v2013 = vmul.f32 %v1997, 0.70710677
      %v2014 = vmul.f32 %v1998, 0.70710677
      %v2015 = vmul.f32 %v1999, 0.70710677
      %v2016 = vmul.f32 %v2000, 0.70710677
      %v2017 = vmul.f32 %v2001, 0.70710677
      %v2018 = vand.u32 2147483647, %v2010
      %v2019 = vand.u32 2147483647, %v2011
      %v2020 = vand.u32 2147483647, %v2012
      %v2021 = vand.u32 2147483647, %v2013
      %v2022 = vand.u32 2147483647, %v2014
      %v2023 = vand.u32 2147483647, %v2015
      %v2024 = vand.u32 2147483647, %v2016
      %v2025 = vand.u32 2147483647, %v2017
      %v2026 = vmul.f32 %v2018, 0.3275911
      %v2027 = vmul.f32 %v2019, 0.3275911
      %v2028 = vmul.f32 %v2020, 0.3275911
      %v2029 = vmul.f32 %v2021, 0.3275911
      %v2030 = vmul.f32 %v2022, 0.3275911
      %v2031 = vmul.f32 %v2023, 0.3275911
      %v2032 = vmul.f32 %v2024, 0.3275911
      %v2033 = vmul.f32 %v2025, 0.3275911
      %v2034 = vadd.f32 %v2026, 1.0
      %v2035 = vadd.f32 %v2027, 1.0
      %v2036 = vadd.f32 %v2028, 1.0
      %v2037 = vadd.f32 %v2029, 1.0
      %v2038 = vadd.f32 %v2030, 1.0
      %v2039 = vadd.f32 %v2031, 1.0
      %v2040 = vadd.f32 %v2032, 1.0
      %v2041 = vadd.f32 %v2033, 1.0
      %v2042 = vrcp.pop %v2034
      %v2043 = vmul.f32 1.0, %v2042
      %v2044 = vrcp.pop %v2035
      %v2045 = vmul.f32 1.0, %v2044
      %v2046 = vrcp.pop %v2036
      %v2047 = vmul.f32 1.0, %v2046
      %v2048 = vrcp.pop %v2037
      %v2049 = vmul.f32 1.0, %v2048
      %v2050 = vrcp.pop %v2038
      %v2051 = vmul.f32 1.0, %v2050
      %v2052 = vrcp.pop %v2039
      %v2053 = vmul.f32 1.0, %v2052
      %v2054 = vrcp.pop %v2040
      %v2055 = vmul.f32 1.0, %v2054
      %v2056 = vrcp.pop %v2041
      %v2057 = vmul.f32 1.0, %v2056
      %v2058 = vmul.f32 %v2043, 1.0614054
      %v2059 = vmul.f32 %v2045, 1.0614054
      %v2060 = vmul.f32 %v2047, 1.0614054
      %v2061 = vmul.f32 %v2049, 1.0614054
      %v2062 = vmul.f32 %v2051, 1.0614054
      %v2063 = vmul.f32 %v2053, 1.0614054
      %v2064 = vmul.f32 %v2055, 1.0614054
      %v2065 = vmul.f32 %v2057, 1.0614054
      %v2066 = vadd.f32 %v2058, -1.4531521
      %v2067 = vadd.f32 %v2059, -1.4531521
      %v2068 = vadd.f32 %v2060, -1.4531521
      %v2069 = vadd.f32 %v2061, -1.4531521
      %v2070 = vadd.f32 %v2062, -1.4531521
      %v2071 = vadd.f32 %v2063, -1.4531521
      %v2072 = vadd.f32 %v2064, -1.4531521
      %v2073 = vadd.f32 %v2065, -1.4531521
      %v2074 = vmul.f32 %v2066, %v2043
      %v2075 = vmul.f32 %v2067, %v2045
      %v2076 = vmul.f32 %v2068, %v2047
      %v2077 = vmul.f32 %v2069, %v2049
      %v2078 = vmul.f32 %v2070, %v2051
      %v2079 = vmul.f32 %v2071, %v2053
      %v2080 = vmul.f32 %v2072, %v2055
      %v2081 = vmul.f32 %v2073, %v2057
      %v2082 = vadd.f32 %v2074, 1.4214138
      %v2083 = vadd.f32 %v2075, 1.4214138
      %v2084 = vadd.f32 %v2076, 1.4214138
      %v2085 = vadd.f32 %v2077, 1.4214138
      %v2086 = vadd.f32 %v2078, 1.4214138
      %v2087 = vadd.f32 %v2079, 1.4214138
      %v2088 = vadd.f32 %v2080, 1.4214138
      %v2089 = vadd.f32 %v2081, 1.4214138
      %v2090 = vmul.f32 %v2082, %v2043
      %v2091 = vmul.f32 %v2083, %v2045
      %v2092 = vmul.f32 %v2084, %v2047
      %v2093 = vmul.f32 %v2085, %v2049
      %v2094 = vmul.f32 %v2086, %v2051
      %v2095 = vmul.f32 %v2087, %v2053
      %v2096 = vmul.f32 %v2088, %v2055
      %v2097 = vmul.f32 %v2089, %v2057
      %v2098 = vadd.f32 %v2090, -0.28449672
      %v2099 = vadd.f32 %v2091, -0.28449672
      %v2100 = vadd.f32 %v2092, -0.28449672
      %v2101 = vadd.f32 %v2093, -0.28449672
      %v2102 = vadd.f32 %v2094, -0.28449672
      %v2103 = vadd.f32 %v2095, -0.28449672
      %v2104 = vadd.f32 %v2096, -0.28449672
      %v2105 = vadd.f32 %v2097, -0.28449672
      %v2106 = vmul.f32 %v2098, %v2043
      %v2107 = vmul.f32 %v2099, %v2045
      %v2108 = vmul.f32 %v2100, %v2047
      %v2109 = vmul.f32 %v2101, %v2049
      %v2110 = vmul.f32 %v2102, %v2051
      %v2111 = vmul.f32 %v2103, %v2053
      %v2112 = vmul.f32 %v2104, %v2055
      %v2113 = vmul.f32 %v2105, %v2057
      %v2114 = vadd.f32 %v2106, 0.2548296
      %v2115 = vadd.f32 %v2107, 0.2548296
      %v2116 = vadd.f32 %v2108, 0.2548296
      %v2117 = vadd.f32 %v2109, 0.2548296
      %v2118 = vadd.f32 %v2110, 0.2548296
      %v2119 = vadd.f32 %v2111, 0.2548296
      %v2120 = vadd.f32 %v2112, 0.2548296
      %v2121 = vadd.f32 %v2113, 0.2548296
      %v2122 = vmul.f32 %v2114, %v2043
      %v2123 = vmul.f32 %v2115, %v2045
      %v2124 = vmul.f32 %v2116, %v2047
      %v2125 = vmul.f32 %v2117, %v2049
      %v2126 = vmul.f32 %v2118, %v2051
      %v2127 = vmul.f32 %v2119, %v2053
      %v2128 = vmul.f32 %v2120, %v2055
      %v2129 = vmul.f32 %v2121, %v2057
      %v2130 = vsub.f32 0.0, %v2018
      %v2131 = vsub.f32 0.0, %v2019
      %v2132 = vsub.f32 0.0, %v2020
      %v2133 = vsub.f32 0.0, %v2021
      %v2134 = vsub.f32 0.0, %v2022
      %v2135 = vsub.f32 0.0, %v2023
      %v2136 = vsub.f32 0.0, %v2024
      %v2137 = vsub.f32 0.0, %v2025
      %v2138 = vmul.f32 %v2130, %v2018
      %v2139 = vmul.f32 %v2131, %v2019
      %v2140 = vmul.f32 %v2132, %v2020
      %v2141 = vmul.f32 %v2133, %v2021
      %v2142 = vmul.f32 %v2134, %v2022
      %v2143 = vmul.f32 %v2135, %v2023
      %v2144 = vmul.f32 %v2136, %v2024
      %v2145 = vmul.f32 %v2137, %v2025
      %v2146 = vmul.f32 %v2138, 1.442695
      %v2147 = vpow.pop %v2146
      %v2148 = vmul.f32 %v2139, 1.442695
      %v2149 = vpow.pop %v2148
      %v2150 = vmul.f32 %v2140, 1.442695
      %v2151 = vpow.pop %v2150
      %v2152 = vmul.f32 %v2141, 1.442695
      %v2153 = vpow.pop %v2152
      %v2154 = vmul.f32 %v2142, 1.442695
      %v2155 = vpow.pop %v2154
      %v2156 = vmul.f32 %v2143, 1.442695
      %v2157 = vpow.pop %v2156
      %v2158 = vmul.f32 %v2144, 1.442695
      %v2159 = vpow.pop %v2158
      %v2160 = vmul.f32 %v2145, 1.442695
      %v2161 = vpow.pop %v2160
      %v2162 = vmul.f32 %v2122, %v2147
      %v2163 = vmul.f32 %v2123, %v2149
      %v2164 = vmul.f32 %v2124, %v2151
      %v2165 = vmul.f32 %v2125, %v2153
      %v2166 = vmul.f32 %v2126, %v2155
      %v2167 = vmul.f32 %v2127, %v2157
      %v2168 = vmul.f32 %v2128, %v2159
      %v2169 = vmul.f32 %v2129, %v2161
      %v2170 = vsub.f32 1.0, %v2162
      %v2171 = vsub.f32 1.0, %v2163
      %v2172 = vsub.f32 1.0, %v2164
      %v2173 = vsub.f32 1.0, %v2165
      %v2174 = vsub.f32 1.0, %v2166
      %v2175 = vsub.f32 1.0, %v2167
      %v2176 = vsub.f32 1.0, %v2168
      %v2177 = vsub.f32 1.0, %v2169
      %vm2178 = vcmp.lt.f32.partialorder %v2010, 0.0
      %vm2179 = vcmp.lt.f32.partialorder %v2011, 0.0
      %vm2180 = vcmp.lt.f32.partialorder %v2012, 0.0
      %vm2181 = vcmp.lt.f32.partialorder %v2013, 0.0
      %vm2182 = vcmp.lt.f32.partialorder %v2014, 0.0
      %vm2183 = vcmp.lt.f32.partialorder %v2015, 0.0
      %vm2184 = vcmp.lt.f32.partialorder %v2016, 0.0
      %vm2185 = vcmp.lt.f32.partialorder %v2017, 0.0
      %v2186 = vsub.f32 0.0, %v2170
      %v2187 = vsub.f32 0.0, %v2171
      %v2188 = vsub.f32 0.0, %v2172
      %v2189 = vsub.f32 0.0, %v2173
      %v2190 = vsub.f32 0.0, %v2174
      %v2191 = vsub.f32 0.0, %v2175
      %v2192 = vsub.f32 0.0, %v2176
      %v2193 = vsub.f32 0.0, %v2177
      %v2194 = vsel %vm2178, %v2186, %v2170
      %v2195 = vsel %vm2179, %v2187, %v2171
      %v2196 = vsel %vm2180, %v2188, %v2172
      %v2197 = vsel %vm2181, %v2189, %v2173
      %v2198 = vsel %vm2182, %v2190, %v2174
      %v2199 = vsel %vm2183, %v2191, %v2175
      %v2200 = vsel %vm2184, %v2192, %v2176
      %v2201 = vsel %vm2185, %v2193, %v2177
      %v2202 = vadd.f32 %v2194, 1.0
      %v2203 = vadd.f32 %v2195, 1.0
      %v2204 = vadd.f32 %v2196, 1.0
      %v2205 = vadd.f32 %v2197, 1.0
      %v2206 = vadd.f32 %v2198, 1.0
      %v2207 = vadd.f32 %v2199, 1.0
      %v2208 = vadd.f32 %v2200, 1.0
      %v2209 = vadd.f32 %v2201, 1.0
      %v2210 = vmul.f32 %v2002, %v2202
      %v2211 = vmul.f32 %v2003, %v2203
      %v2212 = vmul.f32 %v2004, %v2204
      %v2213 = vmul.f32 %v2005, %v2205
      %v2214 = vmul.f32 %v2006, %v2206
      %v2215 = vmul.f32 %v2007, %v2207
      %v2216 = vmul.f32 %v2008, %v2208
      %v2217 = vmul.f32 %v2009, %v2209
      %v2218 = vadd.f32 %v522, %v2210
      %v2219 = vadd.f32 %v523, %v2211
      %v2220 = vadd.f32 %v524, %v2212
      %v2221 = vadd.f32 %v525, %v2213
      %v2222 = vadd.f32 %v526, %v2214
      %v2223 = vadd.f32 %v527, %v2215
      %v2224 = vadd.f32 %v528, %v2216
      %v2225 = vadd.f32 %v529, %v2217
      %v2226 = vld [vmem:[%s4] sm:$0x1]
      %v2227 = vld [vmem:[%s5] sm:$0x1]
      %vm2228 = vcmask 261120
      %v2229 = vsel %vm2228, %v2218, 0.0
      %2230 = vadd.xlane.f32.xlu0 %v2229
      %v2231 = vpop.xlane.xlu0 %2230
      %v2232 = vsel %vm2228, %v2219, 0.0
      %2233 = vadd.xlane.f32.xlu0 %v2232
      %v2234 = vpop.xlane.xlu0 %2233
      %v2235 = vsel %vm2228, %v2220, 0.0
      %2236 = vadd.xlane.f32.xlu0 %v2235
      %v2237 = vpop.xlane.xlu0 %2236
      %v2238 = vsel %vm2228, %v2221, 0.0
      %2239 = vadd.xlane.f32.xlu0 %v2238
      %v2240 = vpop.xlane.xlu0 %2239
      %v2241 = vsel %vm2228, %v2222, 0.0
      %2242 = vadd.xlane.f32.xlu0 %v2241
      %v2243 = vpop.xlane.xlu0 %2242
      %v2244 = vsel %vm2228, %v2223, 0.0
      %2245 = vadd.xlane.f32.xlu0 %v2244
      %v2246 = vpop.xlane.xlu0 %2245
      %v2247 = vsel %vm2228, %v2224, 0.0
      %2248 = vadd.xlane.f32.xlu0 %v2247
      %v2249 = vpop.xlane.xlu0 %2248
      %v2250 = vsel %vm2228, %v2225, 0.0
      %2251 = vadd.xlane.f32.xlu0 %v2250
      %v2252 = vpop.xlane.xlu0 %2251
      %v2253 = vrcp.pop 32.0
      %v2254 = vmul.f32 %v2231, %v2253
      %v2255 = vmul.f32 %v2234, %v2253
      %v2256 = vmul.f32 %v2237, %v2253
      %v2257 = vmul.f32 %v2240, %v2253
      %v2258 = vmul.f32 %v2243, %v2253
      %v2259 = vmul.f32 %v2246, %v2253
      %v2260 = vmul.f32 %v2249, %v2253
      %v2261 = vmul.f32 %v2252, %v2253
      %v2262 = vsub.f32 %v2218, %v2254
      %v2263 = vsub.f32 %v2219, %v2255
      %v2264 = vsub.f32 %v2220, %v2256
      %v2265 = vsub.f32 %v2221, %v2257
      %v2266 = vsub.f32 %v2222, %v2258
      %v2267 = vsub.f32 %v2223, %v2259
      %v2268 = vsub.f32 %v2224, %v2260
      %v2269 = vsub.f32 %v2225, %v2261
      %v2270 = vmul.f32 %v2262, %v2262
      %v2271 = vmul.f32 %v2263, %v2263
      %v2272 = vmul.f32 %v2264, %v2264
      %v2273 = vmul.f32 %v2265, %v2265
      %v2274 = vmul.f32 %v2266, %v2266
      %v2275 = vmul.f32 %v2267, %v2267
      %v2276 = vmul.f32 %v2268, %v2268
      %v2277 = vmul.f32 %v2269, %v2269
      %v2278 = vsel %vm2228, %v2270, 0.0
      %2279 = vadd.xlane.f32.xlu0 %v2278
      %v2280 = vpop.xlane.xlu0 %2279
      %v2281 = vsel %vm2228, %v2271, 0.0
      %2282 = vadd.xlane.f32.xlu0 %v2281
      %v2283 = vpop.xlane.xlu0 %2282
      %v2284 = vsel %vm2228, %v2272, 0.0
      %2285 = vadd.xlane.f32.xlu0 %v2284
      %v2286 = vpop.xlane.xlu0 %2285
      %v2287 = vsel %vm2228, %v2273, 0.0
      %2288 = vadd.xlane.f32.xlu0 %v2287
      %v2289 = vpop.xlane.xlu0 %2288
      %v2290 = vsel %vm2228, %v2274, 0.0
      %2291 = vadd.xlane.f32.xlu0 %v2290
      %v2292 = vpop.xlane.xlu0 %2291
      %v2293 = vsel %vm2228, %v2275, 0.0
      %2294 = vadd.xlane.f32.xlu0 %v2293
      %v2295 = vpop.xlane.xlu0 %2294
      %v2296 = vsel %vm2228, %v2276, 0.0
      %2297 = vadd.xlane.f32.xlu0 %v2296
      %v2298 = vpop.xlane.xlu0 %2297
      %v2299 = vsel %vm2228, %v2277, 0.0
      %2300 = vadd.xlane.f32.xlu0 %v2299
      %v2301 = vpop.xlane.xlu0 %2300
      %v2302 = vmul.f32 %v2280, %v2253
      %v2303 = vmul.f32 %v2283, %v2253
      %v2304 = vmul.f32 %v2286, %v2253
      %v2305 = vmul.f32 %v2289, %v2253
      %v2306 = vmul.f32 %v2292, %v2253
      %v2307 = vmul.f32 %v2295, %v2253
      %v2308 = vmul.f32 %v2298, %v2253
      %v2309 = vmul.f32 %v2301, %v2253
      %v2310 = vadd.f32 %v2302, 1e-05
      %v2311 = vadd.f32 %v2303, 1e-05
      %v2312 = vadd.f32 %v2304, 1e-05
      %v2313 = vadd.f32 %v2305, 1e-05
      %v2314 = vadd.f32 %v2306, 1e-05
      %v2315 = vadd.f32 %v2307, 1e-05
      %v2316 = vadd.f32 %v2308, 1e-05
      %v2317 = vadd.f32 %v2309, 1e-05
      %v2318 = vrsqrt.pop %v2310
      %v2319 = vrsqrt.pop %v2311
      %v2320 = vrsqrt.pop %v2312
      %v2321 = vrsqrt.pop %v2313
      %v2322 = vrsqrt.pop %v2314
      %v2323 = vrsqrt.pop %v2315
      %v2324 = vrsqrt.pop %v2316
      %v2325 = vrsqrt.pop %v2317
      %v2326 = vmul.f32 %v2262, %v2318
      %v2327 = vmul.f32 %v2263, %v2319
      %v2328 = vmul.f32 %v2264, %v2320
      %v2329 = vmul.f32 %v2265, %v2321
      %v2330 = vmul.f32 %v2266, %v2322
      %v2331 = vmul.f32 %v2267, %v2323
      %v2332 = vmul.f32 %v2268, %v2324
      %v2333 = vmul.f32 %v2269, %v2325
      %v2335 = vlaneseq
      %v2336 = vshrl.u32 %v2335, 7
      %v2337 = vsub.s32 0, %v2336
      %v2338 = vrot.slane %v2226, %v2337
      %v2340 = vmul.f32 %v2326, %v2338
      %v2341 = vmul.f32 %v2327, %v2338
      %v2342 = vmul.f32 %v2328, %v2338
      %v2343 = vmul.f32 %v2329, %v2338
      %v2344 = vmul.f32 %v2330, %v2338
      %v2345 = vmul.f32 %v2331, %v2338
      %v2346 = vmul.f32 %v2332, %v2338
      %v2347 = vmul.f32 %v2333, %v2338
      %v2349 = vlaneseq
      %v2350 = vshrl.u32 %v2349, 7
      %v2351 = vsub.s32 0, %v2350
      %v2352 = vrot.slane %v2227, %v2351
      %v2354 = vadd.f32 %v2340, %v2352
      %v2355 = vadd.f32 %v2341, %v2352
      %v2356 = vadd.f32 %v2342, %v2352
      %v2357 = vadd.f32 %v2343, %v2352
      %v2358 = vadd.f32 %v2344, %v2352
      %v2359 = vadd.f32 %v2345, %v2352
      %v2360 = vadd.f32 %v2346, %v2352
      %v2361 = vadd.f32 %v2347, %v2352
      %v2362 = vld [vmem:[%s6] sm:$0xff]
      %v2363 = vld [vmem:[%s6 + $0x8] sm:$0xff]
      %v2364 = vld [vmem:[%s6 + $0x10] sm:$0xff]
      %v2365 = vld [vmem:[%s6 + $0x18] sm:$0xff]
      %v2366 = vld [vmem:[%s7] sm:$0x1]
      %v2368 = vlaneseq
      %v2369 = vshrl.u32 %v2368, 7
      %v2370 = vsub.s32 0, %v2369
      %v2371 = vrot.slane %v2366, %v2370
      %v2374 = vsel %vm2228, %v2354, 0
      %v2377 = vsel %vm2228, %v2355, 0
      %v2380 = vsel %vm2228, %v2356, 0
      %v2383 = vsel %vm2228, %v2357, 0
      %v2386 = vsel %vm2228, %v2358, 0
      %v2389 = vsel %vm2228, %v2359, 0
      %v2392 = vsel %vm2228, %v2360, 0
      %v2395 = vsel %vm2228, %v2361, 0
      %2397 = vmatprep.subr.mxu0 0.0
      %2398 = vmatpush1.msra.mxu0 0.0
      %2399 = vmatprep.subr.mxu0 0.0
      %2400 = vmatpush1.msra.mxu0 0.0
      %2401 = vmatprep.subr.mxu0 0.0
      %2402 = vmatpush1.msra.mxu0 0.0
      %2403 = vmatprep.subr.mxu0 0.0
      %2404 = vmatpush1.msra.mxu0 0.0
      %2405 = vmatprep.subr.mxu0 0.0
      %2406 = vmatpush1.msra.mxu0 0.0
      %2407 = vmatprep.subr.mxu0 0.0
      %2408 = vmatpush1.msra.mxu0 0.0
      %2409 = vmatprep.subr.mxu0 0.0
      %2410 = vmatpush1.msra.mxu0 0.0
      %2411 = vmatprep.subr.mxu0 0.0
      %2412 = vmatpush1.msra.mxu0 0.0
      %2413 = vmatprep.subr.mxu0 0.0
      %2414 = vmatpush1.msra.mxu0 0.0
      %2415 = vmatprep.subr.mxu0 0.0
      %2416 = vmatpush1.msra.mxu0 0.0
      %2417 = vmatprep.subr.mxu0 0.0
      %2418 = vmatpush1.msra.mxu0 0.0
      %2419 = vmatprep.subr.mxu0 0.0
      %2420 = vmatpush1.msra.mxu0 0.0
      %2421 = vmatprep.subr.mxu0 0.0
      %2422 = vmatpush1.msra.mxu0 %v2365
      %2423 = vmatprep.subr.mxu0 0.0
      %2424 = vmatpush1.msra.mxu0 %v2364
      %2425 = vmatprep.subr.mxu0 0.0
      %2426 = vmatpush1.msra.mxu0 %v2363
      %2427 = vmatprep.subr.mxu0 0.0
      %2428 = vmatpush1.msra.mxu0 %v2362
      %2429 = vmatprep.subr.mxu0 0.0
      %2430 = vmatpush2.msra.mxu0 0.0
      %2431 = vmatprep.subr.mxu0 0.0
      %2432 = vmatpush2.msra.mxu0 0.0
      %2433 = vmatprep.subr.mxu0 0.0
      %2434 = vmatpush2.msra.mxu0 0.0
      %2435 = vmatprep.subr.mxu0 0.0
      %2436 = vmatpush2.msra.mxu0 0.0
      %2437 = vmatprep.subr.mxu0 0.0
      %2438 = vmatpush2.msra.mxu0 0.0
      %2439 = vmatprep.subr.mxu0 0.0
      %2440 = vmatpush2.msra.mxu0 0.0
      %2441 = vmatprep.subr.mxu0 0.0
      %2442 = vmatpush2.msra.mxu0 0.0
      %2443 = vmatprep.subr.mxu0 0.0
      %2444 = vmatpush2.msra.mxu0 0.0
      %2445 = vmatprep.subr.mxu0 0.0
      %2446 = vmatpush2.msra.mxu0 0.0
      %2447 = vmatprep.subr.mxu0 0.0
      %2448 = vmatpush2.msra.mxu0 0.0
      %2449 = vmatprep.subr.mxu0 0.0
      %2450 = vmatpush2.msra.mxu0 0.0
      %2451 = vmatprep.subr.mxu0 0.0
      %2452 = vmatpush2.msra.mxu0 0.0
      %2453 = vmatprep.subr.mxu0 0.0
      %2454 = vmatpush2.msra.mxu0 0.0
      %2455 = vmatprep.subr.mxu0 0.0
      %2456 = vmatpush2.msra.mxu0 0.0
      %2457 = vmatprep.subr.mxu0 0.0
      %2458 = vmatpush2.msra.mxu0 0.0
      %2459 = vmatprep.subr.mxu0 0.0
      %2460 = vmatpush2.msra.mxu0 0.0
      %2461 = vmatprep.mubr.f32.mxu0 0.0
      %2462 = vmatmul.mubr.f32.gmra.mxu0 %v2374
      %v2463 = vpop.f32.mrf.mxu0
      %v2464 = vadd.f32 %v2371, %v2463
      %v2465 = vpop.f32.mrf.mxu0
      %2466 = vmatprep.mubr.f32.mxu0 0.0
      %2467 = vmatmul.mubr.f32.gmra.mxu0 %v2377
      %v2468 = vpop.f32.mrf.mxu0
      %v2469 = vadd.f32 %v2371, %v2468
      %v2470 = vpop.f32.mrf.mxu0
      %2471 = vmatprep.mubr.f32.mxu0 0.0
      %2472 = vmatmul.mubr.f32.gmra.mxu0 %v2380
      %v2473 = vpop.f32.mrf.mxu0
      %v2474 = vadd.f32 %v2371, %v2473
      %v2475 = vpop.f32.mrf.mxu0
      %2476 = vmatprep.mubr.f32.mxu0 0.0
      %2477 = vmatmul.mubr.f32.gmra.mxu0 %v2383
      %v2478 = vpop.f32.mrf.mxu0
      %v2479 = vadd.f32 %v2371, %v2478
      %v2480 = vpop.f32.mrf.mxu0
      %2481 = vmatprep.mubr.f32.mxu0 0.0
      %2482 = vmatmul.mubr.f32.gmra.mxu0 %v2386
      %v2483 = vpop.f32.mrf.mxu0
      %v2484 = vadd.f32 %v2371, %v2483
      %v2485 = vpop.f32.mrf.mxu0
      %2486 = vmatprep.mubr.f32.mxu0 0.0
      %2487 = vmatmul.mubr.f32.gmra.mxu0 %v2389
      %v2488 = vpop.f32.mrf.mxu0
      %v2489 = vadd.f32 %v2371, %v2488
      %v2490 = vpop.f32.mrf.mxu0
      %2491 = vmatprep.mubr.f32.mxu0 0.0
      %2492 = vmatmul.mubr.f32.gmra.mxu0 %v2392
      %v2493 = vpop.f32.mrf.mxu0
      %v2494 = vadd.f32 %v2371, %v2493
      %v2495 = vpop.f32.mrf.mxu0
      %2496 = vmatprep.mubr.f32.mxu0 0.0
      %2497 = vmatmul.mubr.f32.gmra.mxu0 %v2395
      %v2498 = vpop.f32.mrf.mxu0
      %v2499 = vadd.f32 %v2371, %v2498
      %v2500 = vpop.f32.mrf.mxu0
      %2501 = vdwg.mxu0
      %s2502 = scalar_lea.vmem %s6, 128
      %v2503 = vld [vmem:[%s2502] sm:$0xff]
      %v2504 = vld [vmem:[%s2502 + $0x8] sm:$0xff]
      %v2505 = vld [vmem:[%s2502 + $0x10] sm:$0xff]
      %v2506 = vld [vmem:[%s2502 + $0x18] sm:$0xff]
      %s2507 = scalar_lea.vmem %s7, 4
      %v2508 = vld [vmem:[%s2507] sm:$0x1]
      %v2510 = vlaneseq
      %v2511 = vshrl.u32 %v2510, 7
      %v2512 = vsub.s32 0, %v2511
      %v2513 = vrot.slane %v2508, %v2512
      %2515 = vmatprep.subr.mxu0 0.0
      %2516 = vmatpush1.msra.mxu0 0.0
      %2517 = vmatprep.subr.mxu0 0.0
      %2518 = vmatpush1.msra.mxu0 0.0
      %2519 = vmatprep.subr.mxu0 0.0
      %2520 = vmatpush1.msra.mxu0 0.0
      %2521 = vmatprep.subr.mxu0 0.0
      %2522 = vmatpush1.msra.mxu0 0.0
      %2523 = vmatprep.subr.mxu0 0.0
      %2524 = vmatpush1.msra.mxu0 0.0
      %2525 = vmatprep.subr.mxu0 0.0
      %2526 = vmatpush1.msra.mxu0 0.0
      %2527 = vmatprep.subr.mxu0 0.0
      %2528 = vmatpush1.msra.mxu0 0.0
      %2529 = vmatprep.subr.mxu0 0.0
      %2530 = vmatpush1.msra.mxu0 0.0
      %2531 = vmatprep.subr.mxu0 0.0
      %2532 = vmatpush1.msra.mxu0 0.0
      %2533 = vmatprep.subr.mxu0 0.0
      %2534 = vmatpush1.msra.mxu0 0.0
      %2535 = vmatprep.subr.mxu0 0.0
      %2536 = vmatpush1.msra.mxu0 0.0
      %2537 = vmatprep.subr.mxu0 0.0
      %2538 = vmatpush1.msra.mxu0 0.0
      %2539 = vmatprep.subr.mxu0 0.0
      %2540 = vmatpush1.msra.mxu0 %v2506
      %2541 = vmatprep.subr.mxu0 0.0
      %2542 = vmatpush1.msra.mxu0 %v2505
      %2543 = vmatprep.subr.mxu0 0.0
      %2544 = vmatpush1.msra.mxu0 %v2504
      %2545 = vmatprep.subr.mxu0 0.0
      %2546 = vmatpush1.msra.mxu0 %v2503
      %2547 = vmatprep.subr.mxu0 0.0
      %2548 = vmatpush2.msra.mxu0 0.0
      %2549 = vmatprep.subr.mxu0 0.0
      %2550 = vmatpush2.msra.mxu0 0.0
      %2551 = vmatprep.subr.mxu0 0.0
      %2552 = vmatpush2.msra.mxu0 0.0
      %2553 = vmatprep.subr.mxu0 0.0
      %2554 = vmatpush2.msra.mxu0 0.0
      %2555 = vmatprep.subr.mxu0 0.0
      %2556 = vmatpush2.msra.mxu0 0.0
      %2557 = vmatprep.subr.mxu0 0.0
      %2558 = vmatpush2.msra.mxu0 0.0
      %2559 = vmatprep.subr.mxu0 0.0
      %2560 = vmatpush2.msra.mxu0 0.0
      %2561 = vmatprep.subr.mxu0 0.0
      %2562 = vmatpush2.msra.mxu0 0.0
      %2563 = vmatprep.subr.mxu0 0.0
      %2564 = vmatpush2.msra.mxu0 0.0
      %2565 = vmatprep.subr.mxu0 0.0
      %2566 = vmatpush2.msra.mxu0 0.0
      %2567 = vmatprep.subr.mxu0 0.0
      %2568 = vmatpush2.msra.mxu0 0.0
      %2569 = vmatprep.subr.mxu0 0.0
      %2570 = vmatpush2.msra.mxu0 0.0
      %2571 = vmatprep.subr.mxu0 0.0
      %2572 = vmatpush2.msra.mxu0 0.0
      %2573 = vmatprep.subr.mxu0 0.0
      %2574 = vmatpush2.msra.mxu0 0.0
      %2575 = vmatprep.subr.mxu0 0.0
      %2576 = vmatpush2.msra.mxu0 0.0
      %2577 = vmatprep.subr.mxu0 0.0
      %2578 = vmatpush2.msra.mxu0 0.0
      %2579 = vmatprep.mubr.f32.mxu0 0.0
      %2580 = vmatmul.mubr.f32.gmra.mxu0 %v2374
      %v2581 = vpop.f32.mrf.mxu0
      %v2582 = vadd.f32 %v2513, %v2581
      %v2583 = vpop.f32.mrf.mxu0
      %2584 = vmatprep.mubr.f32.mxu0 0.0
      %2585 = vmatmul.mubr.f32.gmra.mxu0 %v2377
      %v2586 = vpop.f32.mrf.mxu0
      %v2587 = vadd.f32 %v2513, %v2586
      %v2588 = vpop.f32.mrf.mxu0
      %2589 = vmatprep.mubr.f32.mxu0 0.0
      %2590 = vmatmul.mubr.f32.gmra.mxu0 %v2380
      %v2591 = vpop.f32.mrf.mxu0
      %v2592 = vadd.f32 %v2513, %v2591
      %v2593 = vpop.f32.mrf.mxu0
      %2594 = vmatprep.mubr.f32.mxu0 0.0
      %2595 = vmatmul.mubr.f32.gmra.mxu0 %v2383
      %v2596 = vpop.f32.mrf.mxu0
      %v2597 = vadd.f32 %v2513, %v2596
      %v2598 = vpop.f32.mrf.mxu0
      %2599 = vmatprep.mubr.f32.mxu0 0.0
      %2600 = vmatmul.mubr.f32.gmra.mxu0 %v2386
      %v2601 = vpop.f32.mrf.mxu0
      %v2602 = vadd.f32 %v2513, %v2601
      %v2603 = vpop.f32.mrf.mxu0
      %2604 = vmatprep.mubr.f32.mxu0 0.0
      %2605 = vmatmul.mubr.f32.gmra.mxu0 %v2389
      %v2606 = vpop.f32.mrf.mxu0
      %v2607 = vadd.f32 %v2513, %v2606
      %v2608 = vpop.f32.mrf.mxu0
      %2609 = vmatprep.mubr.f32.mxu0 0.0
      %2610 = vmatmul.mubr.f32.gmra.mxu0 %v2392
      %v2611 = vpop.f32.mrf.mxu0
      %v2612 = vadd.f32 %v2513, %v2611
      %v2613 = vpop.f32.mrf.mxu0
      %2614 = vmatprep.mubr.f32.mxu0 0.0
      %2615 = vmatmul.mubr.f32.gmra.mxu0 %v2395
      %v2616 = vpop.f32.mrf.mxu0
      %v2617 = vadd.f32 %v2513, %v2616
      %v2618 = vpop.f32.mrf.mxu0
      %2619 = vdwg.mxu0
      %s2620 = scalar_lea.vmem %s6, 256
      %v2621 = vld [vmem:[%s2620] sm:$0xff]
      %v2622 = vld [vmem:[%s2620 + $0x8] sm:$0xff]
      %v2623 = vld [vmem:[%s2620 + $0x10] sm:$0xff]
      %v2624 = vld [vmem:[%s2620 + $0x18] sm:$0xff]
      %s2625 = scalar_lea.vmem %s7, 8
      %v2626 = vld [vmem:[%s2625] sm:$0x1]
      %v2628 = vlaneseq
      %v2629 = vshrl.u32 %v2628, 7
      %v2630 = vsub.s32 0, %v2629
      %v2631 = vrot.slane %v2626, %v2630
      %2633 = vmatprep.subr.mxu0 0.0
      %2634 = vmatpush1.msra.mxu0 0.0
      %2635 = vmatprep.subr.mxu0 0.0
      %2636 = vmatpush1.msra.mxu0 0.0
      %2637 = vmatprep.subr.mxu0 0.0
      %2638 = vmatpush1.msra.mxu0 0.0
      %2639 = vmatprep.subr.mxu0 0.0
      %2640 = vmatpush1.msra.mxu0 0.0
      %2641 = vmatprep.subr.mxu0 0.0
      %2642 = vmatpush1.msra.mxu0 0.0
      %2643 = vmatprep.subr.mxu0 0.0
      %2644 = vmatpush1.msra.mxu0 0.0
      %2645 = vmatprep.subr.mxu0 0.0
      %2646 = vmatpush1.msra.mxu0 0.0
      %2647 = vmatprep.subr.mxu0 0.0
      %2648 = vmatpush1.msra.mxu0 0.0
      %2649 = vmatprep.subr.mxu0 0.0
      %2650 = vmatpush1.msra.mxu0 0.0
      %2651 = vmatprep.subr.mxu0 0.0
      %2652 = vmatpush1.msra.mxu0 0.0
      %2653 = vmatprep.subr.mxu0 0.0
      %2654 = vmatpush1.msra.mxu0 0.0
      %2655 = vmatprep.subr.mxu0 0.0
      %2656 = vmatpush1.msra.mxu0 0.0
      %2657 = vmatprep.subr.mxu0 0.0
      %2658 = vmatpush1.msra.mxu0 %v2624
      %2659 = vmatprep.subr.mxu0 0.0
      %2660 = vmatpush1.msra.mxu0 %v2623
      %2661 = vmatprep.subr.mxu0 0.0
      %2662 = vmatpush1.msra.mxu0 %v2622
      %2663 = vmatprep.subr.mxu0 0.0
      %2664 = vmatpush1.msra.mxu0 %v2621
      %2665 = vmatprep.subr.mxu0 0.0
      %2666 = vmatpush2.msra.mxu0 0.0
      %2667 = vmatprep.subr.mxu0 0.0
      %2668 = vmatpush2.msra.mxu0 0.0
      %2669 = vmatprep.subr.mxu0 0.0
      %2670 = vmatpush2.msra.mxu0 0.0
      %2671 = vmatprep.subr.mxu0 0.0
      %2672 = vmatpush2.msra.mxu0 0.0
      %2673 = vmatprep.subr.mxu0 0.0
      %2674 = vmatpush2.msra.mxu0 0.0
      %2675 = vmatprep.subr.mxu0 0.0
      %2676 = vmatpush2.msra.mxu0 0.0
      %2677 = vmatprep.subr.mxu0 0.0
      %2678 = vmatpush2.msra.mxu0 0.0
      %2679 = vmatprep.subr.mxu0 0.0
      %2680 = vmatpush2.msra.mxu0 0.0
      %2681 = vmatprep.subr.mxu0 0.0
      %2682 = vmatpush2.msra.mxu0 0.0
      %2683 = vmatprep.subr.mxu0 0.0
      %2684 = vmatpush2.msra.mxu0 0.0
      %2685 = vmatprep.subr.mxu0 0.0
      %2686 = vmatpush2.msra.mxu0 0.0
      %2687 = vmatprep.subr.mxu0 0.0
      %2688 = vmatpush2.msra.mxu0 0.0
      %2689 = vmatprep.subr.mxu0 0.0
      %2690 = vmatpush2.msra.mxu0 0.0
      %2691 = vmatprep.subr.mxu0 0.0
      %2692 = vmatpush2.msra.mxu0 0.0
      %2693 = vmatprep.subr.mxu0 0.0
      %2694 = vmatpush2.msra.mxu0 0.0
      %2695 = vmatprep.subr.mxu0 0.0
      %2696 = vmatpush2.msra.mxu0 0.0
      %2697 = vmatprep.mubr.f32.mxu0 0.0
      %2698 = vmatmul.mubr.f32.gmra.mxu0 %v2374
      %v2699 = vpop.f32.mrf.mxu0
      %v2700 = vadd.f32 %v2631, %v2699
      %v2701 = vpop.f32.mrf.mxu0
      %2702 = vmatprep.mubr.f32.mxu0 0.0
      %2703 = vmatmul.mubr.f32.gmra.mxu0 %v2377
      %v2704 = vpop.f32.mrf.mxu0
      %v2705 = vadd.f32 %v2631, %v2704
      %v2706 = vpop.f32.mrf.mxu0
      %2707 = vmatprep.mubr.f32.mxu0 0.0
      %2708 = vmatmul.mubr.f32.gmra.mxu0 %v2380
      %v2709 = vpop.f32.mrf.mxu0
      %v2710 = vadd.f32 %v2631, %v2709
      %v2711 = vpop.f32.mrf.mxu0
      %2712 = vmatprep.mubr.f32.mxu0 0.0
      %2713 = vmatmul.mubr.f32.gmra.mxu0 %v2383
      %v2714 = vpop.f32.mrf.mxu0
      %v2715 = vadd.f32 %v2631, %v2714
      %v2716 = vpop.f32.mrf.mxu0
      %2717 = vmatprep.mubr.f32.mxu0 0.0
      %2718 = vmatmul.mubr.f32.gmra.mxu0 %v2386
      %v2719 = vpop.f32.mrf.mxu0
      %v2720 = vadd.f32 %v2631, %v2719
      %v2721 = vpop.f32.mrf.mxu0
      %2722 = vmatprep.mubr.f32.mxu0 0.0
      %2723 = vmatmul.mubr.f32.gmra.mxu0 %v2389
      %v2724 = vpop.f32.mrf.mxu0
      %v2725 = vadd.f32 %v2631, %v2724
      %v2726 = vpop.f32.mrf.mxu0
      %2727 = vmatprep.mubr.f32.mxu0 0.0
      %2728 = vmatmul.mubr.f32.gmra.mxu0 %v2392
      %v2729 = vpop.f32.mrf.mxu0
      %v2730 = vadd.f32 %v2631, %v2729
      %v2731 = vpop.f32.mrf.mxu0
      %2732 = vmatprep.mubr.f32.mxu0 0.0
      %2733 = vmatmul.mubr.f32.gmra.mxu0 %v2395
      %v2734 = vpop.f32.mrf.mxu0
      %v2735 = vadd.f32 %v2631, %v2734
      %v2736 = vpop.f32.mrf.mxu0
      %2737 = vdwg.mxu0
      %vm2738 = vcmask 64512
      %v2740 = vsel %vm2738, %v2464, 0
      %v2743 = vsel %vm2738, %v2469, 0
      %v2746 = vsel %vm2738, %v2474, 0
      %v2749 = vsel %vm2738, %v2479, 0
      %v2752 = vsel %vm2738, %v2484, 0
      %v2755 = vsel %vm2738, %v2489, 0
      %v2758 = vsel %vm2738, %v2494, 0
      %v2761 = vsel %vm2738, %v2499, 0
      %v2764 = vsel %vm2738, %v2582, 0
      %v2767 = vsel %vm2738, %v2587, 0
      %v2770 = vsel %vm2738, %v2592, 0
      %v2773 = vsel %vm2738, %v2597, 0
      %v2776 = vsel %vm2738, %v2602, 0
      %v2779 = vsel %vm2738, %v2607, 0
      %v2782 = vsel %vm2738, %v2612, 0
      %v2785 = vsel %vm2738, %v2617, 0
      %2787 = vmatprep.subr.mxu0 0.0
      %2788 = vmatpush1.xpose.msra.mxu0 0.0
      %2789 = vmatprep.subr.mxu0 0.0
      %2790 = vmatpush1.xpose.msra.mxu0 0.0
      %2791 = vmatprep.subr.mxu0 0.0
      %2792 = vmatpush1.xpose.msra.mxu0 0.0
      %2793 = vmatprep.subr.mxu0 0.0
      %2794 = vmatpush1.xpose.msra.mxu0 0.0
      %2795 = vmatprep.subr.mxu0 0.0
      %2796 = vmatpush1.xpose.msra.mxu0 0.0
      %2797 = vmatprep.subr.mxu0 0.0
      %2798 = vmatpush1.xpose.msra.mxu0 0.0
      %2799 = vmatprep.subr.mxu0 0.0
      %2800 = vmatpush1.xpose.msra.mxu0 0.0
      %2801 = vmatprep.subr.mxu0 0.0
      %2802 = vmatpush1.xpose.msra.mxu0 0.0
      %2803 = vmatprep.subr.mxu0 0.0
      %2804 = vmatpush1.xpose.msra.mxu0 %v2785
      %2805 = vmatprep.subr.mxu0 0.0
      %2806 = vmatpush1.xpose.msra.mxu0 %v2782
      %2807 = vmatprep.subr.mxu0 0.0
      %2808 = vmatpush1.xpose.msra.mxu0 %v2779
      %2809 = vmatprep.subr.mxu0 0.0
      %2810 = vmatpush1.xpose.msra.mxu0 %v2776
      %2811 = vmatprep.subr.mxu0 0.0
      %2812 = vmatpush1.xpose.msra.mxu0 %v2773
      %2813 = vmatprep.subr.mxu0 0.0
      %2814 = vmatpush1.xpose.msra.mxu0 %v2770
      %2815 = vmatprep.subr.mxu0 0.0
      %2816 = vmatpush1.xpose.msra.mxu0 %v2767
      %2817 = vmatprep.subr.mxu0 0.0
      %2818 = vmatpush1.xpose.msra.mxu0 %v2764
      %2819 = vmatprep.subr.mxu0 0.0
      %2820 = vmatpush2.xpose.msra.mxu0 0.0
      %2821 = vmatprep.subr.mxu0 0.0
      %2822 = vmatpush2.xpose.msra.mxu0 0.0
      %2823 = vmatprep.subr.mxu0 0.0
      %2824 = vmatpush2.xpose.msra.mxu0 0.0
      %2825 = vmatprep.subr.mxu0 0.0
      %2826 = vmatpush2.xpose.msra.mxu0 0.0
      %2827 = vmatprep.subr.mxu0 0.0
      %2828 = vmatpush2.xpose.msra.mxu0 0.0
      %2829 = vmatprep.subr.mxu0 0.0
      %2830 = vmatpush2.xpose.msra.mxu0 0.0
      %2831 = vmatprep.subr.mxu0 0.0
      %2832 = vmatpush2.xpose.msra.mxu0 0.0
      %2833 = vmatprep.subr.mxu0 0.0
      %2834 = vmatpush2.xpose.msra.mxu0 0.0
      %2835 = vmatprep.subr.mxu0 0.0
      %2836 = vmatpush2.xpose.msra.mxu0 0.0
      %2837 = vmatprep.subr.mxu0 0.0
      %2838 = vmatpush2.xpose.msra.mxu0 0.0
      %2839 = vmatprep.subr.mxu0 0.0
      %2840 = vmatpush2.xpose.msra.mxu0 0.0
      %2841 = vmatprep.subr.mxu0 0.0
      %2842 = vmatpush2.xpose.msra.mxu0 0.0
      %2843 = vmatprep.subr.mxu0 0.0
      %2844 = vmatpush2.xpose.msra.mxu0 0.0
      %2845 = vmatprep.subr.mxu0 0.0
      %2846 = vmatpush2.xpose.msra.mxu0 0.0
      %2847 = vmatprep.subr.mxu0 0.0
      %2848 = vmatpush2.xpose.msra.mxu0 0.0
      %2849 = vmatprep.subr.mxu0 0.0
      %2850 = vmatpush2.xpose.msra.mxu0 0.0
      %2851 = vmatprep.mubr.f32.mxu0 0.0
      %2852 = vmatmul.mubr.f32.gmra.mxu0 %v2740
      %v2853 = vpop.f32.mrf.mxu0
      %v2854 = vadd.f32 0.0, %v2853
      %v2855 = vpop.f32.mrf.mxu0
      %2856 = vmatprep.mubr.f32.mxu0 0.0
      %2857 = vmatmul.mubr.f32.gmra.mxu0 %v2743
      %v2858 = vpop.f32.mrf.mxu0
      %v2859 = vadd.f32 0.0, %v2858
      %v2860 = vpop.f32.mrf.mxu0
      %2861 = vmatprep.mubr.f32.mxu0 0.0
      %2862 = vmatmul.mubr.f32.gmra.mxu0 %v2746
      %v2863 = vpop.f32.mrf.mxu0
      %v2864 = vadd.f32 0.0, %v2863
      %v2865 = vpop.f32.mrf.mxu0
      %2866 = vmatprep.mubr.f32.mxu0 0.0
      %2867 = vmatmul.mubr.f32.gmra.mxu0 %v2749
      %v2868 = vpop.f32.mrf.mxu0
      %v2869 = vadd.f32 0.0, %v2868
      %v2870 = vpop.f32.mrf.mxu0
      %2871 = vmatprep.mubr.f32.mxu0 0.0
      %2872 = vmatmul.mubr.f32.gmra.mxu0 %v2752
      %v2873 = vpop.f32.mrf.mxu0
      %v2874 = vadd.f32 0.0, %v2873
      %v2875 = vpop.f32.mrf.mxu0
      %2876 = vmatprep.mubr.f32.mxu0 0.0
      %2877 = vmatmul.mubr.f32.gmra.mxu0 %v2755
      %v2878 = vpop.f32.mrf.mxu0
      %v2879 = vadd.f32 0.0, %v2878
      %v2880 = vpop.f32.mrf.mxu0
      %2881 = vmatprep.mubr.f32.mxu0 0.0
      %2882 = vmatmul.mubr.f32.gmra.mxu0 %v2758
      %v2883 = vpop.f32.mrf.mxu0
      %v2884 = vadd.f32 0.0, %v2883
      %v2885 = vpop.f32.mrf.mxu0
      %2886 = vmatprep.mubr.f32.mxu0 0.0
      %2887 = vmatmul.mubr.f32.gmra.mxu0 %v2761
      %v2888 = vpop.f32.mrf.mxu0
      %v2889 = vadd.f32 0.0, %v2888
      %v2890 = vpop.f32.mrf.mxu0
      %2891 = vdwg.mxu0
      %v2892 = vmul.f32 %v2854, 0.35355338
      %v2893 = vmul.f32 %v2859, 0.35355338
      %v2894 = vmul.f32 %v2864, 0.35355338
      %v2895 = vmul.f32 %v2869, 0.35355338
      %v2896 = vmul.f32 %v2874, 0.35355338
      %v2897 = vmul.f32 %v2879, 0.35355338
      %v2898 = vmul.f32 %v2884, 0.35355338
      %v2899 = vmul.f32 %v2889, 0.35355338
      %v2900 = vsel %vm538, %v2892, -inf
      %2901 = vmax.xlane.f32.xlu0 %v2900
      %v2902 = vpop.xlane.xlu0 %2901
      %v2903 = vsel %vm538, %v2893, -inf
      %2904 = vmax.xlane.f32.xlu0 %v2903
      %v2905 = vpop.xlane.xlu0 %2904
      %v2906 = vsel %vm538, %v2894, -inf
      %2907 = vmax.xlane.f32.xlu0 %v2906
      %v2908 = vpop.xlane.xlu0 %2907
      %v2909 = vsel %vm538, %v2895, -inf
      %2910 = vmax.xlane.f32.xlu0 %v2909
      %v2911 = vpop.xlane.xlu0 %2910
      %v2912 = vsel %vm538, %v2896, -inf
      %2913 = vmax.xlane.f32.xlu0 %v2912
      %v2914 = vpop.xlane.xlu0 %2913
      %v2915 = vsel %vm538, %v2897, -inf
      %2916 = vmax.xlane.f32.xlu0 %v2915
      %v2917 = vpop.xlane.xlu0 %2916
      %v2918 = vsel %vm538, %v2898, -inf
      %2919 = vmax.xlane.f32.xlu0 %v2918
      %v2920 = vpop.xlane.xlu0 %2919
      %v2921 = vsel %vm538, %v2899, -inf
      %2922 = vmax.xlane.f32.xlu0 %v2921
      %v2923 = vpop.xlane.xlu0 %2922
      %v2924 = vsub.f32 %v2892, %v2902
      %v2925 = vsub.f32 %v2893, %v2905
      %v2926 = vsub.f32 %v2894, %v2908
      %v2927 = vsub.f32 %v2895, %v2911
      %v2928 = vsub.f32 %v2896, %v2914
      %v2929 = vsub.f32 %v2897, %v2917
      %v2930 = vsub.f32 %v2898, %v2920
      %v2931 = vsub.f32 %v2899, %v2923
      %v2932 = vmul.f32 %v2924, 1.442695
      %v2933 = vpow.pop %v2932
      %v2934 = vmul.f32 %v2925, 1.442695
      %v2935 = vpow.pop %v2934
      %v2936 = vmul.f32 %v2926, 1.442695
      %v2937 = vpow.pop %v2936
      %v2938 = vmul.f32 %v2927, 1.442695
      %v2939 = vpow.pop %v2938
      %v2940 = vmul.f32 %v2928, 1.442695
      %v2941 = vpow.pop %v2940
      %v2942 = vmul.f32 %v2929, 1.442695
      %v2943 = vpow.pop %v2942
      %v2944 = vmul.f32 %v2930, 1.442695
      %v2945 = vpow.pop %v2944
      %v2946 = vmul.f32 %v2931, 1.442695
      %v2947 = vpow.pop %v2946
      %v2948 = vsel %vm538, %v2933, 0.0
      %2949 = vadd.xlane.f32.xlu0 %v2948
      %v2950 = vpop.xlane.xlu0 %2949
      %v2951 = vsel %vm538, %v2935, 0.0
      %2952 = vadd.xlane.f32.xlu0 %v2951
      %v2953 = vpop.xlane.xlu0 %2952
      %v2954 = vsel %vm538, %v2937, 0.0
      %2955 = vadd.xlane.f32.xlu0 %v2954
      %v2956 = vpop.xlane.xlu0 %2955
      %v2957 = vsel %vm538, %v2939, 0.0
      %2958 = vadd.xlane.f32.xlu0 %v2957
      %v2959 = vpop.xlane.xlu0 %2958
      %v2960 = vsel %vm538, %v2941, 0.0
      %2961 = vadd.xlane.f32.xlu0 %v2960
      %v2962 = vpop.xlane.xlu0 %2961
      %v2963 = vsel %vm538, %v2943, 0.0
      %2964 = vadd.xlane.f32.xlu0 %v2963
      %v2965 = vpop.xlane.xlu0 %2964
      %v2966 = vsel %vm538, %v2945, 0.0
      %2967 = vadd.xlane.f32.xlu0 %v2966
      %v2968 = vpop.xlane.xlu0 %2967
      %v2969 = vsel %vm538, %v2947, 0.0
      %2970 = vadd.xlane.f32.xlu0 %v2969
      %v2971 = vpop.xlane.xlu0 %2970
      %v2972 = vrcp.pop %v2950
      %v2973 = vmul.f32 %v2933, %v2972
      %v2974 = vrcp.pop %v2953
      %v2975 = vmul.f32 %v2935, %v2974
      %v2976 = vrcp.pop %v2956
      %v2977 = vmul.f32 %v2937, %v2976
      %v2978 = vrcp.pop %v2959
      %v2979 = vmul.f32 %v2939, %v2978
      %v2980 = vrcp.pop %v2962
      %v2981 = vmul.f32 %v2941, %v2980
      %v2982 = vrcp.pop %v2965
      %v2983 = vmul.f32 %v2943, %v2982
      %v2984 = vrcp.pop %v2968
      %v2985 = vmul.f32 %v2945, %v2984
      %v2986 = vrcp.pop %v2971
      %v2987 = vmul.f32 %v2947, %v2986
      %v2989 = vsel %vm538, %v2973, 0
      %v2992 = vsel %vm538, %v2975, 0
      %v2995 = vsel %vm538, %v2977, 0
      %v2998 = vsel %vm538, %v2979, 0
      %v3001 = vsel %vm538, %v2981, 0
      %v3004 = vsel %vm538, %v2983, 0
      %v3007 = vsel %vm538, %v2985, 0
      %v3010 = vsel %vm538, %v2987, 0
      %3012 = vmatprep.subr.mxu0 0.0
      %3013 = vmatpush1.msra.mxu0 0.0
      %3014 = vmatprep.subr.mxu0 0.0
      %3015 = vmatpush1.msra.mxu0 0.0
      %3016 = vmatprep.subr.mxu0 0.0
      %3017 = vmatpush1.msra.mxu0 0.0
      %3018 = vmatprep.subr.mxu0 0.0
      %3019 = vmatpush1.msra.mxu0 0.0
      %3020 = vmatprep.subr.mxu0 0.0
      %3021 = vmatpush1.msra.mxu0 0.0
      %3022 = vmatprep.subr.mxu0 0.0
      %3023 = vmatpush1.msra.mxu0 0.0
      %3024 = vmatprep.subr.mxu0 0.0
      %3025 = vmatpush1.msra.mxu0 0.0
      %3026 = vmatprep.subr.mxu0 0.0
      %3027 = vmatpush1.msra.mxu0 0.0
      %3028 = vmatprep.subr.mxu0 0.0
      %3029 = vmatpush1.msra.mxu0 %v2735
      %3030 = vmatprep.subr.mxu0 0.0
      %3031 = vmatpush1.msra.mxu0 %v2730
      %3032 = vmatprep.subr.mxu0 0.0
      %3033 = vmatpush1.msra.mxu0 %v2725
      %3034 = vmatprep.subr.mxu0 0.0
      %3035 = vmatpush1.msra.mxu0 %v2720
      %3036 = vmatprep.subr.mxu0 0.0
      %3037 = vmatpush1.msra.mxu0 %v2715
      %3038 = vmatprep.subr.mxu0 0.0
      %3039 = vmatpush1.msra.mxu0 %v2710
      %3040 = vmatprep.subr.mxu0 0.0
      %3041 = vmatpush1.msra.mxu0 %v2705
      %3042 = vmatprep.subr.mxu0 0.0
      %3043 = vmatpush1.msra.mxu0 %v2700
      %3044 = vmatprep.subr.mxu0 0.0
      %3045 = vmatpush2.msra.mxu0 0.0
      %3046 = vmatprep.subr.mxu0 0.0
      %3047 = vmatpush2.msra.mxu0 0.0
      %3048 = vmatprep.subr.mxu0 0.0
      %3049 = vmatpush2.msra.mxu0 0.0
      %3050 = vmatprep.subr.mxu0 0.0
      %3051 = vmatpush2.msra.mxu0 0.0
      %3052 = vmatprep.subr.mxu0 0.0
      %3053 = vmatpush2.msra.mxu0 0.0
      %3054 = vmatprep.subr.mxu0 0.0
      %3055 = vmatpush2.msra.mxu0 0.0
      %3056 = vmatprep.subr.mxu0 0.0
      %3057 = vmatpush2.msra.mxu0 0.0
      %3058 = vmatprep.subr.mxu0 0.0
      %3059 = vmatpush2.msra.mxu0 0.0
      %3060 = vmatprep.subr.mxu0 0.0
      %3061 = vmatpush2.msra.mxu0 0.0
      %3062 = vmatprep.subr.mxu0 0.0
      %3063 = vmatpush2.msra.mxu0 0.0
      %3064 = vmatprep.subr.mxu0 0.0
      %3065 = vmatpush2.msra.mxu0 0.0
      %3066 = vmatprep.subr.mxu0 0.0
      %3067 = vmatpush2.msra.mxu0 0.0
      %3068 = vmatprep.subr.mxu0 0.0
      %3069 = vmatpush2.msra.mxu0 0.0
      %3070 = vmatprep.subr.mxu0 0.0
      %3071 = vmatpush2.msra.mxu0 0.0
      %3072 = vmatprep.subr.mxu0 0.0
      %3073 = vmatpush2.msra.mxu0 0.0
      %3074 = vmatprep.subr.mxu0 0.0
      %3075 = vmatpush2.msra.mxu0 0.0
      %3076 = vmatprep.mubr.f32.mxu0 0.0
      %3077 = vmatmul.mubr.f32.gmra.mxu0 %v2989
      %v3078 = vpop.f32.mrf.mxu0
      %v3079 = vadd.f32 0.0, %v3078
      %v3080 = vpop.f32.mrf.mxu0
      %3081 = vmatprep.mubr.f32.mxu0 0.0
      %3082 = vmatmul.mubr.f32.gmra.mxu0 %v2992
      %v3083 = vpop.f32.mrf.mxu0
      %v3084 = vadd.f32 0.0, %v3083
      %v3085 = vpop.f32.mrf.mxu0
      %3086 = vmatprep.mubr.f32.mxu0 0.0
      %3087 = vmatmul.mubr.f32.gmra.mxu0 %v2995
      %v3088 = vpop.f32.mrf.mxu0
      %v3089 = vadd.f32 0.0, %v3088
      %v3090 = vpop.f32.mrf.mxu0
      %3091 = vmatprep.mubr.f32.mxu0 0.0
      %3092 = vmatmul.mubr.f32.gmra.mxu0 %v2998
      %v3093 = vpop.f32.mrf.mxu0
      %v3094 = vadd.f32 0.0, %v3093
      %v3095 = vpop.f32.mrf.mxu0
      %3096 = vmatprep.mubr.f32.mxu0 0.0
      %3097 = vmatmul.mubr.f32.gmra.mxu0 %v3001
      %v3098 = vpop.f32.mrf.mxu0
      %v3099 = vadd.f32 0.0, %v3098
      %v3100 = vpop.f32.mrf.mxu0
      %3101 = vmatprep.mubr.f32.mxu0 0.0
      %3102 = vmatmul.mubr.f32.gmra.mxu0 %v3004
      %v3103 = vpop.f32.mrf.mxu0
      %v3104 = vadd.f32 0.0, %v3103
      %v3105 = vpop.f32.mrf.mxu0
      %3106 = vmatprep.mubr.f32.mxu0 0.0
      %3107 = vmatmul.mubr.f32.gmra.mxu0 %v3007
      %v3108 = vpop.f32.mrf.mxu0
      %v3109 = vadd.f32 0.0, %v3108
      %v3110 = vpop.f32.mrf.mxu0
      %3111 = vmatprep.mubr.f32.mxu0 0.0
      %3112 = vmatmul.mubr.f32.gmra.mxu0 %v3010
      %v3113 = vpop.f32.mrf.mxu0
      %v3114 = vadd.f32 0.0, %v3113
      %v3115 = vpop.f32.mrf.mxu0
      %3116 = vdwg.mxu0
      %v3117 = vld [vmem:[%s8] sm:$0xff]
      %s3118 = scalar_lea.vmem %s6, 32
      %v3119 = vld [vmem:[%s3118] sm:$0xff]
      %v3120 = vld [vmem:[%s3118 + $0x8] sm:$0xff]
      %v3121 = vld [vmem:[%s3118 + $0x10] sm:$0xff]
      %v3122 = vld [vmem:[%s3118 + $0x18] sm:$0xff]
      %s3123 = scalar_lea.vmem %s7, 1
      %v3124 = vld [vmem:[%s3123] sm:$0x1]
      %v3126 = vlaneseq
      %v3127 = vshrl.u32 %v3126, 7
      %v3128 = vsub.s32 0, %v3127
      %v3129 = vrot.slane %v3124, %v3128
      %3131 = vmatprep.subr.mxu0 0.0
      %3132 = vmatpush1.msra.mxu0 0.0
      %3133 = vmatprep.subr.mxu0 0.0
      %3134 = vmatpush1.msra.mxu0 0.0
      %3135 = vmatprep.subr.mxu0 0.0
      %3136 = vmatpush1.msra.mxu0 0.0
      %3137 = vmatprep.subr.mxu0 0.0
      %3138 = vmatpush1.msra.mxu0 0.0
      %3139 = vmatprep.subr.mxu0 0.0
      %3140 = vmatpush1.msra.mxu0 0.0
      %3141 = vmatprep.subr.mxu0 0.0
      %3142 = vmatpush1.msra.mxu0 0.0
      %3143 = vmatprep.subr.mxu0 0.0
      %3144 = vmatpush1.msra.mxu0 0.0
      %3145 = vmatprep.subr.mxu0 0.0
      %3146 = vmatpush1.msra.mxu0 0.0
      %3147 = vmatprep.subr.mxu0 0.0
      %3148 = vmatpush1.msra.mxu0 0.0
      %3149 = vmatprep.subr.mxu0 0.0
      %3150 = vmatpush1.msra.mxu0 0.0
      %3151 = vmatprep.subr.mxu0 0.0
      %3152 = vmatpush1.msra.mxu0 0.0
      %3153 = vmatprep.subr.mxu0 0.0
      %3154 = vmatpush1.msra.mxu0 0.0
      %3155 = vmatprep.subr.mxu0 0.0
      %3156 = vmatpush1.msra.mxu0 %v3122
      %3157 = vmatprep.subr.mxu0 0.0
      %3158 = vmatpush1.msra.mxu0 %v3121
      %3159 = vmatprep.subr.mxu0 0.0
      %3160 = vmatpush1.msra.mxu0 %v3120
      %3161 = vmatprep.subr.mxu0 0.0
      %3162 = vmatpush1.msra.mxu0 %v3119
      %3163 = vmatprep.subr.mxu0 0.0
      %3164 = vmatpush2.msra.mxu0 0.0
      %3165 = vmatprep.subr.mxu0 0.0
      %3166 = vmatpush2.msra.mxu0 0.0
      %3167 = vmatprep.subr.mxu0 0.0
      %3168 = vmatpush2.msra.mxu0 0.0
      %3169 = vmatprep.subr.mxu0 0.0
      %3170 = vmatpush2.msra.mxu0 0.0
      %3171 = vmatprep.subr.mxu0 0.0
      %3172 = vmatpush2.msra.mxu0 0.0
      %3173 = vmatprep.subr.mxu0 0.0
      %3174 = vmatpush2.msra.mxu0 0.0
      %3175 = vmatprep.subr.mxu0 0.0
      %3176 = vmatpush2.msra.mxu0 0.0
      %3177 = vmatprep.subr.mxu0 0.0
      %3178 = vmatpush2.msra.mxu0 0.0
      %3179 = vmatprep.subr.mxu0 0.0
      %3180 = vmatpush2.msra.mxu0 0.0
      %3181 = vmatprep.subr.mxu0 0.0
      %3182 = vmatpush2.msra.mxu0 0.0
      %3183 = vmatprep.subr.mxu0 0.0
      %3184 = vmatpush2.msra.mxu0 0.0
      %3185 = vmatprep.subr.mxu0 0.0
      %3186 = vmatpush2.msra.mxu0 0.0
      %3187 = vmatprep.subr.mxu0 0.0
      %3188 = vmatpush2.msra.mxu0 0.0
      %3189 = vmatprep.subr.mxu0 0.0
      %3190 = vmatpush2.msra.mxu0 0.0
      %3191 = vmatprep.subr.mxu0 0.0
      %3192 = vmatpush2.msra.mxu0 0.0
      %3193 = vmatprep.subr.mxu0 0.0
      %3194 = vmatpush2.msra.mxu0 0.0
      %3195 = vmatprep.mubr.f32.mxu0 0.0
      %3196 = vmatmul.mubr.f32.gmra.mxu0 %v2374
      %v3197 = vpop.f32.mrf.mxu0
      %v3198 = vadd.f32 %v3129, %v3197
      %v3199 = vpop.f32.mrf.mxu0
      %3200 = vmatprep.mubr.f32.mxu0 0.0
      %3201 = vmatmul.mubr.f32.gmra.mxu0 %v2377
      %v3202 = vpop.f32.mrf.mxu0
      %v3203 = vadd.f32 %v3129, %v3202
      %v3204 = vpop.f32.mrf.mxu0
      %3205 = vmatprep.mubr.f32.mxu0 0.0
      %3206 = vmatmul.mubr.f32.gmra.mxu0 %v2380
      %v3207 = vpop.f32.mrf.mxu0
      %v3208 = vadd.f32 %v3129, %v3207
      %v3209 = vpop.f32.mrf.mxu0
      %3210 = vmatprep.mubr.f32.mxu0 0.0
      %3211 = vmatmul.mubr.f32.gmra.mxu0 %v2383
      %v3212 = vpop.f32.mrf.mxu0
      %v3213 = vadd.f32 %v3129, %v3212
      %v3214 = vpop.f32.mrf.mxu0
      %3215 = vmatprep.mubr.f32.mxu0 0.0
      %3216 = vmatmul.mubr.f32.gmra.mxu0 %v2386
      %v3217 = vpop.f32.mrf.mxu0
      %v3218 = vadd.f32 %v3129, %v3217
      %v3219 = vpop.f32.mrf.mxu0
      %3220 = vmatprep.mubr.f32.mxu0 0.0
      %3221 = vmatmul.mubr.f32.gmra.mxu0 %v2389
      %v3222 = vpop.f32.mrf.mxu0
      %v3223 = vadd.f32 %v3129, %v3222
      %v3224 = vpop.f32.mrf.mxu0
      %3225 = vmatprep.mubr.f32.mxu0 0.0
      %3226 = vmatmul.mubr.f32.gmra.mxu0 %v2392
      %v3227 = vpop.f32.mrf.mxu0
      %v3228 = vadd.f32 %v3129, %v3227
      %v3229 = vpop.f32.mrf.mxu0
      %3230 = vmatprep.mubr.f32.mxu0 0.0
      %3231 = vmatmul.mubr.f32.gmra.mxu0 %v2395
      %v3232 = vpop.f32.mrf.mxu0
      %v3233 = vadd.f32 %v3129, %v3232
      %v3234 = vpop.f32.mrf.mxu0
      %3235 = vdwg.mxu0
      %s3236 = scalar_lea.vmem %s6, 160
      %v3237 = vld [vmem:[%s3236] sm:$0xff]
      %v3238 = vld [vmem:[%s3236 + $0x8] sm:$0xff]
      %v3239 = vld [vmem:[%s3236 + $0x10] sm:$0xff]
      %v3240 = vld [vmem:[%s3236 + $0x18] sm:$0xff]
      %s3241 = scalar_lea.vmem %s7, 5
      %v3242 = vld [vmem:[%s3241] sm:$0x1]
      %v3244 = vlaneseq
      %v3245 = vshrl.u32 %v3244, 7
      %v3246 = vsub.s32 0, %v3245
      %v3247 = vrot.slane %v3242, %v3246
      %3249 = vmatprep.subr.mxu0 0.0
      %3250 = vmatpush1.msra.mxu0 0.0
      %3251 = vmatprep.subr.mxu0 0.0
      %3252 = vmatpush1.msra.mxu0 0.0
      %3253 = vmatprep.subr.mxu0 0.0
      %3254 = vmatpush1.msra.mxu0 0.0
      %3255 = vmatprep.subr.mxu0 0.0
      %3256 = vmatpush1.msra.mxu0 0.0
      %3257 = vmatprep.subr.mxu0 0.0
      %3258 = vmatpush1.msra.mxu0 0.0
      %3259 = vmatprep.subr.mxu0 0.0
      %3260 = vmatpush1.msra.mxu0 0.0
      %3261 = vmatprep.subr.mxu0 0.0
      %3262 = vmatpush1.msra.mxu0 0.0
      %3263 = vmatprep.subr.mxu0 0.0
      %3264 = vmatpush1.msra.mxu0 0.0
      %3265 = vmatprep.subr.mxu0 0.0
      %3266 = vmatpush1.msra.mxu0 0.0
      %3267 = vmatprep.subr.mxu0 0.0
      %3268 = vmatpush1.msra.mxu0 0.0
      %3269 = vmatprep.subr.mxu0 0.0
      %3270 = vmatpush1.msra.mxu0 0.0
      %3271 = vmatprep.subr.mxu0 0.0
      %3272 = vmatpush1.msra.mxu0 0.0
      %3273 = vmatprep.subr.mxu0 0.0
      %3274 = vmatpush1.msra.mxu0 %v3240
      %3275 = vmatprep.subr.mxu0 0.0
      %3276 = vmatpush1.msra.mxu0 %v3239
      %3277 = vmatprep.subr.mxu0 0.0
      %3278 = vmatpush1.msra.mxu0 %v3238
      %3279 = vmatprep.subr.mxu0 0.0
      %3280 = vmatpush1.msra.mxu0 %v3237
      %3281 = vmatprep.subr.mxu0 0.0
      %3282 = vmatpush2.msra.mxu0 0.0
      %3283 = vmatprep.subr.mxu0 0.0
      %3284 = vmatpush2.msra.mxu0 0.0
      %3285 = vmatprep.subr.mxu0 0.0
      %3286 = vmatpush2.msra.mxu0 0.0
      %3287 = vmatprep.subr.mxu0 0.0
      %3288 = vmatpush2.msra.mxu0 0.0
      %3289 = vmatprep.subr.mxu0 0.0
      %3290 = vmatpush2.msra.mxu0 0.0
      %3291 = vmatprep.subr.mxu0 0.0
      %3292 = vmatpush2.msra.mxu0 0.0
      %3293 = vmatprep.subr.mxu0 0.0
      %3294 = vmatpush2.msra.mxu0 0.0
      %3295 = vmatprep.subr.mxu0 0.0
      %3296 = vmatpush2.msra.mxu0 0.0
      %3297 = vmatprep.subr.mxu0 0.0
      %3298 = vmatpush2.msra.mxu0 0.0
      %3299 = vmatprep.subr.mxu0 0.0
      %3300 = vmatpush2.msra.mxu0 0.0
      %3301 = vmatprep.subr.mxu0 0.0
      %3302 = vmatpush2.msra.mxu0 0.0
      %3303 = vmatprep.subr.mxu0 0.0
      %3304 = vmatpush2.msra.mxu0 0.0
      %3305 = vmatprep.subr.mxu0 0.0
      %3306 = vmatpush2.msra.mxu0 0.0
      %3307 = vmatprep.subr.mxu0 0.0
      %3308 = vmatpush2.msra.mxu0 0.0
      %3309 = vmatprep.subr.mxu0 0.0
      %3310 = vmatpush2.msra.mxu0 0.0
      %3311 = vmatprep.subr.mxu0 0.0
      %3312 = vmatpush2.msra.mxu0 0.0
      %3313 = vmatprep.mubr.f32.mxu0 0.0
      %3314 = vmatmul.mubr.f32.gmra.mxu0 %v2374
      %v3315 = vpop.f32.mrf.mxu0
      %v3316 = vadd.f32 %v3247, %v3315
      %v3317 = vpop.f32.mrf.mxu0
      %3318 = vmatprep.mubr.f32.mxu0 0.0
      %3319 = vmatmul.mubr.f32.gmra.mxu0 %v2377
      %v3320 = vpop.f32.mrf.mxu0
      %v3321 = vadd.f32 %v3247, %v3320
      %v3322 = vpop.f32.mrf.mxu0
      %3323 = vmatprep.mubr.f32.mxu0 0.0
      %3324 = vmatmul.mubr.f32.gmra.mxu0 %v2380
      %v3325 = vpop.f32.mrf.mxu0
      %v3326 = vadd.f32 %v3247, %v3325
      %v3327 = vpop.f32.mrf.mxu0
      %3328 = vmatprep.mubr.f32.mxu0 0.0
      %3329 = vmatmul.mubr.f32.gmra.mxu0 %v2383
      %v3330 = vpop.f32.mrf.mxu0
      %v3331 = vadd.f32 %v3247, %v3330
      %v3332 = vpop.f32.mrf.mxu0
      %3333 = vmatprep.mubr.f32.mxu0 0.0
      %3334 = vmatmul.mubr.f32.gmra.mxu0 %v2386
      %v3335 = vpop.f32.mrf.mxu0
      %v3336 = vadd.f32 %v3247, %v3335
      %v3337 = vpop.f32.mrf.mxu0
      %3338 = vmatprep.mubr.f32.mxu0 0.0
      %3339 = vmatmul.mubr.f32.gmra.mxu0 %v2389
      %v3340 = vpop.f32.mrf.mxu0
      %v3341 = vadd.f32 %v3247, %v3340
      %v3342 = vpop.f32.mrf.mxu0
      %3343 = vmatprep.mubr.f32.mxu0 0.0
      %3344 = vmatmul.mubr.f32.gmra.mxu0 %v2392
      %v3345 = vpop.f32.mrf.mxu0
      %v3346 = vadd.f32 %v3247, %v3345
      %v3347 = vpop.f32.mrf.mxu0
      %3348 = vmatprep.mubr.f32.mxu0 0.0
      %3349 = vmatmul.mubr.f32.gmra.mxu0 %v2395
      %v3350 = vpop.f32.mrf.mxu0
      %v3351 = vadd.f32 %v3247, %v3350
      %v3352 = vpop.f32.mrf.mxu0
      %3353 = vdwg.mxu0
      %s3354 = scalar_lea.vmem %s6, 288
      %v3355 = vld [vmem:[%s3354] sm:$0xff]
      %v3356 = vld [vmem:[%s3354 + $0x8] sm:$0xff]
      %v3357 = vld [vmem:[%s3354 + $0x10] sm:$0xff]
      %v3358 = vld [vmem:[%s3354 + $0x18] sm:$0xff]
      %s3359 = scalar_lea.vmem %s7, 9
      %v3360 = vld [vmem:[%s3359] sm:$0x1]
      %v3362 = vlaneseq
      %v3363 = vshrl.u32 %v3362, 7
      %v3364 = vsub.s32 0, %v3363
      %v3365 = vrot.slane %v3360, %v3364
      %3367 = vmatprep.subr.mxu0 0.0
      %3368 = vmatpush1.msra.mxu0 0.0
      %3369 = vmatprep.subr.mxu0 0.0
      %3370 = vmatpush1.msra.mxu0 0.0
      %3371 = vmatprep.subr.mxu0 0.0
      %3372 = vmatpush1.msra.mxu0 0.0
      %3373 = vmatprep.subr.mxu0 0.0
      %3374 = vmatpush1.msra.mxu0 0.0
      %3375 = vmatprep.subr.mxu0 0.0
      %3376 = vmatpush1.msra.mxu0 0.0
      %3377 = vmatprep.subr.mxu0 0.0
      %3378 = vmatpush1.msra.mxu0 0.0
      %3379 = vmatprep.subr.mxu0 0.0
      %3380 = vmatpush1.msra.mxu0 0.0
      %3381 = vmatprep.subr.mxu0 0.0
      %3382 = vmatpush1.msra.mxu0 0.0
      %3383 = vmatprep.subr.mxu0 0.0
      %3384 = vmatpush1.msra.mxu0 0.0
      %3385 = vmatprep.subr.mxu0 0.0
      %3386 = vmatpush1.msra.mxu0 0.0
      %3387 = vmatprep.subr.mxu0 0.0
      %3388 = vmatpush1.msra.mxu0 0.0
      %3389 = vmatprep.subr.mxu0 0.0
      %3390 = vmatpush1.msra.mxu0 0.0
      %3391 = vmatprep.subr.mxu0 0.0
      %3392 = vmatpush1.msra.mxu0 %v3358
      %3393 = vmatprep.subr.mxu0 0.0
      %3394 = vmatpush1.msra.mxu0 %v3357
      %3395 = vmatprep.subr.mxu0 0.0
      %3396 = vmatpush1.msra.mxu0 %v3356
      %3397 = vmatprep.subr.mxu0 0.0
      %3398 = vmatpush1.msra.mxu0 %v3355
      %3399 = vmatprep.subr.mxu0 0.0
      %3400 = vmatpush2.msra.mxu0 0.0
      %3401 = vmatprep.subr.mxu0 0.0
      %3402 = vmatpush2.msra.mxu0 0.0
      %3403 = vmatprep.subr.mxu0 0.0
      %3404 = vmatpush2.msra.mxu0 0.0
      %3405 = vmatprep.subr.mxu0 0.0
      %3406 = vmatpush2.msra.mxu0 0.0
      %3407 = vmatprep.subr.mxu0 0.0
      %3408 = vmatpush2.msra.mxu0 0.0
      %3409 = vmatprep.subr.mxu0 0.0
      %3410 = vmatpush2.msra.mxu0 0.0
      %3411 = vmatprep.subr.mxu0 0.0
      %3412 = vmatpush2.msra.mxu0 0.0
      %3413 = vmatprep.subr.mxu0 0.0
      %3414 = vmatpush2.msra.mxu0 0.0
      %3415 = vmatprep.subr.mxu0 0.0
      %3416 = vmatpush2.msra.mxu0 0.0
      %3417 = vmatprep.subr.mxu0 0.0
      %3418 = vmatpush2.msra.mxu0 0.0
      %3419 = vmatprep.subr.mxu0 0.0
      %3420 = vmatpush2.msra.mxu0 0.0
      %3421 = vmatprep.subr.mxu0 0.0
      %3422 = vmatpush2.msra.mxu0 0.0
      %3423 = vmatprep.subr.mxu0 0.0
      %3424 = vmatpush2.msra.mxu0 0.0
      %3425 = vmatprep.subr.mxu0 0.0
      %3426 = vmatpush2.msra.mxu0 0.0
      %3427 = vmatprep.subr.mxu0 0.0
      %3428 = vmatpush2.msra.mxu0 0.0
      %3429 = vmatprep.subr.mxu0 0.0
      %3430 = vmatpush2.msra.mxu0 0.0
      %3431 = vmatprep.mubr.f32.mxu0 0.0
      %3432 = vmatmul.mubr.f32.gmra.mxu0 %v2374
      %v3433 = vpop.f32.mrf.mxu0
      %v3434 = vadd.f32 %v3365, %v3433
      %v3435 = vpop.f32.mrf.mxu0
      %3436 = vmatprep.mubr.f32.mxu0 0.0
      %3437 = vmatmul.mubr.f32.gmra.mxu0 %v2377
      %v3438 = vpop.f32.mrf.mxu0
      %v3439 = vadd.f32 %v3365, %v3438
      %v3440 = vpop.f32.mrf.mxu0
      %3441 = vmatprep.mubr.f32.mxu0 0.0
      %3442 = vmatmul.mubr.f32.gmra.mxu0 %v2380
      %v3443 = vpop.f32.mrf.mxu0
      %v3444 = vadd.f32 %v3365, %v3443
      %v3445 = vpop.f32.mrf.mxu0
      %3446 = vmatprep.mubr.f32.mxu0 0.0
      %3447 = vmatmul.mubr.f32.gmra.mxu0 %v2383
      %v3448 = vpop.f32.mrf.mxu0
      %v3449 = vadd.f32 %v3365, %v3448
      %v3450 = vpop.f32.mrf.mxu0
      %3451 = vmatprep.mubr.f32.mxu0 0.0
      %3452 = vmatmul.mubr.f32.gmra.mxu0 %v2386
      %v3453 = vpop.f32.mrf.mxu0
      %v3454 = vadd.f32 %v3365, %v3453
      %v3455 = vpop.f32.mrf.mxu0
      %3456 = vmatprep.mubr.f32.mxu0 0.0
      %3457 = vmatmul.mubr.f32.gmra.mxu0 %v2389
      %v3458 = vpop.f32.mrf.mxu0
      %v3459 = vadd.f32 %v3365, %v3458
      %v3460 = vpop.f32.mrf.mxu0
      %3461 = vmatprep.mubr.f32.mxu0 0.0
      %3462 = vmatmul.mubr.f32.gmra.mxu0 %v2392
      %v3463 = vpop.f32.mrf.mxu0
      %v3464 = vadd.f32 %v3365, %v3463
      %v3465 = vpop.f32.mrf.mxu0
      %3466 = vmatprep.mubr.f32.mxu0 0.0
      %3467 = vmatmul.mubr.f32.gmra.mxu0 %v2395
      %v3468 = vpop.f32.mrf.mxu0
      %v3469 = vadd.f32 %v3365, %v3468
      %v3470 = vpop.f32.mrf.mxu0
      %3471 = vdwg.mxu0
      %v3473 = vsel %vm2738, %v3198, 0
      %v3476 = vsel %vm2738, %v3203, 0
      %v3479 = vsel %vm2738, %v3208, 0
      %v3482 = vsel %vm2738, %v3213, 0
      %v3485 = vsel %vm2738, %v3218, 0
      %v3488 = vsel %vm2738, %v3223, 0
      %v3491 = vsel %vm2738, %v3228, 0
      %v3494 = vsel %vm2738, %v3233, 0
      %v3497 = vsel %vm2738, %v3316, 0
      %v3500 = vsel %vm2738, %v3321, 0
      %v3503 = vsel %vm2738, %v3326, 0
      %v3506 = vsel %vm2738, %v3331, 0
      %v3509 = vsel %vm2738, %v3336, 0
      %v3512 = vsel %vm2738, %v3341, 0
      %v3515 = vsel %vm2738, %v3346, 0
      %v3518 = vsel %vm2738, %v3351, 0
      %3520 = vmatprep.subr.mxu0 0.0
      %3521 = vmatpush1.xpose.msra.mxu0 0.0
      %3522 = vmatprep.subr.mxu0 0.0
      %3523 = vmatpush1.xpose.msra.mxu0 0.0
      %3524 = vmatprep.subr.mxu0 0.0
      %3525 = vmatpush1.xpose.msra.mxu0 0.0
      %3526 = vmatprep.subr.mxu0 0.0
      %3527 = vmatpush1.xpose.msra.mxu0 0.0
      %3528 = vmatprep.subr.mxu0 0.0
      %3529 = vmatpush1.xpose.msra.mxu0 0.0
      %3530 = vmatprep.subr.mxu0 0.0
      %3531 = vmatpush1.xpose.msra.mxu0 0.0
      %3532 = vmatprep.subr.mxu0 0.0
      %3533 = vmatpush1.xpose.msra.mxu0 0.0
      %3534 = vmatprep.subr.mxu0 0.0
      %3535 = vmatpush1.xpose.msra.mxu0 0.0
      %3536 = vmatprep.subr.mxu0 0.0
      %3537 = vmatpush1.xpose.msra.mxu0 %v3518
      %3538 = vmatprep.subr.mxu0 0.0
      %3539 = vmatpush1.xpose.msra.mxu0 %v3515
      %3540 = vmatprep.subr.mxu0 0.0
      %3541 = vmatpush1.xpose.msra.mxu0 %v3512
      %3542 = vmatprep.subr.mxu0 0.0
      %3543 = vmatpush1.xpose.msra.mxu0 %v3509
      %3544 = vmatprep.subr.mxu0 0.0
      %3545 = vmatpush1.xpose.msra.mxu0 %v3506
      %3546 = vmatprep.subr.mxu0 0.0
      %3547 = vmatpush1.xpose.msra.mxu0 %v3503
      %3548 = vmatprep.subr.mxu0 0.0
      %3549 = vmatpush1.xpose.msra.mxu0 %v3500
      %3550 = vmatprep.subr.mxu0 0.0
      %3551 = vmatpush1.xpose.msra.mxu0 %v3497
      %3552 = vmatprep.subr.mxu0 0.0
      %3553 = vmatpush2.xpose.msra.mxu0 0.0
      %3554 = vmatprep.subr.mxu0 0.0
      %3555 = vmatpush2.xpose.msra.mxu0 0.0
      %3556 = vmatprep.subr.mxu0 0.0
      %3557 = vmatpush2.xpose.msra.mxu0 0.0
      %3558 = vmatprep.subr.mxu0 0.0
      %3559 = vmatpush2.xpose.msra.mxu0 0.0
      %3560 = vmatprep.subr.mxu0 0.0
      %3561 = vmatpush2.xpose.msra.mxu0 0.0
      %3562 = vmatprep.subr.mxu0 0.0
      %3563 = vmatpush2.xpose.msra.mxu0 0.0
      %3564 = vmatprep.subr.mxu0 0.0
      %3565 = vmatpush2.xpose.msra.mxu0 0.0
      %3566 = vmatprep.subr.mxu0 0.0
      %3567 = vmatpush2.xpose.msra.mxu0 0.0
      %3568 = vmatprep.subr.mxu0 0.0
      %3569 = vmatpush2.xpose.msra.mxu0 0.0
      %3570 = vmatprep.subr.mxu0 0.0
      %3571 = vmatpush2.xpose.msra.mxu0 0.0
      %3572 = vmatprep.subr.mxu0 0.0
      %3573 = vmatpush2.xpose.msra.mxu0 0.0
      %3574 = vmatprep.subr.mxu0 0.0
      %3575 = vmatpush2.xpose.msra.mxu0 0.0
      %3576 = vmatprep.subr.mxu0 0.0
      %3577 = vmatpush2.xpose.msra.mxu0 0.0
      %3578 = vmatprep.subr.mxu0 0.0
      %3579 = vmatpush2.xpose.msra.mxu0 0.0
      %3580 = vmatprep.subr.mxu0 0.0
      %3581 = vmatpush2.xpose.msra.mxu0 0.0
      %3582 = vmatprep.subr.mxu0 0.0
      %3583 = vmatpush2.xpose.msra.mxu0 0.0
      %3584 = vmatprep.mubr.f32.mxu0 0.0
      %3585 = vmatmul.mubr.f32.gmra.mxu0 %v3473
      %v3586 = vpop.f32.mrf.mxu0
      %v3587 = vadd.f32 0.0, %v3586
      %v3588 = vpop.f32.mrf.mxu0
      %3589 = vmatprep.mubr.f32.mxu0 0.0
      %3590 = vmatmul.mubr.f32.gmra.mxu0 %v3476
      %v3591 = vpop.f32.mrf.mxu0
      %v3592 = vadd.f32 0.0, %v3591
      %v3593 = vpop.f32.mrf.mxu0
      %3594 = vmatprep.mubr.f32.mxu0 0.0
      %3595 = vmatmul.mubr.f32.gmra.mxu0 %v3479
      %v3596 = vpop.f32.mrf.mxu0
      %v3597 = vadd.f32 0.0, %v3596
      %v3598 = vpop.f32.mrf.mxu0
      %3599 = vmatprep.mubr.f32.mxu0 0.0
      %3600 = vmatmul.mubr.f32.gmra.mxu0 %v3482
      %v3601 = vpop.f32.mrf.mxu0
      %v3602 = vadd.f32 0.0, %v3601
      %v3603 = vpop.f32.mrf.mxu0
      %3604 = vmatprep.mubr.f32.mxu0 0.0
      %3605 = vmatmul.mubr.f32.gmra.mxu0 %v3485
      %v3606 = vpop.f32.mrf.mxu0
      %v3607 = vadd.f32 0.0, %v3606
      %v3608 = vpop.f32.mrf.mxu0
      %3609 = vmatprep.mubr.f32.mxu0 0.0
      %3610 = vmatmul.mubr.f32.gmra.mxu0 %v3488
      %v3611 = vpop.f32.mrf.mxu0
      %v3612 = vadd.f32 0.0, %v3611
      %v3613 = vpop.f32.mrf.mxu0
      %3614 = vmatprep.mubr.f32.mxu0 0.0
      %3615 = vmatmul.mubr.f32.gmra.mxu0 %v3491
      %v3616 = vpop.f32.mrf.mxu0
      %v3617 = vadd.f32 0.0, %v3616
      %v3618 = vpop.f32.mrf.mxu0
      %3619 = vmatprep.mubr.f32.mxu0 0.0
      %3620 = vmatmul.mubr.f32.gmra.mxu0 %v3494
      %v3621 = vpop.f32.mrf.mxu0
      %v3622 = vadd.f32 0.0, %v3621
      %v3623 = vpop.f32.mrf.mxu0
      %3624 = vdwg.mxu0
      %v3625 = vmul.f32 %v3587, 0.35355338
      %v3626 = vmul.f32 %v3592, 0.35355338
      %v3627 = vmul.f32 %v3597, 0.35355338
      %v3628 = vmul.f32 %v3602, 0.35355338
      %v3629 = vmul.f32 %v3607, 0.35355338
      %v3630 = vmul.f32 %v3612, 0.35355338
      %v3631 = vmul.f32 %v3617, 0.35355338
      %v3632 = vmul.f32 %v3622, 0.35355338
      %v3633 = vsel %vm538, %v3625, -inf
      %3634 = vmax.xlane.f32.xlu0 %v3633
      %v3635 = vpop.xlane.xlu0 %3634
      %v3636 = vsel %vm538, %v3626, -inf
      %3637 = vmax.xlane.f32.xlu0 %v3636
      %v3638 = vpop.xlane.xlu0 %3637
      %v3639 = vsel %vm538, %v3627, -inf
      %3640 = vmax.xlane.f32.xlu0 %v3639
      %v3641 = vpop.xlane.xlu0 %3640
      %v3642 = vsel %vm538, %v3628, -inf
      %3643 = vmax.xlane.f32.xlu0 %v3642
      %v3644 = vpop.xlane.xlu0 %3643
      %v3645 = vsel %vm538, %v3629, -inf
      %3646 = vmax.xlane.f32.xlu0 %v3645
      %v3647 = vpop.xlane.xlu0 %3646
      %v3648 = vsel %vm538, %v3630, -inf
      %3649 = vmax.xlane.f32.xlu0 %v3648
      %v3650 = vpop.xlane.xlu0 %3649
      %v3651 = vsel %vm538, %v3631, -inf
      %3652 = vmax.xlane.f32.xlu0 %v3651
      %v3653 = vpop.xlane.xlu0 %3652
      %v3654 = vsel %vm538, %v3632, -inf
      %3655 = vmax.xlane.f32.xlu0 %v3654
      %v3656 = vpop.xlane.xlu0 %3655
      %v3657 = vsub.f32 %v3625, %v3635
      %v3658 = vsub.f32 %v3626, %v3638
      %v3659 = vsub.f32 %v3627, %v3641
      %v3660 = vsub.f32 %v3628, %v3644
      %v3661 = vsub.f32 %v3629, %v3647
      %v3662 = vsub.f32 %v3630, %v3650
      %v3663 = vsub.f32 %v3631, %v3653
      %v3664 = vsub.f32 %v3632, %v3656
      %v3665 = vmul.f32 %v3657, 1.442695
      %v3666 = vpow.pop %v3665
      %v3667 = vmul.f32 %v3658, 1.442695
      %v3668 = vpow.pop %v3667
      %v3669 = vmul.f32 %v3659, 1.442695
      %v3670 = vpow.pop %v3669
      %v3671 = vmul.f32 %v3660, 1.442695
      %v3672 = vpow.pop %v3671
      %v3673 = vmul.f32 %v3661, 1.442695
      %v3674 = vpow.pop %v3673
      %v3675 = vmul.f32 %v3662, 1.442695
      %v3676 = vpow.pop %v3675
      %v3677 = vmul.f32 %v3663, 1.442695
      %v3678 = vpow.pop %v3677
      %v3679 = vmul.f32 %v3664, 1.442695
      %v3680 = vpow.pop %v3679
      %v3681 = vsel %vm538, %v3666, 0.0
      %3682 = vadd.xlane.f32.xlu0 %v3681
      %v3683 = vpop.xlane.xlu0 %3682
      %v3684 = vsel %vm538, %v3668, 0.0
      %3685 = vadd.xlane.f32.xlu0 %v3684
      %v3686 = vpop.xlane.xlu0 %3685
      %v3687 = vsel %vm538, %v3670, 0.0
      %3688 = vadd.xlane.f32.xlu0 %v3687
      %v3689 = vpop.xlane.xlu0 %3688
      %v3690 = vsel %vm538, %v3672, 0.0
      %3691 = vadd.xlane.f32.xlu0 %v3690
      %v3692 = vpop.xlane.xlu0 %3691
      %v3693 = vsel %vm538, %v3674, 0.0
      %3694 = vadd.xlane.f32.xlu0 %v3693
      %v3695 = vpop.xlane.xlu0 %3694
      %v3696 = vsel %vm538, %v3676, 0.0
      %3697 = vadd.xlane.f32.xlu0 %v3696
      %v3698 = vpop.xlane.xlu0 %3697
      %v3699 = vsel %vm538, %v3678, 0.0
      %3700 = vadd.xlane.f32.xlu0 %v3699
      %v3701 = vpop.xlane.xlu0 %3700
      %v3702 = vsel %vm538, %v3680, 0.0
      %3703 = vadd.xlane.f32.xlu0 %v3702
      %v3704 = vpop.xlane.xlu0 %3703
      %v3705 = vrcp.pop %v3683
      %v3706 = vmul.f32 %v3666, %v3705
      %v3707 = vrcp.pop %v3686
      %v3708 = vmul.f32 %v3668, %v3707
      %v3709 = vrcp.pop %v3689
      %v3710 = vmul.f32 %v3670, %v3709
      %v3711 = vrcp.pop %v3692
      %v3712 = vmul.f32 %v3672, %v3711
      %v3713 = vrcp.pop %v3695
      %v3714 = vmul.f32 %v3674, %v3713
      %v3715 = vrcp.pop %v3698
      %v3716 = vmul.f32 %v3676, %v3715
      %v3717 = vrcp.pop %v3701
      %v3718 = vmul.f32 %v3678, %v3717
      %v3719 = vrcp.pop %v3704
      %v3720 = vmul.f32 %v3680, %v3719
      %v3722 = vsel %vm538, %v3706, 0
      %v3725 = vsel %vm538, %v3708, 0
      %v3728 = vsel %vm538, %v3710, 0
      %v3731 = vsel %vm538, %v3712, 0
      %v3734 = vsel %vm538, %v3714, 0
      %v3737 = vsel %vm538, %v3716, 0
      %v3740 = vsel %vm538, %v3718, 0
      %v3743 = vsel %vm538, %v3720, 0
      %3745 = vmatprep.subr.mxu0 0.0
      %3746 = vmatpush1.msra.mxu0 0.0
      %3747 = vmatprep.subr.mxu0 0.0
      %3748 = vmatpush1.msra.mxu0 0.0
      %3749 = vmatprep.subr.mxu0 0.0
      %3750 = vmatpush1.msra.mxu0 0.0
      %3751 = vmatprep.subr.mxu0 0.0
      %3752 = vmatpush1.msra.mxu0 0.0
      %3753 = vmatprep.subr.mxu0 0.0
      %3754 = vmatpush1.msra.mxu0 0.0
      %3755 = vmatprep.subr.mxu0 0.0
      %3756 = vmatpush1.msra.mxu0 0.0
      %3757 = vmatprep.subr.mxu0 0.0
      %3758 = vmatpush1.msra.mxu0 0.0
      %3759 = vmatprep.subr.mxu0 0.0
      %3760 = vmatpush1.msra.mxu0 0.0
      %3761 = vmatprep.subr.mxu0 0.0
      %3762 = vmatpush1.msra.mxu0 %v3469
      %3763 = vmatprep.subr.mxu0 0.0
      %3764 = vmatpush1.msra.mxu0 %v3464
      %3765 = vmatprep.subr.mxu0 0.0
      %3766 = vmatpush1.msra.mxu0 %v3459
      %3767 = vmatprep.subr.mxu0 0.0
      %3768 = vmatpush1.msra.mxu0 %v3454
      %3769 = vmatprep.subr.mxu0 0.0
      %3770 = vmatpush1.msra.mxu0 %v3449
      %3771 = vmatprep.subr.mxu0 0.0
      %3772 = vmatpush1.msra.mxu0 %v3444
      %3773 = vmatprep.subr.mxu0 0.0
      %3774 = vmatpush1.msra.mxu0 %v3439
      %3775 = vmatprep.subr.mxu0 0.0
      %3776 = vmatpush1.msra.mxu0 %v3434
      %3777 = vmatprep.subr.mxu0 0.0
      %3778 = vmatpush2.msra.mxu0 0.0
      %3779 = vmatprep.subr.mxu0 0.0
      %3780 = vmatpush2.msra.mxu0 0.0
      %3781 = vmatprep.subr.mxu0 0.0
      %3782 = vmatpush2.msra.mxu0 0.0
      %3783 = vmatprep.subr.mxu0 0.0
      %3784 = vmatpush2.msra.mxu0 0.0
      %3785 = vmatprep.subr.mxu0 0.0
      %3786 = vmatpush2.msra.mxu0 0.0
      %3787 = vmatprep.subr.mxu0 0.0
      %3788 = vmatpush2.msra.mxu0 0.0
      %3789 = vmatprep.subr.mxu0 0.0
      %3790 = vmatpush2.msra.mxu0 0.0
      %3791 = vmatprep.subr.mxu0 0.0
      %3792 = vmatpush2.msra.mxu0 0.0
      %3793 = vmatprep.subr.mxu0 0.0
      %3794 = vmatpush2.msra.mxu0 0.0
      %3795 = vmatprep.subr.mxu0 0.0
      %3796 = vmatpush2.msra.mxu0 0.0
      %3797 = vmatprep.subr.mxu0 0.0
      %3798 = vmatpush2.msra.mxu0 0.0
      %3799 = vmatprep.subr.mxu0 0.0
      %3800 = vmatpush2.msra.mxu0 0.0
      %3801 = vmatprep.subr.mxu0 0.0
      %3802 = vmatpush2.msra.mxu0 0.0
      %3803 = vmatprep.subr.mxu0 0.0
      %3804 = vmatpush2.msra.mxu0 0.0
      %3805 = vmatprep.subr.mxu0 0.0
      %3806 = vmatpush2.msra.mxu0 0.0
      %3807 = vmatprep.subr.mxu0 0.0
      %3808 = vmatpush2.msra.mxu0 0.0
      %3809 = vmatprep.mubr.f32.mxu0 0.0
      %3810 = vmatmul.mubr.f32.gmra.mxu0 %v3722
      %v3811 = vpop.f32.mrf.mxu0
      %v3812 = vadd.f32 0.0, %v3811
      %v3813 = vpop.f32.mrf.mxu0
      %3814 = vmatprep.mubr.f32.mxu0 0.0
      %3815 = vmatmul.mubr.f32.gmra.mxu0 %v3725
      %v3816 = vpop.f32.mrf.mxu0
      %v3817 = vadd.f32 0.0, %v3816
      %v3818 = vpop.f32.mrf.mxu0
      %3819 = vmatprep.mubr.f32.mxu0 0.0
      %3820 = vmatmul.mubr.f32.gmra.mxu0 %v3728
      %v3821 = vpop.f32.mrf.mxu0
      %v3822 = vadd.f32 0.0, %v3821
      %v3823 = vpop.f32.mrf.mxu0
      %3824 = vmatprep.mubr.f32.mxu0 0.0
      %3825 = vmatmul.mubr.f32.gmra.mxu0 %v3731
      %v3826 = vpop.f32.mrf.mxu0
      %v3827 = vadd.f32 0.0, %v3826
      %v3828 = vpop.f32.mrf.mxu0
      %3829 = vmatprep.mubr.f32.mxu0 0.0
      %3830 = vmatmul.mubr.f32.gmra.mxu0 %v3734
      %v3831 = vpop.f32.mrf.mxu0
      %v3832 = vadd.f32 0.0, %v3831
      %v3833 = vpop.f32.mrf.mxu0
      %3834 = vmatprep.mubr.f32.mxu0 0.0
      %3835 = vmatmul.mubr.f32.gmra.mxu0 %v3737
      %v3836 = vpop.f32.mrf.mxu0
      %v3837 = vadd.f32 0.0, %v3836
      %v3838 = vpop.f32.mrf.mxu0
      %3839 = vmatprep.mubr.f32.mxu0 0.0
      %3840 = vmatmul.mubr.f32.gmra.mxu0 %v3740
      %v3841 = vpop.f32.mrf.mxu0
      %v3842 = vadd.f32 0.0, %v3841
      %v3843 = vpop.f32.mrf.mxu0
      %3844 = vmatprep.mubr.f32.mxu0 0.0
      %3845 = vmatmul.mubr.f32.gmra.mxu0 %v3743
      %v3846 = vpop.f32.mrf.mxu0
      %v3847 = vadd.f32 0.0, %v3846
      %v3848 = vpop.f32.mrf.mxu0
      %3849 = vdwg.mxu0
      %s3850 = scalar_lea.vmem %s8, 8
      %v3851 = vld [vmem:[%s3850] sm:$0xff]
      %v3853 = vsel %vm2738, %v3812, 0
      %v3856 = vsel %vm2738, %v3817, 0
      %v3859 = vsel %vm2738, %v3822, 0
      %v3862 = vsel %vm2738, %v3827, 0
      %v3865 = vsel %vm2738, %v3832, 0
      %v3868 = vsel %vm2738, %v3837, 0
      %v3871 = vsel %vm2738, %v3842, 0
      %v3874 = vsel %vm2738, %v3847, 0
      %3876 = vmatprep.subr.mxu0 0.0
      %3877 = vmatpush1.msra.mxu0 0.0
      %3878 = vmatprep.subr.mxu0 0.0
      %3879 = vmatpush1.msra.mxu0 0.0
      %3880 = vmatprep.subr.mxu0 0.0
      %3881 = vmatpush1.msra.mxu0 0.0
      %3882 = vmatprep.subr.mxu0 0.0
      %3883 = vmatpush1.msra.mxu0 0.0
      %3884 = vmatprep.subr.mxu0 0.0
      %3885 = vmatpush1.msra.mxu0 0.0
      %3886 = vmatprep.subr.mxu0 0.0
      %3887 = vmatpush1.msra.mxu0 0.0
      %3888 = vmatprep.subr.mxu0 0.0
      %3889 = vmatpush1.msra.mxu0 0.0
      %3890 = vmatprep.subr.mxu0 0.0
      %3891 = vmatpush1.msra.mxu0 0.0
      %3892 = vmatprep.subr.mxu0 0.0
      %3893 = vmatpush1.msra.mxu0 0.0
      %3894 = vmatprep.subr.mxu0 0.0
      %3895 = vmatpush1.msra.mxu0 0.0
      %3896 = vmatprep.subr.mxu0 0.0
      %3897 = vmatpush1.msra.mxu0 0.0
      %3898 = vmatprep.subr.mxu0 0.0
      %3899 = vmatpush1.msra.mxu0 0.0
      %3900 = vmatprep.subr.mxu0 0.0
      %3901 = vmatpush1.msra.mxu0 0.0
      %3902 = vmatprep.subr.mxu0 0.0
      %3903 = vmatpush1.msra.mxu0 0.0
      %3904 = vmatprep.subr.mxu0 0.0
      %3905 = vmatpush1.msra.mxu0 0.0
      %3906 = vmatprep.subr.mxu0 0.0
      %3907 = vmatpush1.msra.mxu0 %v3851
      %3908 = vmatprep.subr.mxu0 0.0
      %3909 = vmatpush2.msra.mxu0 0.0
      %3910 = vmatprep.subr.mxu0 0.0
      %3911 = vmatpush2.msra.mxu0 0.0
      %3912 = vmatprep.subr.mxu0 0.0
      %3913 = vmatpush2.msra.mxu0 0.0
      %3914 = vmatprep.subr.mxu0 0.0
      %3915 = vmatpush2.msra.mxu0 0.0
      %3916 = vmatprep.subr.mxu0 0.0
      %3917 = vmatpush2.msra.mxu0 0.0
      %3918 = vmatprep.subr.mxu0 0.0
      %3919 = vmatpush2.msra.mxu0 0.0
      %3920 = vmatprep.subr.mxu0 0.0
      %3921 = vmatpush2.msra.mxu0 0.0
      %3922 = vmatprep.subr.mxu0 0.0
      %3923 = vmatpush2.msra.mxu0 0.0
      %3924 = vmatprep.subr.mxu0 0.0
      %3925 = vmatpush2.msra.mxu0 0.0
      %3926 = vmatprep.subr.mxu0 0.0
      %3927 = vmatpush2.msra.mxu0 0.0
      %3928 = vmatprep.subr.mxu0 0.0
      %3929 = vmatpush2.msra.mxu0 0.0
      %3930 = vmatprep.subr.mxu0 0.0
      %3931 = vmatpush2.msra.mxu0 0.0
      %3932 = vmatprep.subr.mxu0 0.0
      %3933 = vmatpush2.msra.mxu0 0.0
      %3934 = vmatprep.subr.mxu0 0.0
      %3935 = vmatpush2.msra.mxu0 0.0
      %3936 = vmatprep.subr.mxu0 0.0
      %3937 = vmatpush2.msra.mxu0 0.0
      %3938 = vmatprep.subr.mxu0 0.0
      %3939 = vmatpush2.msra.mxu0 0.0
      %3940 = vmatprep.mubr.f32.mxu0 0.0
      %3941 = vmatmul.mubr.f32.gmra.mxu0 %v3853
      %v3942 = vpop.f32.mrf.mxu0
      %v3943 = vadd.f32 0.0, %v3942
      %v3944 = vpop.f32.mrf.mxu0
      %3945 = vmatprep.mubr.f32.mxu0 0.0
      %3946 = vmatmul.mubr.f32.gmra.mxu0 %v3856
      %v3947 = vpop.f32.mrf.mxu0
      %v3948 = vadd.f32 0.0, %v3947
      %v3949 = vpop.f32.mrf.mxu0
      %3950 = vmatprep.mubr.f32.mxu0 0.0
      %3951 = vmatmul.mubr.f32.gmra.mxu0 %v3859
      %v3952 = vpop.f32.mrf.mxu0
      %v3953 = vadd.f32 0.0, %v3952
      %v3954 = vpop.f32.mrf.mxu0
      %3955 = vmatprep.mubr.f32.mxu0 0.0
      %3956 = vmatmul.mubr.f32.gmra.mxu0 %v3862
      %v3957 = vpop.f32.mrf.mxu0
      %v3958 = vadd.f32 0.0, %v3957
      %v3959 = vpop.f32.mrf.mxu0
      %3960 = vmatprep.mubr.f32.mxu0 0.0
      %3961 = vmatmul.mubr.f32.gmra.mxu0 %v3865
      %v3962 = vpop.f32.mrf.mxu0
      %v3963 = vadd.f32 0.0, %v3962
      %v3964 = vpop.f32.mrf.mxu0
      %3965 = vmatprep.mubr.f32.mxu0 0.0
      %3966 = vmatmul.mubr.f32.gmra.mxu0 %v3868
      %v3967 = vpop.f32.mrf.mxu0
      %v3968 = vadd.f32 0.0, %v3967
      %v3969 = vpop.f32.mrf.mxu0
      %3970 = vmatprep.mubr.f32.mxu0 0.0
      %3971 = vmatmul.mubr.f32.gmra.mxu0 %v3871
      %v3972 = vpop.f32.mrf.mxu0
      %v3973 = vadd.f32 0.0, %v3972
      %v3974 = vpop.f32.mrf.mxu0
      %3975 = vmatprep.mubr.f32.mxu0 0.0
      %3976 = vmatmul.mubr.f32.gmra.mxu0 %v3874
      %v3977 = vpop.f32.mrf.mxu0
      %v3978 = vadd.f32 0.0, %v3977
      %v3979 = vpop.f32.mrf.mxu0
      %3980 = vdwg.mxu0
      %v3982 = vsel %vm2738, %v3079, 0
      %v3985 = vsel %vm2738, %v3084, 0
      %v3988 = vsel %vm2738, %v3089, 0
      %v3991 = vsel %vm2738, %v3094, 0
      %v3994 = vsel %vm2738, %v3099, 0
      %v3997 = vsel %vm2738, %v3104, 0
      %v4000 = vsel %vm2738, %v3109, 0
      %v4003 = vsel %vm2738, %v3114, 0
      %4005 = vmatprep.subr.mxu0 0.0
      %4006 = vmatpush1.msra.mxu0 0.0
      %4007 = vmatprep.subr.mxu0 0.0
      %4008 = vmatpush1.msra.mxu0 0.0
      %4009 = vmatprep.subr.mxu0 0.0
      %4010 = vmatpush1.msra.mxu0 0.0
      %4011 = vmatprep.subr.mxu0 0.0
      %4012 = vmatpush1.msra.mxu0 0.0
      %4013 = vmatprep.subr.mxu0 0.0
      %4014 = vmatpush1.msra.mxu0 0.0
      %4015 = vmatprep.subr.mxu0 0.0
      %4016 = vmatpush1.msra.mxu0 0.0
      %4017 = vmatprep.subr.mxu0 0.0
      %4018 = vmatpush1.msra.mxu0 0.0
      %4019 = vmatprep.subr.mxu0 0.0
      %4020 = vmatpush1.msra.mxu0 0.0
      %4021 = vmatprep.subr.mxu0 0.0
      %4022 = vmatpush1.msra.mxu0 0.0
      %4023 = vmatprep.subr.mxu0 0.0
      %4024 = vmatpush1.msra.mxu0 0.0
      %4025 = vmatprep.subr.mxu0 0.0
      %4026 = vmatpush1.msra.mxu0 0.0
      %4027 = vmatprep.subr.mxu0 0.0
      %4028 = vmatpush1.msra.mxu0 0.0
      %4029 = vmatprep.subr.mxu0 0.0
      %4030 = vmatpush1.msra.mxu0 0.0
      %4031 = vmatprep.subr.mxu0 0.0
      %4032 = vmatpush1.msra.mxu0 0.0
      %4033 = vmatprep.subr.mxu0 0.0
      %4034 = vmatpush1.msra.mxu0 0.0
      %4035 = vmatprep.subr.mxu0 0.0
      %4036 = vmatpush1.msra.mxu0 %v3117
      %4037 = vmatprep.subr.mxu0 0.0
      %4038 = vmatpush2.msra.mxu0 0.0
      %4039 = vmatprep.subr.mxu0 0.0
      %4040 = vmatpush2.msra.mxu0 0.0
      %4041 = vmatprep.subr.mxu0 0.0
      %4042 = vmatpush2.msra.mxu0 0.0
      %4043 = vmatprep.subr.mxu0 0.0
      %4044 = vmatpush2.msra.mxu0 0.0
      %4045 = vmatprep.subr.mxu0 0.0
      %4046 = vmatpush2.msra.mxu0 0.0
      %4047 = vmatprep.subr.mxu0 0.0
      %4048 = vmatpush2.msra.mxu0 0.0
      %4049 = vmatprep.subr.mxu0 0.0
      %4050 = vmatpush2.msra.mxu0 0.0
      %4051 = vmatprep.subr.mxu0 0.0
      %4052 = vmatpush2.msra.mxu0 0.0
      %4053 = vmatprep.subr.mxu0 0.0
      %4054 = vmatpush2.msra.mxu0 0.0
      %4055 = vmatprep.subr.mxu0 0.0
      %4056 = vmatpush2.msra.mxu0 0.0
      %4057 = vmatprep.subr.mxu0 0.0
      %4058 = vmatpush2.msra.mxu0 0.0
      %4059 = vmatprep.subr.mxu0 0.0
      %4060 = vmatpush2.msra.mxu0 0.0
      %4061 = vmatprep.subr.mxu0 0.0
      %4062 = vmatpush2.msra.mxu0 0.0
      %4063 = vmatprep.subr.mxu0 0.0
      %4064 = vmatpush2.msra.mxu0 0.0
      %4065 = vmatprep.subr.mxu0 0.0
      %4066 = vmatpush2.msra.mxu0 0.0
      %4067 = vmatprep.subr.mxu0 0.0
      %4068 = vmatpush2.msra.mxu0 0.0
      %4069 = vmatprep.mubr.f32.mxu0 0.0
      %4070 = vmatmul.mubr.f32.gmra.mxu0 %v3982
      %v4071 = vpop.f32.mrf.mxu0
      %v4072 = vadd.f32 %v3943, %v4071
      %v4073 = vpop.f32.mrf.mxu0
      %4074 = vmatprep.mubr.f32.mxu0 0.0
      %4075 = vmatmul.mubr.f32.gmra.mxu0 %v3985
      %v4076 = vpop.f32.mrf.mxu0
      %v4077 = vadd.f32 %v3948, %v4076
      %v4078 = vpop.f32.mrf.mxu0
      %4079 = vmatprep.mubr.f32.mxu0 0.0
      %4080 = vmatmul.mubr.f32.gmra.mxu0 %v3988
      %v4081 = vpop.f32.mrf.mxu0
      %v4082 = vadd.f32 %v3953, %v4081
      %v4083 = vpop.f32.mrf.mxu0
      %4084 = vmatprep.mubr.f32.mxu0 0.0
      %4085 = vmatmul.mubr.f32.gmra.mxu0 %v3991
      %v4086 = vpop.f32.mrf.mxu0
      %v4087 = vadd.f32 %v3958, %v4086
      %v4088 = vpop.f32.mrf.mxu0
      %4089 = vmatprep.mubr.f32.mxu0 0.0
      %4090 = vmatmul.mubr.f32.gmra.mxu0 %v3994
      %v4091 = vpop.f32.mrf.mxu0
      %v4092 = vadd.f32 %v3963, %v4091
      %v4093 = vpop.f32.mrf.mxu0
      %4094 = vmatprep.mubr.f32.mxu0 0.0
      %4095 = vmatmul.mubr.f32.gmra.mxu0 %v3997
      %v4096 = vpop.f32.mrf.mxu0
      %v4097 = vadd.f32 %v3968, %v4096
      %v4098 = vpop.f32.mrf.mxu0
      %4099 = vmatprep.mubr.f32.mxu0 0.0
      %4100 = vmatmul.mubr.f32.gmra.mxu0 %v4000
      %v4101 = vpop.f32.mrf.mxu0
      %v4102 = vadd.f32 %v3973, %v4101
      %v4103 = vpop.f32.mrf.mxu0
      %4104 = vmatprep.mubr.f32.mxu0 0.0
      %4105 = vmatmul.mubr.f32.gmra.mxu0 %v4003
      %v4106 = vpop.f32.mrf.mxu0
      %v4107 = vadd.f32 %v3978, %v4106
      %v4108 = vpop.f32.mrf.mxu0
      %4109 = vdwg.mxu0
      %s4110 = scalar_lea.vmem %s6, 64
      %v4111 = vld [vmem:[%s4110] sm:$0xff]
      %v4112 = vld [vmem:[%s4110 + $0x8] sm:$0xff]
      %v4113 = vld [vmem:[%s4110 + $0x10] sm:$0xff]
      %v4114 = vld [vmem:[%s4110 + $0x18] sm:$0xff]
      %s4115 = scalar_lea.vmem %s7, 2
      %v4116 = vld [vmem:[%s4115] sm:$0x1]
      %v4118 = vlaneseq
      %v4119 = vshrl.u32 %v4118, 7
      %v4120 = vsub.s32 0, %v4119
      %v4121 = vrot.slane %v4116, %v4120
      %4123 = vmatprep.subr.mxu0 0.0
      %4124 = vmatpush1.msra.mxu0 0.0
      %4125 = vmatprep.subr.mxu0 0.0
      %4126 = vmatpush1.msra.mxu0 0.0
      %4127 = vmatprep.subr.mxu0 0.0
      %4128 = vmatpush1.msra.mxu0 0.0
      %4129 = vmatprep.subr.mxu0 0.0
      %4130 = vmatpush1.msra.mxu0 0.0
      %4131 = vmatprep.subr.mxu0 0.0
      %4132 = vmatpush1.msra.mxu0 0.0
      %4133 = vmatprep.subr.mxu0 0.0
      %4134 = vmatpush1.msra.mxu0 0.0
      %4135 = vmatprep.subr.mxu0 0.0
      %4136 = vmatpush1.msra.mxu0 0.0
      %4137 = vmatprep.subr.mxu0 0.0
      %4138 = vmatpush1.msra.mxu0 0.0
      %4139 = vmatprep.subr.mxu0 0.0
      %4140 = vmatpush1.msra.mxu0 0.0
      %4141 = vmatprep.subr.mxu0 0.0
      %4142 = vmatpush1.msra.mxu0 0.0
      %4143 = vmatprep.subr.mxu0 0.0
      %4144 = vmatpush1.msra.mxu0 0.0
      %4145 = vmatprep.subr.mxu0 0.0
      %4146 = vmatpush1.msra.mxu0 0.0
      %4147 = vmatprep.subr.mxu0 0.0
      %4148 = vmatpush1.msra.mxu0 %v4114
      %4149 = vmatprep.subr.mxu0 0.0
      %4150 = vmatpush1.msra.mxu0 %v4113
      %4151 = vmatprep.subr.mxu0 0.0
      %4152 = vmatpush1.msra.mxu0 %v4112
      %4153 = vmatprep.subr.mxu0 0.0
      %4154 = vmatpush1.msra.mxu0 %v4111
      %4155 = vmatprep.subr.mxu0 0.0
      %4156 = vmatpush2.msra.mxu0 0.0
      %4157 = vmatprep.subr.mxu0 0.0
      %4158 = vmatpush2.msra.mxu0 0.0
      %4159 = vmatprep.subr.mxu0 0.0
      %4160 = vmatpush2.msra.mxu0 0.0
      %4161 = vmatprep.subr.mxu0 0.0
      %4162 = vmatpush2.msra.mxu0 0.0
      %4163 = vmatprep.subr.mxu0 0.0
      %4164 = vmatpush2.msra.mxu0 0.0
      %4165 = vmatprep.subr.mxu0 0.0
      %4166 = vmatpush2.msra.mxu0 0.0
      %4167 = vmatprep.subr.mxu0 0.0
      %4168 = vmatpush2.msra.mxu0 0.0
      %4169 = vmatprep.subr.mxu0 0.0
      %4170 = vmatpush2.msra.mxu0 0.0
      %4171 = vmatprep.subr.mxu0 0.0
      %4172 = vmatpush2.msra.mxu0 0.0
      %4173 = vmatprep.subr.mxu0 0.0
      %4174 = vmatpush2.msra.mxu0 0.0
      %4175 = vmatprep.subr.mxu0 0.0
      %4176 = vmatpush2.msra.mxu0 0.0
      %4177 = vmatprep.subr.mxu0 0.0
      %4178 = vmatpush2.msra.mxu0 0.0
      %4179 = vmatprep.subr.mxu0 0.0
      %4180 = vmatpush2.msra.mxu0 0.0
      %4181 = vmatprep.subr.mxu0 0.0
      %4182 = vmatpush2.msra.mxu0 0.0
      %4183 = vmatprep.subr.mxu0 0.0
      %4184 = vmatpush2.msra.mxu0 0.0
      %4185 = vmatprep.subr.mxu0 0.0
      %4186 = vmatpush2.msra.mxu0 0.0
      %4187 = vmatprep.mubr.f32.mxu0 0.0
      %4188 = vmatmul.mubr.f32.gmra.mxu0 %v2374
      %v4189 = vpop.f32.mrf.mxu0
      %v4190 = vadd.f32 %v4121, %v4189
      %v4191 = vpop.f32.mrf.mxu0
      %4192 = vmatprep.mubr.f32.mxu0 0.0
      %4193 = vmatmul.mubr.f32.gmra.mxu0 %v2377
      %v4194 = vpop.f32.mrf.mxu0
      %v4195 = vadd.f32 %v4121, %v4194
      %v4196 = vpop.f32.mrf.mxu0
      %4197 = vmatprep.mubr.f32.mxu0 0.0
      %4198 = vmatmul.mubr.f32.gmra.mxu0 %v2380
      %v4199 = vpop.f32.mrf.mxu0
      %v4200 = vadd.f32 %v4121, %v4199
      %v4201 = vpop.f32.mrf.mxu0
      %4202 = vmatprep.mubr.f32.mxu0 0.0
      %4203 = vmatmul.mubr.f32.gmra.mxu0 %v2383
      %v4204 = vpop.f32.mrf.mxu0
      %v4205 = vadd.f32 %v4121, %v4204
      %v4206 = vpop.f32.mrf.mxu0
      %4207 = vmatprep.mubr.f32.mxu0 0.0
      %4208 = vmatmul.mubr.f32.gmra.mxu0 %v2386
      %v4209 = vpop.f32.mrf.mxu0
      %v4210 = vadd.f32 %v4121, %v4209
      %v4211 = vpop.f32.mrf.mxu0
      %4212 = vmatprep.mubr.f32.mxu0 0.0
      %4213 = vmatmul.mubr.f32.gmra.mxu0 %v2389
      %v4214 = vpop.f32.mrf.mxu0
      %v4215 = vadd.f32 %v4121, %v4214
      %v4216 = vpop.f32.mrf.mxu0
      %4217 = vmatprep.mubr.f32.mxu0 0.0
      %4218 = vmatmul.mubr.f32.gmra.mxu0 %v2392
      %v4219 = vpop.f32.mrf.mxu0
      %v4220 = vadd.f32 %v4121, %v4219
      %v4221 = vpop.f32.mrf.mxu0
      %4222 = vmatprep.mubr.f32.mxu0 0.0
      %4223 = vmatmul.mubr.f32.gmra.mxu0 %v2395
      %v4224 = vpop.f32.mrf.mxu0
      %v4225 = vadd.f32 %v4121, %v4224
      %v4226 = vpop.f32.mrf.mxu0
      %4227 = vdwg.mxu0
      %s4228 = scalar_lea.vmem %s6, 192
      %v4229 = vld [vmem:[%s4228] sm:$0xff]
      %v4230 = vld [vmem:[%s4228 + $0x8] sm:$0xff]
      %v4231 = vld [vmem:[%s4228 + $0x10] sm:$0xff]
      %v4232 = vld [vmem:[%s4228 + $0x18] sm:$0xff]
      %s4233 = scalar_lea.vmem %s7, 6
      %v4234 = vld [vmem:[%s4233] sm:$0x1]
      %v4236 = vlaneseq
      %v4237 = vshrl.u32 %v4236, 7
      %v4238 = vsub.s32 0, %v4237
      %v4239 = vrot.slane %v4234, %v4238
      %4241 = vmatprep.subr.mxu0 0.0
      %4242 = vmatpush1.msra.mxu0 0.0
      %4243 = vmatprep.subr.mxu0 0.0
      %4244 = vmatpush1.msra.mxu0 0.0
      %4245 = vmatprep.subr.mxu0 0.0
      %4246 = vmatpush1.msra.mxu0 0.0
      %4247 = vmatprep.subr.mxu0 0.0
      %4248 = vmatpush1.msra.mxu0 0.0
      %4249 = vmatprep.subr.mxu0 0.0
      %4250 = vmatpush1.msra.mxu0 0.0
      %4251 = vmatprep.subr.mxu0 0.0
      %4252 = vmatpush1.msra.mxu0 0.0
      %4253 = vmatprep.subr.mxu0 0.0
      %4254 = vmatpush1.msra.mxu0 0.0
      %4255 = vmatprep.subr.mxu0 0.0
      %4256 = vmatpush1.msra.mxu0 0.0
      %4257 = vmatprep.subr.mxu0 0.0
      %4258 = vmatpush1.msra.mxu0 0.0
      %4259 = vmatprep.subr.mxu0 0.0
      %4260 = vmatpush1.msra.mxu0 0.0
      %4261 = vmatprep.subr.mxu0 0.0
      %4262 = vmatpush1.msra.mxu0 0.0
      %4263 = vmatprep.subr.mxu0 0.0
      %4264 = vmatpush1.msra.mxu0 0.0
      %4265 = vmatprep.subr.mxu0 0.0
      %4266 = vmatpush1.msra.mxu0 %v4232
      %4267 = vmatprep.subr.mxu0 0.0
      %4268 = vmatpush1.msra.mxu0 %v4231
      %4269 = vmatprep.subr.mxu0 0.0
      %4270 = vmatpush1.msra.mxu0 %v4230
      %4271 = vmatprep.subr.mxu0 0.0
      %4272 = vmatpush1.msra.mxu0 %v4229
      %4273 = vmatprep.subr.mxu0 0.0
      %4274 = vmatpush2.msra.mxu0 0.0
      %4275 = vmatprep.subr.mxu0 0.0
      %4276 = vmatpush2.msra.mxu0 0.0
      %4277 = vmatprep.subr.mxu0 0.0
      %4278 = vmatpush2.msra.mxu0 0.0
      %4279 = vmatprep.subr.mxu0 0.0
      %4280 = vmatpush2.msra.mxu0 0.0
      %4281 = vmatprep.subr.mxu0 0.0
      %4282 = vmatpush2.msra.mxu0 0.0
      %4283 = vmatprep.subr.mxu0 0.0
      %4284 = vmatpush2.msra.mxu0 0.0
      %4285 = vmatprep.subr.mxu0 0.0
      %4286 = vmatpush2.msra.mxu0 0.0
      %4287 = vmatprep.subr.mxu0 0.0
      %4288 = vmatpush2.msra.mxu0 0.0
      %4289 = vmatprep.subr.mxu0 0.0
      %4290 = vmatpush2.msra.mxu0 0.0
      %4291 = vmatprep.subr.mxu0 0.0
      %4292 = vmatpush2.msra.mxu0 0.0
      %4293 = vmatprep.subr.mxu0 0.0
      %4294 = vmatpush2.msra.mxu0 0.0
      %4295 = vmatprep.subr.mxu0 0.0
      %4296 = vmatpush2.msra.mxu0 0.0
      %4297 = vmatprep.subr.mxu0 0.0
      %4298 = vmatpush2.msra.mxu0 0.0
      %4299 = vmatprep.subr.mxu0 0.0
      %4300 = vmatpush2.msra.mxu0 0.0
      %4301 = vmatprep.subr.mxu0 0.0
      %4302 = vmatpush2.msra.mxu0 0.0
      %4303 = vmatprep.subr.mxu0 0.0
      %4304 = vmatpush2.msra.mxu0 0.0
      %4305 = vmatprep.mubr.f32.mxu0 0.0
      %4306 = vmatmul.mubr.f32.gmra.mxu0 %v2374
      %v4307 = vpop.f32.mrf.mxu0
      %v4308 = vadd.f32 %v4239, %v4307
      %v4309 = vpop.f32.mrf.mxu0
      %4310 = vmatprep.mubr.f32.mxu0 0.0
      %4311 = vmatmul.mubr.f32.gmra.mxu0 %v2377
      %v4312 = vpop.f32.mrf.mxu0
      %v4313 = vadd.f32 %v4239, %v4312
      %v4314 = vpop.f32.mrf.mxu0
      %4315 = vmatprep.mubr.f32.mxu0 0.0
      %4316 = vmatmul.mubr.f32.gmra.mxu0 %v2380
      %v4317 = vpop.f32.mrf.mxu0
      %v4318 = vadd.f32 %v4239, %v4317
      %v4319 = vpop.f32.mrf.mxu0
      %4320 = vmatprep.mubr.f32.mxu0 0.0
      %4321 = vmatmul.mubr.f32.gmra.mxu0 %v2383
      %v4322 = vpop.f32.mrf.mxu0
      %v4323 = vadd.f32 %v4239, %v4322
      %v4324 = vpop.f32.mrf.mxu0
      %4325 = vmatprep.mubr.f32.mxu0 0.0
      %4326 = vmatmul.mubr.f32.gmra.mxu0 %v2386
      %v4327 = vpop.f32.mrf.mxu0
      %v4328 = vadd.f32 %v4239, %v4327
      %v4329 = vpop.f32.mrf.mxu0
      %4330 = vmatprep.mubr.f32.mxu0 0.0
      %4331 = vmatmul.mubr.f32.gmra.mxu0 %v2389
      %v4332 = vpop.f32.mrf.mxu0
      %v4333 = vadd.f32 %v4239, %v4332
      %v4334 = vpop.f32.mrf.mxu0
      %4335 = vmatprep.mubr.f32.mxu0 0.0
      %4336 = vmatmul.mubr.f32.gmra.mxu0 %v2392
      %v4337 = vpop.f32.mrf.mxu0
      %v4338 = vadd.f32 %v4239, %v4337
      %v4339 = vpop.f32.mrf.mxu0
      %4340 = vmatprep.mubr.f32.mxu0 0.0
      %4341 = vmatmul.mubr.f32.gmra.mxu0 %v2395
      %v4342 = vpop.f32.mrf.mxu0
      %v4343 = vadd.f32 %v4239, %v4342
      %v4344 = vpop.f32.mrf.mxu0
      %4345 = vdwg.mxu0
      %s4346 = scalar_lea.vmem %s6, 320
      %v4347 = vld [vmem:[%s4346] sm:$0xff]
      %v4348 = vld [vmem:[%s4346 + $0x8] sm:$0xff]
      %v4349 = vld [vmem:[%s4346 + $0x10] sm:$0xff]
      %v4350 = vld [vmem:[%s4346 + $0x18] sm:$0xff]
      %s4351 = scalar_lea.vmem %s7, 10
      %v4352 = vld [vmem:[%s4351] sm:$0x1]
      %v4354 = vlaneseq
      %v4355 = vshrl.u32 %v4354, 7
      %v4356 = vsub.s32 0, %v4355
      %v4357 = vrot.slane %v4352, %v4356
      %4359 = vmatprep.subr.mxu0 0.0
      %4360 = vmatpush1.msra.mxu0 0.0
      %4361 = vmatprep.subr.mxu0 0.0
      %4362 = vmatpush1.msra.mxu0 0.0
      %4363 = vmatprep.subr.mxu0 0.0
      %4364 = vmatpush1.msra.mxu0 0.0
      %4365 = vmatprep.subr.mxu0 0.0
      %4366 = vmatpush1.msra.mxu0 0.0
      %4367 = vmatprep.subr.mxu0 0.0
      %4368 = vmatpush1.msra.mxu0 0.0
      %4369 = vmatprep.subr.mxu0 0.0
      %4370 = vmatpush1.msra.mxu0 0.0
      %4371 = vmatprep.subr.mxu0 0.0
      %4372 = vmatpush1.msra.mxu0 0.0
      %4373 = vmatprep.subr.mxu0 0.0
      %4374 = vmatpush1.msra.mxu0 0.0
      %4375 = vmatprep.subr.mxu0 0.0
      %4376 = vmatpush1.msra.mxu0 0.0
      %4377 = vmatprep.subr.mxu0 0.0
      %4378 = vmatpush1.msra.mxu0 0.0
      %4379 = vmatprep.subr.mxu0 0.0
      %4380 = vmatpush1.msra.mxu0 0.0
      %4381 = vmatprep.subr.mxu0 0.0
      %4382 = vmatpush1.msra.mxu0 0.0
      %4383 = vmatprep.subr.mxu0 0.0
      %4384 = vmatpush1.msra.mxu0 %v4350
      %4385 = vmatprep.subr.mxu0 0.0
      %4386 = vmatpush1.msra.mxu0 %v4349
      %4387 = vmatprep.subr.mxu0 0.0
      %4388 = vmatpush1.msra.mxu0 %v4348
      %4389 = vmatprep.subr.mxu0 0.0
      %4390 = vmatpush1.msra.mxu0 %v4347
      %4391 = vmatprep.subr.mxu0 0.0
      %4392 = vmatpush2.msra.mxu0 0.0
      %4393 = vmatprep.subr.mxu0 0.0
      %4394 = vmatpush2.msra.mxu0 0.0
      %4395 = vmatprep.subr.mxu0 0.0
      %4396 = vmatpush2.msra.mxu0 0.0
      %4397 = vmatprep.subr.mxu0 0.0
      %4398 = vmatpush2.msra.mxu0 0.0
      %4399 = vmatprep.subr.mxu0 0.0
      %4400 = vmatpush2.msra.mxu0 0.0
      %4401 = vmatprep.subr.mxu0 0.0
      %4402 = vmatpush2.msra.mxu0 0.0
      %4403 = vmatprep.subr.mxu0 0.0
      %4404 = vmatpush2.msra.mxu0 0.0
      %4405 = vmatprep.subr.mxu0 0.0
      %4406 = vmatpush2.msra.mxu0 0.0
      %4407 = vmatprep.subr.mxu0 0.0
      %4408 = vmatpush2.msra.mxu0 0.0
      %4409 = vmatprep.subr.mxu0 0.0
      %4410 = vmatpush2.msra.mxu0 0.0
      %4411 = vmatprep.subr.mxu0 0.0
      %4412 = vmatpush2.msra.mxu0 0.0
      %4413 = vmatprep.subr.mxu0 0.0
      %4414 = vmatpush2.msra.mxu0 0.0
      %4415 = vmatprep.subr.mxu0 0.0
      %4416 = vmatpush2.msra.mxu0 0.0
      %4417 = vmatprep.subr.mxu0 0.0
      %4418 = vmatpush2.msra.mxu0 0.0
      %4419 = vmatprep.subr.mxu0 0.0
      %4420 = vmatpush2.msra.mxu0 0.0
      %4421 = vmatprep.subr.mxu0 0.0
      %4422 = vmatpush2.msra.mxu0 0.0
      %4423 = vmatprep.mubr.f32.mxu0 0.0
      %4424 = vmatmul.mubr.f32.gmra.mxu0 %v2374
      %v4425 = vpop.f32.mrf.mxu0
      %v4426 = vadd.f32 %v4357, %v4425
      %v4427 = vpop.f32.mrf.mxu0
      %4428 = vmatprep.mubr.f32.mxu0 0.0
      %4429 = vmatmul.mubr.f32.gmra.mxu0 %v2377
      %v4430 = vpop.f32.mrf.mxu0
      %v4431 = vadd.f32 %v4357, %v4430
      %v4432 = vpop.f32.mrf.mxu0
      %4433 = vmatprep.mubr.f32.mxu0 0.0
      %4434 = vmatmul.mubr.f32.gmra.mxu0 %v2380
      %v4435 = vpop.f32.mrf.mxu0
      %v4436 = vadd.f32 %v4357, %v4435
      %v4437 = vpop.f32.mrf.mxu0
      %4438 = vmatprep.mubr.f32.mxu0 0.0
      %4439 = vmatmul.mubr.f32.gmra.mxu0 %v2383
      %v4440 = vpop.f32.mrf.mxu0
      %v4441 = vadd.f32 %v4357, %v4440
      %v4442 = vpop.f32.mrf.mxu0
      %4443 = vmatprep.mubr.f32.mxu0 0.0
      %4444 = vmatmul.mubr.f32.gmra.mxu0 %v2386
      %v4445 = vpop.f32.mrf.mxu0
      %v4446 = vadd.f32 %v4357, %v4445
      %v4447 = vpop.f32.mrf.mxu0
      %4448 = vmatprep.mubr.f32.mxu0 0.0
      %4449 = vmatmul.mubr.f32.gmra.mxu0 %v2389
      %v4450 = vpop.f32.mrf.mxu0
      %v4451 = vadd.f32 %v4357, %v4450
      %v4452 = vpop.f32.mrf.mxu0
      %4453 = vmatprep.mubr.f32.mxu0 0.0
      %4454 = vmatmul.mubr.f32.gmra.mxu0 %v2392
      %v4455 = vpop.f32.mrf.mxu0
      %v4456 = vadd.f32 %v4357, %v4455
      %v4457 = vpop.f32.mrf.mxu0
      %4458 = vmatprep.mubr.f32.mxu0 0.0
      %4459 = vmatmul.mubr.f32.gmra.mxu0 %v2395
      %v4460 = vpop.f32.mrf.mxu0
      %v4461 = vadd.f32 %v4357, %v4460
      %v4462 = vpop.f32.mrf.mxu0
      %4463 = vdwg.mxu0
      %v4465 = vsel %vm2738, %v4190, 0
      %v4468 = vsel %vm2738, %v4195, 0
      %v4471 = vsel %vm2738, %v4200, 0
      %v4474 = vsel %vm2738, %v4205, 0
      %v4477 = vsel %vm2738, %v4210, 0
      %v4480 = vsel %vm2738, %v4215, 0
      %v4483 = vsel %vm2738, %v4220, 0
      %v4486 = vsel %vm2738, %v4225, 0
      %v4489 = vsel %vm2738, %v4308, 0
      %v4492 = vsel %vm2738, %v4313, 0
      %v4495 = vsel %vm2738, %v4318, 0
      %v4498 = vsel %vm2738, %v4323, 0
      %v4501 = vsel %vm2738, %v4328, 0
      %v4504 = vsel %vm2738, %v4333, 0
      %v4507 = vsel %vm2738, %v4338, 0
      %v4510 = vsel %vm2738, %v4343, 0
      %4512 = vmatprep.subr.mxu0 0.0
      %4513 = vmatpush1.xpose.msra.mxu0 0.0
      %4514 = vmatprep.subr.mxu0 0.0
      %4515 = vmatpush1.xpose.msra.mxu0 0.0
      %4516 = vmatprep.subr.mxu0 0.0
      %4517 = vmatpush1.xpose.msra.mxu0 0.0
      %4518 = vmatprep.subr.mxu0 0.0
      %4519 = vmatpush1.xpose.msra.mxu0 0.0
      %4520 = vmatprep.subr.mxu0 0.0
      %4521 = vmatpush1.xpose.msra.mxu0 0.0
      %4522 = vmatprep.subr.mxu0 0.0
      %4523 = vmatpush1.xpose.msra.mxu0 0.0
      %4524 = vmatprep.subr.mxu0 0.0
      %4525 = vmatpush1.xpose.msra.mxu0 0.0
      %4526 = vmatprep.subr.mxu0 0.0
      %4527 = vmatpush1.xpose.msra.mxu0 0.0
      %4528 = vmatprep.subr.mxu0 0.0
      %4529 = vmatpush1.xpose.msra.mxu0 %v4510
      %4530 = vmatprep.subr.mxu0 0.0
      %4531 = vmatpush1.xpose.msra.mxu0 %v4507
      %4532 = vmatprep.subr.mxu0 0.0
      %4533 = vmatpush1.xpose.msra.mxu0 %v4504
      %4534 = vmatprep.subr.mxu0 0.0
      %4535 = vmatpush1.xpose.msra.mxu0 %v4501
      %4536 = vmatprep.subr.mxu0 0.0
      %4537 = vmatpush1.xpose.msra.mxu0 %v4498
      %4538 = vmatprep.subr.mxu0 0.0
      %4539 = vmatpush1.xpose.msra.mxu0 %v4495
      %4540 = vmatprep.subr.mxu0 0.0
      %4541 = vmatpush1.xpose.msra.mxu0 %v4492
      %4542 = vmatprep.subr.mxu0 0.0
      %4543 = vmatpush1.xpose.msra.mxu0 %v4489
      %4544 = vmatprep.subr.mxu0 0.0
      %4545 = vmatpush2.xpose.msra.mxu0 0.0
      %4546 = vmatprep.subr.mxu0 0.0
      %4547 = vmatpush2.xpose.msra.mxu0 0.0
      %4548 = vmatprep.subr.mxu0 0.0
      %4549 = vmatpush2.xpose.msra.mxu0 0.0
      %4550 = vmatprep.subr.mxu0 0.0
      %4551 = vmatpush2.xpose.msra.mxu0 0.0
      %4552 = vmatprep.subr.mxu0 0.0
      %4553 = vmatpush2.xpose.msra.mxu0 0.0
      %4554 = vmatprep.subr.mxu0 0.0
      %4555 = vmatpush2.xpose.msra.mxu0 0.0
      %4556 = vmatprep.subr.mxu0 0.0
      %4557 = vmatpush2.xpose.msra.mxu0 0.0
      %4558 = vmatprep.subr.mxu0 0.0
      %4559 = vmatpush2.xpose.msra.mxu0 0.0
      %4560 = vmatprep.subr.mxu0 0.0
      %4561 = vmatpush2.xpose.msra.mxu0 0.0
      %4562 = vmatprep.subr.mxu0 0.0
      %4563 = vmatpush2.xpose.msra.mxu0 0.0
      %4564 = vmatprep.subr.mxu0 0.0
      %4565 = vmatpush2.xpose.msra.mxu0 0.0
      %4566 = vmatprep.subr.mxu0 0.0
      %4567 = vmatpush2.xpose.msra.mxu0 0.0
      %4568 = vmatprep.subr.mxu0 0.0
      %4569 = vmatpush2.xpose.msra.mxu0 0.0
      %4570 = vmatprep.subr.mxu0 0.0
      %4571 = vmatpush2.xpose.msra.mxu0 0.0
      %4572 = vmatprep.subr.mxu0 0.0
      %4573 = vmatpush2.xpose.msra.mxu0 0.0
      %4574 = vmatprep.subr.mxu0 0.0
      %4575 = vmatpush2.xpose.msra.mxu0 0.0
      %4576 = vmatprep.mubr.f32.mxu0 0.0
      %4577 = vmatmul.mubr.f32.gmra.mxu0 %v4465
      %v4578 = vpop.f32.mrf.mxu0
      %v4579 = vadd.f32 0.0, %v4578
      %v4580 = vpop.f32.mrf.mxu0
      %4581 = vmatprep.mubr.f32.mxu0 0.0
      %4582 = vmatmul.mubr.f32.gmra.mxu0 %v4468
      %v4583 = vpop.f32.mrf.mxu0
      %v4584 = vadd.f32 0.0, %v4583
      %v4585 = vpop.f32.mrf.mxu0
      %4586 = vmatprep.mubr.f32.mxu0 0.0
      %4587 = vmatmul.mubr.f32.gmra.mxu0 %v4471
      %v4588 = vpop.f32.mrf.mxu0
      %v4589 = vadd.f32 0.0, %v4588
      %v4590 = vpop.f32.mrf.mxu0
      %4591 = vmatprep.mubr.f32.mxu0 0.0
      %4592 = vmatmul.mubr.f32.gmra.mxu0 %v4474
      %v4593 = vpop.f32.mrf.mxu0
      %v4594 = vadd.f32 0.0, %v4593
      %v4595 = vpop.f32.mrf.mxu0
      %4596 = vmatprep.mubr.f32.mxu0 0.0
      %4597 = vmatmul.mubr.f32.gmra.mxu0 %v4477
      %v4598 = vpop.f32.mrf.mxu0
      %v4599 = vadd.f32 0.0, %v4598
      %v4600 = vpop.f32.mrf.mxu0
      %4601 = vmatprep.mubr.f32.mxu0 0.0
      %4602 = vmatmul.mubr.f32.gmra.mxu0 %v4480
      %v4603 = vpop.f32.mrf.mxu0
      %v4604 = vadd.f32 0.0, %v4603
      %v4605 = vpop.f32.mrf.mxu0
      %4606 = vmatprep.mubr.f32.mxu0 0.0
      %4607 = vmatmul.mubr.f32.gmra.mxu0 %v4483
      %v4608 = vpop.f32.mrf.mxu0
      %v4609 = vadd.f32 0.0, %v4608
      %v4610 = vpop.f32.mrf.mxu0
      %4611 = vmatprep.mubr.f32.mxu0 0.0
      %4612 = vmatmul.mubr.f32.gmra.mxu0 %v4486
      %v4613 = vpop.f32.mrf.mxu0
      %v4614 = vadd.f32 0.0, %v4613
      %v4615 = vpop.f32.mrf.mxu0
      %4616 = vdwg.mxu0
      %v4617 = vmul.f32 %v4579, 0.35355338
      %v4618 = vmul.f32 %v4584, 0.35355338
      %v4619 = vmul.f32 %v4589, 0.35355338
      %v4620 = vmul.f32 %v4594, 0.35355338
      %v4621 = vmul.f32 %v4599, 0.35355338
      %v4622 = vmul.f32 %v4604, 0.35355338
      %v4623 = vmul.f32 %v4609, 0.35355338
      %v4624 = vmul.f32 %v4614, 0.35355338
      %v4625 = vsel %vm538, %v4617, -inf
      %4626 = vmax.xlane.f32.xlu0 %v4625
      %v4627 = vpop.xlane.xlu0 %4626
      %v4628 = vsel %vm538, %v4618, -inf
      %4629 = vmax.xlane.f32.xlu0 %v4628
      %v4630 = vpop.xlane.xlu0 %4629
      %v4631 = vsel %vm538, %v4619, -inf
      %4632 = vmax.xlane.f32.xlu0 %v4631
      %v4633 = vpop.xlane.xlu0 %4632
      %v4634 = vsel %vm538, %v4620, -inf
      %4635 = vmax.xlane.f32.xlu0 %v4634
      %v4636 = vpop.xlane.xlu0 %4635
      %v4637 = vsel %vm538, %v4621, -inf
      %4638 = vmax.xlane.f32.xlu0 %v4637
      %v4639 = vpop.xlane.xlu0 %4638
      %v4640 = vsel %vm538, %v4622, -inf
      %4641 = vmax.xlane.f32.xlu0 %v4640
      %v4642 = vpop.xlane.xlu0 %4641
      %v4643 = vsel %vm538, %v4623, -inf
      %4644 = vmax.xlane.f32.xlu0 %v4643
      %v4645 = vpop.xlane.xlu0 %4644
      %v4646 = vsel %vm538, %v4624, -inf
      %4647 = vmax.xlane.f32.xlu0 %v4646
      %v4648 = vpop.xlane.xlu0 %4647
      %v4649 = vsub.f32 %v4617, %v4627
      %v4650 = vsub.f32 %v4618, %v4630
      %v4651 = vsub.f32 %v4619, %v4633
      %v4652 = vsub.f32 %v4620, %v4636
      %v4653 = vsub.f32 %v4621, %v4639
      %v4654 = vsub.f32 %v4622, %v4642
      %v4655 = vsub.f32 %v4623, %v4645
      %v4656 = vsub.f32 %v4624, %v4648
      %v4657 = vmul.f32 %v4649, 1.442695
      %v4658 = vpow.pop %v4657
      %v4659 = vmul.f32 %v4650, 1.442695
      %v4660 = vpow.pop %v4659
      %v4661 = vmul.f32 %v4651, 1.442695
      %v4662 = vpow.pop %v4661
      %v4663 = vmul.f32 %v4652, 1.442695
      %v4664 = vpow.pop %v4663
      %v4665 = vmul.f32 %v4653, 1.442695
      %v4666 = vpow.pop %v4665
      %v4667 = vmul.f32 %v4654, 1.442695
      %v4668 = vpow.pop %v4667
      %v4669 = vmul.f32 %v4655, 1.442695
      %v4670 = vpow.pop %v4669
      %v4671 = vmul.f32 %v4656, 1.442695
      %v4672 = vpow.pop %v4671
      %v4673 = vsel %vm538, %v4658, 0.0
      %4674 = vadd.xlane.f32.xlu0 %v4673
      %v4675 = vpop.xlane.xlu0 %4674
      %v4676 = vsel %vm538, %v4660, 0.0
      %4677 = vadd.xlane.f32.xlu0 %v4676
      %v4678 = vpop.xlane.xlu0 %4677
      %v4679 = vsel %vm538, %v4662, 0.0
      %4680 = vadd.xlane.f32.xlu0 %v4679
      %v4681 = vpop.xlane.xlu0 %4680
      %v4682 = vsel %vm538, %v4664, 0.0
      %4683 = vadd.xlane.f32.xlu0 %v4682
      %v4684 = vpop.xlane.xlu0 %4683
      %v4685 = vsel %vm538, %v4666, 0.0
      %4686 = vadd.xlane.f32.xlu0 %v4685
      %v4687 = vpop.xlane.xlu0 %4686
      %v4688 = vsel %vm538, %v4668, 0.0
      %4689 = vadd.xlane.f32.xlu0 %v4688
      %v4690 = vpop.xlane.xlu0 %4689
      %v4691 = vsel %vm538, %v4670, 0.0
      %4692 = vadd.xlane.f32.xlu0 %v4691
      %v4693 = vpop.xlane.xlu0 %4692
      %v4694 = vsel %vm538, %v4672, 0.0
      %4695 = vadd.xlane.f32.xlu0 %v4694
      %v4696 = vpop.xlane.xlu0 %4695
      %v4697 = vrcp.pop %v4675
      %v4698 = vmul.f32 %v4658, %v4697
      %v4699 = vrcp.pop %v4678
      %v4700 = vmul.f32 %v4660, %v4699
      %v4701 = vrcp.pop %v4681
      %v4702 = vmul.f32 %v4662, %v4701
      %v4703 = vrcp.pop %v4684
      %v4704 = vmul.f32 %v4664, %v4703
      %v4705 = vrcp.pop %v4687
      %v4706 = vmul.f32 %v4666, %v4705
      %v4707 = vrcp.pop %v4690
      %v4708 = vmul.f32 %v4668, %v4707
      %v4709 = vrcp.pop %v4693
      %v4710 = vmul.f32 %v4670, %v4709
      %v4711 = vrcp.pop %v4696
      %v4712 = vmul.f32 %v4672, %v4711
      %v4714 = vsel %vm538, %v4698, 0
      %v4717 = vsel %vm538, %v4700, 0
      %v4720 = vsel %vm538, %v4702, 0
      %v4723 = vsel %vm538, %v4704, 0
      %v4726 = vsel %vm538, %v4706, 0
      %v4729 = vsel %vm538, %v4708, 0
      %v4732 = vsel %vm538, %v4710, 0
      %v4735 = vsel %vm538, %v4712, 0
      %4737 = vmatprep.subr.mxu0 0.0
      %4738 = vmatpush1.msra.mxu0 0.0
      %4739 = vmatprep.subr.mxu0 0.0
      %4740 = vmatpush1.msra.mxu0 0.0
      %4741 = vmatprep.subr.mxu0 0.0
      %4742 = vmatpush1.msra.mxu0 0.0
      %4743 = vmatprep.subr.mxu0 0.0
      %4744 = vmatpush1.msra.mxu0 0.0
      %4745 = vmatprep.subr.mxu0 0.0
      %4746 = vmatpush1.msra.mxu0 0.0
      %4747 = vmatprep.subr.mxu0 0.0
      %4748 = vmatpush1.msra.mxu0 0.0
      %4749 = vmatprep.subr.mxu0 0.0
      %4750 = vmatpush1.msra.mxu0 0.0
      %4751 = vmatprep.subr.mxu0 0.0
      %4752 = vmatpush1.msra.mxu0 0.0
      %4753 = vmatprep.subr.mxu0 0.0
      %4754 = vmatpush1.msra.mxu0 %v4461
      %4755 = vmatprep.subr.mxu0 0.0
      %4756 = vmatpush1.msra.mxu0 %v4456
      %4757 = vmatprep.subr.mxu0 0.0
      %4758 = vmatpush1.msra.mxu0 %v4451
      %4759 = vmatprep.subr.mxu0 0.0
      %4760 = vmatpush1.msra.mxu0 %v4446
      %4761 = vmatprep.subr.mxu0 0.0
      %4762 = vmatpush1.msra.mxu0 %v4441
      %4763 = vmatprep.subr.mxu0 0.0
      %4764 = vmatpush1.msra.mxu0 %v4436
      %4765 = vmatprep.subr.mxu0 0.0
      %4766 = vmatpush1.msra.mxu0 %v4431
      %4767 = vmatprep.subr.mxu0 0.0
      %4768 = vmatpush1.msra.mxu0 %v4426
      %4769 = vmatprep.subr.mxu0 0.0
      %4770 = vmatpush2.msra.mxu0 0.0
      %4771 = vmatprep.subr.mxu0 0.0
      %4772 = vmatpush2.msra.mxu0 0.0
      %4773 = vmatprep.subr.mxu0 0.0
      %4774 = vmatpush2.msra.mxu0 0.0
      %4775 = vmatprep.subr.mxu0 0.0
      %4776 = vmatpush2.msra.mxu0 0.0
      %4777 = vmatprep.subr.mxu0 0.0
      %4778 = vmatpush2.msra.mxu0 0.0
      %4779 = vmatprep.subr.mxu0 0.0
      %4780 = vmatpush2.msra.mxu0 0.0
      %4781 = vmatprep.subr.mxu0 0.0
      %4782 = vmatpush2.msra.mxu0 0.0
      %4783 = vmatprep.subr.mxu0 0.0
      %4784 = vmatpush2.msra.mxu0 0.0
      %4785 = vmatprep.subr.mxu0 0.0
      %4786 = vmatpush2.msra.mxu0 0.0
      %4787 = vmatprep.subr.mxu0 0.0
      %4788 = vmatpush2.msra.mxu0 0.0
      %4789 = vmatprep.subr.mxu0 0.0
      %4790 = vmatpush2.msra.mxu0 0.0
      %4791 = vmatprep.subr.mxu0 0.0
      %4792 = vmatpush2.msra.mxu0 0.0
      %4793 = vmatprep.subr.mxu0 0.0
      %4794 = vmatpush2.msra.mxu0 0.0
      %4795 = vmatprep.subr.mxu0 0.0
      %4796 = vmatpush2.msra.mxu0 0.0
      %4797 = vmatprep.subr.mxu0 0.0
      %4798 = vmatpush2.msra.mxu0 0.0
      %4799 = vmatprep.subr.mxu0 0.0
      %4800 = vmatpush2.msra.mxu0 0.0
      %4801 = vmatprep.mubr.f32.mxu0 0.0
      %4802 = vmatmul.mubr.f32.gmra.mxu0 %v4714
      %v4803 = vpop.f32.mrf.mxu0
      %v4804 = vadd.f32 0.0, %v4803
      %v4805 = vpop.f32.mrf.mxu0
      %4806 = vmatprep.mubr.f32.mxu0 0.0
      %4807 = vmatmul.mubr.f32.gmra.mxu0 %v4717
      %v4808 = vpop.f32.mrf.mxu0
      %v4809 = vadd.f32 0.0, %v4808
      %v4810 = vpop.f32.mrf.mxu0
      %4811 = vmatprep.mubr.f32.mxu0 0.0
      %4812 = vmatmul.mubr.f32.gmra.mxu0 %v4720
      %v4813 = vpop.f32.mrf.mxu0
      %v4814 = vadd.f32 0.0, %v4813
      %v4815 = vpop.f32.mrf.mxu0
      %4816 = vmatprep.mubr.f32.mxu0 0.0
      %4817 = vmatmul.mubr.f32.gmra.mxu0 %v4723
      %v4818 = vpop.f32.mrf.mxu0
      %v4819 = vadd.f32 0.0, %v4818
      %v4820 = vpop.f32.mrf.mxu0
      %4821 = vmatprep.mubr.f32.mxu0 0.0
      %4822 = vmatmul.mubr.f32.gmra.mxu0 %v4726
      %v4823 = vpop.f32.mrf.mxu0
      %v4824 = vadd.f32 0.0, %v4823
      %v4825 = vpop.f32.mrf.mxu0
      %4826 = vmatprep.mubr.f32.mxu0 0.0
      %4827 = vmatmul.mubr.f32.gmra.mxu0 %v4729
      %v4828 = vpop.f32.mrf.mxu0
      %v4829 = vadd.f32 0.0, %v4828
      %v4830 = vpop.f32.mrf.mxu0
      %4831 = vmatprep.mubr.f32.mxu0 0.0
      %4832 = vmatmul.mubr.f32.gmra.mxu0 %v4732
      %v4833 = vpop.f32.mrf.mxu0
      %v4834 = vadd.f32 0.0, %v4833
      %v4835 = vpop.f32.mrf.mxu0
      %4836 = vmatprep.mubr.f32.mxu0 0.0
      %4837 = vmatmul.mubr.f32.gmra.mxu0 %v4735
      %v4838 = vpop.f32.mrf.mxu0
      %v4839 = vadd.f32 0.0, %v4838
      %v4840 = vpop.f32.mrf.mxu0
      %4841 = vdwg.mxu0
      %s4842 = scalar_lea.vmem %s8, 16
      %v4843 = vld [vmem:[%s4842] sm:$0xff]
      %v4845 = vsel %vm2738, %v4804, 0
      %v4848 = vsel %vm2738, %v4809, 0
      %v4851 = vsel %vm2738, %v4814, 0
      %v4854 = vsel %vm2738, %v4819, 0
      %v4857 = vsel %vm2738, %v4824, 0
      %v4860 = vsel %vm2738, %v4829, 0
      %v4863 = vsel %vm2738, %v4834, 0
      %v4866 = vsel %vm2738, %v4839, 0
      %4868 = vmatprep.subr.mxu0 0.0
      %4869 = vmatpush1.msra.mxu0 0.0
      %4870 = vmatprep.subr.mxu0 0.0
      %4871 = vmatpush1.msra.mxu0 0.0
      %4872 = vmatprep.subr.mxu0 0.0
      %4873 = vmatpush1.msra.mxu0 0.0
      %4874 = vmatprep.subr.mxu0 0.0
      %4875 = vmatpush1.msra.mxu0 0.0
      %4876 = vmatprep.subr.mxu0 0.0
      %4877 = vmatpush1.msra.mxu0 0.0
      %4878 = vmatprep.subr.mxu0 0.0
      %4879 = vmatpush1.msra.mxu0 0.0
      %4880 = vmatprep.subr.mxu0 0.0
      %4881 = vmatpush1.msra.mxu0 0.0
      %4882 = vmatprep.subr.mxu0 0.0
      %4883 = vmatpush1.msra.mxu0 0.0
      %4884 = vmatprep.subr.mxu0 0.0
      %4885 = vmatpush1.msra.mxu0 0.0
      %4886 = vmatprep.subr.mxu0 0.0
      %4887 = vmatpush1.msra.mxu0 0.0
      %4888 = vmatprep.subr.mxu0 0.0
      %4889 = vmatpush1.msra.mxu0 0.0
      %4890 = vmatprep.subr.mxu0 0.0
      %4891 = vmatpush1.msra.mxu0 0.0
      %4892 = vmatprep.subr.mxu0 0.0
      %4893 = vmatpush1.msra.mxu0 0.0
      %4894 = vmatprep.subr.mxu0 0.0
      %4895 = vmatpush1.msra.mxu0 0.0
      %4896 = vmatprep.subr.mxu0 0.0
      %4897 = vmatpush1.msra.mxu0 0.0
      %4898 = vmatprep.subr.mxu0 0.0
      %4899 = vmatpush1.msra.mxu0 %v4843
      %4900 = vmatprep.subr.mxu0 0.0
      %4901 = vmatpush2.msra.mxu0 0.0
      %4902 = vmatprep.subr.mxu0 0.0
      %4903 = vmatpush2.msra.mxu0 0.0
      %4904 = vmatprep.subr.mxu0 0.0
      %4905 = vmatpush2.msra.mxu0 0.0
      %4906 = vmatprep.subr.mxu0 0.0
      %4907 = vmatpush2.msra.mxu0 0.0
      %4908 = vmatprep.subr.mxu0 0.0
      %4909 = vmatpush2.msra.mxu0 0.0
      %4910 = vmatprep.subr.mxu0 0.0
      %4911 = vmatpush2.msra.mxu0 0.0
      %4912 = vmatprep.subr.mxu0 0.0
      %4913 = vmatpush2.msra.mxu0 0.0
      %4914 = vmatprep.subr.mxu0 0.0
      %4915 = vmatpush2.msra.mxu0 0.0
      %4916 = vmatprep.subr.mxu0 0.0
      %4917 = vmatpush2.msra.mxu0 0.0
      %4918 = vmatprep.subr.mxu0 0.0
      %4919 = vmatpush2.msra.mxu0 0.0
      %4920 = vmatprep.subr.mxu0 0.0
      %4921 = vmatpush2.msra.mxu0 0.0
      %4922 = vmatprep.subr.mxu0 0.0
      %4923 = vmatpush2.msra.mxu0 0.0
      %4924 = vmatprep.subr.mxu0 0.0
      %4925 = vmatpush2.msra.mxu0 0.0
      %4926 = vmatprep.subr.mxu0 0.0
      %4927 = vmatpush2.msra.mxu0 0.0
      %4928 = vmatprep.subr.mxu0 0.0
      %4929 = vmatpush2.msra.mxu0 0.0
      %4930 = vmatprep.subr.mxu0 0.0
      %4931 = vmatpush2.msra.mxu0 0.0
      %4932 = vmatprep.mubr.f32.mxu0 0.0
      %4933 = vmatmul.mubr.f32.gmra.mxu0 %v4845
      %v4934 = vpop.f32.mrf.mxu0
      %v4935 = vadd.f32 0.0, %v4934
      %v4936 = vpop.f32.mrf.mxu0
      %4937 = vmatprep.mubr.f32.mxu0 0.0
      %4938 = vmatmul.mubr.f32.gmra.mxu0 %v4848
      %v4939 = vpop.f32.mrf.mxu0
      %v4940 = vadd.f32 0.0, %v4939
      %v4941 = vpop.f32.mrf.mxu0
      %4942 = vmatprep.mubr.f32.mxu0 0.0
      %4943 = vmatmul.mubr.f32.gmra.mxu0 %v4851
      %v4944 = vpop.f32.mrf.mxu0
      %v4945 = vadd.f32 0.0, %v4944
      %v4946 = vpop.f32.mrf.mxu0
      %4947 = vmatprep.mubr.f32.mxu0 0.0
      %4948 = vmatmul.mubr.f32.gmra.mxu0 %v4854
      %v4949 = vpop.f32.mrf.mxu0
      %v4950 = vadd.f32 0.0, %v4949
      %v4951 = vpop.f32.mrf.mxu0
      %4952 = vmatprep.mubr.f32.mxu0 0.0
      %4953 = vmatmul.mubr.f32.gmra.mxu0 %v4857
      %v4954 = vpop.f32.mrf.mxu0
      %v4955 = vadd.f32 0.0, %v4954
      %v4956 = vpop.f32.mrf.mxu0
      %4957 = vmatprep.mubr.f32.mxu0 0.0
      %4958 = vmatmul.mubr.f32.gmra.mxu0 %v4860
      %v4959 = vpop.f32.mrf.mxu0
      %v4960 = vadd.f32 0.0, %v4959
      %v4961 = vpop.f32.mrf.mxu0
      %4962 = vmatprep.mubr.f32.mxu0 0.0
      %4963 = vmatmul.mubr.f32.gmra.mxu0 %v4863
      %v4964 = vpop.f32.mrf.mxu0
      %v4965 = vadd.f32 0.0, %v4964
      %v4966 = vpop.f32.mrf.mxu0
      %4967 = vmatprep.mubr.f32.mxu0 0.0
      %4968 = vmatmul.mubr.f32.gmra.mxu0 %v4866
      %v4969 = vpop.f32.mrf.mxu0
      %v4970 = vadd.f32 0.0, %v4969
      %v4971 = vpop.f32.mrf.mxu0
      %4972 = vdwg.mxu0
      %v4973 = vadd.f32 %v4072, %v4935
      %v4974 = vadd.f32 %v4077, %v4940
      %v4975 = vadd.f32 %v4082, %v4945
      %v4976 = vadd.f32 %v4087, %v4950
      %v4977 = vadd.f32 %v4092, %v4955
      %v4978 = vadd.f32 %v4097, %v4960
      %v4979 = vadd.f32 %v4102, %v4965
      %v4980 = vadd.f32 %v4107, %v4970
      %s4981 = scalar_lea.vmem %s6, 96
      %v4982 = vld [vmem:[%s4981] sm:$0xff]
      %v4983 = vld [vmem:[%s4981 + $0x8] sm:$0xff]
      %v4984 = vld [vmem:[%s4981 + $0x10] sm:$0xff]
      %v4985 = vld [vmem:[%s4981 + $0x18] sm:$0xff]
      %s4986 = scalar_lea.vmem %s7, 3
      %v4987 = vld [vmem:[%s4986] sm:$0x1]
      %v4989 = vlaneseq
      %v4990 = vshrl.u32 %v4989, 7
      %v4991 = vsub.s32 0, %v4990
      %v4992 = vrot.slane %v4987, %v4991
      %4994 = vmatprep.subr.mxu0 0.0
      %4995 = vmatpush1.msra.mxu0 0.0
      %4996 = vmatprep.subr.mxu0 0.0
      %4997 = vmatpush1.msra.mxu0 0.0
      %4998 = vmatprep.subr.mxu0 0.0
      %4999 = vmatpush1.msra.mxu0 0.0
      %5000 = vmatprep.subr.mxu0 0.0
      %5001 = vmatpush1.msra.mxu0 0.0
      %5002 = vmatprep.subr.mxu0 0.0
      %5003 = vmatpush1.msra.mxu0 0.0
      %5004 = vmatprep.subr.mxu0 0.0
      %5005 = vmatpush1.msra.mxu0 0.0
      %5006 = vmatprep.subr.mxu0 0.0
      %5007 = vmatpush1.msra.mxu0 0.0
      %5008 = vmatprep.subr.mxu0 0.0
      %5009 = vmatpush1.msra.mxu0 0.0
      %5010 = vmatprep.subr.mxu0 0.0
      %5011 = vmatpush1.msra.mxu0 0.0
      %5012 = vmatprep.subr.mxu0 0.0
      %5013 = vmatpush1.msra.mxu0 0.0
      %5014 = vmatprep.subr.mxu0 0.0
      %5015 = vmatpush1.msra.mxu0 0.0
      %5016 = vmatprep.subr.mxu0 0.0
      %5017 = vmatpush1.msra.mxu0 0.0
      %5018 = vmatprep.subr.mxu0 0.0
      %5019 = vmatpush1.msra.mxu0 %v4985
      %5020 = vmatprep.subr.mxu0 0.0
      %5021 = vmatpush1.msra.mxu0 %v4984
      %5022 = vmatprep.subr.mxu0 0.0
      %5023 = vmatpush1.msra.mxu0 %v4983
      %5024 = vmatprep.subr.mxu0 0.0
      %5025 = vmatpush1.msra.mxu0 %v4982
      %5026 = vmatprep.subr.mxu0 0.0
      %5027 = vmatpush2.msra.mxu0 0.0
      %5028 = vmatprep.subr.mxu0 0.0
      %5029 = vmatpush2.msra.mxu0 0.0
      %5030 = vmatprep.subr.mxu0 0.0
      %5031 = vmatpush2.msra.mxu0 0.0
      %5032 = vmatprep.subr.mxu0 0.0
      %5033 = vmatpush2.msra.mxu0 0.0
      %5034 = vmatprep.subr.mxu0 0.0
      %5035 = vmatpush2.msra.mxu0 0.0
      %5036 = vmatprep.subr.mxu0 0.0
      %5037 = vmatpush2.msra.mxu0 0.0
      %5038 = vmatprep.subr.mxu0 0.0
      %5039 = vmatpush2.msra.mxu0 0.0
      %5040 = vmatprep.subr.mxu0 0.0
      %5041 = vmatpush2.msra.mxu0 0.0
      %5042 = vmatprep.subr.mxu0 0.0
      %5043 = vmatpush2.msra.mxu0 0.0
      %5044 = vmatprep.subr.mxu0 0.0
      %5045 = vmatpush2.msra.mxu0 0.0
      %5046 = vmatprep.subr.mxu0 0.0
      %5047 = vmatpush2.msra.mxu0 0.0
      %5048 = vmatprep.subr.mxu0 0.0
      %5049 = vmatpush2.msra.mxu0 0.0
      %5050 = vmatprep.subr.mxu0 0.0
      %5051 = vmatpush2.msra.mxu0 0.0
      %5052 = vmatprep.subr.mxu0 0.0
      %5053 = vmatpush2.msra.mxu0 0.0
      %5054 = vmatprep.subr.mxu0 0.0
      %5055 = vmatpush2.msra.mxu0 0.0
      %5056 = vmatprep.subr.mxu0 0.0
      %5057 = vmatpush2.msra.mxu0 0.0
      %5058 = vmatprep.mubr.f32.mxu0 0.0
      %5059 = vmatmul.mubr.f32.gmra.mxu0 %v2374
      %v5060 = vpop.f32.mrf.mxu0
      %v5061 = vadd.f32 %v4992, %v5060
      %v5062 = vpop.f32.mrf.mxu0
      %5063 = vmatprep.mubr.f32.mxu0 0.0
      %5064 = vmatmul.mubr.f32.gmra.mxu0 %v2377
      %v5065 = vpop.f32.mrf.mxu0
      %v5066 = vadd.f32 %v4992, %v5065
      %v5067 = vpop.f32.mrf.mxu0
      %5068 = vmatprep.mubr.f32.mxu0 0.0
      %5069 = vmatmul.mubr.f32.gmra.mxu0 %v2380
      %v5070 = vpop.f32.mrf.mxu0
      %v5071 = vadd.f32 %v4992, %v5070
      %v5072 = vpop.f32.mrf.mxu0
      %5073 = vmatprep.mubr.f32.mxu0 0.0
      %5074 = vmatmul.mubr.f32.gmra.mxu0 %v2383
      %v5075 = vpop.f32.mrf.mxu0
      %v5076 = vadd.f32 %v4992, %v5075
      %v5077 = vpop.f32.mrf.mxu0
      %5078 = vmatprep.mubr.f32.mxu0 0.0
      %5079 = vmatmul.mubr.f32.gmra.mxu0 %v2386
      %v5080 = vpop.f32.mrf.mxu0
      %v5081 = vadd.f32 %v4992, %v5080
      %v5082 = vpop.f32.mrf.mxu0
      %5083 = vmatprep.mubr.f32.mxu0 0.0
      %5084 = vmatmul.mubr.f32.gmra.mxu0 %v2389
      %v5085 = vpop.f32.mrf.mxu0
      %v5086 = vadd.f32 %v4992, %v5085
      %v5087 = vpop.f32.mrf.mxu0
      %5088 = vmatprep.mubr.f32.mxu0 0.0
      %5089 = vmatmul.mubr.f32.gmra.mxu0 %v2392
      %v5090 = vpop.f32.mrf.mxu0
      %v5091 = vadd.f32 %v4992, %v5090
      %v5092 = vpop.f32.mrf.mxu0
      %5093 = vmatprep.mubr.f32.mxu0 0.0
      %5094 = vmatmul.mubr.f32.gmra.mxu0 %v2395
      %v5095 = vpop.f32.mrf.mxu0
      %v5096 = vadd.f32 %v4992, %v5095
      %v5097 = vpop.f32.mrf.mxu0
      %5098 = vdwg.mxu0
      %s5099 = scalar_lea.vmem %s6, 224
      %v5100 = vld [vmem:[%s5099] sm:$0xff]
      %v5101 = vld [vmem:[%s5099 + $0x8] sm:$0xff]
      %v5102 = vld [vmem:[%s5099 + $0x10] sm:$0xff]
      %v5103 = vld [vmem:[%s5099 + $0x18] sm:$0xff]
      %s5104 = scalar_lea.vmem %s7, 7
      %v5105 = vld [vmem:[%s5104] sm:$0x1]
      %v5107 = vlaneseq
      %v5108 = vshrl.u32 %v5107, 7
      %v5109 = vsub.s32 0, %v5108
      %v5110 = vrot.slane %v5105, %v5109
      %5112 = vmatprep.subr.mxu0 0.0
      %5113 = vmatpush1.msra.mxu0 0.0
      %5114 = vmatprep.subr.mxu0 0.0
      %5115 = vmatpush1.msra.mxu0 0.0
      %5116 = vmatprep.subr.mxu0 0.0
      %5117 = vmatpush1.msra.mxu0 0.0
      %5118 = vmatprep.subr.mxu0 0.0
      %5119 = vmatpush1.msra.mxu0 0.0
      %5120 = vmatprep.subr.mxu0 0.0
      %5121 = vmatpush1.msra.mxu0 0.0
      %5122 = vmatprep.subr.mxu0 0.0
      %5123 = vmatpush1.msra.mxu0 0.0
      %5124 = vmatprep.subr.mxu0 0.0
      %5125 = vmatpush1.msra.mxu0 0.0
      %5126 = vmatprep.subr.mxu0 0.0
      %5127 = vmatpush1.msra.mxu0 0.0
      %5128 = vmatprep.subr.mxu0 0.0
      %5129 = vmatpush1.msra.mxu0 0.0
      %5130 = vmatprep.subr.mxu0 0.0
      %5131 = vmatpush1.msra.mxu0 0.0
      %5132 = vmatprep.subr.mxu0 0.0
      %5133 = vmatpush1.msra.mxu0 0.0
      %5134 = vmatprep.subr.mxu0 0.0
      %5135 = vmatpush1.msra.mxu0 0.0
      %5136 = vmatprep.subr.mxu0 0.0
      %5137 = vmatpush1.msra.mxu0 %v5103
      %5138 = vmatprep.subr.mxu0 0.0
      %5139 = vmatpush1.msra.mxu0 %v5102
      %5140 = vmatprep.subr.mxu0 0.0
      %5141 = vmatpush1.msra.mxu0 %v5101
      %5142 = vmatprep.subr.mxu0 0.0
      %5143 = vmatpush1.msra.mxu0 %v5100
      %5144 = vmatprep.subr.mxu0 0.0
      %5145 = vmatpush2.msra.mxu0 0.0
      %5146 = vmatprep.subr.mxu0 0.0
      %5147 = vmatpush2.msra.mxu0 0.0
      %5148 = vmatprep.subr.mxu0 0.0
      %5149 = vmatpush2.msra.mxu0 0.0
      %5150 = vmatprep.subr.mxu0 0.0
      %5151 = vmatpush2.msra.mxu0 0.0
      %5152 = vmatprep.subr.mxu0 0.0
      %5153 = vmatpush2.msra.mxu0 0.0
      %5154 = vmatprep.subr.mxu0 0.0
      %5155 = vmatpush2.msra.mxu0 0.0
      %5156 = vmatprep.subr.mxu0 0.0
      %5157 = vmatpush2.msra.mxu0 0.0
      %5158 = vmatprep.subr.mxu0 0.0
      %5159 = vmatpush2.msra.mxu0 0.0
      %5160 = vmatprep.subr.mxu0 0.0
      %5161 = vmatpush2.msra.mxu0 0.0
      %5162 = vmatprep.subr.mxu0 0.0
      %5163 = vmatpush2.msra.mxu0 0.0
      %5164 = vmatprep.subr.mxu0 0.0
      %5165 = vmatpush2.msra.mxu0 0.0
      %5166 = vmatprep.subr.mxu0 0.0
      %5167 = vmatpush2.msra.mxu0 0.0
      %5168 = vmatprep.subr.mxu0 0.0
      %5169 = vmatpush2.msra.mxu0 0.0
      %5170 = vmatprep.subr.mxu0 0.0
      %5171 = vmatpush2.msra.mxu0 0.0
      %5172 = vmatprep.subr.mxu0 0.0
      %5173 = vmatpush2.msra.mxu0 0.0
      %5174 = vmatprep.subr.mxu0 0.0
      %5175 = vmatpush2.msra.mxu0 0.0
      %5176 = vmatprep.mubr.f32.mxu0 0.0
      %5177 = vmatmul.mubr.f32.gmra.mxu0 %v2374
      %v5178 = vpop.f32.mrf.mxu0
      %v5179 = vadd.f32 %v5110, %v5178
      %v5180 = vpop.f32.mrf.mxu0
      %5181 = vmatprep.mubr.f32.mxu0 0.0
      %5182 = vmatmul.mubr.f32.gmra.mxu0 %v2377
      %v5183 = vpop.f32.mrf.mxu0
      %v5184 = vadd.f32 %v5110, %v5183
      %v5185 = vpop.f32.mrf.mxu0
      %5186 = vmatprep.mubr.f32.mxu0 0.0
      %5187 = vmatmul.mubr.f32.gmra.mxu0 %v2380
      %v5188 = vpop.f32.mrf.mxu0
      %v5189 = vadd.f32 %v5110, %v5188
      %v5190 = vpop.f32.mrf.mxu0
      %5191 = vmatprep.mubr.f32.mxu0 0.0
      %5192 = vmatmul.mubr.f32.gmra.mxu0 %v2383
      %v5193 = vpop.f32.mrf.mxu0
      %v5194 = vadd.f32 %v5110, %v5193
      %v5195 = vpop.f32.mrf.mxu0
      %5196 = vmatprep.mubr.f32.mxu0 0.0
      %5197 = vmatmul.mubr.f32.gmra.mxu0 %v2386
      %v5198 = vpop.f32.mrf.mxu0
      %v5199 = vadd.f32 %v5110, %v5198
      %v5200 = vpop.f32.mrf.mxu0
      %5201 = vmatprep.mubr.f32.mxu0 0.0
      %5202 = vmatmul.mubr.f32.gmra.mxu0 %v2389
      %v5203 = vpop.f32.mrf.mxu0
      %v5204 = vadd.f32 %v5110, %v5203
      %v5205 = vpop.f32.mrf.mxu0
      %5206 = vmatprep.mubr.f32.mxu0 0.0
      %5207 = vmatmul.mubr.f32.gmra.mxu0 %v2392
      %v5208 = vpop.f32.mrf.mxu0
      %v5209 = vadd.f32 %v5110, %v5208
      %v5210 = vpop.f32.mrf.mxu0
      %5211 = vmatprep.mubr.f32.mxu0 0.0
      %5212 = vmatmul.mubr.f32.gmra.mxu0 %v2395
      %v5213 = vpop.f32.mrf.mxu0
      %v5214 = vadd.f32 %v5110, %v5213
      %v5215 = vpop.f32.mrf.mxu0
      %5216 = vdwg.mxu0
      %s5217 = scalar_lea.vmem %s6, 352
      %v5218 = vld [vmem:[%s5217] sm:$0xff]
      %v5219 = vld [vmem:[%s5217 + $0x8] sm:$0xff]
      %v5220 = vld [vmem:[%s5217 + $0x10] sm:$0xff]
      %v5221 = vld [vmem:[%s5217 + $0x18] sm:$0xff]
      %s5222 = scalar_lea.vmem %s7, 11
      %v5223 = vld [vmem:[%s5222] sm:$0x1]
      %v5225 = vlaneseq
      %v5226 = vshrl.u32 %v5225, 7
      %v5227 = vsub.s32 0, %v5226
      %v5228 = vrot.slane %v5223, %v5227
      %5230 = vmatprep.subr.mxu0 0.0
      %5231 = vmatpush1.msra.mxu0 0.0
      %5232 = vmatprep.subr.mxu0 0.0
      %5233 = vmatpush1.msra.mxu0 0.0
      %5234 = vmatprep.subr.mxu0 0.0
      %5235 = vmatpush1.msra.mxu0 0.0
      %5236 = vmatprep.subr.mxu0 0.0
      %5237 = vmatpush1.msra.mxu0 0.0
      %5238 = vmatprep.subr.mxu0 0.0
      %5239 = vmatpush1.msra.mxu0 0.0
      %5240 = vmatprep.subr.mxu0 0.0
      %5241 = vmatpush1.msra.mxu0 0.0
      %5242 = vmatprep.subr.mxu0 0.0
      %5243 = vmatpush1.msra.mxu0 0.0
      %5244 = vmatprep.subr.mxu0 0.0
      %5245 = vmatpush1.msra.mxu0 0.0
      %5246 = vmatprep.subr.mxu0 0.0
      %5247 = vmatpush1.msra.mxu0 0.0
      %5248 = vmatprep.subr.mxu0 0.0
      %5249 = vmatpush1.msra.mxu0 0.0
      %5250 = vmatprep.subr.mxu0 0.0
      %5251 = vmatpush1.msra.mxu0 0.0
      %5252 = vmatprep.subr.mxu0 0.0
      %5253 = vmatpush1.msra.mxu0 0.0
      %5254 = vmatprep.subr.mxu0 0.0
      %5255 = vmatpush1.msra.mxu0 %v5221
      %5256 = vmatprep.subr.mxu0 0.0
      %5257 = vmatpush1.msra.mxu0 %v5220
      %5258 = vmatprep.subr.mxu0 0.0
      %5259 = vmatpush1.msra.mxu0 %v5219
      %5260 = vmatprep.subr.mxu0 0.0
      %5261 = vmatpush1.msra.mxu0 %v5218
      %5262 = vmatprep.subr.mxu0 0.0
      %5263 = vmatpush2.msra.mxu0 0.0
      %5264 = vmatprep.subr.mxu0 0.0
      %5265 = vmatpush2.msra.mxu0 0.0
      %5266 = vmatprep.subr.mxu0 0.0
      %5267 = vmatpush2.msra.mxu0 0.0
      %5268 = vmatprep.subr.mxu0 0.0
      %5269 = vmatpush2.msra.mxu0 0.0
      %5270 = vmatprep.subr.mxu0 0.0
      %5271 = vmatpush2.msra.mxu0 0.0
      %5272 = vmatprep.subr.mxu0 0.0
      %5273 = vmatpush2.msra.mxu0 0.0
      %5274 = vmatprep.subr.mxu0 0.0
      %5275 = vmatpush2.msra.mxu0 0.0
      %5276 = vmatprep.subr.mxu0 0.0
      %5277 = vmatpush2.msra.mxu0 0.0
      %5278 = vmatprep.subr.mxu0 0.0
      %5279 = vmatpush2.msra.mxu0 0.0
      %5280 = vmatprep.subr.mxu0 0.0
      %5281 = vmatpush2.msra.mxu0 0.0
      %5282 = vmatprep.subr.mxu0 0.0
      %5283 = vmatpush2.msra.mxu0 0.0
      %5284 = vmatprep.subr.mxu0 0.0
      %5285 = vmatpush2.msra.mxu0 0.0
      %5286 = vmatprep.subr.mxu0 0.0
      %5287 = vmatpush2.msra.mxu0 0.0
      %5288 = vmatprep.subr.mxu0 0.0
      %5289 = vmatpush2.msra.mxu0 0.0
      %5290 = vmatprep.subr.mxu0 0.0
      %5291 = vmatpush2.msra.mxu0 0.0
      %5292 = vmatprep.subr.mxu0 0.0
      %5293 = vmatpush2.msra.mxu0 0.0
      %5294 = vmatprep.mubr.f32.mxu0 0.0
      %5295 = vmatmul.mubr.f32.gmra.mxu0 %v2374
      %v5296 = vpop.f32.mrf.mxu0
      %v5297 = vadd.f32 %v5228, %v5296
      %v5298 = vpop.f32.mrf.mxu0
      %5299 = vmatprep.mubr.f32.mxu0 0.0
      %5300 = vmatmul.mubr.f32.gmra.mxu0 %v2377
      %v5301 = vpop.f32.mrf.mxu0
      %v5302 = vadd.f32 %v5228, %v5301
      %v5303 = vpop.f32.mrf.mxu0
      %5304 = vmatprep.mubr.f32.mxu0 0.0
      %5305 = vmatmul.mubr.f32.gmra.mxu0 %v2380
      %v5306 = vpop.f32.mrf.mxu0
      %v5307 = vadd.f32 %v5228, %v5306
      %v5308 = vpop.f32.mrf.mxu0
      %5309 = vmatprep.mubr.f32.mxu0 0.0
      %5310 = vmatmul.mubr.f32.gmra.mxu0 %v2383
      %v5311 = vpop.f32.mrf.mxu0
      %v5312 = vadd.f32 %v5228, %v5311
      %v5313 = vpop.f32.mrf.mxu0
      %5314 = vmatprep.mubr.f32.mxu0 0.0
      %5315 = vmatmul.mubr.f32.gmra.mxu0 %v2386
      %v5316 = vpop.f32.mrf.mxu0
      %v5317 = vadd.f32 %v5228, %v5316
      %v5318 = vpop.f32.mrf.mxu0
      %5319 = vmatprep.mubr.f32.mxu0 0.0
      %5320 = vmatmul.mubr.f32.gmra.mxu0 %v2389
      %v5321 = vpop.f32.mrf.mxu0
      %v5322 = vadd.f32 %v5228, %v5321
      %v5323 = vpop.f32.mrf.mxu0
      %5324 = vmatprep.mubr.f32.mxu0 0.0
      %5325 = vmatmul.mubr.f32.gmra.mxu0 %v2392
      %v5326 = vpop.f32.mrf.mxu0
      %v5327 = vadd.f32 %v5228, %v5326
      %v5328 = vpop.f32.mrf.mxu0
      %5329 = vmatprep.mubr.f32.mxu0 0.0
      %5330 = vmatmul.mubr.f32.gmra.mxu0 %v2395
      %v5331 = vpop.f32.mrf.mxu0
      %v5332 = vadd.f32 %v5228, %v5331
      %v5333 = vpop.f32.mrf.mxu0
      %5334 = vdwg.mxu0
      %v5336 = vsel %vm2738, %v5061, 0
      %v5339 = vsel %vm2738, %v5066, 0
      %v5342 = vsel %vm2738, %v5071, 0
      %v5345 = vsel %vm2738, %v5076, 0
      %v5348 = vsel %vm2738, %v5081, 0
      %v5351 = vsel %vm2738, %v5086, 0
      %v5354 = vsel %vm2738, %v5091, 0
      %v5357 = vsel %vm2738, %v5096, 0
      %v5360 = vsel %vm2738, %v5179, 0
      %v5363 = vsel %vm2738, %v5184, 0
      %v5366 = vsel %vm2738, %v5189, 0
      %v5369 = vsel %vm2738, %v5194, 0
      %v5372 = vsel %vm2738, %v5199, 0
      %v5375 = vsel %vm2738, %v5204, 0
      %v5378 = vsel %vm2738, %v5209, 0
      %v5381 = vsel %vm2738, %v5214, 0
      %5383 = vmatprep.subr.mxu0 0.0
      %5384 = vmatpush1.xpose.msra.mxu0 0.0
      %5385 = vmatprep.subr.mxu0 0.0
      %5386 = vmatpush1.xpose.msra.mxu0 0.0
      %5387 = vmatprep.subr.mxu0 0.0
      %5388 = vmatpush1.xpose.msra.mxu0 0.0
      %5389 = vmatprep.subr.mxu0 0.0
      %5390 = vmatpush1.xpose.msra.mxu0 0.0
      %5391 = vmatprep.subr.mxu0 0.0
      %5392 = vmatpush1.xpose.msra.mxu0 0.0
      %5393 = vmatprep.subr.mxu0 0.0
      %5394 = vmatpush1.xpose.msra.mxu0 0.0
      %5395 = vmatprep.subr.mxu0 0.0
      %5396 = vmatpush1.xpose.msra.mxu0 0.0
      %5397 = vmatprep.subr.mxu0 0.0
      %5398 = vmatpush1.xpose.msra.mxu0 0.0
      %5399 = vmatprep.subr.mxu0 0.0
      %5400 = vmatpush1.xpose.msra.mxu0 %v5381
      %5401 = vmatprep.subr.mxu0 0.0
      %5402 = vmatpush1.xpose.msra.mxu0 %v5378
      %5403 = vmatprep.subr.mxu0 0.0
      %5404 = vmatpush1.xpose.msra.mxu0 %v5375
      %5405 = vmatprep.subr.mxu0 0.0
      %5406 = vmatpush1.xpose.msra.mxu0 %v5372
      %5407 = vmatprep.subr.mxu0 0.0
      %5408 = vmatpush1.xpose.msra.mxu0 %v5369
      %5409 = vmatprep.subr.mxu0 0.0
      %5410 = vmatpush1.xpose.msra.mxu0 %v5366
      %5411 = vmatprep.subr.mxu0 0.0
      %5412 = vmatpush1.xpose.msra.mxu0 %v5363
      %5413 = vmatprep.subr.mxu0 0.0
      %5414 = vmatpush1.xpose.msra.mxu0 %v5360
      %5415 = vmatprep.subr.mxu0 0.0
      %5416 = vmatpush2.xpose.msra.mxu0 0.0
      %5417 = vmatprep.subr.mxu0 0.0
      %5418 = vmatpush2.xpose.msra.mxu0 0.0
      %5419 = vmatprep.subr.mxu0 0.0
      %5420 = vmatpush2.xpose.msra.mxu0 0.0
      %5421 = vmatprep.subr.mxu0 0.0
      %5422 = vmatpush2.xpose.msra.mxu0 0.0
      %5423 = vmatprep.subr.mxu0 0.0
      %5424 = vmatpush2.xpose.msra.mxu0 0.0
      %5425 = vmatprep.subr.mxu0 0.0
      %5426 = vmatpush2.xpose.msra.mxu0 0.0
      %5427 = vmatprep.subr.mxu0 0.0
      %5428 = vmatpush2.xpose.msra.mxu0 0.0
      %5429 = vmatprep.subr.mxu0 0.0
      %5430 = vmatpush2.xpose.msra.mxu0 0.0
      %5431 = vmatprep.subr.mxu0 0.0
      %5432 = vmatpush2.xpose.msra.mxu0 0.0
      %5433 = vmatprep.subr.mxu0 0.0
      %5434 = vmatpush2.xpose.msra.mxu0 0.0
      %5435 = vmatprep.subr.mxu0 0.0
      %5436 = vmatpush2.xpose.msra.mxu0 0.0
      %5437 = vmatprep.subr.mxu0 0.0
      %5438 = vmatpush2.xpose.msra.mxu0 0.0
      %5439 = vmatprep.subr.mxu0 0.0
      %5440 = vmatpush2.xpose.msra.mxu0 0.0
      %5441 = vmatprep.subr.mxu0 0.0
      %5442 = vmatpush2.xpose.msra.mxu0 0.0
      %5443 = vmatprep.subr.mxu0 0.0
      %5444 = vmatpush2.xpose.msra.mxu0 0.0
      %5445 = vmatprep.subr.mxu0 0.0
      %5446 = vmatpush2.xpose.msra.mxu0 0.0
      %5447 = vmatprep.mubr.f32.mxu0 0.0
      %5448 = vmatmul.mubr.f32.gmra.mxu0 %v5336
      %v5449 = vpop.f32.mrf.mxu0
      %v5450 = vadd.f32 0.0, %v5449
      %v5451 = vpop.f32.mrf.mxu0
      %5452 = vmatprep.mubr.f32.mxu0 0.0
      %5453 = vmatmul.mubr.f32.gmra.mxu0 %v5339
      %v5454 = vpop.f32.mrf.mxu0
      %v5455 = vadd.f32 0.0, %v5454
      %v5456 = vpop.f32.mrf.mxu0
      %5457 = vmatprep.mubr.f32.mxu0 0.0
      %5458 = vmatmul.mubr.f32.gmra.mxu0 %v5342
      %v5459 = vpop.f32.mrf.mxu0
      %v5460 = vadd.f32 0.0, %v5459
      %v5461 = vpop.f32.mrf.mxu0
      %5462 = vmatprep.mubr.f32.mxu0 0.0
      %5463 = vmatmul.mubr.f32.gmra.mxu0 %v5345
      %v5464 = vpop.f32.mrf.mxu0
      %v5465 = vadd.f32 0.0, %v5464
      %v5466 = vpop.f32.mrf.mxu0
      %5467 = vmatprep.mubr.f32.mxu0 0.0
      %5468 = vmatmul.mubr.f32.gmra.mxu0 %v5348
      %v5469 = vpop.f32.mrf.mxu0
      %v5470 = vadd.f32 0.0, %v5469
      %v5471 = vpop.f32.mrf.mxu0
      %5472 = vmatprep.mubr.f32.mxu0 0.0
      %5473 = vmatmul.mubr.f32.gmra.mxu0 %v5351
      %v5474 = vpop.f32.mrf.mxu0
      %v5475 = vadd.f32 0.0, %v5474
      %v5476 = vpop.f32.mrf.mxu0
      %5477 = vmatprep.mubr.f32.mxu0 0.0
      %5478 = vmatmul.mubr.f32.gmra.mxu0 %v5354
      %v5479 = vpop.f32.mrf.mxu0
      %v5480 = vadd.f32 0.0, %v5479
      %v5481 = vpop.f32.mrf.mxu0
      %5482 = vmatprep.mubr.f32.mxu0 0.0
      %5483 = vmatmul.mubr.f32.gmra.mxu0 %v5357
      %v5484 = vpop.f32.mrf.mxu0
      %v5485 = vadd.f32 0.0, %v5484
      %v5486 = vpop.f32.mrf.mxu0
      %5487 = vdwg.mxu0
      %v5488 = vmul.f32 %v5450, 0.35355338
      %v5489 = vmul.f32 %v5455, 0.35355338
      %v5490 = vmul.f32 %v5460, 0.35355338
      %v5491 = vmul.f32 %v5465, 0.35355338
      %v5492 = vmul.f32 %v5470, 0.35355338
      %v5493 = vmul.f32 %v5475, 0.35355338
      %v5494 = vmul.f32 %v5480, 0.35355338
      %v5495 = vmul.f32 %v5485, 0.35355338
      %v5496 = vsel %vm538, %v5488, -inf
      %5497 = vmax.xlane.f32.xlu0 %v5496
      %v5498 = vpop.xlane.xlu0 %5497
      %v5499 = vsel %vm538, %v5489, -inf
      %5500 = vmax.xlane.f32.xlu0 %v5499
      %v5501 = vpop.xlane.xlu0 %5500
      %v5502 = vsel %vm538, %v5490, -inf
      %5503 = vmax.xlane.f32.xlu0 %v5502
      %v5504 = vpop.xlane.xlu0 %5503
      %v5505 = vsel %vm538, %v5491, -inf
      %5506 = vmax.xlane.f32.xlu0 %v5505
      %v5507 = vpop.xlane.xlu0 %5506
      %v5508 = vsel %vm538, %v5492, -inf
      %5509 = vmax.xlane.f32.xlu0 %v5508
      %v5510 = vpop.xlane.xlu0 %5509
      %v5511 = vsel %vm538, %v5493, -inf
      %5512 = vmax.xlane.f32.xlu0 %v5511
      %v5513 = vpop.xlane.xlu0 %5512
      %v5514 = vsel %vm538, %v5494, -inf
      %5515 = vmax.xlane.f32.xlu0 %v5514
      %v5516 = vpop.xlane.xlu0 %5515
      %v5517 = vsel %vm538, %v5495, -inf
      %5518 = vmax.xlane.f32.xlu0 %v5517
      %v5519 = vpop.xlane.xlu0 %5518
      %v5520 = vsub.f32 %v5488, %v5498
      %v5521 = vsub.f32 %v5489, %v5501
      %v5522 = vsub.f32 %v5490, %v5504
      %v5523 = vsub.f32 %v5491, %v5507
      %v5524 = vsub.f32 %v5492, %v5510
      %v5525 = vsub.f32 %v5493, %v5513
      %v5526 = vsub.f32 %v5494, %v5516
      %v5527 = vsub.f32 %v5495, %v5519
      %v5528 = vmul.f32 %v5520, 1.442695
      %v5529 = vpow.pop %v5528
      %v5530 = vmul.f32 %v5521, 1.442695
      %v5531 = vpow.pop %v5530
      %v5532 = vmul.f32 %v5522, 1.442695
      %v5533 = vpow.pop %v5532
      %v5534 = vmul.f32 %v5523, 1.442695
      %v5535 = vpow.pop %v5534
      %v5536 = vmul.f32 %v5524, 1.442695
      %v5537 = vpow.pop %v5536
      %v5538 = vmul.f32 %v5525, 1.442695
      %v5539 = vpow.pop %v5538
      %v5540 = vmul.f32 %v5526, 1.442695
      %v5541 = vpow.pop %v5540
      %v5542 = vmul.f32 %v5527, 1.442695
      %v5543 = vpow.pop %v5542
      %v5544 = vsel %vm538, %v5529, 0.0
      %5545 = vadd.xlane.f32.xlu0 %v5544
      %v5546 = vpop.xlane.xlu0 %5545
      %v5547 = vsel %vm538, %v5531, 0.0
      %5548 = vadd.xlane.f32.xlu0 %v5547
      %v5549 = vpop.xlane.xlu0 %5548
      %v5550 = vsel %vm538, %v5533, 0.0
      %5551 = vadd.xlane.f32.xlu0 %v5550
      %v5552 = vpop.xlane.xlu0 %5551
      %v5553 = vsel %vm538, %v5535, 0.0
      %5554 = vadd.xlane.f32.xlu0 %v5553
      %v5555 = vpop.xlane.xlu0 %5554
      %v5556 = vsel %vm538, %v5537, 0.0
      %5557 = vadd.xlane.f32.xlu0 %v5556
      %v5558 = vpop.xlane.xlu0 %5557
      %v5559 = vsel %vm538, %v5539, 0.0
      %5560 = vadd.xlane.f32.xlu0 %v5559
      %v5561 = vpop.xlane.xlu0 %5560
      %v5562 = vsel %vm538, %v5541, 0.0
      %5563 = vadd.xlane.f32.xlu0 %v5562
      %v5564 = vpop.xlane.xlu0 %5563
      %v5565 = vsel %vm538, %v5543, 0.0
      %5566 = vadd.xlane.f32.xlu0 %v5565
      %v5567 = vpop.xlane.xlu0 %5566
      %v5568 = vrcp.pop %v5546
      %v5569 = vmul.f32 %v5529, %v5568
      %v5570 = vrcp.pop %v5549
      %v5571 = vmul.f32 %v5531, %v5570
      %v5572 = vrcp.pop %v5552
      %v5573 = vmul.f32 %v5533, %v5572
      %v5574 = vrcp.pop %v5555
      %v5575 = vmul.f32 %v5535, %v5574
      %v5576 = vrcp.pop %v5558
      %v5577 = vmul.f32 %v5537, %v5576
      %v5578 = vrcp.pop %v5561
      %v5579 = vmul.f32 %v5539, %v5578
      %v5580 = vrcp.pop %v5564
      %v5581 = vmul.f32 %v5541, %v5580
      %v5582 = vrcp.pop %v5567
      %v5583 = vmul.f32 %v5543, %v5582
      %v5585 = vsel %vm538, %v5569, 0
      %v5588 = vsel %vm538, %v5571, 0
      %v5591 = vsel %vm538, %v5573, 0
      %v5594 = vsel %vm538, %v5575, 0
      %v5597 = vsel %vm538, %v5577, 0
      %v5600 = vsel %vm538, %v5579, 0
      %v5603 = vsel %vm538, %v5581, 0
      %v5606 = vsel %vm538, %v5583, 0
      %5608 = vmatprep.subr.mxu0 0.0
      %5609 = vmatpush1.msra.mxu0 0.0
      %5610 = vmatprep.subr.mxu0 0.0
      %5611 = vmatpush1.msra.mxu0 0.0
      %5612 = vmatprep.subr.mxu0 0.0
      %5613 = vmatpush1.msra.mxu0 0.0
      %5614 = vmatprep.subr.mxu0 0.0
      %5615 = vmatpush1.msra.mxu0 0.0
      %5616 = vmatprep.subr.mxu0 0.0
      %5617 = vmatpush1.msra.mxu0 0.0
      %5618 = vmatprep.subr.mxu0 0.0
      %5619 = vmatpush1.msra.mxu0 0.0
      %5620 = vmatprep.subr.mxu0 0.0
      %5621 = vmatpush1.msra.mxu0 0.0
      %5622 = vmatprep.subr.mxu0 0.0
      %5623 = vmatpush1.msra.mxu0 0.0
      %5624 = vmatprep.subr.mxu0 0.0
      %5625 = vmatpush1.msra.mxu0 %v5332
      %5626 = vmatprep.subr.mxu0 0.0
      %5627 = vmatpush1.msra.mxu0 %v5327
      %5628 = vmatprep.subr.mxu0 0.0
      %5629 = vmatpush1.msra.mxu0 %v5322
      %5630 = vmatprep.subr.mxu0 0.0
      %5631 = vmatpush1.msra.mxu0 %v5317
      %5632 = vmatprep.subr.mxu0 0.0
      %5633 = vmatpush1.msra.mxu0 %v5312
      %5634 = vmatprep.subr.mxu0 0.0
      %5635 = vmatpush1.msra.mxu0 %v5307
      %5636 = vmatprep.subr.mxu0 0.0
      %5637 = vmatpush1.msra.mxu0 %v5302
      %5638 = vmatprep.subr.mxu0 0.0
      %5639 = vmatpush1.msra.mxu0 %v5297
      %5640 = vmatprep.subr.mxu0 0.0
      %5641 = vmatpush2.msra.mxu0 0.0
      %5642 = vmatprep.subr.mxu0 0.0
      %5643 = vmatpush2.msra.mxu0 0.0
      %5644 = vmatprep.subr.mxu0 0.0
      %5645 = vmatpush2.msra.mxu0 0.0
      %5646 = vmatprep.subr.mxu0 0.0
      %5647 = vmatpush2.msra.mxu0 0.0
      %5648 = vmatprep.subr.mxu0 0.0
      %5649 = vmatpush2.msra.mxu0 0.0
      %5650 = vmatprep.subr.mxu0 0.0
      %5651 = vmatpush2.msra.mxu0 0.0
      %5652 = vmatprep.subr.mxu0 0.0
      %5653 = vmatpush2.msra.mxu0 0.0
      %5654 = vmatprep.subr.mxu0 0.0
      %5655 = vmatpush2.msra.mxu0 0.0
      %5656 = vmatprep.subr.mxu0 0.0
      %5657 = vmatpush2.msra.mxu0 0.0
      %5658 = vmatprep.subr.mxu0 0.0
      %5659 = vmatpush2.msra.mxu0 0.0
      %5660 = vmatprep.subr.mxu0 0.0
      %5661 = vmatpush2.msra.mxu0 0.0
      %5662 = vmatprep.subr.mxu0 0.0
      %5663 = vmatpush2.msra.mxu0 0.0
      %5664 = vmatprep.subr.mxu0 0.0
      %5665 = vmatpush2.msra.mxu0 0.0
      %5666 = vmatprep.subr.mxu0 0.0
      %5667 = vmatpush2.msra.mxu0 0.0
      %5668 = vmatprep.subr.mxu0 0.0
      %5669 = vmatpush2.msra.mxu0 0.0
      %5670 = vmatprep.subr.mxu0 0.0
      %5671 = vmatpush2.msra.mxu0 0.0
      %5672 = vmatprep.mubr.f32.mxu0 0.0
      %5673 = vmatmul.mubr.f32.gmra.mxu0 %v5585
      %v5674 = vpop.f32.mrf.mxu0
      %v5675 = vadd.f32 0.0, %v5674
      %v5676 = vpop.f32.mrf.mxu0
      %5677 = vmatprep.mubr.f32.mxu0 0.0
      %5678 = vmatmul.mubr.f32.gmra.mxu0 %v5588
      %v5679 = vpop.f32.mrf.mxu0
      %v5680 = vadd.f32 0.0, %v5679
      %v5681 = vpop.f32.mrf.mxu0
      %5682 = vmatprep.mubr.f32.mxu0 0.0
      %5683 = vmatmul.mubr.f32.gmra.mxu0 %v5591
      %v5684 = vpop.f32.mrf.mxu0
      %v5685 = vadd.f32 0.0, %v5684
      %v5686 = vpop.f32.mrf.mxu0
      %5687 = vmatprep.mubr.f32.mxu0 0.0
      %5688 = vmatmul.mubr.f32.gmra.mxu0 %v5594
      %v5689 = vpop.f32.mrf.mxu0
      %v5690 = vadd.f32 0.0, %v5689
      %v5691 = vpop.f32.mrf.mxu0
      %5692 = vmatprep.mubr.f32.mxu0 0.0
      %5693 = vmatmul.mubr.f32.gmra.mxu0 %v5597
      %v5694 = vpop.f32.mrf.mxu0
      %v5695 = vadd.f32 0.0, %v5694
      %v5696 = vpop.f32.mrf.mxu0
      %5697 = vmatprep.mubr.f32.mxu0 0.0
      %5698 = vmatmul.mubr.f32.gmra.mxu0 %v5600
      %v5699 = vpop.f32.mrf.mxu0
      %v5700 = vadd.f32 0.0, %v5699
      %v5701 = vpop.f32.mrf.mxu0
      %5702 = vmatprep.mubr.f32.mxu0 0.0
      %5703 = vmatmul.mubr.f32.gmra.mxu0 %v5603
      %v5704 = vpop.f32.mrf.mxu0
      %v5705 = vadd.f32 0.0, %v5704
      %v5706 = vpop.f32.mrf.mxu0
      %5707 = vmatprep.mubr.f32.mxu0 0.0
      %5708 = vmatmul.mubr.f32.gmra.mxu0 %v5606
      %v5709 = vpop.f32.mrf.mxu0
      %v5710 = vadd.f32 0.0, %v5709
      %v5711 = vpop.f32.mrf.mxu0
      %5712 = vdwg.mxu0
      %s5713 = scalar_lea.vmem %s8, 24
      %v5714 = vld [vmem:[%s5713] sm:$0xff]
      %v5716 = vsel %vm2738, %v5675, 0
      %v5719 = vsel %vm2738, %v5680, 0
      %v5722 = vsel %vm2738, %v5685, 0
      %v5725 = vsel %vm2738, %v5690, 0
      %v5728 = vsel %vm2738, %v5695, 0
      %v5731 = vsel %vm2738, %v5700, 0
      %v5734 = vsel %vm2738, %v5705, 0
      %v5737 = vsel %vm2738, %v5710, 0
      %5739 = vmatprep.subr.mxu0 0.0
      %5740 = vmatpush1.msra.mxu0 0.0
      %5741 = vmatprep.subr.mxu0 0.0
      %5742 = vmatpush1.msra.mxu0 0.0
      %5743 = vmatprep.subr.mxu0 0.0
      %5744 = vmatpush1.msra.mxu0 0.0
      %5745 = vmatprep.subr.mxu0 0.0
      %5746 = vmatpush1.msra.mxu0 0.0
      %5747 = vmatprep.subr.mxu0 0.0
      %5748 = vmatpush1.msra.mxu0 0.0
      %5749 = vmatprep.subr.mxu0 0.0
      %5750 = vmatpush1.msra.mxu0 0.0
      %5751 = vmatprep.subr.mxu0 0.0
      %5752 = vmatpush1.msra.mxu0 0.0
      %5753 = vmatprep.subr.mxu0 0.0
      %5754 = vmatpush1.msra.mxu0 0.0
      %5755 = vmatprep.subr.mxu0 0.0
      %5756 = vmatpush1.msra.mxu0 0.0
      %5757 = vmatprep.subr.mxu0 0.0
      %5758 = vmatpush1.msra.mxu0 0.0
      %5759 = vmatprep.subr.mxu0 0.0
      %5760 = vmatpush1.msra.mxu0 0.0
      %5761 = vmatprep.subr.mxu0 0.0
      %5762 = vmatpush1.msra.mxu0 0.0
      %5763 = vmatprep.subr.mxu0 0.0
      %5764 = vmatpush1.msra.mxu0 0.0
      %5765 = vmatprep.subr.mxu0 0.0
      %5766 = vmatpush1.msra.mxu0 0.0
      %5767 = vmatprep.subr.mxu0 0.0
      %5768 = vmatpush1.msra.mxu0 0.0
      %5769 = vmatprep.subr.mxu0 0.0
      %5770 = vmatpush1.msra.mxu0 %v5714
      %5771 = vmatprep.subr.mxu0 0.0
      %5772 = vmatpush2.msra.mxu0 0.0
      %5773 = vmatprep.subr.mxu0 0.0
      %5774 = vmatpush2.msra.mxu0 0.0
      %5775 = vmatprep.subr.mxu0 0.0
      %5776 = vmatpush2.msra.mxu0 0.0
      %5777 = vmatprep.subr.mxu0 0.0
      %5778 = vmatpush2.msra.mxu0 0.0
      %5779 = vmatprep.subr.mxu0 0.0
      %5780 = vmatpush2.msra.mxu0 0.0
      %5781 = vmatprep.subr.mxu0 0.0
      %5782 = vmatpush2.msra.mxu0 0.0
      %5783 = vmatprep.subr.mxu0 0.0
      %5784 = vmatpush2.msra.mxu0 0.0
      %5785 = vmatprep.subr.mxu0 0.0
      %5786 = vmatpush2.msra.mxu0 0.0
      %5787 = vmatprep.subr.mxu0 0.0
      %5788 = vmatpush2.msra.mxu0 0.0
      %5789 = vmatprep.subr.mxu0 0.0
      %5790 = vmatpush2.msra.mxu0 0.0
      %5791 = vmatprep.subr.mxu0 0.0
      %5792 = vmatpush2.msra.mxu0 0.0
      %5793 = vmatprep.subr.mxu0 0.0
      %5794 = vmatpush2.msra.mxu0 0.0
      %5795 = vmatprep.subr.mxu0 0.0
      %5796 = vmatpush2.msra.mxu0 0.0
      %5797 = vmatprep.subr.mxu0 0.0
      %5798 = vmatpush2.msra.mxu0 0.0
      %5799 = vmatprep.subr.mxu0 0.0
      %5800 = vmatpush2.msra.mxu0 0.0
      %5801 = vmatprep.subr.mxu0 0.0
      %5802 = vmatpush2.msra.mxu0 0.0
      %5803 = vmatprep.mubr.f32.mxu0 0.0
      %5804 = vmatmul.mubr.f32.gmra.mxu0 %v5716
      %v5805 = vpop.f32.mrf.mxu0
      %v5806 = vadd.f32 0.0, %v5805
      %v5807 = vpop.f32.mrf.mxu0
      %5808 = vmatprep.mubr.f32.mxu0 0.0
      %5809 = vmatmul.mubr.f32.gmra.mxu0 %v5719
      %v5810 = vpop.f32.mrf.mxu0
      %v5811 = vadd.f32 0.0, %v5810
      %v5812 = vpop.f32.mrf.mxu0
      %5813 = vmatprep.mubr.f32.mxu0 0.0
      %5814 = vmatmul.mubr.f32.gmra.mxu0 %v5722
      %v5815 = vpop.f32.mrf.mxu0
      %v5816 = vadd.f32 0.0, %v5815
      %v5817 = vpop.f32.mrf.mxu0
      %5818 = vmatprep.mubr.f32.mxu0 0.0
      %5819 = vmatmul.mubr.f32.gmra.mxu0 %v5725
      %v5820 = vpop.f32.mrf.mxu0
      %v5821 = vadd.f32 0.0, %v5820
      %v5822 = vpop.f32.mrf.mxu0
      %5823 = vmatprep.mubr.f32.mxu0 0.0
      %5824 = vmatmul.mubr.f32.gmra.mxu0 %v5728
      %v5825 = vpop.f32.mrf.mxu0
      %v5826 = vadd.f32 0.0, %v5825
      %v5827 = vpop.f32.mrf.mxu0
      %5828 = vmatprep.mubr.f32.mxu0 0.0
      %5829 = vmatmul.mubr.f32.gmra.mxu0 %v5731
      %v5830 = vpop.f32.mrf.mxu0
      %v5831 = vadd.f32 0.0, %v5830
      %v5832 = vpop.f32.mrf.mxu0
      %5833 = vmatprep.mubr.f32.mxu0 0.0
      %5834 = vmatmul.mubr.f32.gmra.mxu0 %v5734
      %v5835 = vpop.f32.mrf.mxu0
      %v5836 = vadd.f32 0.0, %v5835
      %v5837 = vpop.f32.mrf.mxu0
      %5838 = vmatprep.mubr.f32.mxu0 0.0
      %5839 = vmatmul.mubr.f32.gmra.mxu0 %v5737
      %v5840 = vpop.f32.mrf.mxu0
      %v5841 = vadd.f32 0.0, %v5840
      %v5842 = vpop.f32.mrf.mxu0
      %5843 = vdwg.mxu0
      %v5844 = vadd.f32 %v4973, %v5806
      %v5845 = vadd.f32 %v4974, %v5811
      %v5846 = vadd.f32 %v4975, %v5816
      %v5847 = vadd.f32 %v4976, %v5821
      %v5848 = vadd.f32 %v4977, %v5826
      %v5849 = vadd.f32 %v4978, %v5831
      %v5850 = vadd.f32 %v4979, %v5836
      %v5851 = vadd.f32 %v4980, %v5841
      %v5852 = vld [vmem:[%s9] sm:$0x1]
      %v5854 = vlaneseq
      %v5855 = vshrl.u32 %v5854, 7
      %v5856 = vsub.s32 0, %v5855
      %v5857 = vrot.slane %v5852, %v5856
      %v5859 = vadd.f32 %v5844, %v5857
      %v5860 = vadd.f32 %v5845, %v5857
      %v5861 = vadd.f32 %v5846, %v5857
      %v5862 = vadd.f32 %v5847, %v5857
      %v5863 = vadd.f32 %v5848, %v5857
      %v5864 = vadd.f32 %v5849, %v5857
      %v5865 = vadd.f32 %v5850, %v5857
      %v5866 = vadd.f32 %v5851, %v5857
      %v5867 = vadd.f32 %v2354, %v5859
      %v5868 = vadd.f32 %v2355, %v5860
      %v5869 = vadd.f32 %v2356, %v5861
      %v5870 = vadd.f32 %v2357, %v5862
      %v5871 = vadd.f32 %v2358, %v5863
      %v5872 = vadd.f32 %v2359, %v5864
      %v5873 = vadd.f32 %v2360, %v5865
      %v5874 = vadd.f32 %v2361, %v5866
      %v5875 = vld [vmem:[%s10] sm:$0x1]
      %v5876 = vld [vmem:[%s11] sm:$0x1]
      %v5877 = vsel %vm2228, %v5867, 0.0
      %5878 = vadd.xlane.f32.xlu0 %v5877
      %v5879 = vpop.xlane.xlu0 %5878
      %v5880 = vsel %vm2228, %v5868, 0.0
      %5881 = vadd.xlane.f32.xlu0 %v5880
      %v5882 = vpop.xlane.xlu0 %5881
      %v5883 = vsel %vm2228, %v5869, 0.0
      %5884 = vadd.xlane.f32.xlu0 %v5883
      %v5885 = vpop.xlane.xlu0 %5884
      %v5886 = vsel %vm2228, %v5870, 0.0
      %5887 = vadd.xlane.f32.xlu0 %v5886
      %v5888 = vpop.xlane.xlu0 %5887
      %v5889 = vsel %vm2228, %v5871, 0.0
      %5890 = vadd.xlane.f32.xlu0 %v5889
      %v5891 = vpop.xlane.xlu0 %5890
      %v5892 = vsel %vm2228, %v5872, 0.0
      %5893 = vadd.xlane.f32.xlu0 %v5892
      %v5894 = vpop.xlane.xlu0 %5893
      %v5895 = vsel %vm2228, %v5873, 0.0
      %5896 = vadd.xlane.f32.xlu0 %v5895
      %v5897 = vpop.xlane.xlu0 %5896
      %v5898 = vsel %vm2228, %v5874, 0.0
      %5899 = vadd.xlane.f32.xlu0 %v5898
      %v5900 = vpop.xlane.xlu0 %5899
      %v5901 = vmul.f32 %v5879, %v2253
      %v5902 = vmul.f32 %v5882, %v2253
      %v5903 = vmul.f32 %v5885, %v2253
      %v5904 = vmul.f32 %v5888, %v2253
      %v5905 = vmul.f32 %v5891, %v2253
      %v5906 = vmul.f32 %v5894, %v2253
      %v5907 = vmul.f32 %v5897, %v2253
      %v5908 = vmul.f32 %v5900, %v2253
      %v5909 = vsub.f32 %v5867, %v5901
      %v5910 = vsub.f32 %v5868, %v5902
      %v5911 = vsub.f32 %v5869, %v5903
      %v5912 = vsub.f32 %v5870, %v5904
      %v5913 = vsub.f32 %v5871, %v5905
      %v5914 = vsub.f32 %v5872, %v5906
      %v5915 = vsub.f32 %v5873, %v5907
      %v5916 = vsub.f32 %v5874, %v5908
      %v5917 = vmul.f32 %v5909, %v5909
      %v5918 = vmul.f32 %v5910, %v5910
      %v5919 = vmul.f32 %v5911, %v5911
      %v5920 = vmul.f32 %v5912, %v5912
      %v5921 = vmul.f32 %v5913, %v5913
      %v5922 = vmul.f32 %v5914, %v5914
      %v5923 = vmul.f32 %v5915, %v5915
      %v5924 = vmul.f32 %v5916, %v5916
      %v5925 = vsel %vm2228, %v5917, 0.0
      %5926 = vadd.xlane.f32.xlu0 %v5925
      %v5927 = vpop.xlane.xlu0 %5926
      %v5928 = vsel %vm2228, %v5918, 0.0
      %5929 = vadd.xlane.f32.xlu0 %v5928
      %v5930 = vpop.xlane.xlu0 %5929
      %v5931 = vsel %vm2228, %v5919, 0.0
      %5932 = vadd.xlane.f32.xlu0 %v5931
      %v5933 = vpop.xlane.xlu0 %5932
      %v5934 = vsel %vm2228, %v5920, 0.0
      %5935 = vadd.xlane.f32.xlu0 %v5934
      %v5936 = vpop.xlane.xlu0 %5935
      %v5937 = vsel %vm2228, %v5921, 0.0
      %5938 = vadd.xlane.f32.xlu0 %v5937
      %v5939 = vpop.xlane.xlu0 %5938
      %v5940 = vsel %vm2228, %v5922, 0.0
      %5941 = vadd.xlane.f32.xlu0 %v5940
      %v5942 = vpop.xlane.xlu0 %5941
      %v5943 = vsel %vm2228, %v5923, 0.0
      %5944 = vadd.xlane.f32.xlu0 %v5943
      %v5945 = vpop.xlane.xlu0 %5944
      %v5946 = vsel %vm2228, %v5924, 0.0
      %5947 = vadd.xlane.f32.xlu0 %v5946
      %v5948 = vpop.xlane.xlu0 %5947
      %v5949 = vmul.f32 %v5927, %v2253
      %v5950 = vmul.f32 %v5930, %v2253
      %v5951 = vmul.f32 %v5933, %v2253
      %v5952 = vmul.f32 %v5936, %v2253
      %v5953 = vmul.f32 %v5939, %v2253
      %v5954 = vmul.f32 %v5942, %v2253
      %v5955 = vmul.f32 %v5945, %v2253
      %v5956 = vmul.f32 %v5948, %v2253
      %v5957 = vadd.f32 %v5949, 1e-05
      %v5958 = vadd.f32 %v5950, 1e-05
      %v5959 = vadd.f32 %v5951, 1e-05
      %v5960 = vadd.f32 %v5952, 1e-05
      %v5961 = vadd.f32 %v5953, 1e-05
      %v5962 = vadd.f32 %v5954, 1e-05
      %v5963 = vadd.f32 %v5955, 1e-05
      %v5964 = vadd.f32 %v5956, 1e-05
      %v5965 = vrsqrt.pop %v5957
      %v5966 = vrsqrt.pop %v5958
      %v5967 = vrsqrt.pop %v5959
      %v5968 = vrsqrt.pop %v5960
      %v5969 = vrsqrt.pop %v5961
      %v5970 = vrsqrt.pop %v5962
      %v5971 = vrsqrt.pop %v5963
      %v5972 = vrsqrt.pop %v5964
      %v5973 = vmul.f32 %v5909, %v5965
      %v5974 = vmul.f32 %v5910, %v5966
      %v5975 = vmul.f32 %v5911, %v5967
      %v5976 = vmul.f32 %v5912, %v5968
      %v5977 = vmul.f32 %v5913, %v5969
      %v5978 = vmul.f32 %v5914, %v5970
      %v5979 = vmul.f32 %v5915, %v5971
      %v5980 = vmul.f32 %v5916, %v5972
      %v5982 = vlaneseq
      %v5983 = vshrl.u32 %v5982, 7
      %v5984 = vsub.s32 0, %v5983
      %v5985 = vrot.slane %v5875, %v5984
      %v5987 = vmul.f32 %v5973, %v5985
      %v5988 = vmul.f32 %v5974, %v5985
      %v5989 = vmul.f32 %v5975, %v5985
      %v5990 = vmul.f32 %v5976, %v5985
      %v5991 = vmul.f32 %v5977, %v5985
      %v5992 = vmul.f32 %v5978, %v5985
      %v5993 = vmul.f32 %v5979, %v5985
      %v5994 = vmul.f32 %v5980, %v5985
      %v5996 = vlaneseq
      %v5997 = vshrl.u32 %v5996, 7
      %v5998 = vsub.s32 0, %v5997
      %v5999 = vrot.slane %v5876, %v5998
      %v6001 = vadd.f32 %v5987, %v5999
      %v6002 = vadd.f32 %v5988, %v5999
      %v6003 = vadd.f32 %v5989, %v5999
      %v6004 = vadd.f32 %v5990, %v5999
      %v6005 = vadd.f32 %v5991, %v5999
      %v6006 = vadd.f32 %v5992, %v5999
      %v6007 = vadd.f32 %v5993, %v5999
      %v6008 = vadd.f32 %v5994, %v5999
      %v6009 = vld [vmem:[%s12] sm:$0xff]
      %v6010 = vld [vmem:[%s12 + $0x8] sm:$0xff]
      %v6011 = vld [vmem:[%s12 + $0x10] sm:$0xff]
      %v6012 = vld [vmem:[%s12 + $0x18] sm:$0xff]
      %v6013 = vld [vmem:[%s13] sm:$0x1]
      %v6015 = vlaneseq
      %v6016 = vshrl.u32 %v6015, 7
      %v6017 = vsub.s32 0, %v6016
      %v6018 = vrot.slane %v6013, %v6017
      %v6021 = vsel %vm2228, %v6001, 0
      %v6024 = vsel %vm2228, %v6002, 0
      %v6027 = vsel %vm2228, %v6003, 0
      %v6030 = vsel %vm2228, %v6004, 0
      %v6033 = vsel %vm2228, %v6005, 0
      %v6036 = vsel %vm2228, %v6006, 0
      %v6039 = vsel %vm2228, %v6007, 0
      %v6042 = vsel %vm2228, %v6008, 0
      %6044 = vmatprep.subr.mxu0 0.0
      %6045 = vmatpush1.msra.mxu0 0.0
      %6046 = vmatprep.subr.mxu0 0.0
      %6047 = vmatpush1.msra.mxu0 0.0
      %6048 = vmatprep.subr.mxu0 0.0
      %6049 = vmatpush1.msra.mxu0 0.0
      %6050 = vmatprep.subr.mxu0 0.0
      %6051 = vmatpush1.msra.mxu0 0.0
      %6052 = vmatprep.subr.mxu0 0.0
      %6053 = vmatpush1.msra.mxu0 0.0
      %6054 = vmatprep.subr.mxu0 0.0
      %6055 = vmatpush1.msra.mxu0 0.0
      %6056 = vmatprep.subr.mxu0 0.0
      %6057 = vmatpush1.msra.mxu0 0.0
      %6058 = vmatprep.subr.mxu0 0.0
      %6059 = vmatpush1.msra.mxu0 0.0
      %6060 = vmatprep.subr.mxu0 0.0
      %6061 = vmatpush1.msra.mxu0 0.0
      %6062 = vmatprep.subr.mxu0 0.0
      %6063 = vmatpush1.msra.mxu0 0.0
      %6064 = vmatprep.subr.mxu0 0.0
      %6065 = vmatpush1.msra.mxu0 0.0
      %6066 = vmatprep.subr.mxu0 0.0
      %6067 = vmatpush1.msra.mxu0 0.0
      %6068 = vmatprep.subr.mxu0 0.0
      %6069 = vmatpush1.msra.mxu0 %v6012
      %6070 = vmatprep.subr.mxu0 0.0
      %6071 = vmatpush1.msra.mxu0 %v6011
      %6072 = vmatprep.subr.mxu0 0.0
      %6073 = vmatpush1.msra.mxu0 %v6010
      %6074 = vmatprep.subr.mxu0 0.0
      %6075 = vmatpush1.msra.mxu0 %v6009
      %6076 = vmatprep.subr.mxu0 0.0
      %6077 = vmatpush2.msra.mxu0 0.0
      %6078 = vmatprep.subr.mxu0 0.0
      %6079 = vmatpush2.msra.mxu0 0.0
      %6080 = vmatprep.subr.mxu0 0.0
      %6081 = vmatpush2.msra.mxu0 0.0
      %6082 = vmatprep.subr.mxu0 0.0
      %6083 = vmatpush2.msra.mxu0 0.0
      %6084 = vmatprep.subr.mxu0 0.0
      %6085 = vmatpush2.msra.mxu0 0.0
      %6086 = vmatprep.subr.mxu0 0.0
      %6087 = vmatpush2.msra.mxu0 0.0
      %6088 = vmatprep.subr.mxu0 0.0
      %6089 = vmatpush2.msra.mxu0 0.0
      %6090 = vmatprep.subr.mxu0 0.0
      %6091 = vmatpush2.msra.mxu0 0.0
      %6092 = vmatprep.subr.mxu0 0.0
      %6093 = vmatpush2.msra.mxu0 0.0
      %6094 = vmatprep.subr.mxu0 0.0
      %6095 = vmatpush2.msra.mxu0 0.0
      %6096 = vmatprep.subr.mxu0 0.0
      %6097 = vmatpush2.msra.mxu0 0.0
      %6098 = vmatprep.subr.mxu0 0.0
      %6099 = vmatpush2.msra.mxu0 0.0
      %6100 = vmatprep.subr.mxu0 0.0
      %6101 = vmatpush2.msra.mxu0 0.0
      %6102 = vmatprep.subr.mxu0 0.0
      %6103 = vmatpush2.msra.mxu0 0.0
      %6104 = vmatprep.subr.mxu0 0.0
      %6105 = vmatpush2.msra.mxu0 0.0
      %6106 = vmatprep.subr.mxu0 0.0
      %6107 = vmatpush2.msra.mxu0 0.0
      %6108 = vmatprep.mubr.f32.mxu0 0.0
      %6109 = vmatmul.mubr.f32.gmra.mxu0 %v6021
      %v6110 = vpop.f32.mrf.mxu0
      %v6111 = vadd.f32 %v6018, %v6110
      %v6112 = vpop.f32.mrf.mxu0
      %6113 = vmatprep.mubr.f32.mxu0 0.0
      %6114 = vmatmul.mubr.f32.gmra.mxu0 %v6024
      %v6115 = vpop.f32.mrf.mxu0
      %v6116 = vadd.f32 %v6018, %v6115
      %v6117 = vpop.f32.mrf.mxu0
      %6118 = vmatprep.mubr.f32.mxu0 0.0
      %6119 = vmatmul.mubr.f32.gmra.mxu0 %v6027
      %v6120 = vpop.f32.mrf.mxu0
      %v6121 = vadd.f32 %v6018, %v6120
      %v6122 = vpop.f32.mrf.mxu0
      %6123 = vmatprep.mubr.f32.mxu0 0.0
      %6124 = vmatmul.mubr.f32.gmra.mxu0 %v6030
      %v6125 = vpop.f32.mrf.mxu0
      %v6126 = vadd.f32 %v6018, %v6125
      %v6127 = vpop.f32.mrf.mxu0
      %6128 = vmatprep.mubr.f32.mxu0 0.0
      %6129 = vmatmul.mubr.f32.gmra.mxu0 %v6033
      %v6130 = vpop.f32.mrf.mxu0
      %v6131 = vadd.f32 %v6018, %v6130
      %v6132 = vpop.f32.mrf.mxu0
      %6133 = vmatprep.mubr.f32.mxu0 0.0
      %6134 = vmatmul.mubr.f32.gmra.mxu0 %v6036
      %v6135 = vpop.f32.mrf.mxu0
      %v6136 = vadd.f32 %v6018, %v6135
      %v6137 = vpop.f32.mrf.mxu0
      %6138 = vmatprep.mubr.f32.mxu0 0.0
      %6139 = vmatmul.mubr.f32.gmra.mxu0 %v6039
      %v6140 = vpop.f32.mrf.mxu0
      %v6141 = vadd.f32 %v6018, %v6140
      %v6142 = vpop.f32.mrf.mxu0
      %6143 = vmatprep.mubr.f32.mxu0 0.0
      %6144 = vmatmul.mubr.f32.gmra.mxu0 %v6042
      %v6145 = vpop.f32.mrf.mxu0
      %v6146 = vadd.f32 %v6018, %v6145
      %v6147 = vpop.f32.mrf.mxu0
      %6148 = vdwg.mxu0
      %v6149 = vmul.f32 %v6111, 0.5
      %v6150 = vmul.f32 %v6116, 0.5
      %v6151 = vmul.f32 %v6121, 0.5
      %v6152 = vmul.f32 %v6126, 0.5
      %v6153 = vmul.f32 %v6131, 0.5
      %v6154 = vmul.f32 %v6136, 0.5
      %v6155 = vmul.f32 %v6141, 0.5
      %v6156 = vmul.f32 %v6146, 0.5
      %v6157 = vmul.f32 %v6111, 0.70710677
      %v6158 = vmul.f32 %v6116, 0.70710677
      %v6159 = vmul.f32 %v6121, 0.70710677
      %v6160 = vmul.f32 %v6126, 0.70710677
      %v6161 = vmul.f32 %v6131, 0.70710677
      %v6162 = vmul.f32 %v6136, 0.70710677
      %v6163 = vmul.f32 %v6141, 0.70710677
      %v6164 = vmul.f32 %v6146, 0.70710677
      %v6165 = vand.u32 2147483647, %v6157
      %v6166 = vand.u32 2147483647, %v6158
      %v6167 = vand.u32 2147483647, %v6159
      %v6168 = vand.u32 2147483647, %v6160
      %v6169 = vand.u32 2147483647, %v6161
      %v6170 = vand.u32 2147483647, %v6162
      %v6171 = vand.u32 2147483647, %v6163
      %v6172 = vand.u32 2147483647, %v6164
      %v6173 = vmul.f32 %v6165, 0.3275911
      %v6174 = vmul.f32 %v6166, 0.3275911
      %v6175 = vmul.f32 %v6167, 0.3275911
      %v6176 = vmul.f32 %v6168, 0.3275911
      %v6177 = vmul.f32 %v6169, 0.3275911
      %v6178 = vmul.f32 %v6170, 0.3275911
      %v6179 = vmul.f32 %v6171, 0.3275911
      %v6180 = vmul.f32 %v6172, 0.3275911
      %v6181 = vadd.f32 %v6173, 1.0
      %v6182 = vadd.f32 %v6174, 1.0
      %v6183 = vadd.f32 %v6175, 1.0
      %v6184 = vadd.f32 %v6176, 1.0
      %v6185 = vadd.f32 %v6177, 1.0
      %v6186 = vadd.f32 %v6178, 1.0
      %v6187 = vadd.f32 %v6179, 1.0
      %v6188 = vadd.f32 %v6180, 1.0
      %v6189 = vrcp.pop %v6181
      %v6190 = vmul.f32 1.0, %v6189
      %v6191 = vrcp.pop %v6182
      %v6192 = vmul.f32 1.0, %v6191
      %v6193 = vrcp.pop %v6183
      %v6194 = vmul.f32 1.0, %v6193
      %v6195 = vrcp.pop %v6184
      %v6196 = vmul.f32 1.0, %v6195
      %v6197 = vrcp.pop %v6185
      %v6198 = vmul.f32 1.0, %v6197
      %v6199 = vrcp.pop %v6186
      %v6200 = vmul.f32 1.0, %v6199
      %v6201 = vrcp.pop %v6187
      %v6202 = vmul.f32 1.0, %v6201
      %v6203 = vrcp.pop %v6188
      %v6204 = vmul.f32 1.0, %v6203
      %v6205 = vmul.f32 %v6190, 1.0614054
      %v6206 = vmul.f32 %v6192, 1.0614054
      %v6207 = vmul.f32 %v6194, 1.0614054
      %v6208 = vmul.f32 %v6196, 1.0614054
      %v6209 = vmul.f32 %v6198, 1.0614054
      %v6210 = vmul.f32 %v6200, 1.0614054
      %v6211 = vmul.f32 %v6202, 1.0614054
      %v6212 = vmul.f32 %v6204, 1.0614054
      %v6213 = vadd.f32 %v6205, -1.4531521
      %v6214 = vadd.f32 %v6206, -1.4531521
      %v6215 = vadd.f32 %v6207, -1.4531521
      %v6216 = vadd.f32 %v6208, -1.4531521
      %v6217 = vadd.f32 %v6209, -1.4531521
      %v6218 = vadd.f32 %v6210, -1.4531521
      %v6219 = vadd.f32 %v6211, -1.4531521
      %v6220 = vadd.f32 %v6212, -1.4531521
      %v6221 = vmul.f32 %v6213, %v6190
      %v6222 = vmul.f32 %v6214, %v6192
      %v6223 = vmul.f32 %v6215, %v6194
      %v6224 = vmul.f32 %v6216, %v6196
      %v6225 = vmul.f32 %v6217, %v6198
      %v6226 = vmul.f32 %v6218, %v6200
      %v6227 = vmul.f32 %v6219, %v6202
      %v6228 = vmul.f32 %v6220, %v6204
      %v6229 = vadd.f32 %v6221, 1.4214138
      %v6230 = vadd.f32 %v6222, 1.4214138
      %v6231 = vadd.f32 %v6223, 1.4214138
      %v6232 = vadd.f32 %v6224, 1.4214138
      %v6233 = vadd.f32 %v6225, 1.4214138
      %v6234 = vadd.f32 %v6226, 1.4214138
      %v6235 = vadd.f32 %v6227, 1.4214138
      %v6236 = vadd.f32 %v6228, 1.4214138
      %v6237 = vmul.f32 %v6229, %v6190
      %v6238 = vmul.f32 %v6230, %v6192
      %v6239 = vmul.f32 %v6231, %v6194
      %v6240 = vmul.f32 %v6232, %v6196
      %v6241 = vmul.f32 %v6233, %v6198
      %v6242 = vmul.f32 %v6234, %v6200
      %v6243 = vmul.f32 %v6235, %v6202
      %v6244 = vmul.f32 %v6236, %v6204
      %v6245 = vadd.f32 %v6237, -0.28449672
      %v6246 = vadd.f32 %v6238, -0.28449672
      %v6247 = vadd.f32 %v6239, -0.28449672
      %v6248 = vadd.f32 %v6240, -0.28449672
      %v6249 = vadd.f32 %v6241, -0.28449672
      %v6250 = vadd.f32 %v6242, -0.28449672
      %v6251 = vadd.f32 %v6243, -0.28449672
      %v6252 = vadd.f32 %v6244, -0.28449672
      %v6253 = vmul.f32 %v6245, %v6190
      %v6254 = vmul.f32 %v6246, %v6192
      %v6255 = vmul.f32 %v6247, %v6194
      %v6256 = vmul.f32 %v6248, %v6196
      %v6257 = vmul.f32 %v6249, %v6198
      %v6258 = vmul.f32 %v6250, %v6200
      %v6259 = vmul.f32 %v6251, %v6202
      %v6260 = vmul.f32 %v6252, %v6204
      %v6261 = vadd.f32 %v6253, 0.2548296
      %v6262 = vadd.f32 %v6254, 0.2548296
      %v6263 = vadd.f32 %v6255, 0.2548296
      %v6264 = vadd.f32 %v6256, 0.2548296
      %v6265 = vadd.f32 %v6257, 0.2548296
      %v6266 = vadd.f32 %v6258, 0.2548296
      %v6267 = vadd.f32 %v6259, 0.2548296
      %v6268 = vadd.f32 %v6260, 0.2548296
      %v6269 = vmul.f32 %v6261, %v6190
      %v6270 = vmul.f32 %v6262, %v6192
      %v6271 = vmul.f32 %v6263, %v6194
      %v6272 = vmul.f32 %v6264, %v6196
      %v6273 = vmul.f32 %v6265, %v6198
      %v6274 = vmul.f32 %v6266, %v6200
      %v6275 = vmul.f32 %v6267, %v6202
      %v6276 = vmul.f32 %v6268, %v6204
      %v6277 = vsub.f32 0.0, %v6165
      %v6278 = vsub.f32 0.0, %v6166
      %v6279 = vsub.f32 0.0, %v6167
      %v6280 = vsub.f32 0.0, %v6168
      %v6281 = vsub.f32 0.0, %v6169
      %v6282 = vsub.f32 0.0, %v6170
      %v6283 = vsub.f32 0.0, %v6171
      %v6284 = vsub.f32 0.0, %v6172
      %v6285 = vmul.f32 %v6277, %v6165
      %v6286 = vmul.f32 %v6278, %v6166
      %v6287 = vmul.f32 %v6279, %v6167
      %v6288 = vmul.f32 %v6280, %v6168
      %v6289 = vmul.f32 %v6281, %v6169
      %v6290 = vmul.f32 %v6282, %v6170
      %v6291 = vmul.f32 %v6283, %v6171
      %v6292 = vmul.f32 %v6284, %v6172
      %v6293 = vmul.f32 %v6285, 1.442695
      %v6294 = vpow.pop %v6293
      %v6295 = vmul.f32 %v6286, 1.442695
      %v6296 = vpow.pop %v6295
      %v6297 = vmul.f32 %v6287, 1.442695
      %v6298 = vpow.pop %v6297
      %v6299 = vmul.f32 %v6288, 1.442695
      %v6300 = vpow.pop %v6299
      %v6301 = vmul.f32 %v6289, 1.442695
      %v6302 = vpow.pop %v6301
      %v6303 = vmul.f32 %v6290, 1.442695
      %v6304 = vpow.pop %v6303
      %v6305 = vmul.f32 %v6291, 1.442695
      %v6306 = vpow.pop %v6305
      %v6307 = vmul.f32 %v6292, 1.442695
      %v6308 = vpow.pop %v6307
      %v6309 = vmul.f32 %v6269, %v6294
      %v6310 = vmul.f32 %v6270, %v6296
      %v6311 = vmul.f32 %v6271, %v6298
      %v6312 = vmul.f32 %v6272, %v6300
      %v6313 = vmul.f32 %v6273, %v6302
      %v6314 = vmul.f32 %v6274, %v6304
      %v6315 = vmul.f32 %v6275, %v6306
      %v6316 = vmul.f32 %v6276, %v6308
      %v6317 = vsub.f32 1.0, %v6309
      %v6318 = vsub.f32 1.0, %v6310
      %v6319 = vsub.f32 1.0, %v6311
      %v6320 = vsub.f32 1.0, %v6312
      %v6321 = vsub.f32 1.0, %v6313
      %v6322 = vsub.f32 1.0, %v6314
      %v6323 = vsub.f32 1.0, %v6315
      %v6324 = vsub.f32 1.0, %v6316
      %vm6325 = vcmp.lt.f32.partialorder %v6157, 0.0
      %vm6326 = vcmp.lt.f32.partialorder %v6158, 0.0
      %vm6327 = vcmp.lt.f32.partialorder %v6159, 0.0
      %vm6328 = vcmp.lt.f32.partialorder %v6160, 0.0
      %vm6329 = vcmp.lt.f32.partialorder %v6161, 0.0
      %vm6330 = vcmp.lt.f32.partialorder %v6162, 0.0
      %vm6331 = vcmp.lt.f32.partialorder %v6163, 0.0
      %vm6332 = vcmp.lt.f32.partialorder %v6164, 0.0
      %v6333 = vsub.f32 0.0, %v6317
      %v6334 = vsub.f32 0.0, %v6318
      %v6335 = vsub.f32 0.0, %v6319
      %v6336 = vsub.f32 0.0, %v6320
      %v6337 = vsub.f32 0.0, %v6321
      %v6338 = vsub.f32 0.0, %v6322
      %v6339 = vsub.f32 0.0, %v6323
      %v6340 = vsub.f32 0.0, %v6324
      %v6341 = vsel %vm6325, %v6333, %v6317
      %v6342 = vsel %vm6326, %v6334, %v6318
      %v6343 = vsel %vm6327, %v6335, %v6319
      %v6344 = vsel %vm6328, %v6336, %v6320
      %v6345 = vsel %vm6329, %v6337, %v6321
      %v6346 = vsel %vm6330, %v6338, %v6322
      %v6347 = vsel %vm6331, %v6339, %v6323
      %v6348 = vsel %vm6332, %v6340, %v6324
      %v6349 = vadd.f32 %v6341, 1.0
      %v6350 = vadd.f32 %v6342, 1.0
      %v6351 = vadd.f32 %v6343, 1.0
      %v6352 = vadd.f32 %v6344, 1.0
      %v6353 = vadd.f32 %v6345, 1.0
      %v6354 = vadd.f32 %v6346, 1.0
      %v6355 = vadd.f32 %v6347, 1.0
      %v6356 = vadd.f32 %v6348, 1.0
      %v6357 = vmul.f32 %v6149, %v6349
      %v6358 = vmul.f32 %v6150, %v6350
      %v6359 = vmul.f32 %v6151, %v6351
      %v6360 = vmul.f32 %v6152, %v6352
      %v6361 = vmul.f32 %v6153, %v6353
      %v6362 = vmul.f32 %v6154, %v6354
      %v6363 = vmul.f32 %v6155, %v6355
      %v6364 = vmul.f32 %v6156, %v6356
      %v6365 = vld [vmem:[%s14] sm:$0xff]
      %v6366 = vld [vmem:[%s14 + $0x8] sm:$0xff]
      %v6367 = vld [vmem:[%s14 + $0x10] sm:$0xff]
      %v6368 = vld [vmem:[%s14 + $0x18] sm:$0xff]
      %v6369 = vld [vmem:[%s14 + $0x20] sm:$0xff]
      %v6370 = vld [vmem:[%s14 + $0x28] sm:$0xff]
      %v6371 = vld [vmem:[%s14 + $0x30] sm:$0xff]
      %v6372 = vld [vmem:[%s14 + $0x38] sm:$0xff]
      %v6373 = vld [vmem:[%s14 + $0x40] sm:$0xff]
      %v6374 = vld [vmem:[%s14 + $0x48] sm:$0xff]
      %v6375 = vld [vmem:[%s14 + $0x50] sm:$0xff]
      %v6376 = vld [vmem:[%s14 + $0x58] sm:$0xff]
      %v6377 = vld [vmem:[%s14 + $0x60] sm:$0xff]
      %v6378 = vld [vmem:[%s14 + $0x68] sm:$0xff]
      %v6379 = vld [vmem:[%s14 + $0x70] sm:$0xff]
      %v6380 = vld [vmem:[%s14 + $0x78] sm:$0xff]
      %v6381 = vld [vmem:[%s15] sm:$0x1]
      %v6383 = vlaneseq
      %v6384 = vshrl.u32 %v6383, 7
      %v6385 = vsub.s32 0, %v6384
      %v6386 = vrot.slane %v6381, %v6385
      %6388 = vmatprep.subr.mxu0 0.0
      %6389 = vmatpush1.msra.mxu0 %v6380
      %6390 = vmatprep.subr.mxu0 0.0
      %6391 = vmatpush1.msra.mxu0 %v6379
      %6392 = vmatprep.subr.mxu0 0.0
      %6393 = vmatpush1.msra.mxu0 %v6378
      %6394 = vmatprep.subr.mxu0 0.0
      %6395 = vmatpush1.msra.mxu0 %v6377
      %6396 = vmatprep.subr.mxu0 0.0
      %6397 = vmatpush1.msra.mxu0 %v6376
      %6398 = vmatprep.subr.mxu0 0.0
      %6399 = vmatpush1.msra.mxu0 %v6375
      %6400 = vmatprep.subr.mxu0 0.0
      %6401 = vmatpush1.msra.mxu0 %v6374
      %6402 = vmatprep.subr.mxu0 0.0
      %6403 = vmatpush1.msra.mxu0 %v6373
      %6404 = vmatprep.subr.mxu0 0.0
      %6405 = vmatpush1.msra.mxu0 %v6372
      %6406 = vmatprep.subr.mxu0 0.0
      %6407 = vmatpush1.msra.mxu0 %v6371
      %6408 = vmatprep.subr.mxu0 0.0
      %6409 = vmatpush1.msra.mxu0 %v6370
      %6410 = vmatprep.subr.mxu0 0.0
      %6411 = vmatpush1.msra.mxu0 %v6369
      %6412 = vmatprep.subr.mxu0 0.0
      %6413 = vmatpush1.msra.mxu0 %v6368
      %6414 = vmatprep.subr.mxu0 0.0
      %6415 = vmatpush1.msra.mxu0 %v6367
      %6416 = vmatprep.subr.mxu0 0.0
      %6417 = vmatpush1.msra.mxu0 %v6366
      %6418 = vmatprep.subr.mxu0 0.0
      %6419 = vmatpush1.msra.mxu0 %v6365
      %6420 = vmatprep.subr.mxu0 0.0
      %6421 = vmatpush2.msra.mxu0 0.0
      %6422 = vmatprep.subr.mxu0 0.0
      %6423 = vmatpush2.msra.mxu0 0.0
      %6424 = vmatprep.subr.mxu0 0.0
      %6425 = vmatpush2.msra.mxu0 0.0
      %6426 = vmatprep.subr.mxu0 0.0
      %6427 = vmatpush2.msra.mxu0 0.0
      %6428 = vmatprep.subr.mxu0 0.0
      %6429 = vmatpush2.msra.mxu0 0.0
      %6430 = vmatprep.subr.mxu0 0.0
      %6431 = vmatpush2.msra.mxu0 0.0
      %6432 = vmatprep.subr.mxu0 0.0
      %6433 = vmatpush2.msra.mxu0 0.0
      %6434 = vmatprep.subr.mxu0 0.0
      %6435 = vmatpush2.msra.mxu0 0.0
      %6436 = vmatprep.subr.mxu0 0.0
      %6437 = vmatpush2.msra.mxu0 0.0
      %6438 = vmatprep.subr.mxu0 0.0
      %6439 = vmatpush2.msra.mxu0 0.0
      %6440 = vmatprep.subr.mxu0 0.0
      %6441 = vmatpush2.msra.mxu0 0.0
      %6442 = vmatprep.subr.mxu0 0.0
      %6443 = vmatpush2.msra.mxu0 0.0
      %6444 = vmatprep.subr.mxu0 0.0
      %6445 = vmatpush2.msra.mxu0 0.0
      %6446 = vmatprep.subr.mxu0 0.0
      %6447 = vmatpush2.msra.mxu0 0.0
      %6448 = vmatprep.subr.mxu0 0.0
      %6449 = vmatpush2.msra.mxu0 0.0
      %6450 = vmatprep.subr.mxu0 0.0
      %6451 = vmatpush2.msra.mxu0 0.0
      %6452 = vmatprep.mubr.f32.mxu0 0.0
      %6453 = vmatmul.mubr.f32.gmra.mxu0 %v6357
      %v6454 = vpop.f32.mrf.mxu0
      %v6455 = vadd.f32 %v6386, %v6454
      %v6456 = vpop.f32.mrf.mxu0
      %6457 = vmatprep.mubr.f32.mxu0 0.0
      %6458 = vmatmul.mubr.f32.gmra.mxu0 %v6358
      %v6459 = vpop.f32.mrf.mxu0
      %v6460 = vadd.f32 %v6386, %v6459
      %v6461 = vpop.f32.mrf.mxu0
      %6462 = vmatprep.mubr.f32.mxu0 0.0
      %6463 = vmatmul.mubr.f32.gmra.mxu0 %v6359
      %v6464 = vpop.f32.mrf.mxu0
      %v6465 = vadd.f32 %v6386, %v6464
      %v6466 = vpop.f32.mrf.mxu0
      %6467 = vmatprep.mubr.f32.mxu0 0.0
      %6468 = vmatmul.mubr.f32.gmra.mxu0 %v6360
      %v6469 = vpop.f32.mrf.mxu0
      %v6470 = vadd.f32 %v6386, %v6469
      %v6471 = vpop.f32.mrf.mxu0
      %6472 = vmatprep.mubr.f32.mxu0 0.0
      %6473 = vmatmul.mubr.f32.gmra.mxu0 %v6361
      %v6474 = vpop.f32.mrf.mxu0
      %v6475 = vadd.f32 %v6386, %v6474
      %v6476 = vpop.f32.mrf.mxu0
      %6477 = vmatprep.mubr.f32.mxu0 0.0
      %6478 = vmatmul.mubr.f32.gmra.mxu0 %v6362
      %v6479 = vpop.f32.mrf.mxu0
      %v6480 = vadd.f32 %v6386, %v6479
      %v6481 = vpop.f32.mrf.mxu0
      %6482 = vmatprep.mubr.f32.mxu0 0.0
      %6483 = vmatmul.mubr.f32.gmra.mxu0 %v6363
      %v6484 = vpop.f32.mrf.mxu0
      %v6485 = vadd.f32 %v6386, %v6484
      %v6486 = vpop.f32.mrf.mxu0
      %6487 = vmatprep.mubr.f32.mxu0 0.0
      %6488 = vmatmul.mubr.f32.gmra.mxu0 %v6364
      %v6489 = vpop.f32.mrf.mxu0
      %v6490 = vadd.f32 %v6386, %v6489
      %v6491 = vpop.f32.mrf.mxu0
      %6492 = vdwg.mxu0
      %v6493 = vadd.f32 %v6001, %v6455
      %v6494 = vadd.f32 %v6002, %v6460
      %v6495 = vadd.f32 %v6003, %v6465
      %v6496 = vadd.f32 %v6004, %v6470
      %v6497 = vadd.f32 %v6005, %v6475
      %v6498 = vadd.f32 %v6006, %v6480
      %v6499 = vadd.f32 %v6007, %v6485
      %v6500 = vadd.f32 %v6008, %v6490
      %6501 = vst.msk [vmem:[%s521] sm:$0xff] %vm2228, %v6493
      %6502 = vst.msk [vmem:[%s521 + $0x8] sm:$0xff] %vm2228, %v6494
      %6503 = vst.msk [vmem:[%s521 + $0x10] sm:$0xff] %vm2228, %v6495
      %6504 = vst.msk [vmem:[%s521 + $0x18] sm:$0xff] %vm2228, %v6496
      %6505 = vst.msk [vmem:[%s521 + $0x20] sm:$0xff] %vm2228, %v6497
      %6506 = vst.msk [vmem:[%s521 + $0x28] sm:$0xff] %vm2228, %v6498
      %6507 = vst.msk [vmem:[%s521 + $0x30] sm:$0xff] %vm2228, %v6499
      %6508 = vst.msk [vmem:[%s521 + $0x38] sm:$0xff] %vm2228, %v6500
      %p6509 = scmp.lt.s32.totalorder %s27, 1
      %s6510 = scalar_select %p6509, %s27, 1
      %s6511 = smul.addr %s6510, 8
      %s6512 = smul.addr %s6511, 8
      %s6513 = scalar_lea.vmem %s16, %s6512
      // Predicated region
      $region85: #{tpu_custom_call.1} parent=83 // pred_check
        %p6514 = pneg %p386
      $region86: #{tpu_custom_call.1} parent=83 // pred_check_branch
        %6516 = sbr.rel (%p6514) target = $region88
      $region87: #{tpu_custom_call.1} parent=83 // pred_region
        _
      $region88: #{tpu_custom_call.1} parent=83 // pred_fallthru
        _
    $region84: #{tpu_custom_call.1} parent=5 // pred_fallthru
      _
    %p6517 = scmp.le.s32.totalorder 2, %s22
    // Predicated region
    $region89: #{tpu_custom_call.1} parent=5 // pred_check
      %p6518 = pneg %p6517
    $region90: #{tpu_custom_call.1} parent=5 // pred_check_branch
      %6520 = sbr.rel (%p6518) target = $region92
    $region91: #{tpu_custom_call.1} parent=5 // pred_region
      %s6521 = ssub.s32 %s22, 2
      // Predicated region
      $region93: #{tpu_custom_call.1} parent=91 // pred_check
        %p6522 = pneg %p392
      $region94: #{tpu_custom_call.1} parent=91 // pred_check_branch
        %6524 = sbr.rel (%p6522) target = $region96
      $region95: #{tpu_custom_call.1} parent=91 // pred_region
        %p6525 = scmp.lt.s32.totalorder %s28, 1
        %s6526 = scalar_select %p6525, %s28, 1
        %s6527 = smul.addr %s6526, 8
        %s6528 = smul.addr %s6527, 8
        %s6529 = scalar_lea.vmem %s16, %s6528
      $region96: #{tpu_custom_call.1} parent=91 // pred_fallthru
        _
    $region92: #{tpu_custom_call.1} parent=5 // pred_fallthru
      _
  $region6: #{tpu_custom_call.1} parent=0 // loop_footer
    %s26 = sadd.s32 1, %s22
  $region7: #{tpu_custom_call.1} parent=0 // loop_footer_branch
    %21 = sbr.rel target = $region3
  $region8: #{tpu_custom_call.1} parent=0 // loop_exit
    _

</llo_original>
